<compile_context>
chip_gen: v7x
topology: tpu7x:2x2x1
jax: 0.10.0
libtpu: 0.0.40
codegen_flags: <defaults>
</compile_context>

<pallas_src>
import functools

import jax
import jax.numpy as jnp
from jax.experimental import pallas as pl
from jax.experimental.pallas import tpu as pltpu

FEATURES = 784
TARGETS = 10
HIDDEN = [1000, 1000, 500, 200]

DIMS = [FEATURES] + HIDDEN + [TARGETS]               # [784, 1000, 1000, 500, 200, 10]


def _round_up(x, m):
    return (x + m - 1) // m * m


PDIMS = [_round_up(d, 128) for d in DIMS]            # [896, 1024, 1024, 512, 256, 128]


def mlp_kernel(x_ref, w1_ref, w2_ref, w3_ref, w4_ref, w5_ref, o_ref):
    """Fused 5-layer MLP on one batch tile: bf16 MXU matmuls, f32 accumulation,
    ReLU after every layer. Weights are (in, out), lane-aligned, VMEM-resident."""

    def linear_relu_bf16(h, w_ref):
        y = jnp.dot(h, w_ref[...], preferred_element_type=jnp.float32)
        return jnp.maximum(y, 0.0).astype(jnp.bfloat16)

    h = x_ref[...]                                   # bf16 (tile_b, 896)
    h = linear_relu_bf16(h, w1_ref)
    h = linear_relu_bf16(h, w2_ref)
    h = linear_relu_bf16(h, w3_ref)
    h = linear_relu_bf16(h, w4_ref)
    y = jnp.dot(h, w5_ref[...], preferred_element_type=jnp.float32)
    o_ref[...] = jnp.maximum(y, 0.0)                 # f32 (tile_b, 128)


def prepare_weights(weights):
    """One-time preparation (do NOT call per forward pass):
    PyTorch (out, in) f32 -> transpose to (in, out), zero-pad both dims to
    multiples of 128, cast to bf16."""
    prepped = []
    for i, w in enumerate(weights):
        w_t = jnp.asarray(w, jnp.float32).T          # (in, out)
        pin, pout = PDIMS[i], PDIMS[i + 1]
        w_p = jnp.zeros((pin, pout), jnp.float32)
        w_p = w_p.at[: w_t.shape[0], : w_t.shape[1]].set(w_t)
        prepped.append(w_p.astype(jnp.bfloat16))
    return tuple(prepped)


@jax.jit
def mlp_forward(x, w1, w2, w3, w4, w5):
    """x: (batch, 784) f32. w1..w5: prepared (padded, transposed, bf16) weights.
    Returns (batch, 10) f32."""
    batch = x.shape[0]

    # Batch tiling: small batches -> single sublane-aligned tile; large batches
    # -> 128-row tiles pipelined / megacore-sharded over the grid.
    if batch <= 128:
        tile_b = _round_up(batch, 8)
    else:
        tile_b = 128
    pb = _round_up(batch, tile_b)

    # Pad batch + feature dim, cast activations to bf16 (f32 accumulation in-kernel).
    xp = jnp.zeros((pb, PDIMS[0]), jnp.bfloat16)
    xp = xp.at[:batch, :FEATURES].set(x.astype(jnp.bfloat16))

    weights = (w1, w2, w3, w4, w5)
    w_specs = [
        pl.BlockSpec((PDIMS[i], PDIMS[i + 1]), lambda b: (0, 0))  # VMEM-resident
        for i in range(5)
    ]

    out_padded = pl.pallas_call(
        mlp_kernel,
        out_shape=jax.ShapeDtypeStruct((pb, PDIMS[-1]), jnp.float32),
        grid=(pb // tile_b,),
        in_specs=[pl.BlockSpec((tile_b, PDIMS[0]), lambda b: (b, 0))] + w_specs,
        out_specs=pl.BlockSpec((tile_b, PDIMS[-1]), lambda b: (b, 0)),
        compiler_params=pltpu.CompilerParams(
            dimension_semantics=("parallel",),
            vmem_limit_bytes=32 * 1024 * 1024,
        ),
    )(xp, *weights)

    return out_padded[:batch, :TARGETS]


def init_weights(key):
    """PyTorch nn.Linear default init: U(-1/sqrt(fan_in), 1/sqrt(fan_in)),
    weight shape (out_features, in_features)."""
    weights = []
    for i in range(len(DIMS) - 1):
        key, sub = jax.random.split(key)
        fan_in, fan_out = DIMS[i], DIMS[i + 1]
        bound = 1.0 / (fan_in ** 0.5)
        w = jax.random.uniform(
            sub, (fan_out, fan_in), dtype=jnp.float32, minval=-bound, maxval=bound
        )
        weights.append(w)
    return weights


def reference_forward(x, weights):
    """Mirrors the kernel numerics (bf16 multiplies, f32 accumulation, bf16
    intermediate activations) using plain jnp ops on the unpadded weights."""
    h = x.astype(jnp.bfloat16)
    for i, w in enumerate(weights):
        y = jnp.dot(h, w.T.astype(jnp.bfloat16), preferred_element_type=jnp.float32)
        y = jnp.maximum(y, 0.0)
        h = y.astype(jnp.bfloat16) if i < len(weights) - 1 else y
    return h


if __name__ == "__main__":
    key = jax.random.PRNGKey(0)
    key, xk = jax.random.split(key)

    batch = 8
    x = jax.random.normal(xk, (batch, FEATURES), dtype=jnp.float32)
    weights = init_weights(key)

    prepped = prepare_weights(weights)          # one-time, outside the hot path
    out = mlp_forward(x, *prepped)
    out = jax.block_until_ready(out)

    ref = reference_forward(x, weights)
    assert out.shape == (batch, TARGETS), out.shape
    assert jnp.allclose(out, ref, atol=1e-2, rtol=1e-2), "mismatch vs reference"

    print("KERNEL_OK")
</pallas_src>

<mosaic_0001>
module attributes {stable_mosaic.version = 11 : i64} {
  func.func @mlp_kernel(%arg0: i32, %arg1: memref<8x896xbf16, #tpu.memory_space<vmem>>, %arg2: memref<896x1024xbf16, #tpu.memory_space<vmem>>, %arg3: memref<1024x1024xbf16, #tpu.memory_space<vmem>>, %arg4: memref<1024x512xbf16, #tpu.memory_space<vmem>>, %arg5: memref<512x256xbf16, #tpu.memory_space<vmem>>, %arg6: memref<256x128xbf16, #tpu.memory_space<vmem>>, %arg7: memref<8x128xf32, #tpu.memory_space<vmem>>) attributes {dimension_semantics = [#tpu.dimension_semantics<parallel>], iteration_bounds = array<i64: 1>, scalar_prefetch = 0 : i64, scratch_operands = 0 : i64, tpu.core_type = #tpu.core_type<tc>, window_params = [{transform_indices = @transform_0, window_bounds = array<i64: 8, 896>}, {pipeline_mode = #tpu.pipeline_mode<synchronous>, transform_indices = @transform_1, window_bounds = array<i64: 896, 1024>}, {pipeline_mode = #tpu.pipeline_mode<synchronous>, transform_indices = @transform_2, window_bounds = array<i64: 1024, 1024>}, {pipeline_mode = #tpu.pipeline_mode<synchronous>, transform_indices = @transform_3, window_bounds = array<i64: 1024, 512>}, {pipeline_mode = #tpu.pipeline_mode<synchronous>, transform_indices = @transform_4, window_bounds = array<i64: 512, 256>}, {pipeline_mode = #tpu.pipeline_mode<synchronous>, transform_indices = @transform_5, window_bounds = array<i64: 256, 128>}, {transform_indices = @transform_6, window_bounds = array<i64: 8, 128>}]} {
    %c0 = arith.constant 0 : index
    %c0_0 = arith.constant 0 : index
    %0 = vector.load %arg1[%c0, %c0_0] : memref<8x896xbf16, #tpu.memory_space<vmem>>, vector<8x896xbf16>
    %c0_1 = arith.constant 0 : index
    %c0_2 = arith.constant 0 : index
    %1 = vector.load %arg2[%c0_1, %c0_2] : memref<896x1024xbf16, #tpu.memory_space<vmem>>, vector<896x1024xbf16>
    %cst = arith.constant dense<0.000000e+00> : vector<8x1024xf32>
    %2 = tpu.matmul %0, %1, %cst {dimension_numbers = #tpu.dot_dimension_numbers<[1], [0], [0], [1], [0, 0, 1, 1], [], []>} : vector<8x896xbf16>, vector<896x1024xbf16>, vector<8x1024xf32> -> vector<8x1024xf32>
    %cst_3 = arith.constant 0.000000e+00 : f32
    %3 = vector.broadcast %cst_3 : f32 to vector<8x1024xf32>
    %4 = arith.maximumf %2, %3 : vector<8x1024xf32>
    %5 = arith.truncf %4 : vector<8x1024xf32> to vector<8x1024xbf16>
    %c0_4 = arith.constant 0 : index
    %c0_5 = arith.constant 0 : index
    %6 = vector.load %arg3[%c0_4, %c0_5] : memref<1024x1024xbf16, #tpu.memory_space<vmem>>, vector<1024x1024xbf16>
    %cst_6 = arith.constant dense<0.000000e+00> : vector<8x1024xf32>
    %7 = tpu.matmul %5, %6, %cst_6 {dimension_numbers = #tpu.dot_dimension_numbers<[1], [0], [0], [1], [0, 0, 1, 1], [], []>} : vector<8x1024xbf16>, vector<1024x1024xbf16>, vector<8x1024xf32> -> vector<8x1024xf32>
    %cst_7 = arith.constant 0.000000e+00 : f32
    %8 = vector.broadcast %cst_7 : f32 to vector<8x1024xf32>
    %9 = arith.maximumf %7, %8 : vector<8x1024xf32>
    %10 = arith.truncf %9 : vector<8x1024xf32> to vector<8x1024xbf16>
    %c0_8 = arith.constant 0 : index
    %c0_9 = arith.constant 0 : index
    %11 = vector.load %arg4[%c0_8, %c0_9] : memref<1024x512xbf16, #tpu.memory_space<vmem>>, vector<1024x512xbf16>
    %cst_10 = arith.constant dense<0.000000e+00> : vector<8x512xf32>
    %12 = tpu.matmul %10, %11, %cst_10 {dimension_numbers = #tpu.dot_dimension_numbers<[1], [0], [0], [1], [0, 0, 1, 1], [], []>} : vector<8x1024xbf16>, vector<1024x512xbf16>, vector<8x512xf32> -> vector<8x512xf32>
    %cst_11 = arith.constant 0.000000e+00 : f32
    %13 = vector.broadcast %cst_11 : f32 to vector<8x512xf32>
    %14 = arith.maximumf %12, %13 : vector<8x512xf32>
    %15 = arith.truncf %14 : vector<8x512xf32> to vector<8x512xbf16>
    %c0_12 = arith.constant 0 : index
    %c0_13 = arith.constant 0 : index
    %16 = vector.load %arg5[%c0_12, %c0_13] : memref<512x256xbf16, #tpu.memory_space<vmem>>, vector<512x256xbf16>
    %cst_14 = arith.constant dense<0.000000e+00> : vector<8x256xf32>
    %17 = tpu.matmul %15, %16, %cst_14 {dimension_numbers = #tpu.dot_dimension_numbers<[1], [0], [0], [1], [0, 0, 1, 1], [], []>} : vector<8x512xbf16>, vector<512x256xbf16>, vector<8x256xf32> -> vector<8x256xf32>
    %cst_15 = arith.constant 0.000000e+00 : f32
    %18 = vector.broadcast %cst_15 : f32 to vector<8x256xf32>
    %19 = arith.maximumf %17, %18 : vector<8x256xf32>
    %20 = arith.truncf %19 : vector<8x256xf32> to vector<8x256xbf16>
    %c0_16 = arith.constant 0 : index
    %c0_17 = arith.constant 0 : index
    %21 = vector.load %arg6[%c0_16, %c0_17] : memref<256x128xbf16, #tpu.memory_space<vmem>>, vector<256x128xbf16>
    %cst_18 = arith.constant dense<0.000000e+00> : vector<8x128xf32>
    %22 = tpu.matmul %20, %21, %cst_18 {dimension_numbers = #tpu.dot_dimension_numbers<[1], [0], [0], [1], [0, 0, 1, 1], [], []>} : vector<8x256xbf16>, vector<256x128xbf16>, vector<8x128xf32> -> vector<8x128xf32>
    %cst_19 = arith.constant 0.000000e+00 : f32
    %23 = vector.broadcast %cst_19 : f32 to vector<8x128xf32>
    %24 = arith.maximumf %22, %23 : vector<8x128xf32>
    %c0_20 = arith.constant 0 : index
    %c0_21 = arith.constant 0 : index
    %25 = vector.load %arg7[%c0_20, %c0_21] : memref<8x128xf32, #tpu.memory_space<vmem>>, vector<8x128xf32>
    tpu.vector_store %arg7[%c0_20, %c0_21], %24 {strides = array<i32>} : memref<8x128xf32, #tpu.memory_space<vmem>>, vector<8x128xf32>,
    return
  }
  func.func @transform_0(%arg0: i32) -> (i32, i32) {
    %c0_i32 = arith.constant 0 : i32
    %c0_i32_0 = arith.constant 0 : i32
    return %arg0, %c0_i32 : i32, i32
  }
  func.func @transform_1(%arg0: i32) -> (i32, i32) {
    %c0_i32 = arith.constant 0 : i32
    %c0_i32_0 = arith.constant 0 : i32
    %c0_i32_1 = arith.constant 0 : i32
    return %c0_i32, %c0_i32_0 : i32, i32
  }
  func.func @transform_2(%arg0: i32) -> (i32, i32) {
    %c0_i32 = arith.constant 0 : i32
    %c0_i32_0 = arith.constant 0 : i32
    %c0_i32_1 = arith.constant 0 : i32
    return %c0_i32, %c0_i32_0 : i32, i32
  }
  func.func @transform_3(%arg0: i32) -> (i32, i32) {
    %c0_i32 = arith.constant 0 : i32
    %c0_i32_0 = arith.constant 0 : i32
    %c0_i32_1 = arith.constant 0 : i32
    return %c0_i32, %c0_i32_0 : i32, i32
  }
  func.func @transform_4(%arg0: i32) -> (i32, i32) {
    %c0_i32 = arith.constant 0 : i32
    %c0_i32_0 = arith.constant 0 : i32
    %c0_i32_1 = arith.constant 0 : i32
    return %c0_i32, %c0_i32_0 : i32, i32
  }
  func.func @transform_5(%arg0: i32) -> (i32, i32) {
    %c0_i32 = arith.constant 0 : i32
    %c0_i32_0 = arith.constant 0 : i32
    %c0_i32_1 = arith.constant 0 : i32
    return %c0_i32, %c0_i32_0 : i32, i32
  }
  func.func @transform_6(%arg0: i32) -> (i32, i32) {
    %c0_i32 = arith.constant 0 : i32
    %c0_i32_0 = arith.constant 0 : i32
    return %arg0, %c0_i32 : i32, i32
  }
}

</mosaic_0001>

<llo_original>
// kernel: mlp_forward.1
$region0: #{mlp_forward.1}
  #allocation0 [shape = 'u32[]', space=smem, size = 0x4, offset = 0x4, fixed_abs, tag = 'smem constant byte address 0x4 - core index']
  #allocation1 [shape = 'u32[144,128]{1,0:T(1,128)}', space=vmem, size = 0x12000, scoped, tag = 'internal scratch']
  %s0 = inlined_call_operand.vmem [shape: bf16[8,896], index: 0, kind: input, shape index: {}]
  %s1 = inlined_call_operand.hbm [shape: bf16[896,1024], index: 1, kind: input, shape index: {}]
  %s2 = inlined_call_operand.hbm [shape: bf16[1024,1024], index: 2, kind: input, shape index: {}]
  %s3 = inlined_call_operand.hbm [shape: bf16[1024,512], index: 3, kind: input, shape index: {}]
  %s4 = inlined_call_operand.hbm [shape: bf16[512,256], index: 4, kind: input, shape index: {}]
  %s5 = inlined_call_operand.hbm [shape: bf16[256,128], index: 5, kind: input, shape index: {}]
  %s6 = inlined_call_operand.hbm [shape: f32[8,128], index: 6, kind: output, shape index: {}]
  %s7 = sld [smem:[#allocation0]]
  $region54: #{mlp_forward.1} parent=0
    _
  %s9 = ssub.s32 1, %s7
  %s10 = scalar_select 0, %s9, %s7
  $region1: #{mlp_forward.1} parent=0
    #allocation2 [shape = 'u8[1835008]{0}', space=vmem, size = 0x1c0000, scoped, tag = 'input window, operand 1, single buffered']
    #allocation3 [shape = 's32[1]{0}', space=sflag, size = 0x4, scoped, tag = 'scoped memory for mlp_forward.1']
    #allocation4 [shape = 's32[1]{0}', space=sflag, size = 0x4, scoped, tag = 'scoped memory for mlp_forward.1']
    #allocation5 [shape = 'u8[2097152]{0}', space=vmem, size = 0x200000, scoped, tag = 'input window, operand 2, single buffered']
    #allocation6 [shape = 's32[1]{0}', space=sflag, size = 0x4, scoped, tag = 'scoped memory for mlp_forward.1']
    #allocation7 [shape = 'u8[1048576]{0}', space=vmem, size = 0x100000, scoped, tag = 'input window, operand 3, single buffered']
    #allocation8 [shape = 'u8[262144]{0}', space=vmem, size = 0x40000, scoped, tag = 'input window, operand 4, single buffered']
    #allocation9 [shape = 's32[1]{0}', space=sflag, size = 0x4, scoped, tag = 'scoped memory for mlp_forward.1']
    #allocation10 [shape = 'u8[65536]{0}', space=vmem, size = 0x10000, scoped, tag = 'input window, operand 5, single buffered']
    #allocation11 [shape = 'u8[4096]{0}', space=vmem, size = 0x1000, scoped, tag = 'output window, operand 0, single buffered']
    %11 = vsyncpa [#allocation3], 0
    %12 = vsyncpa [#allocation6], 0
    %13 = vsyncpa [#allocation9], 0
    %14 = vsyncpa [#allocation4], 0
    // Predicated region
    $region2: #{mlp_forward.1} parent=1 // pred_check
      _
    $region3: #{mlp_forward.1} parent=1 // pred_check_branch
      %16 = sbr.rel (0) target = $region5
    $region4: #{mlp_forward.1} parent=1 // pred_region
      _
    $region5: #{mlp_forward.1} parent=1 // pred_fallthru
      _
    // Predicated region
    $region6: #{mlp_forward.1} parent=1 // pred_check
      _
    $region7: #{mlp_forward.1} parent=1 // pred_check_branch
      %18 = sbr.rel (0) target = $region9
    $region8: #{mlp_forward.1} parent=1 // pred_region
      %s20 = ssub.s32 57344, 57344
      %21 = vsyncadd [#allocation3], %s20
      %s22 = sshll.u32 [#allocation2], 4
      %s23 = int_to_ptr.vmem [resolvable:$true] %s22
      %28 = dma.hbm_to_vmem [thread:$0]  %s1, 57344, %s23, [#allocation3], 512, 512, 32
    $region9: #{mlp_forward.1} parent=1 // pred_fallthru
      _
    // Predicated region
    $region10: #{mlp_forward.1} parent=1 // pred_check
      _
    $region11: #{mlp_forward.1} parent=1 // pred_check_branch
      %30 = sbr.rel (0) target = $region13
    $region12: #{mlp_forward.1} parent=1 // pred_region
      %s32 = ssub.s32 65536, 65536
      %33 = vsyncadd [#allocation6], %s32
      %s34 = sshll.u32 [#allocation5], 4
      %s35 = int_to_ptr.vmem [resolvable:$true] %s34
      %40 = dma.hbm_to_vmem [thread:$0]  %s2, 65536, %s35, [#allocation6], 512, 512, 32
    $region13: #{mlp_forward.1} parent=1 // pred_fallthru
      _
    // Predicated region
    $region14: #{mlp_forward.1} parent=1 // pred_check
      _
    $region15: #{mlp_forward.1} parent=1 // pred_check_branch
      %42 = sbr.rel (0) target = $region17
    $region16: #{mlp_forward.1} parent=1 // pred_region
      %s44 = ssub.s32 32768, 32768
      %45 = vsyncadd [#allocation6], %s44
      %s46 = sshll.u32 [#allocation7], 4
      %s47 = int_to_ptr.vmem [resolvable:$true] %s46
      %52 = dma.hbm_to_vmem [thread:$0]  %s3, 32768, %s47, [#allocation6], 256, 256, 16
    $region17: #{mlp_forward.1} parent=1 // pred_fallthru
      _
    // Predicated region
    $region18: #{mlp_forward.1} parent=1 // pred_check
      _
    $region19: #{mlp_forward.1} parent=1 // pred_check_branch
      %54 = sbr.rel (0) target = $region21
    $region20: #{mlp_forward.1} parent=1 // pred_region
      %s56 = ssub.s32 8192, 8192
      %57 = vsyncadd [#allocation9], %s56
      %s58 = sshll.u32 [#allocation8], 4
      %s59 = int_to_ptr.vmem [resolvable:$true] %s58
      %64 = dma.hbm_to_vmem [thread:$0]  %s4, 8192, %s59, [#allocation9], 128, 128, 8
    $region21: #{mlp_forward.1} parent=1 // pred_fallthru
      _
    // Predicated region
    $region22: #{mlp_forward.1} parent=1 // pred_check
      _
    $region23: #{mlp_forward.1} parent=1 // pred_check_branch
      %66 = sbr.rel (0) target = $region25
    $region24: #{mlp_forward.1} parent=1 // pred_region
      %s68 = ssub.s32 2048, 2048
      %69 = vsyncadd [#allocation9], %s68
      %s70 = sshll.u32 [#allocation10], 4
      %s71 = int_to_ptr.vmem [resolvable:$true] %s70
      %76 = dma.hbm_to_vmem [thread:$0]  %s5, 2048, %s71, [#allocation9], 64, 64, 4
    $region25: #{mlp_forward.1} parent=1 // pred_fallthru
      _
    // Predicated region
    $region26: #{mlp_forward.1} parent=1 // pred_check
      _
    $region27: #{mlp_forward.1} parent=1 // pred_check_branch
      %78 = sbr.rel (0) target = $region29
    $region28: #{mlp_forward.1} parent=1 // pred_region
      %79 = dma.done [#allocation3], 57344
    $region29: #{mlp_forward.1} parent=1 // pred_fallthru
      _
    // Predicated region
    $region30: #{mlp_forward.1} parent=1 // pred_check
      _
    $region31: #{mlp_forward.1} parent=1 // pred_check_branch
      %81 = sbr.rel (0) target = $region33
    $region32: #{mlp_forward.1} parent=1 // pred_region
      %82 = dma.done [#allocation6], 65536
    $region33: #{mlp_forward.1} parent=1 // pred_fallthru
      _
    // Predicated region
    $region34: #{mlp_forward.1} parent=1 // pred_check
      _
    $region35: #{mlp_forward.1} parent=1 // pred_check_branch
      %84 = sbr.rel (0) target = $region37
    $region36: #{mlp_forward.1} parent=1 // pred_region
      %85 = dma.done [#allocation6], 32768
    $region37: #{mlp_forward.1} parent=1 // pred_fallthru
      _
    // Predicated region
    $region38: #{mlp_forward.1} parent=1 // pred_check
      _
    $region39: #{mlp_forward.1} parent=1 // pred_check_branch
      %87 = sbr.rel (0) target = $region41
    $region40: #{mlp_forward.1} parent=1 // pred_region
      %88 = dma.done [#allocation9], 8192
    $region41: #{mlp_forward.1} parent=1 // pred_fallthru
      _
    // Predicated region
    $region42: #{mlp_forward.1} parent=1 // pred_check
      _
    $region43: #{mlp_forward.1} parent=1 // pred_check_branch
      %90 = sbr.rel (0) target = $region45
    $region44: #{mlp_forward.1} parent=1 // pred_region
      %91 = dma.done [#allocation9], 2048
    $region45: #{mlp_forward.1} parent=1 // pred_fallthru
      _
    %v93 = vld [vmem:[%s0] sm:$0xff]
    %v94 = vld [vmem:[%s0 + $0x8] sm:$0xff]
    %v95 = vld [vmem:[%s0 + $0x10] sm:$0xff]
    %v96 = vld [vmem:[%s0 + $0x18] sm:$0xf]
    %v97 = vld [vmem:[#allocation2] sm:$0xff]
    %v98 = vld [vmem:[#allocation2 + $0x8] sm:$0xff]
    %v99 = vld [vmem:[#allocation2 + $0x10] sm:$0xff]
    %v100 = vld [vmem:[#allocation2 + $0x18] sm:$0xff]
    %v101 = vld [vmem:[#allocation2 + $0x20] sm:$0xff]
    %v102 = vld [vmem:[#allocation2 + $0x28] sm:$0xff]
    %v103 = vld [vmem:[#allocation2 + $0x30] sm:$0xff]
    %v104 = vld [vmem:[#allocation2 + $0x38] sm:$0xff]
    %v105 = vld [vmem:[#allocation2 + $0x40] sm:$0xff]
    %v106 = vld [vmem:[#allocation2 + $0x48] sm:$0xff]
    %v107 = vld [vmem:[#allocation2 + $0x50] sm:$0xff]
    %v108 = vld [vmem:[#allocation2 + $0x58] sm:$0xff]
    %v109 = vld [vmem:[#allocation2 + $0x60] sm:$0xff]
    %v110 = vld [vmem:[#allocation2 + $0x68] sm:$0xff]
    %v111 = vld [vmem:[#allocation2 + $0x70] sm:$0xff]
    %v112 = vld [vmem:[#allocation2 + $0x78] sm:$0xff]
    %v113 = vld [vmem:[#allocation2 + $0x80] sm:$0xff]
    %v114 = vld [vmem:[#allocation2 + $0x88] sm:$0xff]
    %v115 = vld [vmem:[#allocation2 + $0x90] sm:$0xff]
    %v116 = vld [vmem:[#allocation2 + $0x98] sm:$0xff]
    %v117 = vld [vmem:[#allocation2 + $0xa0] sm:$0xff]
    %v118 = vld [vmem:[#allocation2 + $0xa8] sm:$0xff]
    %v119 = vld [vmem:[#allocation2 + $0xb0] sm:$0xff]
    %v120 = vld [vmem:[#allocation2 + $0xb8] sm:$0xff]
    %v121 = vld [vmem:[#allocation2 + $0xc0] sm:$0xff]
    %v122 = vld [vmem:[#allocation2 + $0xc8] sm:$0xff]
    %v123 = vld [vmem:[#allocation2 + $0xd0] sm:$0xff]
    %v124 = vld [vmem:[#allocation2 + $0xd8] sm:$0xff]
    %v125 = vld [vmem:[#allocation2 + $0xe0] sm:$0xff]
    %v126 = vld [vmem:[#allocation2 + $0xe8] sm:$0xff]
    %v127 = vld [vmem:[#allocation2 + $0xf0] sm:$0xff]
    %v128 = vld [vmem:[#allocation2 + $0xf8] sm:$0xff]
    %v129 = vld [vmem:[#allocation2 + $0x100] sm:$0xff]
    %v130 = vld [vmem:[#allocation2 + $0x108] sm:$0xff]
    %v131 = vld [vmem:[#allocation2 + $0x110] sm:$0xff]
    %v132 = vld [vmem:[#allocation2 + $0x118] sm:$0xff]
    %v133 = vld [vmem:[#allocation2 + $0x120] sm:$0xff]
    %v134 = vld [vmem:[#allocation2 + $0x128] sm:$0xff]
    %v135 = vld [vmem:[#allocation2 + $0x130] sm:$0xff]
    %v136 = vld [vmem:[#allocation2 + $0x138] sm:$0xff]
    %v137 = vld [vmem:[#allocation2 + $0x140] sm:$0xff]
    %v138 = vld [vmem:[#allocation2 + $0x148] sm:$0xff]
    %v139 = vld [vmem:[#allocation2 + $0x150] sm:$0xff]
    %v140 = vld [vmem:[#allocation2 + $0x158] sm:$0xff]
    %v141 = vld [vmem:[#allocation2 + $0x160] sm:$0xff]
    %v142 = vld [vmem:[#allocation2 + $0x168] sm:$0xff]
    %v143 = vld [vmem:[#allocation2 + $0x170] sm:$0xff]
    %v144 = vld [vmem:[#allocation2 + $0x178] sm:$0xff]
    %v145 = vld [vmem:[#allocation2 + $0x180] sm:$0xff]
    %v146 = vld [vmem:[#allocation2 + $0x188] sm:$0xff]
    %v147 = vld [vmem:[#allocation2 + $0x190] sm:$0xff]
    %v148 = vld [vmem:[#allocation2 + $0x198] sm:$0xff]
    %v149 = vld [vmem:[#allocation2 + $0x1a0] sm:$0xff]
    %v150 = vld [vmem:[#allocation2 + $0x1a8] sm:$0xff]
    %v151 = vld [vmem:[#allocation2 + $0x1b0] sm:$0xff]
    %v152 = vld [vmem:[#allocation2 + $0x1b8] sm:$0xff]
    %v153 = vld [vmem:[#allocation2 + $0x1c0] sm:$0xff]
    %v154 = vld [vmem:[#allocation2 + $0x1c8] sm:$0xff]
    %v155 = vld [vmem:[#allocation2 + $0x1d0] sm:$0xff]
    %v156 = vld [vmem:[#allocation2 + $0x1d8] sm:$0xff]
    %v157 = vld [vmem:[#allocation2 + $0x1e0] sm:$0xff]
    %v158 = vld [vmem:[#allocation2 + $0x1e8] sm:$0xff]
    %v159 = vld [vmem:[#allocation2 + $0x1f0] sm:$0xff]
    %v160 = vld [vmem:[#allocation2 + $0x1f8] sm:$0xff]
    %v161 = vld [vmem:[#allocation2 + $0x200] sm:$0xff]
    %v162 = vld [vmem:[#allocation2 + $0x208] sm:$0xff]
    %v163 = vld [vmem:[#allocation2 + $0x210] sm:$0xff]
    %v164 = vld [vmem:[#allocation2 + $0x218] sm:$0xff]
    %v165 = vld [vmem:[#allocation2 + $0x220] sm:$0xff]
    %v166 = vld [vmem:[#allocation2 + $0x228] sm:$0xff]
    %v167 = vld [vmem:[#allocation2 + $0x230] sm:$0xff]
    %v168 = vld [vmem:[#allocation2 + $0x238] sm:$0xff]
    %v169 = vld [vmem:[#allocation2 + $0x240] sm:$0xff]
    %v170 = vld [vmem:[#allocation2 + $0x248] sm:$0xff]
    %v171 = vld [vmem:[#allocation2 + $0x250] sm:$0xff]
    %v172 = vld [vmem:[#allocation2 + $0x258] sm:$0xff]
    %v173 = vld [vmem:[#allocation2 + $0x260] sm:$0xff]
    %v174 = vld [vmem:[#allocation2 + $0x268] sm:$0xff]
    %v175 = vld [vmem:[#allocation2 + $0x270] sm:$0xff]
    %v176 = vld [vmem:[#allocation2 + $0x278] sm:$0xff]
    %v177 = vld [vmem:[#allocation2 + $0x280] sm:$0xff]
    %v178 = vld [vmem:[#allocation2 + $0x288] sm:$0xff]
    %v179 = vld [vmem:[#allocation2 + $0x290] sm:$0xff]
    %v180 = vld [vmem:[#allocation2 + $0x298] sm:$0xff]
    %v181 = vld [vmem:[#allocation2 + $0x2a0] sm:$0xff]
    %v182 = vld [vmem:[#allocation2 + $0x2a8] sm:$0xff]
    %v183 = vld [vmem:[#allocation2 + $0x2b0] sm:$0xff]
    %v184 = vld [vmem:[#allocation2 + $0x2b8] sm:$0xff]
    %v185 = vld [vmem:[#allocation2 + $0x2c0] sm:$0xff]
    %v186 = vld [vmem:[#allocation2 + $0x2c8] sm:$0xff]
    %v187 = vld [vmem:[#allocation2 + $0x2d0] sm:$0xff]
    %v188 = vld [vmem:[#allocation2 + $0x2d8] sm:$0xff]
    %v189 = vld [vmem:[#allocation2 + $0x2e0] sm:$0xff]
    %v190 = vld [vmem:[#allocation2 + $0x2e8] sm:$0xff]
    %v191 = vld [vmem:[#allocation2 + $0x2f0] sm:$0xff]
    %v192 = vld [vmem:[#allocation2 + $0x2f8] sm:$0xff]
    %v193 = vld [vmem:[#allocation2 + $0x300] sm:$0xff]
    %v194 = vld [vmem:[#allocation2 + $0x308] sm:$0xff]
    %v195 = vld [vmem:[#allocation2 + $0x310] sm:$0xff]
    %v196 = vld [vmem:[#allocation2 + $0x318] sm:$0xff]
    %v197 = vld [vmem:[#allocation2 + $0x320] sm:$0xff]
    %v198 = vld [vmem:[#allocation2 + $0x328] sm:$0xff]
    %v199 = vld [vmem:[#allocation2 + $0x330] sm:$0xff]
    %v200 = vld [vmem:[#allocation2 + $0x338] sm:$0xff]
    %v201 = vld [vmem:[#allocation2 + $0x340] sm:$0xff]
    %v202 = vld [vmem:[#allocation2 + $0x348] sm:$0xff]
    %v203 = vld [vmem:[#allocation2 + $0x350] sm:$0xff]
    %v204 = vld [vmem:[#allocation2 + $0x358] sm:$0xff]
    %v205 = vld [vmem:[#allocation2 + $0x360] sm:$0xff]
    %v206 = vld [vmem:[#allocation2 + $0x368] sm:$0xff]
    %v207 = vld [vmem:[#allocation2 + $0x370] sm:$0xff]
    %v208 = vld [vmem:[#allocation2 + $0x378] sm:$0xff]
    %v209 = vld [vmem:[#allocation2 + $0x380] sm:$0xff]
    %v210 = vld [vmem:[#allocation2 + $0x388] sm:$0xff]
    %v211 = vld [vmem:[#allocation2 + $0x390] sm:$0xff]
    %v212 = vld [vmem:[#allocation2 + $0x398] sm:$0xff]
    %v213 = vld [vmem:[#allocation2 + $0x3a0] sm:$0xff]
    %v214 = vld [vmem:[#allocation2 + $0x3a8] sm:$0xff]
    %v215 = vld [vmem:[#allocation2 + $0x3b0] sm:$0xff]
    %v216 = vld [vmem:[#allocation2 + $0x3b8] sm:$0xff]
    %v217 = vld [vmem:[#allocation2 + $0x3c0] sm:$0xff]
    %v218 = vld [vmem:[#allocation2 + $0x3c8] sm:$0xff]
    %v219 = vld [vmem:[#allocation2 + $0x3d0] sm:$0xff]
    %v220 = vld [vmem:[#allocation2 + $0x3d8] sm:$0xff]
    %v221 = vld [vmem:[#allocation2 + $0x3e0] sm:$0xff]
    %v222 = vld [vmem:[#allocation2 + $0x3e8] sm:$0xff]
    %v223 = vld [vmem:[#allocation2 + $0x3f0] sm:$0xff]
    %v224 = vld [vmem:[#allocation2 + $0x3f8] sm:$0xff]
    %v225 = vld [vmem:[#allocation2 + $0x400] sm:$0xff]
    %v226 = vld [vmem:[#allocation2 + $0x408] sm:$0xff]
    %v227 = vld [vmem:[#allocation2 + $0x410] sm:$0xff]
    %v228 = vld [vmem:[#allocation2 + $0x418] sm:$0xff]
    %v229 = vld [vmem:[#allocation2 + $0x420] sm:$0xff]
    %v230 = vld [vmem:[#allocation2 + $0x428] sm:$0xff]
    %v231 = vld [vmem:[#allocation2 + $0x430] sm:$0xff]
    %v232 = vld [vmem:[#allocation2 + $0x438] sm:$0xff]
    %v233 = vld [vmem:[#allocation2 + $0x440] sm:$0xff]
    %v234 = vld [vmem:[#allocation2 + $0x448] sm:$0xff]
    %v235 = vld [vmem:[#allocation2 + $0x450] sm:$0xff]
    %v236 = vld [vmem:[#allocation2 + $0x458] sm:$0xff]
    %v237 = vld [vmem:[#allocation2 + $0x460] sm:$0xff]
    %v238 = vld [vmem:[#allocation2 + $0x468] sm:$0xff]
    %v239 = vld [vmem:[#allocation2 + $0x470] sm:$0xff]
    %v240 = vld [vmem:[#allocation2 + $0x478] sm:$0xff]
    %v241 = vld [vmem:[#allocation2 + $0x480] sm:$0xff]
    %v242 = vld [vmem:[#allocation2 + $0x488] sm:$0xff]
    %v243 = vld [vmem:[#allocation2 + $0x490] sm:$0xff]
    %v244 = vld [vmem:[#allocation2 + $0x498] sm:$0xff]
    %v245 = vld [vmem:[#allocation2 + $0x4a0] sm:$0xff]
    %v246 = vld [vmem:[#allocation2 + $0x4a8] sm:$0xff]
    %v247 = vld [vmem:[#allocation2 + $0x4b0] sm:$0xff]
    %v248 = vld [vmem:[#allocation2 + $0x4b8] sm:$0xff]
    %v249 = vld [vmem:[#allocation2 + $0x4c0] sm:$0xff]
    %v250 = vld [vmem:[#allocation2 + $0x4c8] sm:$0xff]
    %v251 = vld [vmem:[#allocation2 + $0x4d0] sm:$0xff]
    %v252 = vld [vmem:[#allocation2 + $0x4d8] sm:$0xff]
    %v253 = vld [vmem:[#allocation2 + $0x4e0] sm:$0xff]
    %v254 = vld [vmem:[#allocation2 + $0x4e8] sm:$0xff]
    %v255 = vld [vmem:[#allocation2 + $0x4f0] sm:$0xff]
    %v256 = vld [vmem:[#allocation2 + $0x4f8] sm:$0xff]
    %v257 = vld [vmem:[#allocation2 + $0x500] sm:$0xff]
    %v258 = vld [vmem:[#allocation2 + $0x508] sm:$0xff]
    %v259 = vld [vmem:[#allocation2 + $0x510] sm:$0xff]
    %v260 = vld [vmem:[#allocation2 + $0x518] sm:$0xff]
    %v261 = vld [vmem:[#allocation2 + $0x520] sm:$0xff]
    %v262 = vld [vmem:[#allocation2 + $0x528] sm:$0xff]
    %v263 = vld [vmem:[#allocation2 + $0x530] sm:$0xff]
    %v264 = vld [vmem:[#allocation2 + $0x538] sm:$0xff]
    %v265 = vld [vmem:[#allocation2 + $0x540] sm:$0xff]
    %v266 = vld [vmem:[#allocation2 + $0x548] sm:$0xff]
    %v267 = vld [vmem:[#allocation2 + $0x550] sm:$0xff]
    %v268 = vld [vmem:[#allocation2 + $0x558] sm:$0xff]
    %v269 = vld [vmem:[#allocation2 + $0x560] sm:$0xff]
    %v270 = vld [vmem:[#allocation2 + $0x568] sm:$0xff]
    %v271 = vld [vmem:[#allocation2 + $0x570] sm:$0xff]
    %v272 = vld [vmem:[#allocation2 + $0x578] sm:$0xff]
    %v273 = vld [vmem:[#allocation2 + $0x580] sm:$0xff]
    %v274 = vld [vmem:[#allocation2 + $0x588] sm:$0xff]
    %v275 = vld [vmem:[#allocation2 + $0x590] sm:$0xff]
    %v276 = vld [vmem:[#allocation2 + $0x598] sm:$0xff]
    %v277 = vld [vmem:[#allocation2 + $0x5a0] sm:$0xff]
    %v278 = vld [vmem:[#allocation2 + $0x5a8] sm:$0xff]
    %v279 = vld [vmem:[#allocation2 + $0x5b0] sm:$0xff]
    %v280 = vld [vmem:[#allocation2 + $0x5b8] sm:$0xff]
    %v281 = vld [vmem:[#allocation2 + $0x5c0] sm:$0xff]
    %v282 = vld [vmem:[#allocation2 + $0x5c8] sm:$0xff]
    %v283 = vld [vmem:[#allocation2 + $0x5d0] sm:$0xff]
    %v284 = vld [vmem:[#allocation2 + $0x5d8] sm:$0xff]
    %v285 = vld [vmem:[#allocation2 + $0x5e0] sm:$0xff]
    %v286 = vld [vmem:[#allocation2 + $0x5e8] sm:$0xff]
    %v287 = vld [vmem:[#allocation2 + $0x5f0] sm:$0xff]
    %v288 = vld [vmem:[#allocation2 + $0x5f8] sm:$0xff]
    %v289 = vld [vmem:[#allocation2 + $0x600] sm:$0xff]
    %v290 = vld [vmem:[#allocation2 + $0x608] sm:$0xff]
    %v291 = vld [vmem:[#allocation2 + $0x610] sm:$0xff]
    %v292 = vld [vmem:[#allocation2 + $0x618] sm:$0xff]
    %v293 = vld [vmem:[#allocation2 + $0x620] sm:$0xff]
    %v294 = vld [vmem:[#allocation2 + $0x628] sm:$0xff]
    %v295 = vld [vmem:[#allocation2 + $0x630] sm:$0xff]
    %v296 = vld [vmem:[#allocation2 + $0x638] sm:$0xff]
    %v297 = vld [vmem:[#allocation2 + $0x640] sm:$0xff]
    %v298 = vld [vmem:[#allocation2 + $0x648] sm:$0xff]
    %v299 = vld [vmem:[#allocation2 + $0x650] sm:$0xff]
    %v300 = vld [vmem:[#allocation2 + $0x658] sm:$0xff]
    %v301 = vld [vmem:[#allocation2 + $0x660] sm:$0xff]
    %v302 = vld [vmem:[#allocation2 + $0x668] sm:$0xff]
    %v303 = vld [vmem:[#allocation2 + $0x670] sm:$0xff]
    %v304 = vld [vmem:[#allocation2 + $0x678] sm:$0xff]
    %v305 = vld [vmem:[#allocation2 + $0x680] sm:$0xff]
    %v306 = vld [vmem:[#allocation2 + $0x688] sm:$0xff]
    %v307 = vld [vmem:[#allocation2 + $0x690] sm:$0xff]
    %v308 = vld [vmem:[#allocation2 + $0x698] sm:$0xff]
    %v309 = vld [vmem:[#allocation2 + $0x6a0] sm:$0xff]
    %v310 = vld [vmem:[#allocation2 + $0x6a8] sm:$0xff]
    %v311 = vld [vmem:[#allocation2 + $0x6b0] sm:$0xff]
    %v312 = vld [vmem:[#allocation2 + $0x6b8] sm:$0xff]
    %v313 = vld [vmem:[#allocation2 + $0x6c0] sm:$0xff]
    %v314 = vld [vmem:[#allocation2 + $0x6c8] sm:$0xff]
    %v315 = vld [vmem:[#allocation2 + $0x6d0] sm:$0xff]
    %v316 = vld [vmem:[#allocation2 + $0x6d8] sm:$0xff]
    %v317 = vld [vmem:[#allocation2 + $0x6e0] sm:$0xff]
    %v318 = vld [vmem:[#allocation2 + $0x6e8] sm:$0xff]
    %v319 = vld [vmem:[#allocation2 + $0x6f0] sm:$0xff]
    %v320 = vld [vmem:[#allocation2 + $0x6f8] sm:$0xff]
    %v321 = vld [vmem:[#allocation2 + $0x700] sm:$0xff]
    %v322 = vld [vmem:[#allocation2 + $0x708] sm:$0xff]
    %v323 = vld [vmem:[#allocation2 + $0x710] sm:$0xff]
    %v324 = vld [vmem:[#allocation2 + $0x718] sm:$0xff]
    %v325 = vld [vmem:[#allocation2 + $0x720] sm:$0xff]
    %v326 = vld [vmem:[#allocation2 + $0x728] sm:$0xff]
    %v327 = vld [vmem:[#allocation2 + $0x730] sm:$0xff]
    %v328 = vld [vmem:[#allocation2 + $0x738] sm:$0xff]
    %v329 = vld [vmem:[#allocation2 + $0x740] sm:$0xff]
    %v330 = vld [vmem:[#allocation2 + $0x748] sm:$0xff]
    %v331 = vld [vmem:[#allocation2 + $0x750] sm:$0xff]
    %v332 = vld [vmem:[#allocation2 + $0x758] sm:$0xff]
    %v333 = vld [vmem:[#allocation2 + $0x760] sm:$0xff]
    %v334 = vld [vmem:[#allocation2 + $0x768] sm:$0xff]
    %v335 = vld [vmem:[#allocation2 + $0x770] sm:$0xff]
    %v336 = vld [vmem:[#allocation2 + $0x778] sm:$0xff]
    %v337 = vld [vmem:[#allocation2 + $0x780] sm:$0xff]
    %v338 = vld [vmem:[#allocation2 + $0x788] sm:$0xff]
    %v339 = vld [vmem:[#allocation2 + $0x790] sm:$0xff]
    %v340 = vld [vmem:[#allocation2 + $0x798] sm:$0xff]
    %v341 = vld [vmem:[#allocation2 + $0x7a0] sm:$0xff]
    %v342 = vld [vmem:[#allocation2 + $0x7a8] sm:$0xff]
    %v343 = vld [vmem:[#allocation2 + $0x7b0] sm:$0xff]
    %v344 = vld [vmem:[#allocation2 + $0x7b8] sm:$0xff]
    %v345 = vld [vmem:[#allocation2 + $0x7c0] sm:$0xff]
    %v346 = vld [vmem:[#allocation2 + $0x7c8] sm:$0xff]
    %v347 = vld [vmem:[#allocation2 + $0x7d0] sm:$0xff]
    %v348 = vld [vmem:[#allocation2 + $0x7d8] sm:$0xff]
    %v349 = vld [vmem:[#allocation2 + $0x7e0] sm:$0xff]
    %v350 = vld [vmem:[#allocation2 + $0x7e8] sm:$0xff]
    %v351 = vld [vmem:[#allocation2 + $0x7f0] sm:$0xff]
    %v352 = vld [vmem:[#allocation2 + $0x7f8] sm:$0xff]
    %v353 = vld [vmem:[#allocation2 + $0x800] sm:$0xff]
    %v354 = vld [vmem:[#allocation2 + $0x808] sm:$0xff]
    %v355 = vld [vmem:[#allocation2 + $0x810] sm:$0xff]
    %v356 = vld [vmem:[#allocation2 + $0x818] sm:$0xff]
    %v357 = vld [vmem:[#allocation2 + $0x820] sm:$0xff]
    %v358 = vld [vmem:[#allocation2 + $0x828] sm:$0xff]
    %v359 = vld [vmem:[#allocation2 + $0x830] sm:$0xff]
    %v360 = vld [vmem:[#allocation2 + $0x838] sm:$0xff]
    %v361 = vld [vmem:[#allocation2 + $0x840] sm:$0xff]
    %v362 = vld [vmem:[#allocation2 + $0x848] sm:$0xff]
    %v363 = vld [vmem:[#allocation2 + $0x850] sm:$0xff]
    %v364 = vld [vmem:[#allocation2 + $0x858] sm:$0xff]
    %v365 = vld [vmem:[#allocation2 + $0x860] sm:$0xff]
    %v366 = vld [vmem:[#allocation2 + $0x868] sm:$0xff]
    %v367 = vld [vmem:[#allocation2 + $0x870] sm:$0xff]
    %v368 = vld [vmem:[#allocation2 + $0x878] sm:$0xff]
    %v369 = vld [vmem:[#allocation2 + $0x880] sm:$0xff]
    %v370 = vld [vmem:[#allocation2 + $0x888] sm:$0xff]
    %v371 = vld [vmem:[#allocation2 + $0x890] sm:$0xff]
    %v372 = vld [vmem:[#allocation2 + $0x898] sm:$0xff]
    %v373 = vld [vmem:[#allocation2 + $0x8a0] sm:$0xff]
    %v374 = vld [vmem:[#allocation2 + $0x8a8] sm:$0xff]
    %v375 = vld [vmem:[#allocation2 + $0x8b0] sm:$0xff]
    %v376 = vld [vmem:[#allocation2 + $0x8b8] sm:$0xff]
    %v377 = vld [vmem:[#allocation2 + $0x8c0] sm:$0xff]
    %v378 = vld [vmem:[#allocation2 + $0x8c8] sm:$0xff]
    %v379 = vld [vmem:[#allocation2 + $0x8d0] sm:$0xff]
    %v380 = vld [vmem:[#allocation2 + $0x8d8] sm:$0xff]
    %v381 = vld [vmem:[#allocation2 + $0x8e0] sm:$0xff]
    %v382 = vld [vmem:[#allocation2 + $0x8e8] sm:$0xff]
    %v383 = vld [vmem:[#allocation2 + $0x8f0] sm:$0xff]
    %v384 = vld [vmem:[#allocation2 + $0x8f8] sm:$0xff]
    %v385 = vld [vmem:[#allocation2 + $0x900] sm:$0xff]
    %v386 = vld [vmem:[#allocation2 + $0x908] sm:$0xff]
    %v387 = vld [vmem:[#allocation2 + $0x910] sm:$0xff]
    %v388 = vld [vmem:[#allocation2 + $0x918] sm:$0xff]
    %v389 = vld [vmem:[#allocation2 + $0x920] sm:$0xff]
    %v390 = vld [vmem:[#allocation2 + $0x928] sm:$0xff]
    %v391 = vld [vmem:[#allocation2 + $0x930] sm:$0xff]
    %v392 = vld [vmem:[#allocation2 + $0x938] sm:$0xff]
    %v393 = vld [vmem:[#allocation2 + $0x940] sm:$0xff]
    %v394 = vld [vmem:[#allocation2 + $0x948] sm:$0xff]
    %v395 = vld [vmem:[#allocation2 + $0x950] sm:$0xff]
    %v396 = vld [vmem:[#allocation2 + $0x958] sm:$0xff]
    %v397 = vld [vmem:[#allocation2 + $0x960] sm:$0xff]
    %v398 = vld [vmem:[#allocation2 + $0x968] sm:$0xff]
    %v399 = vld [vmem:[#allocation2 + $0x970] sm:$0xff]
    %v400 = vld [vmem:[#allocation2 + $0x978] sm:$0xff]
    %v401 = vld [vmem:[#allocation2 + $0x980] sm:$0xff]
    %v402 = vld [vmem:[#allocation2 + $0x988] sm:$0xff]
    %v403 = vld [vmem:[#allocation2 + $0x990] sm:$0xff]
    %v404 = vld [vmem:[#allocation2 + $0x998] sm:$0xff]
    %v405 = vld [vmem:[#allocation2 + $0x9a0] sm:$0xff]
    %v406 = vld [vmem:[#allocation2 + $0x9a8] sm:$0xff]
    %v407 = vld [vmem:[#allocation2 + $0x9b0] sm:$0xff]
    %v408 = vld [vmem:[#allocation2 + $0x9b8] sm:$0xff]
    %v409 = vld [vmem:[#allocation2 + $0x9c0] sm:$0xff]
    %v410 = vld [vmem:[#allocation2 + $0x9c8] sm:$0xff]
    %v411 = vld [vmem:[#allocation2 + $0x9d0] sm:$0xff]
    %v412 = vld [vmem:[#allocation2 + $0x9d8] sm:$0xff]
    %v413 = vld [vmem:[#allocation2 + $0x9e0] sm:$0xff]
    %v414 = vld [vmem:[#allocation2 + $0x9e8] sm:$0xff]
    %v415 = vld [vmem:[#allocation2 + $0x9f0] sm:$0xff]
    %v416 = vld [vmem:[#allocation2 + $0x9f8] sm:$0xff]
    %v417 = vld [vmem:[#allocation2 + $0xa00] sm:$0xff]
    %v418 = vld [vmem:[#allocation2 + $0xa08] sm:$0xff]
    %v419 = vld [vmem:[#allocation2 + $0xa10] sm:$0xff]
    %v420 = vld [vmem:[#allocation2 + $0xa18] sm:$0xff]
    %v421 = vld [vmem:[#allocation2 + $0xa20] sm:$0xff]
    %v422 = vld [vmem:[#allocation2 + $0xa28] sm:$0xff]
    %v423 = vld [vmem:[#allocation2 + $0xa30] sm:$0xff]
    %v424 = vld [vmem:[#allocation2 + $0xa38] sm:$0xff]
    %v425 = vld [vmem:[#allocation2 + $0xa40] sm:$0xff]
    %v426 = vld [vmem:[#allocation2 + $0xa48] sm:$0xff]
    %v427 = vld [vmem:[#allocation2 + $0xa50] sm:$0xff]
    %v428 = vld [vmem:[#allocation2 + $0xa58] sm:$0xff]
    %v429 = vld [vmem:[#allocation2 + $0xa60] sm:$0xff]
    %v430 = vld [vmem:[#allocation2 + $0xa68] sm:$0xff]
    %v431 = vld [vmem:[#allocation2 + $0xa70] sm:$0xff]
    %v432 = vld [vmem:[#allocation2 + $0xa78] sm:$0xff]
    %v433 = vld [vmem:[#allocation2 + $0xa80] sm:$0xff]
    %v434 = vld [vmem:[#allocation2 + $0xa88] sm:$0xff]
    %v435 = vld [vmem:[#allocation2 + $0xa90] sm:$0xff]
    %v436 = vld [vmem:[#allocation2 + $0xa98] sm:$0xff]
    %v437 = vld [vmem:[#allocation2 + $0xaa0] sm:$0xff]
    %v438 = vld [vmem:[#allocation2 + $0xaa8] sm:$0xff]
    %v439 = vld [vmem:[#allocation2 + $0xab0] sm:$0xff]
    %v440 = vld [vmem:[#allocation2 + $0xab8] sm:$0xff]
    %v441 = vld [vmem:[#allocation2 + $0xac0] sm:$0xff]
    %v442 = vld [vmem:[#allocation2 + $0xac8] sm:$0xff]
    %v443 = vld [vmem:[#allocation2 + $0xad0] sm:$0xff]
    %v444 = vld [vmem:[#allocation2 + $0xad8] sm:$0xff]
    %v445 = vld [vmem:[#allocation2 + $0xae0] sm:$0xff]
    %v446 = vld [vmem:[#allocation2 + $0xae8] sm:$0xff]
    %v447 = vld [vmem:[#allocation2 + $0xaf0] sm:$0xff]
    %v448 = vld [vmem:[#allocation2 + $0xaf8] sm:$0xff]
    %v449 = vld [vmem:[#allocation2 + $0xb00] sm:$0xff]
    %v450 = vld [vmem:[#allocation2 + $0xb08] sm:$0xff]
    %v451 = vld [vmem:[#allocation2 + $0xb10] sm:$0xff]
    %v452 = vld [vmem:[#allocation2 + $0xb18] sm:$0xff]
    %v453 = vld [vmem:[#allocation2 + $0xb20] sm:$0xff]
    %v454 = vld [vmem:[#allocation2 + $0xb28] sm:$0xff]
    %v455 = vld [vmem:[#allocation2 + $0xb30] sm:$0xff]
    %v456 = vld [vmem:[#allocation2 + $0xb38] sm:$0xff]
    %v457 = vld [vmem:[#allocation2 + $0xb40] sm:$0xff]
    %v458 = vld [vmem:[#allocation2 + $0xb48] sm:$0xff]
    %v459 = vld [vmem:[#allocation2 + $0xb50] sm:$0xff]
    %v460 = vld [vmem:[#allocation2 + $0xb58] sm:$0xff]
    %v461 = vld [vmem:[#allocation2 + $0xb60] sm:$0xff]
    %v462 = vld [vmem:[#allocation2 + $0xb68] sm:$0xff]
    %v463 = vld [vmem:[#allocation2 + $0xb70] sm:$0xff]
    %v464 = vld [vmem:[#allocation2 + $0xb78] sm:$0xff]
    %v465 = vld [vmem:[#allocation2 + $0xb80] sm:$0xff]
    %v466 = vld [vmem:[#allocation2 + $0xb88] sm:$0xff]
    %v467 = vld [vmem:[#allocation2 + $0xb90] sm:$0xff]
    %v468 = vld [vmem:[#allocation2 + $0xb98] sm:$0xff]
    %v469 = vld [vmem:[#allocation2 + $0xba0] sm:$0xff]
    %v470 = vld [vmem:[#allocation2 + $0xba8] sm:$0xff]
    %v471 = vld [vmem:[#allocation2 + $0xbb0] sm:$0xff]
    %v472 = vld [vmem:[#allocation2 + $0xbb8] sm:$0xff]
    %v473 = vld [vmem:[#allocation2 + $0xbc0] sm:$0xff]
    %v474 = vld [vmem:[#allocation2 + $0xbc8] sm:$0xff]
    %v475 = vld [vmem:[#allocation2 + $0xbd0] sm:$0xff]
    %v476 = vld [vmem:[#allocation2 + $0xbd8] sm:$0xff]
    %v477 = vld [vmem:[#allocation2 + $0xbe0] sm:$0xff]
    %v478 = vld [vmem:[#allocation2 + $0xbe8] sm:$0xff]
    %v479 = vld [vmem:[#allocation2 + $0xbf0] sm:$0xff]
    %v480 = vld [vmem:[#allocation2 + $0xbf8] sm:$0xff]
    %v481 = vld [vmem:[#allocation2 + $0xc00] sm:$0xff]
    %v482 = vld [vmem:[#allocation2 + $0xc08] sm:$0xff]
    %v483 = vld [vmem:[#allocation2 + $0xc10] sm:$0xff]
    %v484 = vld [vmem:[#allocation2 + $0xc18] sm:$0xff]
    %v485 = vld [vmem:[#allocation2 + $0xc20] sm:$0xff]
    %v486 = vld [vmem:[#allocation2 + $0xc28] sm:$0xff]
    %v487 = vld [vmem:[#allocation2 + $0xc30] sm:$0xff]
    %v488 = vld [vmem:[#allocation2 + $0xc38] sm:$0xff]
    %v489 = vld [vmem:[#allocation2 + $0xc40] sm:$0xff]
    %v490 = vld [vmem:[#allocation2 + $0xc48] sm:$0xff]
    %v491 = vld [vmem:[#allocation2 + $0xc50] sm:$0xff]
    %v492 = vld [vmem:[#allocation2 + $0xc58] sm:$0xff]
    %v493 = vld [vmem:[#allocation2 + $0xc60] sm:$0xff]
    %v494 = vld [vmem:[#allocation2 + $0xc68] sm:$0xff]
    %v495 = vld [vmem:[#allocation2 + $0xc70] sm:$0xff]
    %v496 = vld [vmem:[#allocation2 + $0xc78] sm:$0xff]
    %v497 = vld [vmem:[#allocation2 + $0xc80] sm:$0xff]
    %v498 = vld [vmem:[#allocation2 + $0xc88] sm:$0xff]
    %v499 = vld [vmem:[#allocation2 + $0xc90] sm:$0xff]
    %v500 = vld [vmem:[#allocation2 + $0xc98] sm:$0xff]
    %v501 = vld [vmem:[#allocation2 + $0xca0] sm:$0xff]
    %v502 = vld [vmem:[#allocation2 + $0xca8] sm:$0xff]
    %v503 = vld [vmem:[#allocation2 + $0xcb0] sm:$0xff]
    %v504 = vld [vmem:[#allocation2 + $0xcb8] sm:$0xff]
    %v505 = vld [vmem:[#allocation2 + $0xcc0] sm:$0xff]
    %v506 = vld [vmem:[#allocation2 + $0xcc8] sm:$0xff]
    %v507 = vld [vmem:[#allocation2 + $0xcd0] sm:$0xff]
    %v508 = vld [vmem:[#allocation2 + $0xcd8] sm:$0xff]
    %v509 = vld [vmem:[#allocation2 + $0xce0] sm:$0xff]
    %v510 = vld [vmem:[#allocation2 + $0xce8] sm:$0xff]
    %v511 = vld [vmem:[#allocation2 + $0xcf0] sm:$0xff]
    %v512 = vld [vmem:[#allocation2 + $0xcf8] sm:$0xff]
    %v513 = vld [vmem:[#allocation2 + $0xd00] sm:$0xff]
    %v514 = vld [vmem:[#allocation2 + $0xd08] sm:$0xff]
    %v515 = vld [vmem:[#allocation2 + $0xd10] sm:$0xff]
    %v516 = vld [vmem:[#allocation2 + $0xd18] sm:$0xff]
    %v517 = vld [vmem:[#allocation2 + $0xd20] sm:$0xff]
    %v518 = vld [vmem:[#allocation2 + $0xd28] sm:$0xff]
    %v519 = vld [vmem:[#allocation2 + $0xd30] sm:$0xff]
    %v520 = vld [vmem:[#allocation2 + $0xd38] sm:$0xff]
    %v521 = vld [vmem:[#allocation2 + $0xd40] sm:$0xff]
    %v522 = vld [vmem:[#allocation2 + $0xd48] sm:$0xff]
    %v523 = vld [vmem:[#allocation2 + $0xd50] sm:$0xff]
    %v524 = vld [vmem:[#allocation2 + $0xd58] sm:$0xff]
    %v525 = vld [vmem:[#allocation2 + $0xd60] sm:$0xff]
    %v526 = vld [vmem:[#allocation2 + $0xd68] sm:$0xff]
    %v527 = vld [vmem:[#allocation2 + $0xd70] sm:$0xff]
    %v528 = vld [vmem:[#allocation2 + $0xd78] sm:$0xff]
    %v529 = vld [vmem:[#allocation2 + $0xd80] sm:$0xff]
    %v530 = vld [vmem:[#allocation2 + $0xd88] sm:$0xff]
    %v531 = vld [vmem:[#allocation2 + $0xd90] sm:$0xff]
    %v532 = vld [vmem:[#allocation2 + $0xd98] sm:$0xff]
    %v533 = vld [vmem:[#allocation2 + $0xda0] sm:$0xff]
    %v534 = vld [vmem:[#allocation2 + $0xda8] sm:$0xff]
    %v535 = vld [vmem:[#allocation2 + $0xdb0] sm:$0xff]
    %v536 = vld [vmem:[#allocation2 + $0xdb8] sm:$0xff]
    %v537 = vld [vmem:[#allocation2 + $0xdc0] sm:$0xff]
    %v538 = vld [vmem:[#allocation2 + $0xdc8] sm:$0xff]
    %v539 = vld [vmem:[#allocation2 + $0xdd0] sm:$0xff]
    %v540 = vld [vmem:[#allocation2 + $0xdd8] sm:$0xff]
    %v541 = vld [vmem:[#allocation2 + $0xde0] sm:$0xff]
    %v542 = vld [vmem:[#allocation2 + $0xde8] sm:$0xff]
    %v543 = vld [vmem:[#allocation2 + $0xdf0] sm:$0xff]
    %v544 = vld [vmem:[#allocation2 + $0xdf8] sm:$0xff]
    %v549 = vunpack.c.l.b16 %v93
    %v550 = vunpack.c.h.b16 %v93
    %v551 = vunpack.c.l.b16 %v94
    %v552 = vunpack.c.h.b16 %v94
    %v553 = vunpack.c.l.b16 %v95
    %v554 = vunpack.c.h.b16 %v95
    %v555 = vunpack.c.l.b16 %v96
    %v556 = vpack.c.b16 %v549, %v549
    %v557 = vpack.c.b16 %v550, %v550
    %v558 = vpack.c.b16 %v551, %v551
    %v559 = vpack.c.b16 %v552, %v552
    %v560 = vpack.c.b16 %v553, %v553
    %v561 = vpack.c.b16 %v554, %v554
    %v562 = vpack.c.b16 %v555, %v555
    %v1018 = vunpack.c.l.b16 %v97
    %v1019 = vunpack.c.h.b16 %v97
    %v1020 = vunpack.c.l.b16 %v98
    %v1021 = vunpack.c.h.b16 %v98
    %v1022 = vunpack.c.l.b16 %v99
    %v1023 = vunpack.c.h.b16 %v99
    %v1024 = vunpack.c.l.b16 %v100
    %v1025 = vunpack.c.h.b16 %v100
    %v1026 = vunpack.c.l.b16 %v101
    %v1027 = vunpack.c.h.b16 %v101
    %v1028 = vunpack.c.l.b16 %v102
    %v1029 = vunpack.c.h.b16 %v102
    %v1030 = vunpack.c.l.b16 %v103
    %v1031 = vunpack.c.h.b16 %v103
    %v1032 = vunpack.c.l.b16 %v104
    %v1033 = vunpack.c.h.b16 %v104
    %v1034 = vunpack.c.l.b16 %v105
    %v1035 = vunpack.c.h.b16 %v105
    %v1036 = vunpack.c.l.b16 %v106
    %v1037 = vunpack.c.h.b16 %v106
    %v1038 = vunpack.c.l.b16 %v107
    %v1039 = vunpack.c.h.b16 %v107
    %v1040 = vunpack.c.l.b16 %v108
    %v1041 = vunpack.c.h.b16 %v108
    %v1042 = vunpack.c.l.b16 %v109
    %v1043 = vunpack.c.h.b16 %v109
    %v1044 = vunpack.c.l.b16 %v110
    %v1045 = vunpack.c.h.b16 %v110
    %v1046 = vunpack.c.l.b16 %v111
    %v1047 = vunpack.c.h.b16 %v111
    %v1048 = vunpack.c.l.b16 %v112
    %v1049 = vunpack.c.h.b16 %v112
    %v1050 = vunpack.c.l.b16 %v113
    %v1051 = vunpack.c.h.b16 %v113
    %v1052 = vunpack.c.l.b16 %v114
    %v1053 = vunpack.c.h.b16 %v114
    %v1054 = vunpack.c.l.b16 %v115
    %v1055 = vunpack.c.h.b16 %v115
    %v1056 = vunpack.c.l.b16 %v116
    %v1057 = vunpack.c.h.b16 %v116
    %v1058 = vunpack.c.l.b16 %v117
    %v1059 = vunpack.c.h.b16 %v117
    %v1060 = vunpack.c.l.b16 %v118
    %v1061 = vunpack.c.h.b16 %v118
    %v1062 = vunpack.c.l.b16 %v119
    %v1063 = vunpack.c.h.b16 %v119
    %v1064 = vunpack.c.l.b16 %v120
    %v1065 = vunpack.c.h.b16 %v120
    %v1066 = vunpack.c.l.b16 %v121
    %v1067 = vunpack.c.h.b16 %v121
    %v1068 = vunpack.c.l.b16 %v122
    %v1069 = vunpack.c.h.b16 %v122
    %v1070 = vunpack.c.l.b16 %v123
    %v1071 = vunpack.c.h.b16 %v123
    %v1072 = vunpack.c.l.b16 %v124
    %v1073 = vunpack.c.h.b16 %v124
    %v1074 = vunpack.c.l.b16 %v125
    %v1075 = vunpack.c.h.b16 %v125
    %v1076 = vunpack.c.l.b16 %v126
    %v1077 = vunpack.c.h.b16 %v126
    %v1078 = vunpack.c.l.b16 %v127
    %v1079 = vunpack.c.h.b16 %v127
    %v1080 = vunpack.c.l.b16 %v128
    %v1081 = vunpack.c.h.b16 %v128
    %v1082 = vunpack.c.l.b16 %v129
    %v1083 = vunpack.c.h.b16 %v129
    %v1084 = vunpack.c.l.b16 %v130
    %v1085 = vunpack.c.h.b16 %v130
    %v1086 = vunpack.c.l.b16 %v131
    %v1087 = vunpack.c.h.b16 %v131
    %v1088 = vunpack.c.l.b16 %v132
    %v1089 = vunpack.c.h.b16 %v132
    %v1090 = vunpack.c.l.b16 %v133
    %v1091 = vunpack.c.h.b16 %v133
    %v1092 = vunpack.c.l.b16 %v134
    %v1093 = vunpack.c.h.b16 %v134
    %v1094 = vunpack.c.l.b16 %v135
    %v1095 = vunpack.c.h.b16 %v135
    %v1096 = vunpack.c.l.b16 %v136
    %v1097 = vunpack.c.h.b16 %v136
    %v1098 = vunpack.c.l.b16 %v137
    %v1099 = vunpack.c.h.b16 %v137
    %v1100 = vunpack.c.l.b16 %v138
    %v1101 = vunpack.c.h.b16 %v138
    %v1102 = vunpack.c.l.b16 %v139
    %v1103 = vunpack.c.h.b16 %v139
    %v1104 = vunpack.c.l.b16 %v140
    %v1105 = vunpack.c.h.b16 %v140
    %v1106 = vunpack.c.l.b16 %v141
    %v1107 = vunpack.c.h.b16 %v141
    %v1108 = vunpack.c.l.b16 %v142
    %v1109 = vunpack.c.h.b16 %v142
    %v1110 = vunpack.c.l.b16 %v143
    %v1111 = vunpack.c.h.b16 %v143
    %v1112 = vunpack.c.l.b16 %v144
    %v1113 = vunpack.c.h.b16 %v144
    %v1114 = vunpack.c.l.b16 %v145
    %v1115 = vunpack.c.h.b16 %v145
    %v1116 = vunpack.c.l.b16 %v146
    %v1117 = vunpack.c.h.b16 %v146
    %v1118 = vunpack.c.l.b16 %v147
    %v1119 = vunpack.c.h.b16 %v147
    %v1120 = vunpack.c.l.b16 %v148
    %v1121 = vunpack.c.h.b16 %v148
    %v1122 = vunpack.c.l.b16 %v149
    %v1123 = vunpack.c.h.b16 %v149
    %v1124 = vunpack.c.l.b16 %v150
    %v1125 = vunpack.c.h.b16 %v150
    %v1126 = vunpack.c.l.b16 %v151
    %v1127 = vunpack.c.h.b16 %v151
    %v1128 = vunpack.c.l.b16 %v152
    %v1129 = vunpack.c.h.b16 %v152
    %v1130 = vunpack.c.l.b16 %v153
    %v1131 = vunpack.c.h.b16 %v153
    %v1132 = vunpack.c.l.b16 %v154
    %v1133 = vunpack.c.h.b16 %v154
    %v1134 = vunpack.c.l.b16 %v155
    %v1135 = vunpack.c.h.b16 %v155
    %v1136 = vunpack.c.l.b16 %v156
    %v1137 = vunpack.c.h.b16 %v156
    %v1138 = vunpack.c.l.b16 %v157
    %v1139 = vunpack.c.h.b16 %v157
    %v1140 = vunpack.c.l.b16 %v158
    %v1141 = vunpack.c.h.b16 %v158
    %v1142 = vunpack.c.l.b16 %v159
    %v1143 = vunpack.c.h.b16 %v159
    %v1144 = vunpack.c.l.b16 %v160
    %v1145 = vunpack.c.h.b16 %v160
    %v1146 = vunpack.c.l.b16 %v161
    %v1147 = vunpack.c.h.b16 %v161
    %v1148 = vunpack.c.l.b16 %v162
    %v1149 = vunpack.c.h.b16 %v162
    %v1150 = vunpack.c.l.b16 %v163
    %v1151 = vunpack.c.h.b16 %v163
    %v1152 = vunpack.c.l.b16 %v164
    %v1153 = vunpack.c.h.b16 %v164
    %v1154 = vunpack.c.l.b16 %v165
    %v1155 = vunpack.c.h.b16 %v165
    %v1156 = vunpack.c.l.b16 %v166
    %v1157 = vunpack.c.h.b16 %v166
    %v1158 = vunpack.c.l.b16 %v167
    %v1159 = vunpack.c.h.b16 %v167
    %v1160 = vunpack.c.l.b16 %v168
    %v1161 = vunpack.c.h.b16 %v168
    %v1162 = vunpack.c.l.b16 %v169
    %v1163 = vunpack.c.h.b16 %v169
    %v1164 = vunpack.c.l.b16 %v170
    %v1165 = vunpack.c.h.b16 %v170
    %v1166 = vunpack.c.l.b16 %v171
    %v1167 = vunpack.c.h.b16 %v171
    %v1168 = vunpack.c.l.b16 %v172
    %v1169 = vunpack.c.h.b16 %v172
    %v1170 = vunpack.c.l.b16 %v173
    %v1171 = vunpack.c.h.b16 %v173
    %v1172 = vunpack.c.l.b16 %v174
    %v1173 = vunpack.c.h.b16 %v174
    %v1174 = vunpack.c.l.b16 %v175
    %v1175 = vunpack.c.h.b16 %v175
    %v1176 = vunpack.c.l.b16 %v176
    %v1177 = vunpack.c.h.b16 %v176
    %v1178 = vunpack.c.l.b16 %v177
    %v1179 = vunpack.c.h.b16 %v177
    %v1180 = vunpack.c.l.b16 %v178
    %v1181 = vunpack.c.h.b16 %v178
    %v1182 = vunpack.c.l.b16 %v179
    %v1183 = vunpack.c.h.b16 %v179
    %v1184 = vunpack.c.l.b16 %v180
    %v1185 = vunpack.c.h.b16 %v180
    %v1186 = vunpack.c.l.b16 %v181
    %v1187 = vunpack.c.h.b16 %v181
    %v1188 = vunpack.c.l.b16 %v182
    %v1189 = vunpack.c.h.b16 %v182
    %v1190 = vunpack.c.l.b16 %v183
    %v1191 = vunpack.c.h.b16 %v183
    %v1192 = vunpack.c.l.b16 %v184
    %v1193 = vunpack.c.h.b16 %v184
    %v1194 = vunpack.c.l.b16 %v185
    %v1195 = vunpack.c.h.b16 %v185
    %v1196 = vunpack.c.l.b16 %v186
    %v1197 = vunpack.c.h.b16 %v186
    %v1198 = vunpack.c.l.b16 %v187
    %v1199 = vunpack.c.h.b16 %v187
    %v1200 = vunpack.c.l.b16 %v188
    %v1201 = vunpack.c.h.b16 %v188
    %v1202 = vunpack.c.l.b16 %v189
    %v1203 = vunpack.c.h.b16 %v189
    %v1204 = vunpack.c.l.b16 %v190
    %v1205 = vunpack.c.h.b16 %v190
    %v1206 = vunpack.c.l.b16 %v191
    %v1207 = vunpack.c.h.b16 %v191
    %v1208 = vunpack.c.l.b16 %v192
    %v1209 = vunpack.c.h.b16 %v192
    %v1210 = vunpack.c.l.b16 %v193
    %v1211 = vunpack.c.h.b16 %v193
    %v1212 = vunpack.c.l.b16 %v194
    %v1213 = vunpack.c.h.b16 %v194
    %v1214 = vunpack.c.l.b16 %v195
    %v1215 = vunpack.c.h.b16 %v195
    %v1216 = vunpack.c.l.b16 %v196
    %v1217 = vunpack.c.h.b16 %v196
    %v1218 = vunpack.c.l.b16 %v197
    %v1219 = vunpack.c.h.b16 %v197
    %v1220 = vunpack.c.l.b16 %v198
    %v1221 = vunpack.c.h.b16 %v198
    %v1222 = vunpack.c.l.b16 %v199
    %v1223 = vunpack.c.h.b16 %v199
    %v1224 = vunpack.c.l.b16 %v200
    %v1225 = vunpack.c.h.b16 %v200
    %v1226 = vunpack.c.l.b16 %v201
    %v1227 = vunpack.c.h.b16 %v201
    %v1228 = vunpack.c.l.b16 %v202
    %v1229 = vunpack.c.h.b16 %v202
    %v1230 = vunpack.c.l.b16 %v203
    %v1231 = vunpack.c.h.b16 %v203
    %v1232 = vunpack.c.l.b16 %v204
    %v1233 = vunpack.c.h.b16 %v204
    %v1234 = vunpack.c.l.b16 %v205
    %v1235 = vunpack.c.h.b16 %v205
    %v1236 = vunpack.c.l.b16 %v206
    %v1237 = vunpack.c.h.b16 %v206
    %v1238 = vunpack.c.l.b16 %v207
    %v1239 = vunpack.c.h.b16 %v207
    %v1240 = vunpack.c.l.b16 %v208
    %v1241 = vunpack.c.h.b16 %v208
    %v1242 = vunpack.c.l.b16 %v209
    %v1243 = vunpack.c.h.b16 %v209
    %v1244 = vunpack.c.l.b16 %v210
    %v1245 = vunpack.c.h.b16 %v210
    %v1246 = vunpack.c.l.b16 %v211
    %v1247 = vunpack.c.h.b16 %v211
    %v1248 = vunpack.c.l.b16 %v212
    %v1249 = vunpack.c.h.b16 %v212
    %v1250 = vunpack.c.l.b16 %v213
    %v1251 = vunpack.c.h.b16 %v213
    %v1252 = vunpack.c.l.b16 %v214
    %v1253 = vunpack.c.h.b16 %v214
    %v1254 = vunpack.c.l.b16 %v215
    %v1255 = vunpack.c.h.b16 %v215
    %v1256 = vunpack.c.l.b16 %v216
    %v1257 = vunpack.c.h.b16 %v216
    %v1258 = vunpack.c.l.b16 %v217
    %v1259 = vunpack.c.h.b16 %v217
    %v1260 = vunpack.c.l.b16 %v218
    %v1261 = vunpack.c.h.b16 %v218
    %v1262 = vunpack.c.l.b16 %v219
    %v1263 = vunpack.c.h.b16 %v219
    %v1264 = vunpack.c.l.b16 %v220
    %v1265 = vunpack.c.h.b16 %v220
    %v1266 = vunpack.c.l.b16 %v221
    %v1267 = vunpack.c.h.b16 %v221
    %v1268 = vunpack.c.l.b16 %v222
    %v1269 = vunpack.c.h.b16 %v222
    %v1270 = vunpack.c.l.b16 %v223
    %v1271 = vunpack.c.h.b16 %v223
    %v1272 = vunpack.c.l.b16 %v224
    %v1273 = vunpack.c.h.b16 %v224
    %v1274 = vunpack.c.l.b16 %v225
    %v1275 = vunpack.c.h.b16 %v225
    %v1276 = vunpack.c.l.b16 %v226
    %v1277 = vunpack.c.h.b16 %v226
    %v1278 = vunpack.c.l.b16 %v227
    %v1279 = vunpack.c.h.b16 %v227
    %v1280 = vunpack.c.l.b16 %v228
    %v1281 = vunpack.c.h.b16 %v228
    %v1282 = vunpack.c.l.b16 %v229
    %v1283 = vunpack.c.h.b16 %v229
    %v1284 = vunpack.c.l.b16 %v230
    %v1285 = vunpack.c.h.b16 %v230
    %v1286 = vunpack.c.l.b16 %v231
    %v1287 = vunpack.c.h.b16 %v231
    %v1288 = vunpack.c.l.b16 %v232
    %v1289 = vunpack.c.h.b16 %v232
    %v1290 = vunpack.c.l.b16 %v233
    %v1291 = vunpack.c.h.b16 %v233
    %v1292 = vunpack.c.l.b16 %v234
    %v1293 = vunpack.c.h.b16 %v234
    %v1294 = vunpack.c.l.b16 %v235
    %v1295 = vunpack.c.h.b16 %v235
    %v1296 = vunpack.c.l.b16 %v236
    %v1297 = vunpack.c.h.b16 %v236
    %v1298 = vunpack.c.l.b16 %v237
    %v1299 = vunpack.c.h.b16 %v237
    %v1300 = vunpack.c.l.b16 %v238
    %v1301 = vunpack.c.h.b16 %v238
    %v1302 = vunpack.c.l.b16 %v239
    %v1303 = vunpack.c.h.b16 %v239
    %v1304 = vunpack.c.l.b16 %v240
    %v1305 = vunpack.c.h.b16 %v240
    %v1306 = vunpack.c.l.b16 %v241
    %v1307 = vunpack.c.h.b16 %v241
    %v1308 = vunpack.c.l.b16 %v242
    %v1309 = vunpack.c.h.b16 %v242
    %v1310 = vunpack.c.l.b16 %v243
    %v1311 = vunpack.c.h.b16 %v243
    %v1312 = vunpack.c.l.b16 %v244
    %v1313 = vunpack.c.h.b16 %v244
    %v1314 = vunpack.c.l.b16 %v245
    %v1315 = vunpack.c.h.b16 %v245
    %v1316 = vunpack.c.l.b16 %v246
    %v1317 = vunpack.c.h.b16 %v246
    %v1318 = vunpack.c.l.b16 %v247
    %v1319 = vunpack.c.h.b16 %v247
    %v1320 = vunpack.c.l.b16 %v248
    %v1321 = vunpack.c.h.b16 %v248
    %v1322 = vunpack.c.l.b16 %v249
    %v1323 = vunpack.c.h.b16 %v249
    %v1324 = vunpack.c.l.b16 %v250
    %v1325 = vunpack.c.h.b16 %v250
    %v1326 = vunpack.c.l.b16 %v251
    %v1327 = vunpack.c.h.b16 %v251
    %v1328 = vunpack.c.l.b16 %v252
    %v1329 = vunpack.c.h.b16 %v252
    %v1330 = vunpack.c.l.b16 %v253
    %v1331 = vunpack.c.h.b16 %v253
    %v1332 = vunpack.c.l.b16 %v254
    %v1333 = vunpack.c.h.b16 %v254
    %v1334 = vunpack.c.l.b16 %v255
    %v1335 = vunpack.c.h.b16 %v255
    %v1336 = vunpack.c.l.b16 %v256
    %v1337 = vunpack.c.h.b16 %v256
    %v1338 = vunpack.c.l.b16 %v257
    %v1339 = vunpack.c.h.b16 %v257
    %v1340 = vunpack.c.l.b16 %v258
    %v1341 = vunpack.c.h.b16 %v258
    %v1342 = vunpack.c.l.b16 %v259
    %v1343 = vunpack.c.h.b16 %v259
    %v1344 = vunpack.c.l.b16 %v260
    %v1345 = vunpack.c.h.b16 %v260
    %v1346 = vunpack.c.l.b16 %v261
    %v1347 = vunpack.c.h.b16 %v261
    %v1348 = vunpack.c.l.b16 %v262
    %v1349 = vunpack.c.h.b16 %v262
    %v1350 = vunpack.c.l.b16 %v263
    %v1351 = vunpack.c.h.b16 %v263
    %v1352 = vunpack.c.l.b16 %v264
    %v1353 = vunpack.c.h.b16 %v264
    %v1354 = vunpack.c.l.b16 %v265
    %v1355 = vunpack.c.h.b16 %v265
    %v1356 = vunpack.c.l.b16 %v266
    %v1357 = vunpack.c.h.b16 %v266
    %v1358 = vunpack.c.l.b16 %v267
    %v1359 = vunpack.c.h.b16 %v267
    %v1360 = vunpack.c.l.b16 %v268
    %v1361 = vunpack.c.h.b16 %v268
    %v1362 = vunpack.c.l.b16 %v269
    %v1363 = vunpack.c.h.b16 %v269
    %v1364 = vunpack.c.l.b16 %v270
    %v1365 = vunpack.c.h.b16 %v270
    %v1366 = vunpack.c.l.b16 %v271
    %v1367 = vunpack.c.h.b16 %v271
    %v1368 = vunpack.c.l.b16 %v272
    %v1369 = vunpack.c.h.b16 %v272
    %v1370 = vunpack.c.l.b16 %v273
    %v1371 = vunpack.c.h.b16 %v273
    %v1372 = vunpack.c.l.b16 %v274
    %v1373 = vunpack.c.h.b16 %v274
    %v1374 = vunpack.c.l.b16 %v275
    %v1375 = vunpack.c.h.b16 %v275
    %v1376 = vunpack.c.l.b16 %v276
    %v1377 = vunpack.c.h.b16 %v276
    %v1378 = vunpack.c.l.b16 %v277
    %v1379 = vunpack.c.h.b16 %v277
    %v1380 = vunpack.c.l.b16 %v278
    %v1381 = vunpack.c.h.b16 %v278
    %v1382 = vunpack.c.l.b16 %v279
    %v1383 = vunpack.c.h.b16 %v279
    %v1384 = vunpack.c.l.b16 %v280
    %v1385 = vunpack.c.h.b16 %v280
    %v1386 = vunpack.c.l.b16 %v281
    %v1387 = vunpack.c.h.b16 %v281
    %v1388 = vunpack.c.l.b16 %v282
    %v1389 = vunpack.c.h.b16 %v282
    %v1390 = vunpack.c.l.b16 %v283
    %v1391 = vunpack.c.h.b16 %v283
    %v1392 = vunpack.c.l.b16 %v284
    %v1393 = vunpack.c.h.b16 %v284
    %v1394 = vunpack.c.l.b16 %v285
    %v1395 = vunpack.c.h.b16 %v285
    %v1396 = vunpack.c.l.b16 %v286
    %v1397 = vunpack.c.h.b16 %v286
    %v1398 = vunpack.c.l.b16 %v287
    %v1399 = vunpack.c.h.b16 %v287
    %v1400 = vunpack.c.l.b16 %v288
    %v1401 = vunpack.c.h.b16 %v288
    %v1402 = vunpack.c.l.b16 %v289
    %v1403 = vunpack.c.h.b16 %v289
    %v1404 = vunpack.c.l.b16 %v290
    %v1405 = vunpack.c.h.b16 %v290
    %v1406 = vunpack.c.l.b16 %v291
    %v1407 = vunpack.c.h.b16 %v291
    %v1408 = vunpack.c.l.b16 %v292
    %v1409 = vunpack.c.h.b16 %v292
    %v1410 = vunpack.c.l.b16 %v293
    %v1411 = vunpack.c.h.b16 %v293
    %v1412 = vunpack.c.l.b16 %v294
    %v1413 = vunpack.c.h.b16 %v294
    %v1414 = vunpack.c.l.b16 %v295
    %v1415 = vunpack.c.h.b16 %v295
    %v1416 = vunpack.c.l.b16 %v296
    %v1417 = vunpack.c.h.b16 %v296
    %v1418 = vunpack.c.l.b16 %v297
    %v1419 = vunpack.c.h.b16 %v297
    %v1420 = vunpack.c.l.b16 %v298
    %v1421 = vunpack.c.h.b16 %v298
    %v1422 = vunpack.c.l.b16 %v299
    %v1423 = vunpack.c.h.b16 %v299
    %v1424 = vunpack.c.l.b16 %v300
    %v1425 = vunpack.c.h.b16 %v300
    %v1426 = vunpack.c.l.b16 %v301
    %v1427 = vunpack.c.h.b16 %v301
    %v1428 = vunpack.c.l.b16 %v302
    %v1429 = vunpack.c.h.b16 %v302
    %v1430 = vunpack.c.l.b16 %v303
    %v1431 = vunpack.c.h.b16 %v303
    %v1432 = vunpack.c.l.b16 %v304
    %v1433 = vunpack.c.h.b16 %v304
    %v1434 = vunpack.c.l.b16 %v305
    %v1435 = vunpack.c.h.b16 %v305
    %v1436 = vunpack.c.l.b16 %v306
    %v1437 = vunpack.c.h.b16 %v306
    %v1438 = vunpack.c.l.b16 %v307
    %v1439 = vunpack.c.h.b16 %v307
    %v1440 = vunpack.c.l.b16 %v308
    %v1441 = vunpack.c.h.b16 %v308
    %v1442 = vunpack.c.l.b16 %v309
    %v1443 = vunpack.c.h.b16 %v309
    %v1444 = vunpack.c.l.b16 %v310
    %v1445 = vunpack.c.h.b16 %v310
    %v1446 = vunpack.c.l.b16 %v311
    %v1447 = vunpack.c.h.b16 %v311
    %v1448 = vunpack.c.l.b16 %v312
    %v1449 = vunpack.c.h.b16 %v312
    %v1450 = vunpack.c.l.b16 %v313
    %v1451 = vunpack.c.h.b16 %v313
    %v1452 = vunpack.c.l.b16 %v314
    %v1453 = vunpack.c.h.b16 %v314
    %v1454 = vunpack.c.l.b16 %v315
    %v1455 = vunpack.c.h.b16 %v315
    %v1456 = vunpack.c.l.b16 %v316
    %v1457 = vunpack.c.h.b16 %v316
    %v1458 = vunpack.c.l.b16 %v317
    %v1459 = vunpack.c.h.b16 %v317
    %v1460 = vunpack.c.l.b16 %v318
    %v1461 = vunpack.c.h.b16 %v318
    %v1462 = vunpack.c.l.b16 %v319
    %v1463 = vunpack.c.h.b16 %v319
    %v1464 = vunpack.c.l.b16 %v320
    %v1465 = vunpack.c.h.b16 %v320
    %v1466 = vunpack.c.l.b16 %v321
    %v1467 = vunpack.c.h.b16 %v321
    %v1468 = vunpack.c.l.b16 %v322
    %v1469 = vunpack.c.h.b16 %v322
    %v1470 = vunpack.c.l.b16 %v323
    %v1471 = vunpack.c.h.b16 %v323
    %v1472 = vunpack.c.l.b16 %v324
    %v1473 = vunpack.c.h.b16 %v324
    %v1474 = vunpack.c.l.b16 %v325
    %v1475 = vunpack.c.h.b16 %v325
    %v1476 = vunpack.c.l.b16 %v326
    %v1477 = vunpack.c.h.b16 %v326
    %v1478 = vunpack.c.l.b16 %v327
    %v1479 = vunpack.c.h.b16 %v327
    %v1480 = vunpack.c.l.b16 %v328
    %v1481 = vunpack.c.h.b16 %v328
    %v1482 = vunpack.c.l.b16 %v329
    %v1483 = vunpack.c.h.b16 %v329
    %v1484 = vunpack.c.l.b16 %v330
    %v1485 = vunpack.c.h.b16 %v330
    %v1486 = vunpack.c.l.b16 %v331
    %v1487 = vunpack.c.h.b16 %v331
    %v1488 = vunpack.c.l.b16 %v332
    %v1489 = vunpack.c.h.b16 %v332
    %v1490 = vunpack.c.l.b16 %v333
    %v1491 = vunpack.c.h.b16 %v333
    %v1492 = vunpack.c.l.b16 %v334
    %v1493 = vunpack.c.h.b16 %v334
    %v1494 = vunpack.c.l.b16 %v335
    %v1495 = vunpack.c.h.b16 %v335
    %v1496 = vunpack.c.l.b16 %v336
    %v1497 = vunpack.c.h.b16 %v336
    %v1498 = vunpack.c.l.b16 %v337
    %v1499 = vunpack.c.h.b16 %v337
    %v1500 = vunpack.c.l.b16 %v338
    %v1501 = vunpack.c.h.b16 %v338
    %v1502 = vunpack.c.l.b16 %v339
    %v1503 = vunpack.c.h.b16 %v339
    %v1504 = vunpack.c.l.b16 %v340
    %v1505 = vunpack.c.h.b16 %v340
    %v1506 = vunpack.c.l.b16 %v341
    %v1507 = vunpack.c.h.b16 %v341
    %v1508 = vunpack.c.l.b16 %v342
    %v1509 = vunpack.c.h.b16 %v342
    %v1510 = vunpack.c.l.b16 %v343
    %v1511 = vunpack.c.h.b16 %v343
    %v1512 = vunpack.c.l.b16 %v344
    %v1513 = vunpack.c.h.b16 %v344
    %v1514 = vunpack.c.l.b16 %v345
    %v1515 = vunpack.c.h.b16 %v345
    %v1516 = vunpack.c.l.b16 %v346
    %v1517 = vunpack.c.h.b16 %v346
    %v1518 = vunpack.c.l.b16 %v347
    %v1519 = vunpack.c.h.b16 %v347
    %v1520 = vunpack.c.l.b16 %v348
    %v1521 = vunpack.c.h.b16 %v348
    %v1522 = vunpack.c.l.b16 %v349
    %v1523 = vunpack.c.h.b16 %v349
    %v1524 = vunpack.c.l.b16 %v350
    %v1525 = vunpack.c.h.b16 %v350
    %v1526 = vunpack.c.l.b16 %v351
    %v1527 = vunpack.c.h.b16 %v351
    %v1528 = vunpack.c.l.b16 %v352
    %v1529 = vunpack.c.h.b16 %v352
    %v1530 = vunpack.c.l.b16 %v353
    %v1531 = vunpack.c.h.b16 %v353
    %v1532 = vunpack.c.l.b16 %v354
    %v1533 = vunpack.c.h.b16 %v354
    %v1534 = vunpack.c.l.b16 %v355
    %v1535 = vunpack.c.h.b16 %v355
    %v1536 = vunpack.c.l.b16 %v356
    %v1537 = vunpack.c.h.b16 %v356
    %v1538 = vunpack.c.l.b16 %v357
    %v1539 = vunpack.c.h.b16 %v357
    %v1540 = vunpack.c.l.b16 %v358
    %v1541 = vunpack.c.h.b16 %v358
    %v1542 = vunpack.c.l.b16 %v359
    %v1543 = vunpack.c.h.b16 %v359
    %v1544 = vunpack.c.l.b16 %v360
    %v1545 = vunpack.c.h.b16 %v360
    %v1546 = vunpack.c.l.b16 %v361
    %v1547 = vunpack.c.h.b16 %v361
    %v1548 = vunpack.c.l.b16 %v362
    %v1549 = vunpack.c.h.b16 %v362
    %v1550 = vunpack.c.l.b16 %v363
    %v1551 = vunpack.c.h.b16 %v363
    %v1552 = vunpack.c.l.b16 %v364
    %v1553 = vunpack.c.h.b16 %v364
    %v1554 = vunpack.c.l.b16 %v365
    %v1555 = vunpack.c.h.b16 %v365
    %v1556 = vunpack.c.l.b16 %v366
    %v1557 = vunpack.c.h.b16 %v366
    %v1558 = vunpack.c.l.b16 %v367
    %v1559 = vunpack.c.h.b16 %v367
    %v1560 = vunpack.c.l.b16 %v368
    %v1561 = vunpack.c.h.b16 %v368
    %v1562 = vunpack.c.l.b16 %v369
    %v1563 = vunpack.c.h.b16 %v369
    %v1564 = vunpack.c.l.b16 %v370
    %v1565 = vunpack.c.h.b16 %v370
    %v1566 = vunpack.c.l.b16 %v371
    %v1567 = vunpack.c.h.b16 %v371
    %v1568 = vunpack.c.l.b16 %v372
    %v1569 = vunpack.c.h.b16 %v372
    %v1570 = vunpack.c.l.b16 %v373
    %v1571 = vunpack.c.h.b16 %v373
    %v1572 = vunpack.c.l.b16 %v374
    %v1573 = vunpack.c.h.b16 %v374
    %v1574 = vunpack.c.l.b16 %v375
    %v1575 = vunpack.c.h.b16 %v375
    %v1576 = vunpack.c.l.b16 %v376
    %v1577 = vunpack.c.h.b16 %v376
    %v1578 = vunpack.c.l.b16 %v377
    %v1579 = vunpack.c.h.b16 %v377
    %v1580 = vunpack.c.l.b16 %v378
    %v1581 = vunpack.c.h.b16 %v378
    %v1582 = vunpack.c.l.b16 %v379
    %v1583 = vunpack.c.h.b16 %v379
    %v1584 = vunpack.c.l.b16 %v380
    %v1585 = vunpack.c.h.b16 %v380
    %v1586 = vunpack.c.l.b16 %v381
    %v1587 = vunpack.c.h.b16 %v381
    %v1588 = vunpack.c.l.b16 %v382
    %v1589 = vunpack.c.h.b16 %v382
    %v1590 = vunpack.c.l.b16 %v383
    %v1591 = vunpack.c.h.b16 %v383
    %v1592 = vunpack.c.l.b16 %v384
    %v1593 = vunpack.c.h.b16 %v384
    %v1594 = vunpack.c.l.b16 %v385
    %v1595 = vunpack.c.h.b16 %v385
    %v1596 = vunpack.c.l.b16 %v386
    %v1597 = vunpack.c.h.b16 %v386
    %v1598 = vunpack.c.l.b16 %v387
    %v1599 = vunpack.c.h.b16 %v387
    %v1600 = vunpack.c.l.b16 %v388
    %v1601 = vunpack.c.h.b16 %v388
    %v1602 = vunpack.c.l.b16 %v389
    %v1603 = vunpack.c.h.b16 %v389
    %v1604 = vunpack.c.l.b16 %v390
    %v1605 = vunpack.c.h.b16 %v390
    %v1606 = vunpack.c.l.b16 %v391
    %v1607 = vunpack.c.h.b16 %v391
    %v1608 = vunpack.c.l.b16 %v392
    %v1609 = vunpack.c.h.b16 %v392
    %v1610 = vunpack.c.l.b16 %v393
    %v1611 = vunpack.c.h.b16 %v393
    %v1612 = vunpack.c.l.b16 %v394
    %v1613 = vunpack.c.h.b16 %v394
    %v1614 = vunpack.c.l.b16 %v395
    %v1615 = vunpack.c.h.b16 %v395
    %v1616 = vunpack.c.l.b16 %v396
    %v1617 = vunpack.c.h.b16 %v396
    %v1618 = vunpack.c.l.b16 %v397
    %v1619 = vunpack.c.h.b16 %v397
    %v1620 = vunpack.c.l.b16 %v398
    %v1621 = vunpack.c.h.b16 %v398
    %v1622 = vunpack.c.l.b16 %v399
    %v1623 = vunpack.c.h.b16 %v399
    %v1624 = vunpack.c.l.b16 %v400
    %v1625 = vunpack.c.h.b16 %v400
    %v1626 = vunpack.c.l.b16 %v401
    %v1627 = vunpack.c.h.b16 %v401
    %v1628 = vunpack.c.l.b16 %v402
    %v1629 = vunpack.c.h.b16 %v402
    %v1630 = vunpack.c.l.b16 %v403
    %v1631 = vunpack.c.h.b16 %v403
    %v1632 = vunpack.c.l.b16 %v404
    %v1633 = vunpack.c.h.b16 %v404
    %v1634 = vunpack.c.l.b16 %v405
    %v1635 = vunpack.c.h.b16 %v405
    %v1636 = vunpack.c.l.b16 %v406
    %v1637 = vunpack.c.h.b16 %v406
    %v1638 = vunpack.c.l.b16 %v407
    %v1639 = vunpack.c.h.b16 %v407
    %v1640 = vunpack.c.l.b16 %v408
    %v1641 = vunpack.c.h.b16 %v408
    %v1642 = vunpack.c.l.b16 %v409
    %v1643 = vunpack.c.h.b16 %v409
    %v1644 = vunpack.c.l.b16 %v410
    %v1645 = vunpack.c.h.b16 %v410
    %v1646 = vunpack.c.l.b16 %v411
    %v1647 = vunpack.c.h.b16 %v411
    %v1648 = vunpack.c.l.b16 %v412
    %v1649 = vunpack.c.h.b16 %v412
    %v1650 = vunpack.c.l.b16 %v413
    %v1651 = vunpack.c.h.b16 %v413
    %v1652 = vunpack.c.l.b16 %v414
    %v1653 = vunpack.c.h.b16 %v414
    %v1654 = vunpack.c.l.b16 %v415
    %v1655 = vunpack.c.h.b16 %v415
    %v1656 = vunpack.c.l.b16 %v416
    %v1657 = vunpack.c.h.b16 %v416
    %v1658 = vunpack.c.l.b16 %v417
    %v1659 = vunpack.c.h.b16 %v417
    %v1660 = vunpack.c.l.b16 %v418
    %v1661 = vunpack.c.h.b16 %v418
    %v1662 = vunpack.c.l.b16 %v419
    %v1663 = vunpack.c.h.b16 %v419
    %v1664 = vunpack.c.l.b16 %v420
    %v1665 = vunpack.c.h.b16 %v420
    %v1666 = vunpack.c.l.b16 %v421
    %v1667 = vunpack.c.h.b16 %v421
    %v1668 = vunpack.c.l.b16 %v422
    %v1669 = vunpack.c.h.b16 %v422
    %v1670 = vunpack.c.l.b16 %v423
    %v1671 = vunpack.c.h.b16 %v423
    %v1672 = vunpack.c.l.b16 %v424
    %v1673 = vunpack.c.h.b16 %v424
    %v1674 = vunpack.c.l.b16 %v425
    %v1675 = vunpack.c.h.b16 %v425
    %v1676 = vunpack.c.l.b16 %v426
    %v1677 = vunpack.c.h.b16 %v426
    %v1678 = vunpack.c.l.b16 %v427
    %v1679 = vunpack.c.h.b16 %v427
    %v1680 = vunpack.c.l.b16 %v428
    %v1681 = vunpack.c.h.b16 %v428
    %v1682 = vunpack.c.l.b16 %v429
    %v1683 = vunpack.c.h.b16 %v429
    %v1684 = vunpack.c.l.b16 %v430
    %v1685 = vunpack.c.h.b16 %v430
    %v1686 = vunpack.c.l.b16 %v431
    %v1687 = vunpack.c.h.b16 %v431
    %v1688 = vunpack.c.l.b16 %v432
    %v1689 = vunpack.c.h.b16 %v432
    %v1690 = vunpack.c.l.b16 %v433
    %v1691 = vunpack.c.h.b16 %v433
    %v1692 = vunpack.c.l.b16 %v434
    %v1693 = vunpack.c.h.b16 %v434
    %v1694 = vunpack.c.l.b16 %v435
    %v1695 = vunpack.c.h.b16 %v435
    %v1696 = vunpack.c.l.b16 %v436
    %v1697 = vunpack.c.h.b16 %v436
    %v1698 = vunpack.c.l.b16 %v437
    %v1699 = vunpack.c.h.b16 %v437
    %v1700 = vunpack.c.l.b16 %v438
    %v1701 = vunpack.c.h.b16 %v438
    %v1702 = vunpack.c.l.b16 %v439
    %v1703 = vunpack.c.h.b16 %v439
    %v1704 = vunpack.c.l.b16 %v440
    %v1705 = vunpack.c.h.b16 %v440
    %v1706 = vunpack.c.l.b16 %v441
    %v1707 = vunpack.c.h.b16 %v441
    %v1708 = vunpack.c.l.b16 %v442
    %v1709 = vunpack.c.h.b16 %v442
    %v1710 = vunpack.c.l.b16 %v443
    %v1711 = vunpack.c.h.b16 %v443
    %v1712 = vunpack.c.l.b16 %v444
    %v1713 = vunpack.c.h.b16 %v444
    %v1714 = vunpack.c.l.b16 %v445
    %v1715 = vunpack.c.h.b16 %v445
    %v1716 = vunpack.c.l.b16 %v446
    %v1717 = vunpack.c.h.b16 %v446
    %v1718 = vunpack.c.l.b16 %v447
    %v1719 = vunpack.c.h.b16 %v447
    %v1720 = vunpack.c.l.b16 %v448
    %v1721 = vunpack.c.h.b16 %v448
    %v1722 = vunpack.c.l.b16 %v449
    %v1723 = vunpack.c.h.b16 %v449
    %v1724 = vunpack.c.l.b16 %v450
    %v1725 = vunpack.c.h.b16 %v450
    %v1726 = vunpack.c.l.b16 %v451
    %v1727 = vunpack.c.h.b16 %v451
    %v1728 = vunpack.c.l.b16 %v452
    %v1729 = vunpack.c.h.b16 %v452
    %v1730 = vunpack.c.l.b16 %v453
    %v1731 = vunpack.c.h.b16 %v453
    %v1732 = vunpack.c.l.b16 %v454
    %v1733 = vunpack.c.h.b16 %v454
    %v1734 = vunpack.c.l.b16 %v455
    %v1735 = vunpack.c.h.b16 %v455
    %v1736 = vunpack.c.l.b16 %v456
    %v1737 = vunpack.c.h.b16 %v456
    %v1738 = vunpack.c.l.b16 %v457
    %v1739 = vunpack.c.h.b16 %v457
    %v1740 = vunpack.c.l.b16 %v458
    %v1741 = vunpack.c.h.b16 %v458
    %v1742 = vunpack.c.l.b16 %v459
    %v1743 = vunpack.c.h.b16 %v459
    %v1744 = vunpack.c.l.b16 %v460
    %v1745 = vunpack.c.h.b16 %v460
    %v1746 = vunpack.c.l.b16 %v461
    %v1747 = vunpack.c.h.b16 %v461
    %v1748 = vunpack.c.l.b16 %v462
    %v1749 = vunpack.c.h.b16 %v462
    %v1750 = vunpack.c.l.b16 %v463
    %v1751 = vunpack.c.h.b16 %v463
    %v1752 = vunpack.c.l.b16 %v464
    %v1753 = vunpack.c.h.b16 %v464
    %v1754 = vunpack.c.l.b16 %v465
    %v1755 = vunpack.c.h.b16 %v465
    %v1756 = vunpack.c.l.b16 %v466
    %v1757 = vunpack.c.h.b16 %v466
    %v1758 = vunpack.c.l.b16 %v467
    %v1759 = vunpack.c.h.b16 %v467
    %v1760 = vunpack.c.l.b16 %v468
    %v1761 = vunpack.c.h.b16 %v468
    %v1762 = vunpack.c.l.b16 %v469
    %v1763 = vunpack.c.h.b16 %v469
    %v1764 = vunpack.c.l.b16 %v470
    %v1765 = vunpack.c.h.b16 %v470
    %v1766 = vunpack.c.l.b16 %v471
    %v1767 = vunpack.c.h.b16 %v471
    %v1768 = vunpack.c.l.b16 %v472
    %v1769 = vunpack.c.h.b16 %v472
    %v1770 = vunpack.c.l.b16 %v473
    %v1771 = vunpack.c.h.b16 %v473
    %v1772 = vunpack.c.l.b16 %v474
    %v1773 = vunpack.c.h.b16 %v474
    %v1774 = vunpack.c.l.b16 %v475
    %v1775 = vunpack.c.h.b16 %v475
    %v1776 = vunpack.c.l.b16 %v476
    %v1777 = vunpack.c.h.b16 %v476
    %v1778 = vunpack.c.l.b16 %v477
    %v1779 = vunpack.c.h.b16 %v477
    %v1780 = vunpack.c.l.b16 %v478
    %v1781 = vunpack.c.h.b16 %v478
    %v1782 = vunpack.c.l.b16 %v479
    %v1783 = vunpack.c.h.b16 %v479
    %v1784 = vunpack.c.l.b16 %v480
    %v1785 = vunpack.c.h.b16 %v480
    %v1786 = vunpack.c.l.b16 %v481
    %v1787 = vunpack.c.h.b16 %v481
    %v1788 = vunpack.c.l.b16 %v482
    %v1789 = vunpack.c.h.b16 %v482
    %v1790 = vunpack.c.l.b16 %v483
    %v1791 = vunpack.c.h.b16 %v483
    %v1792 = vunpack.c.l.b16 %v484
    %v1793 = vunpack.c.h.b16 %v484
    %v1794 = vunpack.c.l.b16 %v485
    %v1795 = vunpack.c.h.b16 %v485
    %v1796 = vunpack.c.l.b16 %v486
    %v1797 = vunpack.c.h.b16 %v486
    %v1798 = vunpack.c.l.b16 %v487
    %v1799 = vunpack.c.h.b16 %v487
    %v1800 = vunpack.c.l.b16 %v488
    %v1801 = vunpack.c.h.b16 %v488
    %v1802 = vunpack.c.l.b16 %v489
    %v1803 = vunpack.c.h.b16 %v489
    %v1804 = vunpack.c.l.b16 %v490
    %v1805 = vunpack.c.h.b16 %v490
    %v1806 = vunpack.c.l.b16 %v491
    %v1807 = vunpack.c.h.b16 %v491
    %v1808 = vunpack.c.l.b16 %v492
    %v1809 = vunpack.c.h.b16 %v492
    %v1810 = vunpack.c.l.b16 %v493
    %v1811 = vunpack.c.h.b16 %v493
    %v1812 = vunpack.c.l.b16 %v494
    %v1813 = vunpack.c.h.b16 %v494
    %v1814 = vunpack.c.l.b16 %v495
    %v1815 = vunpack.c.h.b16 %v495
    %v1816 = vunpack.c.l.b16 %v496
    %v1817 = vunpack.c.h.b16 %v496
    %v1818 = vunpack.c.l.b16 %v497
    %v1819 = vunpack.c.h.b16 %v497
    %v1820 = vunpack.c.l.b16 %v498
    %v1821 = vunpack.c.h.b16 %v498
    %v1822 = vunpack.c.l.b16 %v499
    %v1823 = vunpack.c.h.b16 %v499
    %v1824 = vunpack.c.l.b16 %v500
    %v1825 = vunpack.c.h.b16 %v500
    %v1826 = vunpack.c.l.b16 %v501
    %v1827 = vunpack.c.h.b16 %v501
    %v1828 = vunpack.c.l.b16 %v502
    %v1829 = vunpack.c.h.b16 %v502
    %v1830 = vunpack.c.l.b16 %v503
    %v1831 = vunpack.c.h.b16 %v503
    %v1832 = vunpack.c.l.b16 %v504
    %v1833 = vunpack.c.h.b16 %v504
    %v1834 = vunpack.c.l.b16 %v505
    %v1835 = vunpack.c.h.b16 %v505
    %v1836 = vunpack.c.l.b16 %v506
    %v1837 = vunpack.c.h.b16 %v506
    %v1838 = vunpack.c.l.b16 %v507
    %v1839 = vunpack.c.h.b16 %v507
    %v1840 = vunpack.c.l.b16 %v508
    %v1841 = vunpack.c.h.b16 %v508
    %v1842 = vunpack.c.l.b16 %v509
    %v1843 = vunpack.c.h.b16 %v509
    %v1844 = vunpack.c.l.b16 %v510
    %v1845 = vunpack.c.h.b16 %v510
    %v1846 = vunpack.c.l.b16 %v511
    %v1847 = vunpack.c.h.b16 %v511
    %v1848 = vunpack.c.l.b16 %v512
    %v1849 = vunpack.c.h.b16 %v512
    %v1850 = vunpack.c.l.b16 %v513
    %v1851 = vunpack.c.h.b16 %v513
    %v1852 = vunpack.c.l.b16 %v514
    %v1853 = vunpack.c.h.b16 %v514
    %v1854 = vunpack.c.l.b16 %v515
    %v1855 = vunpack.c.h.b16 %v515
    %v1856 = vunpack.c.l.b16 %v516
    %v1857 = vunpack.c.h.b16 %v516
    %v1858 = vunpack.c.l.b16 %v517
    %v1859 = vunpack.c.h.b16 %v517
    %v1860 = vunpack.c.l.b16 %v518
    %v1861 = vunpack.c.h.b16 %v518
    %v1862 = vunpack.c.l.b16 %v519
    %v1863 = vunpack.c.h.b16 %v519
    %v1864 = vunpack.c.l.b16 %v520
    %v1865 = vunpack.c.h.b16 %v520
    %v1866 = vunpack.c.l.b16 %v521
    %v1867 = vunpack.c.h.b16 %v521
    %v1868 = vunpack.c.l.b16 %v522
    %v1869 = vunpack.c.h.b16 %v522
    %v1870 = vunpack.c.l.b16 %v523
    %v1871 = vunpack.c.h.b16 %v523
    %v1872 = vunpack.c.l.b16 %v524
    %v1873 = vunpack.c.h.b16 %v524
    %v1874 = vunpack.c.l.b16 %v525
    %v1875 = vunpack.c.h.b16 %v525
    %v1876 = vunpack.c.l.b16 %v526
    %v1877 = vunpack.c.h.b16 %v526
    %v1878 = vunpack.c.l.b16 %v527
    %v1879 = vunpack.c.h.b16 %v527
    %v1880 = vunpack.c.l.b16 %v528
    %v1881 = vunpack.c.h.b16 %v528
    %v1882 = vunpack.c.l.b16 %v529
    %v1883 = vunpack.c.h.b16 %v529
    %v1884 = vunpack.c.l.b16 %v530
    %v1885 = vunpack.c.h.b16 %v530
    %v1886 = vunpack.c.l.b16 %v531
    %v1887 = vunpack.c.h.b16 %v531
    %v1888 = vunpack.c.l.b16 %v532
    %v1889 = vunpack.c.h.b16 %v532
    %v1890 = vunpack.c.l.b16 %v533
    %v1891 = vunpack.c.h.b16 %v533
    %v1892 = vunpack.c.l.b16 %v534
    %v1893 = vunpack.c.h.b16 %v534
    %v1894 = vunpack.c.l.b16 %v535
    %v1895 = vunpack.c.h.b16 %v535
    %v1896 = vunpack.c.l.b16 %v536
    %v1897 = vunpack.c.h.b16 %v536
    %v1898 = vunpack.c.l.b16 %v537
    %v1899 = vunpack.c.h.b16 %v537
    %v1900 = vunpack.c.l.b16 %v538
    %v1901 = vunpack.c.h.b16 %v538
    %v1902 = vunpack.c.l.b16 %v539
    %v1903 = vunpack.c.h.b16 %v539
    %v1904 = vunpack.c.l.b16 %v540
    %v1905 = vunpack.c.h.b16 %v540
    %v1906 = vunpack.c.l.b16 %v541
    %v1907 = vunpack.c.h.b16 %v541
    %v1908 = vunpack.c.l.b16 %v542
    %v1909 = vunpack.c.h.b16 %v542
    %v1910 = vunpack.c.l.b16 %v543
    %v1911 = vunpack.c.h.b16 %v543
    %v1912 = vunpack.c.l.b16 %v544
    %v1913 = vunpack.c.h.b16 %v544
    %v1914 = vpack.c.b16 %v1026, %v1018
    %v1915 = vpack.c.b16 %v1027, %v1019
    %v1916 = vpack.c.b16 %v1028, %v1020
    %v1917 = vpack.c.b16 %v1029, %v1021
    %v1918 = vpack.c.b16 %v1030, %v1022
    %v1919 = vpack.c.b16 %v1031, %v1023
    %v1920 = vpack.c.b16 %v1032, %v1024
    %v1921 = vpack.c.b16 %v1033, %v1025
    %v1922 = vpack.c.b16 %v1042, %v1034
    %v1923 = vpack.c.b16 %v1043, %v1035
    %v1924 = vpack.c.b16 %v1044, %v1036
    %v1925 = vpack.c.b16 %v1045, %v1037
    %v1926 = vpack.c.b16 %v1046, %v1038
    %v1927 = vpack.c.b16 %v1047, %v1039
    %v1928 = vpack.c.b16 %v1048, %v1040
    %v1929 = vpack.c.b16 %v1049, %v1041
    %v1930 = vpack.c.b16 %v1058, %v1050
    %v1931 = vpack.c.b16 %v1059, %v1051
    %v1932 = vpack.c.b16 %v1060, %v1052
    %v1933 = vpack.c.b16 %v1061, %v1053
    %v1934 = vpack.c.b16 %v1062, %v1054
    %v1935 = vpack.c.b16 %v1063, %v1055
    %v1936 = vpack.c.b16 %v1064, %v1056
    %v1937 = vpack.c.b16 %v1065, %v1057
    %v1938 = vpack.c.b16 %v1074, %v1066
    %v1939 = vpack.c.b16 %v1075, %v1067
    %v1940 = vpack.c.b16 %v1076, %v1068
    %v1941 = vpack.c.b16 %v1077, %v1069
    %v1942 = vpack.c.b16 %v1078, %v1070
    %v1943 = vpack.c.b16 %v1079, %v1071
    %v1944 = vpack.c.b16 %v1080, %v1072
    %v1945 = vpack.c.b16 %v1081, %v1073
    %v1946 = vpack.c.b16 %v1090, %v1082
    %v1947 = vpack.c.b16 %v1091, %v1083
    %v1948 = vpack.c.b16 %v1092, %v1084
    %v1949 = vpack.c.b16 %v1093, %v1085
    %v1950 = vpack.c.b16 %v1094, %v1086
    %v1951 = vpack.c.b16 %v1095, %v1087
    %v1952 = vpack.c.b16 %v1096, %v1088
    %v1953 = vpack.c.b16 %v1097, %v1089
    %v1954 = vpack.c.b16 %v1106, %v1098
    %v1955 = vpack.c.b16 %v1107, %v1099
    %v1956 = vpack.c.b16 %v1108, %v1100
    %v1957 = vpack.c.b16 %v1109, %v1101
    %v1958 = vpack.c.b16 %v1110, %v1102
    %v1959 = vpack.c.b16 %v1111, %v1103
    %v1960 = vpack.c.b16 %v1112, %v1104
    %v1961 = vpack.c.b16 %v1113, %v1105
    %v1962 = vpack.c.b16 %v1122, %v1114
    %v1963 = vpack.c.b16 %v1123, %v1115
    %v1964 = vpack.c.b16 %v1124, %v1116
    %v1965 = vpack.c.b16 %v1125, %v1117
    %v1966 = vpack.c.b16 %v1126, %v1118
    %v1967 = vpack.c.b16 %v1127, %v1119
    %v1968 = vpack.c.b16 %v1128, %v1120
    %v1969 = vpack.c.b16 %v1129, %v1121
    %v1970 = vpack.c.b16 %v1138, %v1130
    %v1971 = vpack.c.b16 %v1139, %v1131
    %v1972 = vpack.c.b16 %v1140, %v1132
    %v1973 = vpack.c.b16 %v1141, %v1133
    %v1974 = vpack.c.b16 %v1142, %v1134
    %v1975 = vpack.c.b16 %v1143, %v1135
    %v1976 = vpack.c.b16 %v1144, %v1136
    %v1977 = vpack.c.b16 %v1145, %v1137
    %v1978 = vpack.c.b16 %v1154, %v1146
    %v1979 = vpack.c.b16 %v1155, %v1147
    %v1980 = vpack.c.b16 %v1156, %v1148
    %v1981 = vpack.c.b16 %v1157, %v1149
    %v1982 = vpack.c.b16 %v1158, %v1150
    %v1983 = vpack.c.b16 %v1159, %v1151
    %v1984 = vpack.c.b16 %v1160, %v1152
    %v1985 = vpack.c.b16 %v1161, %v1153
    %v1986 = vpack.c.b16 %v1170, %v1162
    %v1987 = vpack.c.b16 %v1171, %v1163
    %v1988 = vpack.c.b16 %v1172, %v1164
    %v1989 = vpack.c.b16 %v1173, %v1165
    %v1990 = vpack.c.b16 %v1174, %v1166
    %v1991 = vpack.c.b16 %v1175, %v1167
    %v1992 = vpack.c.b16 %v1176, %v1168
    %v1993 = vpack.c.b16 %v1177, %v1169
    %v1994 = vpack.c.b16 %v1186, %v1178
    %v1995 = vpack.c.b16 %v1187, %v1179
    %v1996 = vpack.c.b16 %v1188, %v1180
    %v1997 = vpack.c.b16 %v1189, %v1181
    %v1998 = vpack.c.b16 %v1190, %v1182
    %v1999 = vpack.c.b16 %v1191, %v1183
    %v2000 = vpack.c.b16 %v1192, %v1184
    %v2001 = vpack.c.b16 %v1193, %v1185
    %v2002 = vpack.c.b16 %v1202, %v1194
    %v2003 = vpack.c.b16 %v1203, %v1195
    %v2004 = vpack.c.b16 %v1204, %v1196
    %v2005 = vpack.c.b16 %v1205, %v1197
    %v2006 = vpack.c.b16 %v1206, %v1198
    %v2007 = vpack.c.b16 %v1207, %v1199
    %v2008 = vpack.c.b16 %v1208, %v1200
    %v2009 = vpack.c.b16 %v1209, %v1201
    %v2010 = vpack.c.b16 %v1218, %v1210
    %v2011 = vpack.c.b16 %v1219, %v1211
    %v2012 = vpack.c.b16 %v1220, %v1212
    %v2013 = vpack.c.b16 %v1221, %v1213
    %v2014 = vpack.c.b16 %v1222, %v1214
    %v2015 = vpack.c.b16 %v1223, %v1215
    %v2016 = vpack.c.b16 %v1224, %v1216
    %v2017 = vpack.c.b16 %v1225, %v1217
    %v2018 = vpack.c.b16 %v1234, %v1226
    %v2019 = vpack.c.b16 %v1235, %v1227
    %v2020 = vpack.c.b16 %v1236, %v1228
    %v2021 = vpack.c.b16 %v1237, %v1229
    %v2022 = vpack.c.b16 %v1238, %v1230
    %v2023 = vpack.c.b16 %v1239, %v1231
    %v2024 = vpack.c.b16 %v1240, %v1232
    %v2025 = vpack.c.b16 %v1241, %v1233
    %v2026 = vpack.c.b16 %v1250, %v1242
    %v2027 = vpack.c.b16 %v1251, %v1243
    %v2028 = vpack.c.b16 %v1252, %v1244
    %v2029 = vpack.c.b16 %v1253, %v1245
    %v2030 = vpack.c.b16 %v1254, %v1246
    %v2031 = vpack.c.b16 %v1255, %v1247
    %v2032 = vpack.c.b16 %v1256, %v1248
    %v2033 = vpack.c.b16 %v1257, %v1249
    %v2034 = vpack.c.b16 %v1266, %v1258
    %v2035 = vpack.c.b16 %v1267, %v1259
    %v2036 = vpack.c.b16 %v1268, %v1260
    %v2037 = vpack.c.b16 %v1269, %v1261
    %v2038 = vpack.c.b16 %v1270, %v1262
    %v2039 = vpack.c.b16 %v1271, %v1263
    %v2040 = vpack.c.b16 %v1272, %v1264
    %v2041 = vpack.c.b16 %v1273, %v1265
    %v2042 = vpack.c.b16 %v1282, %v1274
    %v2043 = vpack.c.b16 %v1283, %v1275
    %v2044 = vpack.c.b16 %v1284, %v1276
    %v2045 = vpack.c.b16 %v1285, %v1277
    %v2046 = vpack.c.b16 %v1286, %v1278
    %v2047 = vpack.c.b16 %v1287, %v1279
    %v2048 = vpack.c.b16 %v1288, %v1280
    %v2049 = vpack.c.b16 %v1289, %v1281
    %v2050 = vpack.c.b16 %v1298, %v1290
    %v2051 = vpack.c.b16 %v1299, %v1291
    %v2052 = vpack.c.b16 %v1300, %v1292
    %v2053 = vpack.c.b16 %v1301, %v1293
    %v2054 = vpack.c.b16 %v1302, %v1294
    %v2055 = vpack.c.b16 %v1303, %v1295
    %v2056 = vpack.c.b16 %v1304, %v1296
    %v2057 = vpack.c.b16 %v1305, %v1297
    %v2058 = vpack.c.b16 %v1314, %v1306
    %v2059 = vpack.c.b16 %v1315, %v1307
    %v2060 = vpack.c.b16 %v1316, %v1308
    %v2061 = vpack.c.b16 %v1317, %v1309
    %v2062 = vpack.c.b16 %v1318, %v1310
    %v2063 = vpack.c.b16 %v1319, %v1311
    %v2064 = vpack.c.b16 %v1320, %v1312
    %v2065 = vpack.c.b16 %v1321, %v1313
    %v2066 = vpack.c.b16 %v1330, %v1322
    %v2067 = vpack.c.b16 %v1331, %v1323
    %v2068 = vpack.c.b16 %v1332, %v1324
    %v2069 = vpack.c.b16 %v1333, %v1325
    %v2070 = vpack.c.b16 %v1334, %v1326
    %v2071 = vpack.c.b16 %v1335, %v1327
    %v2072 = vpack.c.b16 %v1336, %v1328
    %v2073 = vpack.c.b16 %v1337, %v1329
    %v2074 = vpack.c.b16 %v1346, %v1338
    %v2075 = vpack.c.b16 %v1347, %v1339
    %v2076 = vpack.c.b16 %v1348, %v1340
    %v2077 = vpack.c.b16 %v1349, %v1341
    %v2078 = vpack.c.b16 %v1350, %v1342
    %v2079 = vpack.c.b16 %v1351, %v1343
    %v2080 = vpack.c.b16 %v1352, %v1344
    %v2081 = vpack.c.b16 %v1353, %v1345
    %v2082 = vpack.c.b16 %v1362, %v1354
    %v2083 = vpack.c.b16 %v1363, %v1355
    %v2084 = vpack.c.b16 %v1364, %v1356
    %v2085 = vpack.c.b16 %v1365, %v1357
    %v2086 = vpack.c.b16 %v1366, %v1358
    %v2087 = vpack.c.b16 %v1367, %v1359
    %v2088 = vpack.c.b16 %v1368, %v1360
    %v2089 = vpack.c.b16 %v1369, %v1361
    %v2090 = vpack.c.b16 %v1378, %v1370
    %v2091 = vpack.c.b16 %v1379, %v1371
    %v2092 = vpack.c.b16 %v1380, %v1372
    %v2093 = vpack.c.b16 %v1381, %v1373
    %v2094 = vpack.c.b16 %v1382, %v1374
    %v2095 = vpack.c.b16 %v1383, %v1375
    %v2096 = vpack.c.b16 %v1384, %v1376
    %v2097 = vpack.c.b16 %v1385, %v1377
    %v2098 = vpack.c.b16 %v1394, %v1386
    %v2099 = vpack.c.b16 %v1395, %v1387
    %v2100 = vpack.c.b16 %v1396, %v1388
    %v2101 = vpack.c.b16 %v1397, %v1389
    %v2102 = vpack.c.b16 %v1398, %v1390
    %v2103 = vpack.c.b16 %v1399, %v1391
    %v2104 = vpack.c.b16 %v1400, %v1392
    %v2105 = vpack.c.b16 %v1401, %v1393
    %v2106 = vpack.c.b16 %v1410, %v1402
    %v2107 = vpack.c.b16 %v1411, %v1403
    %v2108 = vpack.c.b16 %v1412, %v1404
    %v2109 = vpack.c.b16 %v1413, %v1405
    %v2110 = vpack.c.b16 %v1414, %v1406
    %v2111 = vpack.c.b16 %v1415, %v1407
    %v2112 = vpack.c.b16 %v1416, %v1408
    %v2113 = vpack.c.b16 %v1417, %v1409
    %v2114 = vpack.c.b16 %v1426, %v1418
    %v2115 = vpack.c.b16 %v1427, %v1419
    %v2116 = vpack.c.b16 %v1428, %v1420
    %v2117 = vpack.c.b16 %v1429, %v1421
    %v2118 = vpack.c.b16 %v1430, %v1422
    %v2119 = vpack.c.b16 %v1431, %v1423
    %v2120 = vpack.c.b16 %v1432, %v1424
    %v2121 = vpack.c.b16 %v1433, %v1425
    %v2122 = vpack.c.b16 %v1442, %v1434
    %v2123 = vpack.c.b16 %v1443, %v1435
    %v2124 = vpack.c.b16 %v1444, %v1436
    %v2125 = vpack.c.b16 %v1445, %v1437
    %v2126 = vpack.c.b16 %v1446, %v1438
    %v2127 = vpack.c.b16 %v1447, %v1439
    %v2128 = vpack.c.b16 %v1448, %v1440
    %v2129 = vpack.c.b16 %v1449, %v1441
    %v2130 = vpack.c.b16 %v1458, %v1450
    %v2131 = vpack.c.b16 %v1459, %v1451
    %v2132 = vpack.c.b16 %v1460, %v1452
    %v2133 = vpack.c.b16 %v1461, %v1453
    %v2134 = vpack.c.b16 %v1462, %v1454
    %v2135 = vpack.c.b16 %v1463, %v1455
    %v2136 = vpack.c.b16 %v1464, %v1456
    %v2137 = vpack.c.b16 %v1465, %v1457
    %v2138 = vpack.c.b16 %v1474, %v1466
    %v2139 = vpack.c.b16 %v1475, %v1467
    %v2140 = vpack.c.b16 %v1476, %v1468
    %v2141 = vpack.c.b16 %v1477, %v1469
    %v2142 = vpack.c.b16 %v1478, %v1470
    %v2143 = vpack.c.b16 %v1479, %v1471
    %v2144 = vpack.c.b16 %v1480, %v1472
    %v2145 = vpack.c.b16 %v1481, %v1473
    %v2146 = vpack.c.b16 %v1490, %v1482
    %v2147 = vpack.c.b16 %v1491, %v1483
    %v2148 = vpack.c.b16 %v1492, %v1484
    %v2149 = vpack.c.b16 %v1493, %v1485
    %v2150 = vpack.c.b16 %v1494, %v1486
    %v2151 = vpack.c.b16 %v1495, %v1487
    %v2152 = vpack.c.b16 %v1496, %v1488
    %v2153 = vpack.c.b16 %v1497, %v1489
    %v2154 = vpack.c.b16 %v1506, %v1498
    %v2155 = vpack.c.b16 %v1507, %v1499
    %v2156 = vpack.c.b16 %v1508, %v1500
    %v2157 = vpack.c.b16 %v1509, %v1501
    %v2158 = vpack.c.b16 %v1510, %v1502
    %v2159 = vpack.c.b16 %v1511, %v1503
    %v2160 = vpack.c.b16 %v1512, %v1504
    %v2161 = vpack.c.b16 %v1513, %v1505
    %v2162 = vpack.c.b16 %v1522, %v1514
    %v2163 = vpack.c.b16 %v1523, %v1515
    %v2164 = vpack.c.b16 %v1524, %v1516
    %v2165 = vpack.c.b16 %v1525, %v1517
    %v2166 = vpack.c.b16 %v1526, %v1518
    %v2167 = vpack.c.b16 %v1527, %v1519
    %v2168 = vpack.c.b16 %v1528, %v1520
    %v2169 = vpack.c.b16 %v1529, %v1521
    %v2170 = vpack.c.b16 %v1538, %v1530
    %v2171 = vpack.c.b16 %v1539, %v1531
    %v2172 = vpack.c.b16 %v1540, %v1532
    %v2173 = vpack.c.b16 %v1541, %v1533
    %v2174 = vpack.c.b16 %v1542, %v1534
    %v2175 = vpack.c.b16 %v1543, %v1535
    %v2176 = vpack.c.b16 %v1544, %v1536
    %v2177 = vpack.c.b16 %v1545, %v1537
    %v2178 = vpack.c.b16 %v1554, %v1546
    %v2179 = vpack.c.b16 %v1555, %v1547
    %v2180 = vpack.c.b16 %v1556, %v1548
    %v2181 = vpack.c.b16 %v1557, %v1549
    %v2182 = vpack.c.b16 %v1558, %v1550
    %v2183 = vpack.c.b16 %v1559, %v1551
    %v2184 = vpack.c.b16 %v1560, %v1552
    %v2185 = vpack.c.b16 %v1561, %v1553
    %v2186 = vpack.c.b16 %v1570, %v1562
    %v2187 = vpack.c.b16 %v1571, %v1563
    %v2188 = vpack.c.b16 %v1572, %v1564
    %v2189 = vpack.c.b16 %v1573, %v1565
    %v2190 = vpack.c.b16 %v1574, %v1566
    %v2191 = vpack.c.b16 %v1575, %v1567
    %v2192 = vpack.c.b16 %v1576, %v1568
    %v2193 = vpack.c.b16 %v1577, %v1569
    %v2194 = vpack.c.b16 %v1586, %v1578
    %v2195 = vpack.c.b16 %v1587, %v1579
    %v2196 = vpack.c.b16 %v1588, %v1580
    %v2197 = vpack.c.b16 %v1589, %v1581
    %v2198 = vpack.c.b16 %v1590, %v1582
    %v2199 = vpack.c.b16 %v1591, %v1583
    %v2200 = vpack.c.b16 %v1592, %v1584
    %v2201 = vpack.c.b16 %v1593, %v1585
    %v2202 = vpack.c.b16 %v1602, %v1594
    %v2203 = vpack.c.b16 %v1603, %v1595
    %v2204 = vpack.c.b16 %v1604, %v1596
    %v2205 = vpack.c.b16 %v1605, %v1597
    %v2206 = vpack.c.b16 %v1606, %v1598
    %v2207 = vpack.c.b16 %v1607, %v1599
    %v2208 = vpack.c.b16 %v1608, %v1600
    %v2209 = vpack.c.b16 %v1609, %v1601
    %v2210 = vpack.c.b16 %v1618, %v1610
    %v2211 = vpack.c.b16 %v1619, %v1611
    %v2212 = vpack.c.b16 %v1620, %v1612
    %v2213 = vpack.c.b16 %v1621, %v1613
    %v2214 = vpack.c.b16 %v1622, %v1614
    %v2215 = vpack.c.b16 %v1623, %v1615
    %v2216 = vpack.c.b16 %v1624, %v1616
    %v2217 = vpack.c.b16 %v1625, %v1617
    %v2218 = vpack.c.b16 %v1634, %v1626
    %v2219 = vpack.c.b16 %v1635, %v1627
    %v2220 = vpack.c.b16 %v1636, %v1628
    %v2221 = vpack.c.b16 %v1637, %v1629
    %v2222 = vpack.c.b16 %v1638, %v1630
    %v2223 = vpack.c.b16 %v1639, %v1631
    %v2224 = vpack.c.b16 %v1640, %v1632
    %v2225 = vpack.c.b16 %v1641, %v1633
    %v2226 = vpack.c.b16 %v1650, %v1642
    %v2227 = vpack.c.b16 %v1651, %v1643
    %v2228 = vpack.c.b16 %v1652, %v1644
    %v2229 = vpack.c.b16 %v1653, %v1645
    %v2230 = vpack.c.b16 %v1654, %v1646
    %v2231 = vpack.c.b16 %v1655, %v1647
    %v2232 = vpack.c.b16 %v1656, %v1648
    %v2233 = vpack.c.b16 %v1657, %v1649
    %v2234 = vpack.c.b16 %v1666, %v1658
    %v2235 = vpack.c.b16 %v1667, %v1659
    %v2236 = vpack.c.b16 %v1668, %v1660
    %v2237 = vpack.c.b16 %v1669, %v1661
    %v2238 = vpack.c.b16 %v1670, %v1662
    %v2239 = vpack.c.b16 %v1671, %v1663
    %v2240 = vpack.c.b16 %v1672, %v1664
    %v2241 = vpack.c.b16 %v1673, %v1665
    %v2242 = vpack.c.b16 %v1682, %v1674
    %v2243 = vpack.c.b16 %v1683, %v1675
    %v2244 = vpack.c.b16 %v1684, %v1676
    %v2245 = vpack.c.b16 %v1685, %v1677
    %v2246 = vpack.c.b16 %v1686, %v1678
    %v2247 = vpack.c.b16 %v1687, %v1679
    %v2248 = vpack.c.b16 %v1688, %v1680
    %v2249 = vpack.c.b16 %v1689, %v1681
    %v2250 = vpack.c.b16 %v1698, %v1690
    %v2251 = vpack.c.b16 %v1699, %v1691
    %v2252 = vpack.c.b16 %v1700, %v1692
    %v2253 = vpack.c.b16 %v1701, %v1693
    %v2254 = vpack.c.b16 %v1702, %v1694
    %v2255 = vpack.c.b16 %v1703, %v1695
    %v2256 = vpack.c.b16 %v1704, %v1696
    %v2257 = vpack.c.b16 %v1705, %v1697
    %v2258 = vpack.c.b16 %v1714, %v1706
    %v2259 = vpack.c.b16 %v1715, %v1707
    %v2260 = vpack.c.b16 %v1716, %v1708
    %v2261 = vpack.c.b16 %v1717, %v1709
    %v2262 = vpack.c.b16 %v1718, %v1710
    %v2263 = vpack.c.b16 %v1719, %v1711
    %v2264 = vpack.c.b16 %v1720, %v1712
    %v2265 = vpack.c.b16 %v1721, %v1713
    %v2266 = vpack.c.b16 %v1730, %v1722
    %v2267 = vpack.c.b16 %v1731, %v1723
    %v2268 = vpack.c.b16 %v1732, %v1724
    %v2269 = vpack.c.b16 %v1733, %v1725
    %v2270 = vpack.c.b16 %v1734, %v1726
    %v2271 = vpack.c.b16 %v1735, %v1727
    %v2272 = vpack.c.b16 %v1736, %v1728
    %v2273 = vpack.c.b16 %v1737, %v1729
    %v2274 = vpack.c.b16 %v1746, %v1738
    %v2275 = vpack.c.b16 %v1747, %v1739
    %v2276 = vpack.c.b16 %v1748, %v1740
    %v2277 = vpack.c.b16 %v1749, %v1741
    %v2278 = vpack.c.b16 %v1750, %v1742
    %v2279 = vpack.c.b16 %v1751, %v1743
    %v2280 = vpack.c.b16 %v1752, %v1744
    %v2281 = vpack.c.b16 %v1753, %v1745
    %v2282 = vpack.c.b16 %v1762, %v1754
    %v2283 = vpack.c.b16 %v1763, %v1755
    %v2284 = vpack.c.b16 %v1764, %v1756
    %v2285 = vpack.c.b16 %v1765, %v1757
    %v2286 = vpack.c.b16 %v1766, %v1758
    %v2287 = vpack.c.b16 %v1767, %v1759
    %v2288 = vpack.c.b16 %v1768, %v1760
    %v2289 = vpack.c.b16 %v1769, %v1761
    %v2290 = vpack.c.b16 %v1778, %v1770
    %v2291 = vpack.c.b16 %v1779, %v1771
    %v2292 = vpack.c.b16 %v1780, %v1772
    %v2293 = vpack.c.b16 %v1781, %v1773
    %v2294 = vpack.c.b16 %v1782, %v1774
    %v2295 = vpack.c.b16 %v1783, %v1775
    %v2296 = vpack.c.b16 %v1784, %v1776
    %v2297 = vpack.c.b16 %v1785, %v1777
    %v2298 = vpack.c.b16 %v1794, %v1786
    %v2299 = vpack.c.b16 %v1795, %v1787
    %v2300 = vpack.c.b16 %v1796, %v1788
    %v2301 = vpack.c.b16 %v1797, %v1789
    %v2302 = vpack.c.b16 %v1798, %v1790
    %v2303 = vpack.c.b16 %v1799, %v1791
    %v2304 = vpack.c.b16 %v1800, %v1792
    %v2305 = vpack.c.b16 %v1801, %v1793
    %v2306 = vpack.c.b16 %v1810, %v1802
    %v2307 = vpack.c.b16 %v1811, %v1803
    %v2308 = vpack.c.b16 %v1812, %v1804
    %v2309 = vpack.c.b16 %v1813, %v1805
    %v2310 = vpack.c.b16 %v1814, %v1806
    %v2311 = vpack.c.b16 %v1815, %v1807
    %v2312 = vpack.c.b16 %v1816, %v1808
    %v2313 = vpack.c.b16 %v1817, %v1809
    %v2314 = vpack.c.b16 %v1826, %v1818
    %v2315 = vpack.c.b16 %v1827, %v1819
    %v2316 = vpack.c.b16 %v1828, %v1820
    %v2317 = vpack.c.b16 %v1829, %v1821
    %v2318 = vpack.c.b16 %v1830, %v1822
    %v2319 = vpack.c.b16 %v1831, %v1823
    %v2320 = vpack.c.b16 %v1832, %v1824
    %v2321 = vpack.c.b16 %v1833, %v1825
    %v2322 = vpack.c.b16 %v1842, %v1834
    %v2323 = vpack.c.b16 %v1843, %v1835
    %v2324 = vpack.c.b16 %v1844, %v1836
    %v2325 = vpack.c.b16 %v1845, %v1837
    %v2326 = vpack.c.b16 %v1846, %v1838
    %v2327 = vpack.c.b16 %v1847, %v1839
    %v2328 = vpack.c.b16 %v1848, %v1840
    %v2329 = vpack.c.b16 %v1849, %v1841
    %v2330 = vpack.c.b16 %v1858, %v1850
    %v2331 = vpack.c.b16 %v1859, %v1851
    %v2332 = vpack.c.b16 %v1860, %v1852
    %v2333 = vpack.c.b16 %v1861, %v1853
    %v2334 = vpack.c.b16 %v1862, %v1854
    %v2335 = vpack.c.b16 %v1863, %v1855
    %v2336 = vpack.c.b16 %v1864, %v1856
    %v2337 = vpack.c.b16 %v1865, %v1857
    %v2338 = vpack.c.b16 %v1874, %v1866
    %v2339 = vpack.c.b16 %v1875, %v1867
    %v2340 = vpack.c.b16 %v1876, %v1868
    %v2341 = vpack.c.b16 %v1877, %v1869
    %v2342 = vpack.c.b16 %v1878, %v1870
    %v2343 = vpack.c.b16 %v1879, %v1871
    %v2344 = vpack.c.b16 %v1880, %v1872
    %v2345 = vpack.c.b16 %v1881, %v1873
    %v2346 = vpack.c.b16 %v1890, %v1882
    %v2347 = vpack.c.b16 %v1891, %v1883
    %v2348 = vpack.c.b16 %v1892, %v1884
    %v2349 = vpack.c.b16 %v1893, %v1885
    %v2350 = vpack.c.b16 %v1894, %v1886
    %v2351 = vpack.c.b16 %v1895, %v1887
    %v2352 = vpack.c.b16 %v1896, %v1888
    %v2353 = vpack.c.b16 %v1897, %v1889
    %v2354 = vpack.c.b16 %v1906, %v1898
    %v2355 = vpack.c.b16 %v1907, %v1899
    %v2356 = vpack.c.b16 %v1908, %v1900
    %v2357 = vpack.c.b16 %v1909, %v1901
    %v2358 = vpack.c.b16 %v1910, %v1902
    %v2359 = vpack.c.b16 %v1911, %v1903
    %v2360 = vpack.c.b16 %v1912, %v1904
    %v2361 = vpack.c.b16 %v1913, %v1905
    %2810 = vmatprep.subr.bf16.mxu0 %v1915
    %2811 = vmatpush1.bf16.msra.mxu0 %v1914
    %2812 = vmatprep.subr.bf16.mxu0 %v1923
    %2813 = vmatpush1.bf16.msra.mxu0 %v1922
    %2814 = vmatprep.subr.bf16.mxu0 %v1931
    %2815 = vmatpush1.bf16.msra.mxu0 %v1930
    %2816 = vmatprep.subr.bf16.mxu0 %v1939
    %2817 = vmatpush1.bf16.msra.mxu0 %v1938
    %2818 = vmatprep.subr.bf16.mxu0 %v1947
    %2819 = vmatpush1.bf16.msra.mxu0 %v1946
    %2820 = vmatprep.subr.bf16.mxu0 %v1955
    %2821 = vmatpush1.bf16.msra.mxu0 %v1954
    %2822 = vmatprep.subr.bf16.mxu0 %v1963
    %2823 = vmatpush1.bf16.msra.mxu0 %v1962
    %2824 = vmatprep.subr.bf16.mxu0 %v1971
    %2825 = vmatpush1.bf16.msra.mxu0 %v1970
    %2826 = vmatprep.subr.bf16.mxu0 %v1979
    %2827 = vmatpush1.bf16.msra.mxu0 %v1978
    %2828 = vmatprep.subr.bf16.mxu0 %v1987
    %2829 = vmatpush1.bf16.msra.mxu0 %v1986
    %2830 = vmatprep.subr.bf16.mxu0 %v1995
    %2831 = vmatpush1.bf16.msra.mxu0 %v1994
    %2832 = vmatprep.subr.bf16.mxu0 %v2003
    %2833 = vmatpush1.bf16.msra.mxu0 %v2002
    %2834 = vmatprep.subr.bf16.mxu0 %v2011
    %2835 = vmatpush1.bf16.msra.mxu0 %v2010
    %2836 = vmatprep.subr.bf16.mxu0 %v2019
    %2837 = vmatpush1.bf16.msra.mxu0 %v2018
    %2838 = vmatprep.subr.bf16.mxu0 %v2027
    %2839 = vmatpush1.bf16.msra.mxu0 %v2026
    %2840 = vmatprep.subr.bf16.mxu0 %v2035
    %2841 = vmatpush1.bf16.msra.mxu0 %v2034
    %2842 = vmatprep.mubr.bf16.mxu0 %v557
    %2843 = vmatmul.mubr.bf16.gmra.mrb[0].mxu0 %v556
    %v2844 = vpop.f32.mrb[0].mxu0
    %v2845 = vadd.f32 0.0, %v2844
    %v2846 = vpop.f32.mrb[0].mxu0
    %v2847 = vadd.f32 0.0, %v2846
    %v2848 = vpop.f32.mrb[0].mxu0
    %v2849 = vpop.f32.mrb[0].mxu0
    %2850 = vdwg.mxu0
    %2851 = vmatprep.subr.bf16.mxu0 %v2043
    %2852 = vmatpush1.bf16.msra.mxu0 %v2042
    %2853 = vmatprep.subr.bf16.mxu0 %v2051
    %2854 = vmatpush1.bf16.msra.mxu0 %v2050
    %2855 = vmatprep.subr.bf16.mxu0 %v2059
    %2856 = vmatpush1.bf16.msra.mxu0 %v2058
    %2857 = vmatprep.subr.bf16.mxu0 %v2067
    %2858 = vmatpush1.bf16.msra.mxu0 %v2066
    %2859 = vmatprep.subr.bf16.mxu0 %v2075
    %2860 = vmatpush1.bf16.msra.mxu0 %v2074
    %2861 = vmatprep.subr.bf16.mxu0 %v2083
    %2862 = vmatpush1.bf16.msra.mxu0 %v2082
    %2863 = vmatprep.subr.bf16.mxu0 %v2091
    %2864 = vmatpush1.bf16.msra.mxu0 %v2090
    %2865 = vmatprep.subr.bf16.mxu0 %v2099
    %2866 = vmatpush1.bf16.msra.mxu0 %v2098
    %2867 = vmatprep.subr.bf16.mxu0 %v2107
    %2868 = vmatpush1.bf16.msra.mxu0 %v2106
    %2869 = vmatprep.subr.bf16.mxu0 %v2115
    %2870 = vmatpush1.bf16.msra.mxu0 %v2114
    %2871 = vmatprep.subr.bf16.mxu0 %v2123
    %2872 = vmatpush1.bf16.msra.mxu0 %v2122
    %2873 = vmatprep.subr.bf16.mxu0 %v2131
    %2874 = vmatpush1.bf16.msra.mxu0 %v2130
    %2875 = vmatprep.subr.bf16.mxu0 %v2139
    %2876 = vmatpush1.bf16.msra.mxu0 %v2138
    %2877 = vmatprep.subr.bf16.mxu0 %v2147
    %2878 = vmatpush1.bf16.msra.mxu0 %v2146
    %2879 = vmatprep.subr.bf16.mxu0 %v2155
    %2880 = vmatpush1.bf16.msra.mxu0 %v2154
    %2881 = vmatprep.subr.bf16.mxu0 %v2163
    %2882 = vmatpush1.bf16.msra.mxu0 %v2162
    %2883 = vmatprep.mubr.bf16.mxu0 %v559
    %2884 = vmatmul.mubr.bf16.gmra.mrb[0].mxu0 %v558
    %v2885 = vpop.f32.mrb[0].mxu0
    %v2886 = vadd.f32 %v2845, %v2885
    %v2887 = vpop.f32.mrb[0].mxu0
    %v2888 = vadd.f32 %v2847, %v2887
    %v2889 = vpop.f32.mrb[0].mxu0
    %v2890 = vpop.f32.mrb[0].mxu0
    %2891 = vdwg.mxu0
    %2892 = vmatprep.subr.bf16.mxu0 %v2171
    %2893 = vmatpush1.bf16.msra.mxu0 %v2170
    %2894 = vmatprep.subr.bf16.mxu0 %v2179
    %2895 = vmatpush1.bf16.msra.mxu0 %v2178
    %2896 = vmatprep.subr.bf16.mxu0 %v2187
    %2897 = vmatpush1.bf16.msra.mxu0 %v2186
    %2898 = vmatprep.subr.bf16.mxu0 %v2195
    %2899 = vmatpush1.bf16.msra.mxu0 %v2194
    %2900 = vmatprep.subr.bf16.mxu0 %v2203
    %2901 = vmatpush1.bf16.msra.mxu0 %v2202
    %2902 = vmatprep.subr.bf16.mxu0 %v2211
    %2903 = vmatpush1.bf16.msra.mxu0 %v2210
    %2904 = vmatprep.subr.bf16.mxu0 %v2219
    %2905 = vmatpush1.bf16.msra.mxu0 %v2218
    %2906 = vmatprep.subr.bf16.mxu0 %v2227
    %2907 = vmatpush1.bf16.msra.mxu0 %v2226
    %2908 = vmatprep.subr.bf16.mxu0 %v2235
    %2909 = vmatpush1.bf16.msra.mxu0 %v2234
    %2910 = vmatprep.subr.bf16.mxu0 %v2243
    %2911 = vmatpush1.bf16.msra.mxu0 %v2242
    %2912 = vmatprep.subr.bf16.mxu0 %v2251
    %2913 = vmatpush1.bf16.msra.mxu0 %v2250
    %2914 = vmatprep.subr.bf16.mxu0 %v2259
    %2915 = vmatpush1.bf16.msra.mxu0 %v2258
    %2916 = vmatprep.subr.bf16.mxu0 %v2267
    %2917 = vmatpush1.bf16.msra.mxu0 %v2266
    %2918 = vmatprep.subr.bf16.mxu0 %v2275
    %2919 = vmatpush1.bf16.msra.mxu0 %v2274
    %2920 = vmatprep.subr.bf16.mxu0 %v2283
    %2921 = vmatpush1.bf16.msra.mxu0 %v2282
    %2922 = vmatprep.subr.bf16.mxu0 %v2291
    %2923 = vmatpush1.bf16.msra.mxu0 %v2290
    %2924 = vmatprep.mubr.bf16.mxu0 %v561
    %2925 = vmatmul.mubr.bf16.gmra.mrb[0].mxu0 %v560
    %v2926 = vpop.f32.mrb[0].mxu0
    %v2927 = vadd.f32 %v2886, %v2926
    %v2928 = vpop.f32.mrb[0].mxu0
    %v2929 = vadd.f32 %v2888, %v2928
    %v2930 = vpop.f32.mrb[0].mxu0
    %v2931 = vpop.f32.mrb[0].mxu0
    %2932 = vdwg.mxu0
    %2933 = vmatprep.subr.bf16.mxu0 %v2299
    %2934 = vmatpush1.bf16.msra.mxu0 %v2298
    %2935 = vmatprep.subr.bf16.mxu0 %v2307
    %2936 = vmatpush1.bf16.msra.mxu0 %v2306
    %2937 = vmatprep.subr.bf16.mxu0 %v2315
    %2938 = vmatpush1.bf16.msra.mxu0 %v2314
    %2939 = vmatprep.subr.bf16.mxu0 %v2323
    %2940 = vmatpush1.bf16.msra.mxu0 %v2322
    %2941 = vmatprep.subr.bf16.mxu0 %v2331
    %2942 = vmatpush1.bf16.msra.mxu0 %v2330
    %2943 = vmatprep.subr.bf16.mxu0 %v2339
    %2944 = vmatpush1.bf16.msra.mxu0 %v2338
    %2945 = vmatprep.subr.bf16.mxu0 %v2347
    %2946 = vmatpush1.bf16.msra.mxu0 %v2346
    %2947 = vmatprep.subr.bf16.mxu0 %v2355
    %2948 = vmatpush1.bf16.msra.mxu0 %v2354
    %2949 = vmatprep.subr.bf16.mxu0 0
    %2950 = vmatpush1.bf16.msra.mxu0 0
    %2951 = vmatprep.subr.bf16.mxu0 0
    %2952 = vmatpush1.bf16.msra.mxu0 0
    %2953 = vmatprep.subr.bf16.mxu0 0
    %2954 = vmatpush1.bf16.msra.mxu0 0
    %2955 = vmatprep.subr.bf16.mxu0 0
    %2956 = vmatpush1.bf16.msra.mxu0 0
    %2957 = vmatprep.subr.bf16.mxu0 0
    %2958 = vmatpush1.bf16.msra.mxu0 0
    %2959 = vmatprep.subr.bf16.mxu0 0
    %2960 = vmatpush1.bf16.msra.mxu0 0
    %2961 = vmatprep.subr.bf16.mxu0 0
    %2962 = vmatpush1.bf16.msra.mxu0 0
    %2963 = vmatprep.subr.bf16.mxu0 0
    %2964 = vmatpush1.bf16.msra.mxu0 0
    %2965 = vmatprep.mubr.bf16.mxu0 0
    %2966 = vmatmul.mubr.bf16.gmra.mrb[0].mxu0 %v562
    %v2967 = vpop.f32.mrb[0].mxu0
    %v2968 = vadd.f32 %v2927, %v2967
    %v2969 = vpop.f32.mrb[0].mxu0
    %v2970 = vadd.f32 %v2929, %v2969
    %v2971 = vpop.f32.mrb[0].mxu0
    %v2972 = vpop.f32.mrb[0].mxu0
    %2973 = vdwg.mxu0
    %2974 = vmatprep.subr.bf16.mxu0 %v1917
    %2975 = vmatpush1.bf16.msra.mxu0 %v1916
    %2976 = vmatprep.subr.bf16.mxu0 %v1925
    %2977 = vmatpush1.bf16.msra.mxu0 %v1924
    %2978 = vmatprep.subr.bf16.mxu0 %v1933
    %2979 = vmatpush1.bf16.msra.mxu0 %v1932
    %2980 = vmatprep.subr.bf16.mxu0 %v1941
    %2981 = vmatpush1.bf16.msra.mxu0 %v1940
    %2982 = vmatprep.subr.bf16.mxu0 %v1949
    %2983 = vmatpush1.bf16.msra.mxu0 %v1948
    %2984 = vmatprep.subr.bf16.mxu0 %v1957
    %2985 = vmatpush1.bf16.msra.mxu0 %v1956
    %2986 = vmatprep.subr.bf16.mxu0 %v1965
    %2987 = vmatpush1.bf16.msra.mxu0 %v1964
    %2988 = vmatprep.subr.bf16.mxu0 %v1973
    %2989 = vmatpush1.bf16.msra.mxu0 %v1972
    %2990 = vmatprep.subr.bf16.mxu0 %v1981
    %2991 = vmatpush1.bf16.msra.mxu0 %v1980
    %2992 = vmatprep.subr.bf16.mxu0 %v1989
    %2993 = vmatpush1.bf16.msra.mxu0 %v1988
    %2994 = vmatprep.subr.bf16.mxu0 %v1997
    %2995 = vmatpush1.bf16.msra.mxu0 %v1996
    %2996 = vmatprep.subr.bf16.mxu0 %v2005
    %2997 = vmatpush1.bf16.msra.mxu0 %v2004
    %2998 = vmatprep.subr.bf16.mxu0 %v2013
    %2999 = vmatpush1.bf16.msra.mxu0 %v2012
    %3000 = vmatprep.subr.bf16.mxu0 %v2021
    %3001 = vmatpush1.bf16.msra.mxu0 %v2020
    %3002 = vmatprep.subr.bf16.mxu0 %v2029
    %3003 = vmatpush1.bf16.msra.mxu0 %v2028
    %3004 = vmatprep.subr.bf16.mxu0 %v2037
    %3005 = vmatpush1.bf16.msra.mxu0 %v2036
    %3006 = vmatprep.mubr.bf16.mxu0 %v557
    %3007 = vmatmul.mubr.bf16.gmra.mrb[0].mxu0 %v556
    %v3008 = vpop.f32.mrb[0].mxu0
    %v3009 = vadd.f32 0.0, %v3008
    %v3010 = vpop.f32.mrb[0].mxu0
    %v3011 = vadd.f32 0.0, %v3010
    %v3012 = vpop.f32.mrb[0].mxu0
    %v3013 = vpop.f32.mrb[0].mxu0
    %3014 = vdwg.mxu0
    %3015 = vmatprep.subr.bf16.mxu0 %v2045
    %3016 = vmatpush1.bf16.msra.mxu0 %v2044
    %3017 = vmatprep.subr.bf16.mxu0 %v2053
    %3018 = vmatpush1.bf16.msra.mxu0 %v2052
    %3019 = vmatprep.subr.bf16.mxu0 %v2061
    %3020 = vmatpush1.bf16.msra.mxu0 %v2060
    %3021 = vmatprep.subr.bf16.mxu0 %v2069
    %3022 = vmatpush1.bf16.msra.mxu0 %v2068
    %3023 = vmatprep.subr.bf16.mxu0 %v2077
    %3024 = vmatpush1.bf16.msra.mxu0 %v2076
    %3025 = vmatprep.subr.bf16.mxu0 %v2085
    %3026 = vmatpush1.bf16.msra.mxu0 %v2084
    %3027 = vmatprep.subr.bf16.mxu0 %v2093
    %3028 = vmatpush1.bf16.msra.mxu0 %v2092
    %3029 = vmatprep.subr.bf16.mxu0 %v2101
    %3030 = vmatpush1.bf16.msra.mxu0 %v2100
    %3031 = vmatprep.subr.bf16.mxu0 %v2109
    %3032 = vmatpush1.bf16.msra.mxu0 %v2108
    %3033 = vmatprep.subr.bf16.mxu0 %v2117
    %3034 = vmatpush1.bf16.msra.mxu0 %v2116
    %3035 = vmatprep.subr.bf16.mxu0 %v2125
    %3036 = vmatpush1.bf16.msra.mxu0 %v2124
    %3037 = vmatprep.subr.bf16.mxu0 %v2133
    %3038 = vmatpush1.bf16.msra.mxu0 %v2132
    %3039 = vmatprep.subr.bf16.mxu0 %v2141
    %3040 = vmatpush1.bf16.msra.mxu0 %v2140
    %3041 = vmatprep.subr.bf16.mxu0 %v2149
    %3042 = vmatpush1.bf16.msra.mxu0 %v2148
    %3043 = vmatprep.subr.bf16.mxu0 %v2157
    %3044 = vmatpush1.bf16.msra.mxu0 %v2156
    %3045 = vmatprep.subr.bf16.mxu0 %v2165
    %3046 = vmatpush1.bf16.msra.mxu0 %v2164
    %3047 = vmatprep.mubr.bf16.mxu0 %v559
    %3048 = vmatmul.mubr.bf16.gmra.mrb[0].mxu0 %v558
    %v3049 = vpop.f32.mrb[0].mxu0
    %v3050 = vadd.f32 %v3009, %v3049
    %v3051 = vpop.f32.mrb[0].mxu0
    %v3052 = vadd.f32 %v3011, %v3051
    %v3053 = vpop.f32.mrb[0].mxu0
    %v3054 = vpop.f32.mrb[0].mxu0
    %3055 = vdwg.mxu0
    %3056 = vmatprep.subr.bf16.mxu0 %v2173
    %3057 = vmatpush1.bf16.msra.mxu0 %v2172
    %3058 = vmatprep.subr.bf16.mxu0 %v2181
    %3059 = vmatpush1.bf16.msra.mxu0 %v2180
    %3060 = vmatprep.subr.bf16.mxu0 %v2189
    %3061 = vmatpush1.bf16.msra.mxu0 %v2188
    %3062 = vmatprep.subr.bf16.mxu0 %v2197
    %3063 = vmatpush1.bf16.msra.mxu0 %v2196
    %3064 = vmatprep.subr.bf16.mxu0 %v2205
    %3065 = vmatpush1.bf16.msra.mxu0 %v2204
    %3066 = vmatprep.subr.bf16.mxu0 %v2213
    %3067 = vmatpush1.bf16.msra.mxu0 %v2212
    %3068 = vmatprep.subr.bf16.mxu0 %v2221
    %3069 = vmatpush1.bf16.msra.mxu0 %v2220
    %3070 = vmatprep.subr.bf16.mxu0 %v2229
    %3071 = vmatpush1.bf16.msra.mxu0 %v2228
    %3072 = vmatprep.subr.bf16.mxu0 %v2237
    %3073 = vmatpush1.bf16.msra.mxu0 %v2236
    %3074 = vmatprep.subr.bf16.mxu0 %v2245
    %3075 = vmatpush1.bf16.msra.mxu0 %v2244
    %3076 = vmatprep.subr.bf16.mxu0 %v2253
    %3077 = vmatpush1.bf16.msra.mxu0 %v2252
    %3078 = vmatprep.subr.bf16.mxu0 %v2261
    %3079 = vmatpush1.bf16.msra.mxu0 %v2260
    %3080 = vmatprep.subr.bf16.mxu0 %v2269
    %3081 = vmatpush1.bf16.msra.mxu0 %v2268
    %3082 = vmatprep.subr.bf16.mxu0 %v2277
    %3083 = vmatpush1.bf16.msra.mxu0 %v2276
    %3084 = vmatprep.subr.bf16.mxu0 %v2285
    %3085 = vmatpush1.bf16.msra.mxu0 %v2284
    %3086 = vmatprep.subr.bf16.mxu0 %v2293
    %3087 = vmatpush1.bf16.msra.mxu0 %v2292
    %3088 = vmatprep.mubr.bf16.mxu0 %v561
    %3089 = vmatmul.mubr.bf16.gmra.mrb[0].mxu0 %v560
    %v3090 = vpop.f32.mrb[0].mxu0
    %v3091 = vadd.f32 %v3050, %v3090
    %v3092 = vpop.f32.mrb[0].mxu0
    %v3093 = vadd.f32 %v3052, %v3092
    %v3094 = vpop.f32.mrb[0].mxu0
    %v3095 = vpop.f32.mrb[0].mxu0
    %3096 = vdwg.mxu0
    %3097 = vmatprep.subr.bf16.mxu0 %v2301
    %3098 = vmatpush1.bf16.msra.mxu0 %v2300
    %3099 = vmatprep.subr.bf16.mxu0 %v2309
    %3100 = vmatpush1.bf16.msra.mxu0 %v2308
    %3101 = vmatprep.subr.bf16.mxu0 %v2317
    %3102 = vmatpush1.bf16.msra.mxu0 %v2316
    %3103 = vmatprep.subr.bf16.mxu0 %v2325
    %3104 = vmatpush1.bf16.msra.mxu0 %v2324
    %3105 = vmatprep.subr.bf16.mxu0 %v2333
    %3106 = vmatpush1.bf16.msra.mxu0 %v2332
    %3107 = vmatprep.subr.bf16.mxu0 %v2341
    %3108 = vmatpush1.bf16.msra.mxu0 %v2340
    %3109 = vmatprep.subr.bf16.mxu0 %v2349
    %3110 = vmatpush1.bf16.msra.mxu0 %v2348
    %3111 = vmatprep.subr.bf16.mxu0 %v2357
    %3112 = vmatpush1.bf16.msra.mxu0 %v2356
    %3113 = vmatprep.subr.bf16.mxu0 0
    %3114 = vmatpush1.bf16.msra.mxu0 0
    %3115 = vmatprep.subr.bf16.mxu0 0
    %3116 = vmatpush1.bf16.msra.mxu0 0
    %3117 = vmatprep.subr.bf16.mxu0 0
    %3118 = vmatpush1.bf16.msra.mxu0 0
    %3119 = vmatprep.subr.bf16.mxu0 0
    %3120 = vmatpush1.bf16.msra.mxu0 0
    %3121 = vmatprep.subr.bf16.mxu0 0
    %3122 = vmatpush1.bf16.msra.mxu0 0
    %3123 = vmatprep.subr.bf16.mxu0 0
    %3124 = vmatpush1.bf16.msra.mxu0 0
    %3125 = vmatprep.subr.bf16.mxu0 0
    %3126 = vmatpush1.bf16.msra.mxu0 0
    %3127 = vmatprep.subr.bf16.mxu0 0
    %3128 = vmatpush1.bf16.msra.mxu0 0
    %3129 = vmatprep.mubr.bf16.mxu0 0
    %3130 = vmatmul.mubr.bf16.gmra.mrb[0].mxu0 %v562
    %v3131 = vpop.f32.mrb[0].mxu0
    %v3132 = vadd.f32 %v3091, %v3131
    %v3133 = vpop.f32.mrb[0].mxu0
    %v3134 = vadd.f32 %v3093, %v3133
    %v3135 = vpop.f32.mrb[0].mxu0
    %v3136 = vpop.f32.mrb[0].mxu0
    %3137 = vdwg.mxu0
    %3138 = vmatprep.subr.bf16.mxu0 %v1919
    %3139 = vmatpush1.bf16.msra.mxu0 %v1918
    %3140 = vmatprep.subr.bf16.mxu0 %v1927
    %3141 = vmatpush1.bf16.msra.mxu0 %v1926
    %3142 = vmatprep.subr.bf16.mxu0 %v1935
    %3143 = vmatpush1.bf16.msra.mxu0 %v1934
    %3144 = vmatprep.subr.bf16.mxu0 %v1943
    %3145 = vmatpush1.bf16.msra.mxu0 %v1942
    %3146 = vmatprep.subr.bf16.mxu0 %v1951
    %3147 = vmatpush1.bf16.msra.mxu0 %v1950
    %3148 = vmatprep.subr.bf16.mxu0 %v1959
    %3149 = vmatpush1.bf16.msra.mxu0 %v1958
    %3150 = vmatprep.subr.bf16.mxu0 %v1967
    %3151 = vmatpush1.bf16.msra.mxu0 %v1966
    %3152 = vmatprep.subr.bf16.mxu0 %v1975
    %3153 = vmatpush1.bf16.msra.mxu0 %v1974
    %3154 = vmatprep.subr.bf16.mxu0 %v1983
    %3155 = vmatpush1.bf16.msra.mxu0 %v1982
    %3156 = vmatprep.subr.bf16.mxu0 %v1991
    %3157 = vmatpush1.bf16.msra.mxu0 %v1990
    %3158 = vmatprep.subr.bf16.mxu0 %v1999
    %3159 = vmatpush1.bf16.msra.mxu0 %v1998
    %3160 = vmatprep.subr.bf16.mxu0 %v2007
    %3161 = vmatpush1.bf16.msra.mxu0 %v2006
    %3162 = vmatprep.subr.bf16.mxu0 %v2015
    %3163 = vmatpush1.bf16.msra.mxu0 %v2014
    %3164 = vmatprep.subr.bf16.mxu0 %v2023
    %3165 = vmatpush1.bf16.msra.mxu0 %v2022
    %3166 = vmatprep.subr.bf16.mxu0 %v2031
    %3167 = vmatpush1.bf16.msra.mxu0 %v2030
    %3168 = vmatprep.subr.bf16.mxu0 %v2039
    %3169 = vmatpush1.bf16.msra.mxu0 %v2038
    %3170 = vmatprep.mubr.bf16.mxu0 %v557
    %3171 = vmatmul.mubr.bf16.gmra.mrb[0].mxu0 %v556
    %v3172 = vpop.f32.mrb[0].mxu0
    %v3173 = vadd.f32 0.0, %v3172
    %v3174 = vpop.f32.mrb[0].mxu0
    %v3175 = vadd.f32 0.0, %v3174
    %v3176 = vpop.f32.mrb[0].mxu0
    %v3177 = vpop.f32.mrb[0].mxu0
    %3178 = vdwg.mxu0
    %3179 = vmatprep.subr.bf16.mxu0 %v2047
    %3180 = vmatpush1.bf16.msra.mxu0 %v2046
    %3181 = vmatprep.subr.bf16.mxu0 %v2055
    %3182 = vmatpush1.bf16.msra.mxu0 %v2054
    %3183 = vmatprep.subr.bf16.mxu0 %v2063
    %3184 = vmatpush1.bf16.msra.mxu0 %v2062
    %3185 = vmatprep.subr.bf16.mxu0 %v2071
    %3186 = vmatpush1.bf16.msra.mxu0 %v2070
    %3187 = vmatprep.subr.bf16.mxu0 %v2079
    %3188 = vmatpush1.bf16.msra.mxu0 %v2078
    %3189 = vmatprep.subr.bf16.mxu0 %v2087
    %3190 = vmatpush1.bf16.msra.mxu0 %v2086
    %3191 = vmatprep.subr.bf16.mxu0 %v2095
    %3192 = vmatpush1.bf16.msra.mxu0 %v2094
    %3193 = vmatprep.subr.bf16.mxu0 %v2103
    %3194 = vmatpush1.bf16.msra.mxu0 %v2102
    %3195 = vmatprep.subr.bf16.mxu0 %v2111
    %3196 = vmatpush1.bf16.msra.mxu0 %v2110
    %3197 = vmatprep.subr.bf16.mxu0 %v2119
    %3198 = vmatpush1.bf16.msra.mxu0 %v2118
    %3199 = vmatprep.subr.bf16.mxu0 %v2127
    %3200 = vmatpush1.bf16.msra.mxu0 %v2126
    %3201 = vmatprep.subr.bf16.mxu0 %v2135
    %3202 = vmatpush1.bf16.msra.mxu0 %v2134
    %3203 = vmatprep.subr.bf16.mxu0 %v2143
    %3204 = vmatpush1.bf16.msra.mxu0 %v2142
    %3205 = vmatprep.subr.bf16.mxu0 %v2151
    %3206 = vmatpush1.bf16.msra.mxu0 %v2150
    %3207 = vmatprep.subr.bf16.mxu0 %v2159
    %3208 = vmatpush1.bf16.msra.mxu0 %v2158
    %3209 = vmatprep.subr.bf16.mxu0 %v2167
    %3210 = vmatpush1.bf16.msra.mxu0 %v2166
    %3211 = vmatprep.mubr.bf16.mxu0 %v559
    %3212 = vmatmul.mubr.bf16.gmra.mrb[0].mxu0 %v558
    %v3213 = vpop.f32.mrb[0].mxu0
    %v3214 = vadd.f32 %v3173, %v3213
    %v3215 = vpop.f32.mrb[0].mxu0
    %v3216 = vadd.f32 %v3175, %v3215
    %v3217 = vpop.f32.mrb[0].mxu0
    %v3218 = vpop.f32.mrb[0].mxu0
    %3219 = vdwg.mxu0
    %3220 = vmatprep.subr.bf16.mxu0 %v2175
    %3221 = vmatpush1.bf16.msra.mxu0 %v2174
    %3222 = vmatprep.subr.bf16.mxu0 %v2183
    %3223 = vmatpush1.bf16.msra.mxu0 %v2182
    %3224 = vmatprep.subr.bf16.mxu0 %v2191
    %3225 = vmatpush1.bf16.msra.mxu0 %v2190
    %3226 = vmatprep.subr.bf16.mxu0 %v2199
    %3227 = vmatpush1.bf16.msra.mxu0 %v2198
    %3228 = vmatprep.subr.bf16.mxu0 %v2207
    %3229 = vmatpush1.bf16.msra.mxu0 %v2206
    %3230 = vmatprep.subr.bf16.mxu0 %v2215
    %3231 = vmatpush1.bf16.msra.mxu0 %v2214
    %3232 = vmatprep.subr.bf16.mxu0 %v2223
    %3233 = vmatpush1.bf16.msra.mxu0 %v2222
    %3234 = vmatprep.subr.bf16.mxu0 %v2231
    %3235 = vmatpush1.bf16.msra.mxu0 %v2230
    %3236 = vmatprep.subr.bf16.mxu0 %v2239
    %3237 = vmatpush1.bf16.msra.mxu0 %v2238
    %3238 = vmatprep.subr.bf16.mxu0 %v2247
    %3239 = vmatpush1.bf16.msra.mxu0 %v2246
    %3240 = vmatprep.subr.bf16.mxu0 %v2255
    %3241 = vmatpush1.bf16.msra.mxu0 %v2254
    %3242 = vmatprep.subr.bf16.mxu0 %v2263
    %3243 = vmatpush1.bf16.msra.mxu0 %v2262
    %3244 = vmatprep.subr.bf16.mxu0 %v2271
    %3245 = vmatpush1.bf16.msra.mxu0 %v2270
    %3246 = vmatprep.subr.bf16.mxu0 %v2279
    %3247 = vmatpush1.bf16.msra.mxu0 %v2278
    %3248 = vmatprep.subr.bf16.mxu0 %v2287
    %3249 = vmatpush1.bf16.msra.mxu0 %v2286
    %3250 = vmatprep.subr.bf16.mxu0 %v2295
    %3251 = vmatpush1.bf16.msra.mxu0 %v2294
    %3252 = vmatprep.mubr.bf16.mxu0 %v561
    %3253 = vmatmul.mubr.bf16.gmra.mrb[0].mxu0 %v560
    %v3254 = vpop.f32.mrb[0].mxu0
    %v3255 = vadd.f32 %v3214, %v3254
    %v3256 = vpop.f32.mrb[0].mxu0
    %v3257 = vadd.f32 %v3216, %v3256
    %v3258 = vpop.f32.mrb[0].mxu0
    %v3259 = vpop.f32.mrb[0].mxu0
    %3260 = vdwg.mxu0
    %3261 = vmatprep.subr.bf16.mxu0 %v2303
    %3262 = vmatpush1.bf16.msra.mxu0 %v2302
    %3263 = vmatprep.subr.bf16.mxu0 %v2311
    %3264 = vmatpush1.bf16.msra.mxu0 %v2310
    %3265 = vmatprep.subr.bf16.mxu0 %v2319
    %3266 = vmatpush1.bf16.msra.mxu0 %v2318
    %3267 = vmatprep.subr.bf16.mxu0 %v2327
    %3268 = vmatpush1.bf16.msra.mxu0 %v2326
    %3269 = vmatprep.subr.bf16.mxu0 %v2335
    %3270 = vmatpush1.bf16.msra.mxu0 %v2334
    %3271 = vmatprep.subr.bf16.mxu0 %v2343
    %3272 = vmatpush1.bf16.msra.mxu0 %v2342
    %3273 = vmatprep.subr.bf16.mxu0 %v2351
    %3274 = vmatpush1.bf16.msra.mxu0 %v2350
    %3275 = vmatprep.subr.bf16.mxu0 %v2359
    %3276 = vmatpush1.bf16.msra.mxu0 %v2358
    %3277 = vmatprep.subr.bf16.mxu0 0
    %3278 = vmatpush1.bf16.msra.mxu0 0
    %3279 = vmatprep.subr.bf16.mxu0 0
    %3280 = vmatpush1.bf16.msra.mxu0 0
    %3281 = vmatprep.subr.bf16.mxu0 0
    %3282 = vmatpush1.bf16.msra.mxu0 0
    %3283 = vmatprep.subr.bf16.mxu0 0
    %3284 = vmatpush1.bf16.msra.mxu0 0
    %3285 = vmatprep.subr.bf16.mxu0 0
    %3286 = vmatpush1.bf16.msra.mxu0 0
    %3287 = vmatprep.subr.bf16.mxu0 0
    %3288 = vmatpush1.bf16.msra.mxu0 0
    %3289 = vmatprep.subr.bf16.mxu0 0
    %3290 = vmatpush1.bf16.msra.mxu0 0
    %3291 = vmatprep.subr.bf16.mxu0 0
    %3292 = vmatpush1.bf16.msra.mxu0 0
    %3293 = vmatprep.mubr.bf16.mxu0 0
    %3294 = vmatmul.mubr.bf16.gmra.mrb[0].mxu0 %v562
    %v3295 = vpop.f32.mrb[0].mxu0
    %v3296 = vadd.f32 %v3255, %v3295
    %v3297 = vpop.f32.mrb[0].mxu0
    %v3298 = vadd.f32 %v3257, %v3297
    %v3299 = vpop.f32.mrb[0].mxu0
    %v3300 = vpop.f32.mrb[0].mxu0
    %3301 = vdwg.mxu0
    %3302 = vmatprep.subr.bf16.mxu0 %v1921
    %3303 = vmatpush1.bf16.msra.mxu0 %v1920
    %3304 = vmatprep.subr.bf16.mxu0 %v1929
    %3305 = vmatpush1.bf16.msra.mxu0 %v1928
    %3306 = vmatprep.subr.bf16.mxu0 %v1937
    %3307 = vmatpush1.bf16.msra.mxu0 %v1936
    %3308 = vmatprep.subr.bf16.mxu0 %v1945
    %3309 = vmatpush1.bf16.msra.mxu0 %v1944
    %3310 = vmatprep.subr.bf16.mxu0 %v1953
    %3311 = vmatpush1.bf16.msra.mxu0 %v1952
    %3312 = vmatprep.subr.bf16.mxu0 %v1961
    %3313 = vmatpush1.bf16.msra.mxu0 %v1960
    %3314 = vmatprep.subr.bf16.mxu0 %v1969
    %3315 = vmatpush1.bf16.msra.mxu0 %v1968
    %3316 = vmatprep.subr.bf16.mxu0 %v1977
    %3317 = vmatpush1.bf16.msra.mxu0 %v1976
    %3318 = vmatprep.subr.bf16.mxu0 %v1985
    %3319 = vmatpush1.bf16.msra.mxu0 %v1984
    %3320 = vmatprep.subr.bf16.mxu0 %v1993
    %3321 = vmatpush1.bf16.msra.mxu0 %v1992
    %3322 = vmatprep.subr.bf16.mxu0 %v2001
    %3323 = vmatpush1.bf16.msra.mxu0 %v2000
    %3324 = vmatprep.subr.bf16.mxu0 %v2009
    %3325 = vmatpush1.bf16.msra.mxu0 %v2008
    %3326 = vmatprep.subr.bf16.mxu0 %v2017
    %3327 = vmatpush1.bf16.msra.mxu0 %v2016
    %3328 = vmatprep.subr.bf16.mxu0 %v2025
    %3329 = vmatpush1.bf16.msra.mxu0 %v2024
    %3330 = vmatprep.subr.bf16.mxu0 %v2033
    %3331 = vmatpush1.bf16.msra.mxu0 %v2032
    %3332 = vmatprep.subr.bf16.mxu0 %v2041
    %3333 = vmatpush1.bf16.msra.mxu0 %v2040
    %3334 = vmatprep.mubr.bf16.mxu0 %v557
    %3335 = vmatmul.mubr.bf16.gmra.mrb[0].mxu0 %v556
    %v3336 = vpop.f32.mrb[0].mxu0
    %v3337 = vadd.f32 0.0, %v3336
    %v3338 = vpop.f32.mrb[0].mxu0
    %v3339 = vadd.f32 0.0, %v3338
    %v3340 = vpop.f32.mrb[0].mxu0
    %v3341 = vpop.f32.mrb[0].mxu0
    %3342 = vdwg.mxu0
    %3343 = vmatprep.subr.bf16.mxu0 %v2049
    %3344 = vmatpush1.bf16.msra.mxu0 %v2048
    %3345 = vmatprep.subr.bf16.mxu0 %v2057
    %3346 = vmatpush1.bf16.msra.mxu0 %v2056
    %3347 = vmatprep.subr.bf16.mxu0 %v2065
    %3348 = vmatpush1.bf16.msra.mxu0 %v2064
    %3349 = vmatprep.subr.bf16.mxu0 %v2073
    %3350 = vmatpush1.bf16.msra.mxu0 %v2072
    %3351 = vmatprep.subr.bf16.mxu0 %v2081
    %3352 = vmatpush1.bf16.msra.mxu0 %v2080
    %3353 = vmatprep.subr.bf16.mxu0 %v2089
    %3354 = vmatpush1.bf16.msra.mxu0 %v2088
    %3355 = vmatprep.subr.bf16.mxu0 %v2097
    %3356 = vmatpush1.bf16.msra.mxu0 %v2096
    %3357 = vmatprep.subr.bf16.mxu0 %v2105
    %3358 = vmatpush1.bf16.msra.mxu0 %v2104
    %3359 = vmatprep.subr.bf16.mxu0 %v2113
    %3360 = vmatpush1.bf16.msra.mxu0 %v2112
    %3361 = vmatprep.subr.bf16.mxu0 %v2121
    %3362 = vmatpush1.bf16.msra.mxu0 %v2120
    %3363 = vmatprep.subr.bf16.mxu0 %v2129
    %3364 = vmatpush1.bf16.msra.mxu0 %v2128
    %3365 = vmatprep.subr.bf16.mxu0 %v2137
    %3366 = vmatpush1.bf16.msra.mxu0 %v2136
    %3367 = vmatprep.subr.bf16.mxu0 %v2145
    %3368 = vmatpush1.bf16.msra.mxu0 %v2144
    %3369 = vmatprep.subr.bf16.mxu0 %v2153
    %3370 = vmatpush1.bf16.msra.mxu0 %v2152
    %3371 = vmatprep.subr.bf16.mxu0 %v2161
    %3372 = vmatpush1.bf16.msra.mxu0 %v2160
    %3373 = vmatprep.subr.bf16.mxu0 %v2169
    %3374 = vmatpush1.bf16.msra.mxu0 %v2168
    %3375 = vmatprep.mubr.bf16.mxu0 %v559
    %3376 = vmatmul.mubr.bf16.gmra.mrb[0].mxu0 %v558
    %v3377 = vpop.f32.mrb[0].mxu0
    %v3378 = vadd.f32 %v3337, %v3377
    %v3379 = vpop.f32.mrb[0].mxu0
    %v3380 = vadd.f32 %v3339, %v3379
    %v3381 = vpop.f32.mrb[0].mxu0
    %v3382 = vpop.f32.mrb[0].mxu0
    %3383 = vdwg.mxu0
    %3384 = vmatprep.subr.bf16.mxu0 %v2177
    %3385 = vmatpush1.bf16.msra.mxu0 %v2176
    %3386 = vmatprep.subr.bf16.mxu0 %v2185
    %3387 = vmatpush1.bf16.msra.mxu0 %v2184
    %3388 = vmatprep.subr.bf16.mxu0 %v2193
    %3389 = vmatpush1.bf16.msra.mxu0 %v2192
    %3390 = vmatprep.subr.bf16.mxu0 %v2201
    %3391 = vmatpush1.bf16.msra.mxu0 %v2200
    %3392 = vmatprep.subr.bf16.mxu0 %v2209
    %3393 = vmatpush1.bf16.msra.mxu0 %v2208
    %3394 = vmatprep.subr.bf16.mxu0 %v2217
    %3395 = vmatpush1.bf16.msra.mxu0 %v2216
    %3396 = vmatprep.subr.bf16.mxu0 %v2225
    %3397 = vmatpush1.bf16.msra.mxu0 %v2224
    %3398 = vmatprep.subr.bf16.mxu0 %v2233
    %3399 = vmatpush1.bf16.msra.mxu0 %v2232
    %3400 = vmatprep.subr.bf16.mxu0 %v2241
    %3401 = vmatpush1.bf16.msra.mxu0 %v2240
    %3402 = vmatprep.subr.bf16.mxu0 %v2249
    %3403 = vmatpush1.bf16.msra.mxu0 %v2248
    %3404 = vmatprep.subr.bf16.mxu0 %v2257
    %3405 = vmatpush1.bf16.msra.mxu0 %v2256
    %3406 = vmatprep.subr.bf16.mxu0 %v2265
    %3407 = vmatpush1.bf16.msra.mxu0 %v2264
    %3408 = vmatprep.subr.bf16.mxu0 %v2273
    %3409 = vmatpush1.bf16.msra.mxu0 %v2272
    %3410 = vmatprep.subr.bf16.mxu0 %v2281
    %3411 = vmatpush1.bf16.msra.mxu0 %v2280
    %3412 = vmatprep.subr.bf16.mxu0 %v2289
    %3413 = vmatpush1.bf16.msra.mxu0 %v2288
    %3414 = vmatprep.subr.bf16.mxu0 %v2297
    %3415 = vmatpush1.bf16.msra.mxu0 %v2296
    %3416 = vmatprep.mubr.bf16.mxu0 %v561
    %3417 = vmatmul.mubr.bf16.gmra.mrb[0].mxu0 %v560
    %v3418 = vpop.f32.mrb[0].mxu0
    %v3419 = vadd.f32 %v3378, %v3418
    %v3420 = vpop.f32.mrb[0].mxu0
    %v3421 = vadd.f32 %v3380, %v3420
    %v3422 = vpop.f32.mrb[0].mxu0
    %v3423 = vpop.f32.mrb[0].mxu0
    %3424 = vdwg.mxu0
    %3425 = vmatprep.subr.bf16.mxu0 %v2305
    %3426 = vmatpush1.bf16.msra.mxu0 %v2304
    %3427 = vmatprep.subr.bf16.mxu0 %v2313
    %3428 = vmatpush1.bf16.msra.mxu0 %v2312
    %3429 = vmatprep.subr.bf16.mxu0 %v2321
    %3430 = vmatpush1.bf16.msra.mxu0 %v2320
    %3431 = vmatprep.subr.bf16.mxu0 %v2329
    %3432 = vmatpush1.bf16.msra.mxu0 %v2328
    %3433 = vmatprep.subr.bf16.mxu0 %v2337
    %3434 = vmatpush1.bf16.msra.mxu0 %v2336
    %3435 = vmatprep.subr.bf16.mxu0 %v2345
    %3436 = vmatpush1.bf16.msra.mxu0 %v2344
    %3437 = vmatprep.subr.bf16.mxu0 %v2353
    %3438 = vmatpush1.bf16.msra.mxu0 %v2352
    %3439 = vmatprep.subr.bf16.mxu0 %v2361
    %3440 = vmatpush1.bf16.msra.mxu0 %v2360
    %3441 = vmatprep.subr.bf16.mxu0 0
    %3442 = vmatpush1.bf16.msra.mxu0 0
    %3443 = vmatprep.subr.bf16.mxu0 0
    %3444 = vmatpush1.bf16.msra.mxu0 0
    %3445 = vmatprep.subr.bf16.mxu0 0
    %3446 = vmatpush1.bf16.msra.mxu0 0
    %3447 = vmatprep.subr.bf16.mxu0 0
    %3448 = vmatpush1.bf16.msra.mxu0 0
    %3449 = vmatprep.subr.bf16.mxu0 0
    %3450 = vmatpush1.bf16.msra.mxu0 0
    %3451 = vmatprep.subr.bf16.mxu0 0
    %3452 = vmatpush1.bf16.msra.mxu0 0
    %3453 = vmatprep.subr.bf16.mxu0 0
    %3454 = vmatpush1.bf16.msra.mxu0 0
    %3455 = vmatprep.subr.bf16.mxu0 0
    %3456 = vmatpush1.bf16.msra.mxu0 0
    %3457 = vmatprep.mubr.bf16.mxu0 0
    %3458 = vmatmul.mubr.bf16.gmra.mrb[0].mxu0 %v562
    %v3459 = vpop.f32.mrb[0].mxu0
    %v3460 = vadd.f32 %v3419, %v3459
    %v3461 = vpop.f32.mrb[0].mxu0
    %v3462 = vadd.f32 %v3421, %v3461
    %v3463 = vpop.f32.mrb[0].mxu0
    %v3464 = vpop.f32.mrb[0].mxu0
    %3465 = vdwg.mxu0
    %v3466 = vmax.f32 %v2968, 0.0
    %v3467 = vmax.f32 %v2970, 0.0
    %v3468 = vmax.f32 %v3132, 0.0
    %v3469 = vmax.f32 %v3134, 0.0
    %v3470 = vmax.f32 %v3296, 0.0
    %v3471 = vmax.f32 %v3298, 0.0
    %v3472 = vmax.f32 %v3460, 0.0
    %v3473 = vmax.f32 %v3462, 0.0
    %v3474 = vpack.c.bf16 %v3466, %v3466
    %v3475 = vpack.c.bf16 %v3467, %v3467
    %v3476 = vpack.c.bf16 %v3468, %v3468
    %v3477 = vpack.c.bf16 %v3469, %v3469
    %v3478 = vpack.c.bf16 %v3470, %v3470
    %v3479 = vpack.c.bf16 %v3471, %v3471
    %v3480 = vpack.c.bf16 %v3472, %v3472
    %v3481 = vpack.c.bf16 %v3473, %v3473
    %v3482 = vld [vmem:[#allocation5] sm:$0xff]
    %v3483 = vld [vmem:[#allocation5 + $0x8] sm:$0xff]
    %v3484 = vld [vmem:[#allocation5 + $0x10] sm:$0xff]
    %v3485 = vld [vmem:[#allocation5 + $0x18] sm:$0xff]
    %v3486 = vld [vmem:[#allocation5 + $0x20] sm:$0xff]
    %v3487 = vld [vmem:[#allocation5 + $0x28] sm:$0xff]
    %v3488 = vld [vmem:[#allocation5 + $0x30] sm:$0xff]
    %v3489 = vld [vmem:[#allocation5 + $0x38] sm:$0xff]
    %v3490 = vld [vmem:[#allocation5 + $0x40] sm:$0xff]
    %v3491 = vld [vmem:[#allocation5 + $0x48] sm:$0xff]
    %v3492 = vld [vmem:[#allocation5 + $0x50] sm:$0xff]
    %v3493 = vld [vmem:[#allocation5 + $0x58] sm:$0xff]
    %v3494 = vld [vmem:[#allocation5 + $0x60] sm:$0xff]
    %v3495 = vld [vmem:[#allocation5 + $0x68] sm:$0xff]
    %v3496 = vld [vmem:[#allocation5 + $0x70] sm:$0xff]
    %v3497 = vld [vmem:[#allocation5 + $0x78] sm:$0xff]
    %v3498 = vld [vmem:[#allocation5 + $0x80] sm:$0xff]
    %v3499 = vld [vmem:[#allocation5 + $0x88] sm:$0xff]
    %v3500 = vld [vmem:[#allocation5 + $0x90] sm:$0xff]
    %v3501 = vld [vmem:[#allocation5 + $0x98] sm:$0xff]
    %v3502 = vld [vmem:[#allocation5 + $0xa0] sm:$0xff]
    %v3503 = vld [vmem:[#allocation5 + $0xa8] sm:$0xff]
    %v3504 = vld [vmem:[#allocation5 + $0xb0] sm:$0xff]
    %v3505 = vld [vmem:[#allocation5 + $0xb8] sm:$0xff]
    %v3506 = vld [vmem:[#allocation5 + $0xc0] sm:$0xff]
    %v3507 = vld [vmem:[#allocation5 + $0xc8] sm:$0xff]
    %v3508 = vld [vmem:[#allocation5 + $0xd0] sm:$0xff]
    %v3509 = vld [vmem:[#allocation5 + $0xd8] sm:$0xff]
    %v3510 = vld [vmem:[#allocation5 + $0xe0] sm:$0xff]
    %v3511 = vld [vmem:[#allocation5 + $0xe8] sm:$0xff]
    %v3512 = vld [vmem:[#allocation5 + $0xf0] sm:$0xff]
    %v3513 = vld [vmem:[#allocation5 + $0xf8] sm:$0xff]
    %v3514 = vld [vmem:[#allocation5 + $0x100] sm:$0xff]
    %v3515 = vld [vmem:[#allocation5 + $0x108] sm:$0xff]
    %v3516 = vld [vmem:[#allocation5 + $0x110] sm:$0xff]
    %v3517 = vld [vmem:[#allocation5 + $0x118] sm:$0xff]
    %v3518 = vld [vmem:[#allocation5 + $0x120] sm:$0xff]
    %v3519 = vld [vmem:[#allocation5 + $0x128] sm:$0xff]
    %v3520 = vld [vmem:[#allocation5 + $0x130] sm:$0xff]
    %v3521 = vld [vmem:[#allocation5 + $0x138] sm:$0xff]
    %v3522 = vld [vmem:[#allocation5 + $0x140] sm:$0xff]
    %v3523 = vld [vmem:[#allocation5 + $0x148] sm:$0xff]
    %v3524 = vld [vmem:[#allocation5 + $0x150] sm:$0xff]
    %v3525 = vld [vmem:[#allocation5 + $0x158] sm:$0xff]
    %v3526 = vld [vmem:[#allocation5 + $0x160] sm:$0xff]
    %v3527 = vld [vmem:[#allocation5 + $0x168] sm:$0xff]
    %v3528 = vld [vmem:[#allocation5 + $0x170] sm:$0xff]
    %v3529 = vld [vmem:[#allocation5 + $0x178] sm:$0xff]
    %v3530 = vld [vmem:[#allocation5 + $0x180] sm:$0xff]
    %v3531 = vld [vmem:[#allocation5 + $0x188] sm:$0xff]
    %v3532 = vld [vmem:[#allocation5 + $0x190] sm:$0xff]
    %v3533 = vld [vmem:[#allocation5 + $0x198] sm:$0xff]
    %v3534 = vld [vmem:[#allocation5 + $0x1a0] sm:$0xff]
    %v3535 = vld [vmem:[#allocation5 + $0x1a8] sm:$0xff]
    %v3536 = vld [vmem:[#allocation5 + $0x1b0] sm:$0xff]
    %v3537 = vld [vmem:[#allocation5 + $0x1b8] sm:$0xff]
    %v3538 = vld [vmem:[#allocation5 + $0x1c0] sm:$0xff]
    %v3539 = vld [vmem:[#allocation5 + $0x1c8] sm:$0xff]
    %v3540 = vld [vmem:[#allocation5 + $0x1d0] sm:$0xff]
    %v3541 = vld [vmem:[#allocation5 + $0x1d8] sm:$0xff]
    %v3542 = vld [vmem:[#allocation5 + $0x1e0] sm:$0xff]
    %v3543 = vld [vmem:[#allocation5 + $0x1e8] sm:$0xff]
    %v3544 = vld [vmem:[#allocation5 + $0x1f0] sm:$0xff]
    %v3545 = vld [vmem:[#allocation5 + $0x1f8] sm:$0xff]
    %v3546 = vld [vmem:[#allocation5 + $0x200] sm:$0xff]
    %v3547 = vld [vmem:[#allocation5 + $0x208] sm:$0xff]
    %v3548 = vld [vmem:[#allocation5 + $0x210] sm:$0xff]
    %v3549 = vld [vmem:[#allocation5 + $0x218] sm:$0xff]
    %v3550 = vld [vmem:[#allocation5 + $0x220] sm:$0xff]
    %v3551 = vld [vmem:[#allocation5 + $0x228] sm:$0xff]
    %v3552 = vld [vmem:[#allocation5 + $0x230] sm:$0xff]
    %v3553 = vld [vmem:[#allocation5 + $0x238] sm:$0xff]
    %v3554 = vld [vmem:[#allocation5 + $0x240] sm:$0xff]
    %v3555 = vld [vmem:[#allocation5 + $0x248] sm:$0xff]
    %v3556 = vld [vmem:[#allocation5 + $0x250] sm:$0xff]
    %v3557 = vld [vmem:[#allocation5 + $0x258] sm:$0xff]
    %v3558 = vld [vmem:[#allocation5 + $0x260] sm:$0xff]
    %v3559 = vld [vmem:[#allocation5 + $0x268] sm:$0xff]
    %v3560 = vld [vmem:[#allocation5 + $0x270] sm:$0xff]
    %v3561 = vld [vmem:[#allocation5 + $0x278] sm:$0xff]
    %v3562 = vld [vmem:[#allocation5 + $0x280] sm:$0xff]
    %v3563 = vld [vmem:[#allocation5 + $0x288] sm:$0xff]
    %v3564 = vld [vmem:[#allocation5 + $0x290] sm:$0xff]
    %v3565 = vld [vmem:[#allocation5 + $0x298] sm:$0xff]
    %v3566 = vld [vmem:[#allocation5 + $0x2a0] sm:$0xff]
    %v3567 = vld [vmem:[#allocation5 + $0x2a8] sm:$0xff]
    %v3568 = vld [vmem:[#allocation5 + $0x2b0] sm:$0xff]
    %v3569 = vld [vmem:[#allocation5 + $0x2b8] sm:$0xff]
    %v3570 = vld [vmem:[#allocation5 + $0x2c0] sm:$0xff]
    %v3571 = vld [vmem:[#allocation5 + $0x2c8] sm:$0xff]
    %v3572 = vld [vmem:[#allocation5 + $0x2d0] sm:$0xff]
    %v3573 = vld [vmem:[#allocation5 + $0x2d8] sm:$0xff]
    %v3574 = vld [vmem:[#allocation5 + $0x2e0] sm:$0xff]
    %v3575 = vld [vmem:[#allocation5 + $0x2e8] sm:$0xff]
    %v3576 = vld [vmem:[#allocation5 + $0x2f0] sm:$0xff]
    %v3577 = vld [vmem:[#allocation5 + $0x2f8] sm:$0xff]
    %v3578 = vld [vmem:[#allocation5 + $0x300] sm:$0xff]
    %v3579 = vld [vmem:[#allocation5 + $0x308] sm:$0xff]
    %v3580 = vld [vmem:[#allocation5 + $0x310] sm:$0xff]
    %v3581 = vld [vmem:[#allocation5 + $0x318] sm:$0xff]
    %v3582 = vld [vmem:[#allocation5 + $0x320] sm:$0xff]
    %v3583 = vld [vmem:[#allocation5 + $0x328] sm:$0xff]
    %v3584 = vld [vmem:[#allocation5 + $0x330] sm:$0xff]
    %v3585 = vld [vmem:[#allocation5 + $0x338] sm:$0xff]
    %v3586 = vld [vmem:[#allocation5 + $0x340] sm:$0xff]
    %v3587 = vld [vmem:[#allocation5 + $0x348] sm:$0xff]
    %v3588 = vld [vmem:[#allocation5 + $0x350] sm:$0xff]
    %v3589 = vld [vmem:[#allocation5 + $0x358] sm:$0xff]
    %v3590 = vld [vmem:[#allocation5 + $0x360] sm:$0xff]
    %v3591 = vld [vmem:[#allocation5 + $0x368] sm:$0xff]
    %v3592 = vld [vmem:[#allocation5 + $0x370] sm:$0xff]
    %v3593 = vld [vmem:[#allocation5 + $0x378] sm:$0xff]
    %v3594 = vld [vmem:[#allocation5 + $0x380] sm:$0xff]
    %v3595 = vld [vmem:[#allocation5 + $0x388] sm:$0xff]
    %v3596 = vld [vmem:[#allocation5 + $0x390] sm:$0xff]
    %v3597 = vld [vmem:[#allocation5 + $0x398] sm:$0xff]
    %v3598 = vld [vmem:[#allocation5 + $0x3a0] sm:$0xff]
    %v3599 = vld [vmem:[#allocation5 + $0x3a8] sm:$0xff]
    %v3600 = vld [vmem:[#allocation5 + $0x3b0] sm:$0xff]
    %v3601 = vld [vmem:[#allocation5 + $0x3b8] sm:$0xff]
    %v3602 = vld [vmem:[#allocation5 + $0x3c0] sm:$0xff]
    %v3603 = vld [vmem:[#allocation5 + $0x3c8] sm:$0xff]
    %v3604 = vld [vmem:[#allocation5 + $0x3d0] sm:$0xff]
    %v3605 = vld [vmem:[#allocation5 + $0x3d8] sm:$0xff]
    %v3606 = vld [vmem:[#allocation5 + $0x3e0] sm:$0xff]
    %v3607 = vld [vmem:[#allocation5 + $0x3e8] sm:$0xff]
    %v3608 = vld [vmem:[#allocation5 + $0x3f0] sm:$0xff]
    %v3609 = vld [vmem:[#allocation5 + $0x3f8] sm:$0xff]
    %v3610 = vld [vmem:[#allocation5 + $0x400] sm:$0xff]
    %v3611 = vld [vmem:[#allocation5 + $0x408] sm:$0xff]
    %v3612 = vld [vmem:[#allocation5 + $0x410] sm:$0xff]
    %v3613 = vld [vmem:[#allocation5 + $0x418] sm:$0xff]
    %v3614 = vld [vmem:[#allocation5 + $0x420] sm:$0xff]
    %v3615 = vld [vmem:[#allocation5 + $0x428] sm:$0xff]
    %v3616 = vld [vmem:[#allocation5 + $0x430] sm:$0xff]
    %v3617 = vld [vmem:[#allocation5 + $0x438] sm:$0xff]
    %v3618 = vld [vmem:[#allocation5 + $0x440] sm:$0xff]
    %v3619 = vld [vmem:[#allocation5 + $0x448] sm:$0xff]
    %v3620 = vld [vmem:[#allocation5 + $0x450] sm:$0xff]
    %v3621 = vld [vmem:[#allocation5 + $0x458] sm:$0xff]
    %v3622 = vld [vmem:[#allocation5 + $0x460] sm:$0xff]
    %v3623 = vld [vmem:[#allocation5 + $0x468] sm:$0xff]
    %v3624 = vld [vmem:[#allocation5 + $0x470] sm:$0xff]
    %v3625 = vld [vmem:[#allocation5 + $0x478] sm:$0xff]
    %v3626 = vld [vmem:[#allocation5 + $0x480] sm:$0xff]
    %v3627 = vld [vmem:[#allocation5 + $0x488] sm:$0xff]
    %v3628 = vld [vmem:[#allocation5 + $0x490] sm:$0xff]
    %v3629 = vld [vmem:[#allocation5 + $0x498] sm:$0xff]
    %v3630 = vld [vmem:[#allocation5 + $0x4a0] sm:$0xff]
    %v3631 = vld [vmem:[#allocation5 + $0x4a8] sm:$0xff]
    %v3632 = vld [vmem:[#allocation5 + $0x4b0] sm:$0xff]
    %v3633 = vld [vmem:[#allocation5 + $0x4b8] sm:$0xff]
    %v3634 = vld [vmem:[#allocation5 + $0x4c0] sm:$0xff]
    %v3635 = vld [vmem:[#allocation5 + $0x4c8] sm:$0xff]
    %v3636 = vld [vmem:[#allocation5 + $0x4d0] sm:$0xff]
    %v3637 = vld [vmem:[#allocation5 + $0x4d8] sm:$0xff]
    %v3638 = vld [vmem:[#allocation5 + $0x4e0] sm:$0xff]
    %v3639 = vld [vmem:[#allocation5 + $0x4e8] sm:$0xff]
    %v3640 = vld [vmem:[#allocation5 + $0x4f0] sm:$0xff]
    %v3641 = vld [vmem:[#allocation5 + $0x4f8] sm:$0xff]
    %v3642 = vld [vmem:[#allocation5 + $0x500] sm:$0xff]
    %v3643 = vld [vmem:[#allocation5 + $0x508] sm:$0xff]
    %v3644 = vld [vmem:[#allocation5 + $0x510] sm:$0xff]
    %v3645 = vld [vmem:[#allocation5 + $0x518] sm:$0xff]
    %v3646 = vld [vmem:[#allocation5 + $0x520] sm:$0xff]
    %v3647 = vld [vmem:[#allocation5 + $0x528] sm:$0xff]
    %v3648 = vld [vmem:[#allocation5 + $0x530] sm:$0xff]
    %v3649 = vld [vmem:[#allocation5 + $0x538] sm:$0xff]
    %v3650 = vld [vmem:[#allocation5 + $0x540] sm:$0xff]
    %v3651 = vld [vmem:[#allocation5 + $0x548] sm:$0xff]
    %v3652 = vld [vmem:[#allocation5 + $0x550] sm:$0xff]
    %v3653 = vld [vmem:[#allocation5 + $0x558] sm:$0xff]
    %v3654 = vld [vmem:[#allocation5 + $0x560] sm:$0xff]
    %v3655 = vld [vmem:[#allocation5 + $0x568] sm:$0xff]
    %v3656 = vld [vmem:[#allocation5 + $0x570] sm:$0xff]
    %v3657 = vld [vmem:[#allocation5 + $0x578] sm:$0xff]
    %v3658 = vld [vmem:[#allocation5 + $0x580] sm:$0xff]
    %v3659 = vld [vmem:[#allocation5 + $0x588] sm:$0xff]
    %v3660 = vld [vmem:[#allocation5 + $0x590] sm:$0xff]
    %v3661 = vld [vmem:[#allocation5 + $0x598] sm:$0xff]
    %v3662 = vld [vmem:[#allocation5 + $0x5a0] sm:$0xff]
    %v3663 = vld [vmem:[#allocation5 + $0x5a8] sm:$0xff]
    %v3664 = vld [vmem:[#allocation5 + $0x5b0] sm:$0xff]
    %v3665 = vld [vmem:[#allocation5 + $0x5b8] sm:$0xff]
    %v3666 = vld [vmem:[#allocation5 + $0x5c0] sm:$0xff]
    %v3667 = vld [vmem:[#allocation5 + $0x5c8] sm:$0xff]
    %v3668 = vld [vmem:[#allocation5 + $0x5d0] sm:$0xff]
    %v3669 = vld [vmem:[#allocation5 + $0x5d8] sm:$0xff]
    %v3670 = vld [vmem:[#allocation5 + $0x5e0] sm:$0xff]
    %v3671 = vld [vmem:[#allocation5 + $0x5e8] sm:$0xff]
    %v3672 = vld [vmem:[#allocation5 + $0x5f0] sm:$0xff]
    %v3673 = vld [vmem:[#allocation5 + $0x5f8] sm:$0xff]
    %v3674 = vld [vmem:[#allocation5 + $0x600] sm:$0xff]
    %v3675 = vld [vmem:[#allocation5 + $0x608] sm:$0xff]
    %v3676 = vld [vmem:[#allocation5 + $0x610] sm:$0xff]
    %v3677 = vld [vmem:[#allocation5 + $0x618] sm:$0xff]
    %v3678 = vld [vmem:[#allocation5 + $0x620] sm:$0xff]
    %v3679 = vld [vmem:[#allocation5 + $0x628] sm:$0xff]
    %v3680 = vld [vmem:[#allocation5 + $0x630] sm:$0xff]
    %v3681 = vld [vmem:[#allocation5 + $0x638] sm:$0xff]
    %v3682 = vld [vmem:[#allocation5 + $0x640] sm:$0xff]
    %v3683 = vld [vmem:[#allocation5 + $0x648] sm:$0xff]
    %v3684 = vld [vmem:[#allocation5 + $0x650] sm:$0xff]
    %v3685 = vld [vmem:[#allocation5 + $0x658] sm:$0xff]
    %v3686 = vld [vmem:[#allocation5 + $0x660] sm:$0xff]
    %v3687 = vld [vmem:[#allocation5 + $0x668] sm:$0xff]
    %v3688 = vld [vmem:[#allocation5 + $0x670] sm:$0xff]
    %v3689 = vld [vmem:[#allocation5 + $0x678] sm:$0xff]
    %v3690 = vld [vmem:[#allocation5 + $0x680] sm:$0xff]
    %v3691 = vld [vmem:[#allocation5 + $0x688] sm:$0xff]
    %v3692 = vld [vmem:[#allocation5 + $0x690] sm:$0xff]
    %v3693 = vld [vmem:[#allocation5 + $0x698] sm:$0xff]
    %v3694 = vld [vmem:[#allocation5 + $0x6a0] sm:$0xff]
    %v3695 = vld [vmem:[#allocation5 + $0x6a8] sm:$0xff]
    %v3696 = vld [vmem:[#allocation5 + $0x6b0] sm:$0xff]
    %v3697 = vld [vmem:[#allocation5 + $0x6b8] sm:$0xff]
    %v3698 = vld [vmem:[#allocation5 + $0x6c0] sm:$0xff]
    %v3699 = vld [vmem:[#allocation5 + $0x6c8] sm:$0xff]
    %v3700 = vld [vmem:[#allocation5 + $0x6d0] sm:$0xff]
    %v3701 = vld [vmem:[#allocation5 + $0x6d8] sm:$0xff]
    %v3702 = vld [vmem:[#allocation5 + $0x6e0] sm:$0xff]
    %v3703 = vld [vmem:[#allocation5 + $0x6e8] sm:$0xff]
    %v3704 = vld [vmem:[#allocation5 + $0x6f0] sm:$0xff]
    %v3705 = vld [vmem:[#allocation5 + $0x6f8] sm:$0xff]
    %v3706 = vld [vmem:[#allocation5 + $0x700] sm:$0xff]
    %v3707 = vld [vmem:[#allocation5 + $0x708] sm:$0xff]
    %v3708 = vld [vmem:[#allocation5 + $0x710] sm:$0xff]
    %v3709 = vld [vmem:[#allocation5 + $0x718] sm:$0xff]
    %v3710 = vld [vmem:[#allocation5 + $0x720] sm:$0xff]
    %v3711 = vld [vmem:[#allocation5 + $0x728] sm:$0xff]
    %v3712 = vld [vmem:[#allocation5 + $0x730] sm:$0xff]
    %v3713 = vld [vmem:[#allocation5 + $0x738] sm:$0xff]
    %v3714 = vld [vmem:[#allocation5 + $0x740] sm:$0xff]
    %v3715 = vld [vmem:[#allocation5 + $0x748] sm:$0xff]
    %v3716 = vld [vmem:[#allocation5 + $0x750] sm:$0xff]
    %v3717 = vld [vmem:[#allocation5 + $0x758] sm:$0xff]
    %v3718 = vld [vmem:[#allocation5 + $0x760] sm:$0xff]
    %v3719 = vld [vmem:[#allocation5 + $0x768] sm:$0xff]
    %v3720 = vld [vmem:[#allocation5 + $0x770] sm:$0xff]
    %v3721 = vld [vmem:[#allocation5 + $0x778] sm:$0xff]
    %v3722 = vld [vmem:[#allocation5 + $0x780] sm:$0xff]
    %v3723 = vld [vmem:[#allocation5 + $0x788] sm:$0xff]
    %v3724 = vld [vmem:[#allocation5 + $0x790] sm:$0xff]
    %v3725 = vld [vmem:[#allocation5 + $0x798] sm:$0xff]
    %v3726 = vld [vmem:[#allocation5 + $0x7a0] sm:$0xff]
    %v3727 = vld [vmem:[#allocation5 + $0x7a8] sm:$0xff]
    %v3728 = vld [vmem:[#allocation5 + $0x7b0] sm:$0xff]
    %v3729 = vld [vmem:[#allocation5 + $0x7b8] sm:$0xff]
    %v3730 = vld [vmem:[#allocation5 + $0x7c0] sm:$0xff]
    %v3731 = vld [vmem:[#allocation5 + $0x7c8] sm:$0xff]
    %v3732 = vld [vmem:[#allocation5 + $0x7d0] sm:$0xff]
    %v3733 = vld [vmem:[#allocation5 + $0x7d8] sm:$0xff]
    %v3734 = vld [vmem:[#allocation5 + $0x7e0] sm:$0xff]
    %v3735 = vld [vmem:[#allocation5 + $0x7e8] sm:$0xff]
    %v3736 = vld [vmem:[#allocation5 + $0x7f0] sm:$0xff]
    %v3737 = vld [vmem:[#allocation5 + $0x7f8] sm:$0xff]
    %v3738 = vld [vmem:[#allocation5 + $0x800] sm:$0xff]
    %v3739 = vld [vmem:[#allocation5 + $0x808] sm:$0xff]
    %v3740 = vld [vmem:[#allocation5 + $0x810] sm:$0xff]
    %v3741 = vld [vmem:[#allocation5 + $0x818] sm:$0xff]
    %v3742 = vld [vmem:[#allocation5 + $0x820] sm:$0xff]
    %v3743 = vld [vmem:[#allocation5 + $0x828] sm:$0xff]
    %v3744 = vld [vmem:[#allocation5 + $0x830] sm:$0xff]
    %v3745 = vld [vmem:[#allocation5 + $0x838] sm:$0xff]
    %v3746 = vld [vmem:[#allocation5 + $0x840] sm:$0xff]
    %v3747 = vld [vmem:[#allocation5 + $0x848] sm:$0xff]
    %v3748 = vld [vmem:[#allocation5 + $0x850] sm:$0xff]
    %v3749 = vld [vmem:[#allocation5 + $0x858] sm:$0xff]
    %v3750 = vld [vmem:[#allocation5 + $0x860] sm:$0xff]
    %v3751 = vld [vmem:[#allocation5 + $0x868] sm:$0xff]
    %v3752 = vld [vmem:[#allocation5 + $0x870] sm:$0xff]
    %v3753 = vld [vmem:[#allocation5 + $0x878] sm:$0xff]
    %v3754 = vld [vmem:[#allocation5 + $0x880] sm:$0xff]
    %v3755 = vld [vmem:[#allocation5 + $0x888] sm:$0xff]
    %v3756 = vld [vmem:[#allocation5 + $0x890] sm:$0xff]
    %v3757 = vld [vmem:[#allocation5 + $0x898] sm:$0xff]
    %v3758 = vld [vmem:[#allocation5 + $0x8a0] sm:$0xff]
    %v3759 = vld [vmem:[#allocation5 + $0x8a8] sm:$0xff]
    %v3760 = vld [vmem:[#allocation5 + $0x8b0] sm:$0xff]
    %v3761 = vld [vmem:[#allocation5 + $0x8b8] sm:$0xff]
    %v3762 = vld [vmem:[#allocation5 + $0x8c0] sm:$0xff]
    %v3763 = vld [vmem:[#allocation5 + $0x8c8] sm:$0xff]
    %v3764 = vld [vmem:[#allocation5 + $0x8d0] sm:$0xff]
    %v3765 = vld [vmem:[#allocation5 + $0x8d8] sm:$0xff]
    %v3766 = vld [vmem:[#allocation5 + $0x8e0] sm:$0xff]
    %v3767 = vld [vmem:[#allocation5 + $0x8e8] sm:$0xff]
    %v3768 = vld [vmem:[#allocation5 + $0x8f0] sm:$0xff]
    %v3769 = vld [vmem:[#allocation5 + $0x8f8] sm:$0xff]
    %v3770 = vld [vmem:[#allocation5 + $0x900] sm:$0xff]
    %v3771 = vld [vmem:[#allocation5 + $0x908] sm:$0xff]
    %v3772 = vld [vmem:[#allocation5 + $0x910] sm:$0xff]
    %v3773 = vld [vmem:[#allocation5 + $0x918] sm:$0xff]
    %v3774 = vld [vmem:[#allocation5 + $0x920] sm:$0xff]
    %v3775 = vld [vmem:[#allocation5 + $0x928] sm:$0xff]
    %v3776 = vld [vmem:[#allocation5 + $0x930] sm:$0xff]
    %v3777 = vld [vmem:[#allocation5 + $0x938] sm:$0xff]
    %v3778 = vld [vmem:[#allocation5 + $0x940] sm:$0xff]
    %v3779 = vld [vmem:[#allocation5 + $0x948] sm:$0xff]
    %v3780 = vld [vmem:[#allocation5 + $0x950] sm:$0xff]
    %v3781 = vld [vmem:[#allocation5 + $0x958] sm:$0xff]
    %v3782 = vld [vmem:[#allocation5 + $0x960] sm:$0xff]
    %v3783 = vld [vmem:[#allocation5 + $0x968] sm:$0xff]
    %v3784 = vld [vmem:[#allocation5 + $0x970] sm:$0xff]
    %v3785 = vld [vmem:[#allocation5 + $0x978] sm:$0xff]
    %v3786 = vld [vmem:[#allocation5 + $0x980] sm:$0xff]
    %v3787 = vld [vmem:[#allocation5 + $0x988] sm:$0xff]
    %v3788 = vld [vmem:[#allocation5 + $0x990] sm:$0xff]
    %v3789 = vld [vmem:[#allocation5 + $0x998] sm:$0xff]
    %v3790 = vld [vmem:[#allocation5 + $0x9a0] sm:$0xff]
    %v3791 = vld [vmem:[#allocation5 + $0x9a8] sm:$0xff]
    %v3792 = vld [vmem:[#allocation5 + $0x9b0] sm:$0xff]
    %v3793 = vld [vmem:[#allocation5 + $0x9b8] sm:$0xff]
    %v3794 = vld [vmem:[#allocation5 + $0x9c0] sm:$0xff]
    %v3795 = vld [vmem:[#allocation5 + $0x9c8] sm:$0xff]
    %v3796 = vld [vmem:[#allocation5 + $0x9d0] sm:$0xff]
    %v3797 = vld [vmem:[#allocation5 + $0x9d8] sm:$0xff]
    %v3798 = vld [vmem:[#allocation5 + $0x9e0] sm:$0xff]
    %v3799 = vld [vmem:[#allocation5 + $0x9e8] sm:$0xff]
    %v3800 = vld [vmem:[#allocation5 + $0x9f0] sm:$0xff]
    %v3801 = vld [vmem:[#allocation5 + $0x9f8] sm:$0xff]
    %v3802 = vld [vmem:[#allocation5 + $0xa00] sm:$0xff]
    %v3803 = vld [vmem:[#allocation5 + $0xa08] sm:$0xff]
    %v3804 = vld [vmem:[#allocation5 + $0xa10] sm:$0xff]
    %v3805 = vld [vmem:[#allocation5 + $0xa18] sm:$0xff]
    %v3806 = vld [vmem:[#allocation5 + $0xa20] sm:$0xff]
    %v3807 = vld [vmem:[#allocation5 + $0xa28] sm:$0xff]
    %v3808 = vld [vmem:[#allocation5 + $0xa30] sm:$0xff]
    %v3809 = vld [vmem:[#allocation5 + $0xa38] sm:$0xff]
    %v3810 = vld [vmem:[#allocation5 + $0xa40] sm:$0xff]
    %v3811 = vld [vmem:[#allocation5 + $0xa48] sm:$0xff]
    %v3812 = vld [vmem:[#allocation5 + $0xa50] sm:$0xff]
    %v3813 = vld [vmem:[#allocation5 + $0xa58] sm:$0xff]
    %v3814 = vld [vmem:[#allocation5 + $0xa60] sm:$0xff]
    %v3815 = vld [vmem:[#allocation5 + $0xa68] sm:$0xff]
    %v3816 = vld [vmem:[#allocation5 + $0xa70] sm:$0xff]
    %v3817 = vld [vmem:[#allocation5 + $0xa78] sm:$0xff]
    %v3818 = vld [vmem:[#allocation5 + $0xa80] sm:$0xff]
    %v3819 = vld [vmem:[#allocation5 + $0xa88] sm:$0xff]
    %v3820 = vld [vmem:[#allocation5 + $0xa90] sm:$0xff]
    %v3821 = vld [vmem:[#allocation5 + $0xa98] sm:$0xff]
    %v3822 = vld [vmem:[#allocation5 + $0xaa0] sm:$0xff]
    %v3823 = vld [vmem:[#allocation5 + $0xaa8] sm:$0xff]
    %v3824 = vld [vmem:[#allocation5 + $0xab0] sm:$0xff]
    %v3825 = vld [vmem:[#allocation5 + $0xab8] sm:$0xff]
    %v3826 = vld [vmem:[#allocation5 + $0xac0] sm:$0xff]
    %v3827 = vld [vmem:[#allocation5 + $0xac8] sm:$0xff]
    %v3828 = vld [vmem:[#allocation5 + $0xad0] sm:$0xff]
    %v3829 = vld [vmem:[#allocation5 + $0xad8] sm:$0xff]
    %v3830 = vld [vmem:[#allocation5 + $0xae0] sm:$0xff]
    %v3831 = vld [vmem:[#allocation5 + $0xae8] sm:$0xff]
    %v3832 = vld [vmem:[#allocation5 + $0xaf0] sm:$0xff]
    %v3833 = vld [vmem:[#allocation5 + $0xaf8] sm:$0xff]
    %v3834 = vld [vmem:[#allocation5 + $0xb00] sm:$0xff]
    %v3835 = vld [vmem:[#allocation5 + $0xb08] sm:$0xff]
    %v3836 = vld [vmem:[#allocation5 + $0xb10] sm:$0xff]
    %v3837 = vld [vmem:[#allocation5 + $0xb18] sm:$0xff]
    %v3838 = vld [vmem:[#allocation5 + $0xb20] sm:$0xff]
    %v3839 = vld [vmem:[#allocation5 + $0xb28] sm:$0xff]
    %v3840 = vld [vmem:[#allocation5 + $0xb30] sm:$0xff]
    %v3841 = vld [vmem:[#allocation5 + $0xb38] sm:$0xff]
    %v3842 = vld [vmem:[#allocation5 + $0xb40] sm:$0xff]
    %v3843 = vld [vmem:[#allocation5 + $0xb48] sm:$0xff]
    %v3844 = vld [vmem:[#allocation5 + $0xb50] sm:$0xff]
    %v3845 = vld [vmem:[#allocation5 + $0xb58] sm:$0xff]
    %v3846 = vld [vmem:[#allocation5 + $0xb60] sm:$0xff]
    %v3847 = vld [vmem:[#allocation5 + $0xb68] sm:$0xff]
    %v3848 = vld [vmem:[#allocation5 + $0xb70] sm:$0xff]
    %v3849 = vld [vmem:[#allocation5 + $0xb78] sm:$0xff]
    %v3850 = vld [vmem:[#allocation5 + $0xb80] sm:$0xff]
    %v3851 = vld [vmem:[#allocation5 + $0xb88] sm:$0xff]
    %v3852 = vld [vmem:[#allocation5 + $0xb90] sm:$0xff]
    %v3853 = vld [vmem:[#allocation5 + $0xb98] sm:$0xff]
    %v3854 = vld [vmem:[#allocation5 + $0xba0] sm:$0xff]
    %v3855 = vld [vmem:[#allocation5 + $0xba8] sm:$0xff]
    %v3856 = vld [vmem:[#allocation5 + $0xbb0] sm:$0xff]
    %v3857 = vld [vmem:[#allocation5 + $0xbb8] sm:$0xff]
    %v3858 = vld [vmem:[#allocation5 + $0xbc0] sm:$0xff]
    %v3859 = vld [vmem:[#allocation5 + $0xbc8] sm:$0xff]
    %v3860 = vld [vmem:[#allocation5 + $0xbd0] sm:$0xff]
    %v3861 = vld [vmem:[#allocation5 + $0xbd8] sm:$0xff]
    %v3862 = vld [vmem:[#allocation5 + $0xbe0] sm:$0xff]
    %v3863 = vld [vmem:[#allocation5 + $0xbe8] sm:$0xff]
    %v3864 = vld [vmem:[#allocation5 + $0xbf0] sm:$0xff]
    %v3865 = vld [vmem:[#allocation5 + $0xbf8] sm:$0xff]
    %v3866 = vld [vmem:[#allocation5 + $0xc00] sm:$0xff]
    %v3867 = vld [vmem:[#allocation5 + $0xc08] sm:$0xff]
    %v3868 = vld [vmem:[#allocation5 + $0xc10] sm:$0xff]
    %v3869 = vld [vmem:[#allocation5 + $0xc18] sm:$0xff]
    %v3870 = vld [vmem:[#allocation5 + $0xc20] sm:$0xff]
    %v3871 = vld [vmem:[#allocation5 + $0xc28] sm:$0xff]
    %v3872 = vld [vmem:[#allocation5 + $0xc30] sm:$0xff]
    %v3873 = vld [vmem:[#allocation5 + $0xc38] sm:$0xff]
    %v3874 = vld [vmem:[#allocation5 + $0xc40] sm:$0xff]
    %v3875 = vld [vmem:[#allocation5 + $0xc48] sm:$0xff]
    %v3876 = vld [vmem:[#allocation5 + $0xc50] sm:$0xff]
    %v3877 = vld [vmem:[#allocation5 + $0xc58] sm:$0xff]
    %v3878 = vld [vmem:[#allocation5 + $0xc60] sm:$0xff]
    %v3879 = vld [vmem:[#allocation5 + $0xc68] sm:$0xff]
    %v3880 = vld [vmem:[#allocation5 + $0xc70] sm:$0xff]
    %v3881 = vld [vmem:[#allocation5 + $0xc78] sm:$0xff]
    %v3882 = vld [vmem:[#allocation5 + $0xc80] sm:$0xff]
    %v3883 = vld [vmem:[#allocation5 + $0xc88] sm:$0xff]
    %v3884 = vld [vmem:[#allocation5 + $0xc90] sm:$0xff]
    %v3885 = vld [vmem:[#allocation5 + $0xc98] sm:$0xff]
    %v3886 = vld [vmem:[#allocation5 + $0xca0] sm:$0xff]
    %v3887 = vld [vmem:[#allocation5 + $0xca8] sm:$0xff]
    %v3888 = vld [vmem:[#allocation5 + $0xcb0] sm:$0xff]
    %v3889 = vld [vmem:[#allocation5 + $0xcb8] sm:$0xff]
    %v3890 = vld [vmem:[#allocation5 + $0xcc0] sm:$0xff]
    %v3891 = vld [vmem:[#allocation5 + $0xcc8] sm:$0xff]
    %v3892 = vld [vmem:[#allocation5 + $0xcd0] sm:$0xff]
    %v3893 = vld [vmem:[#allocation5 + $0xcd8] sm:$0xff]
    %v3894 = vld [vmem:[#allocation5 + $0xce0] sm:$0xff]
    %v3895 = vld [vmem:[#allocation5 + $0xce8] sm:$0xff]
    %v3896 = vld [vmem:[#allocation5 + $0xcf0] sm:$0xff]
    %v3897 = vld [vmem:[#allocation5 + $0xcf8] sm:$0xff]
    %v3898 = vld [vmem:[#allocation5 + $0xd00] sm:$0xff]
    %v3899 = vld [vmem:[#allocation5 + $0xd08] sm:$0xff]
    %v3900 = vld [vmem:[#allocation5 + $0xd10] sm:$0xff]
    %v3901 = vld [vmem:[#allocation5 + $0xd18] sm:$0xff]
    %v3902 = vld [vmem:[#allocation5 + $0xd20] sm:$0xff]
    %v3903 = vld [vmem:[#allocation5 + $0xd28] sm:$0xff]
    %v3904 = vld [vmem:[#allocation5 + $0xd30] sm:$0xff]
    %v3905 = vld [vmem:[#allocation5 + $0xd38] sm:$0xff]
    %v3906 = vld [vmem:[#allocation5 + $0xd40] sm:$0xff]
    %v3907 = vld [vmem:[#allocation5 + $0xd48] sm:$0xff]
    %v3908 = vld [vmem:[#allocation5 + $0xd50] sm:$0xff]
    %v3909 = vld [vmem:[#allocation5 + $0xd58] sm:$0xff]
    %v3910 = vld [vmem:[#allocation5 + $0xd60] sm:$0xff]
    %v3911 = vld [vmem:[#allocation5 + $0xd68] sm:$0xff]
    %v3912 = vld [vmem:[#allocation5 + $0xd70] sm:$0xff]
    %v3913 = vld [vmem:[#allocation5 + $0xd78] sm:$0xff]
    %v3914 = vld [vmem:[#allocation5 + $0xd80] sm:$0xff]
    %v3915 = vld [vmem:[#allocation5 + $0xd88] sm:$0xff]
    %v3916 = vld [vmem:[#allocation5 + $0xd90] sm:$0xff]
    %v3917 = vld [vmem:[#allocation5 + $0xd98] sm:$0xff]
    %v3918 = vld [vmem:[#allocation5 + $0xda0] sm:$0xff]
    %v3919 = vld [vmem:[#allocation5 + $0xda8] sm:$0xff]
    %v3920 = vld [vmem:[#allocation5 + $0xdb0] sm:$0xff]
    %v3921 = vld [vmem:[#allocation5 + $0xdb8] sm:$0xff]
    %v3922 = vld [vmem:[#allocation5 + $0xdc0] sm:$0xff]
    %v3923 = vld [vmem:[#allocation5 + $0xdc8] sm:$0xff]
    %v3924 = vld [vmem:[#allocation5 + $0xdd0] sm:$0xff]
    %v3925 = vld [vmem:[#allocation5 + $0xdd8] sm:$0xff]
    %v3926 = vld [vmem:[#allocation5 + $0xde0] sm:$0xff]
    %v3927 = vld [vmem:[#allocation5 + $0xde8] sm:$0xff]
    %v3928 = vld [vmem:[#allocation5 + $0xdf0] sm:$0xff]
    %v3929 = vld [vmem:[#allocation5 + $0xdf8] sm:$0xff]
    %v3930 = vld [vmem:[#allocation5 + $0xe00] sm:$0xff]
    %v3931 = vld [vmem:[#allocation5 + $0xe08] sm:$0xff]
    %v3932 = vld [vmem:[#allocation5 + $0xe10] sm:$0xff]
    %v3933 = vld [vmem:[#allocation5 + $0xe18] sm:$0xff]
    %v3934 = vld [vmem:[#allocation5 + $0xe20] sm:$0xff]
    %v3935 = vld [vmem:[#allocation5 + $0xe28] sm:$0xff]
    %v3936 = vld [vmem:[#allocation5 + $0xe30] sm:$0xff]
    %v3937 = vld [vmem:[#allocation5 + $0xe38] sm:$0xff]
    %v3938 = vld [vmem:[#allocation5 + $0xe40] sm:$0xff]
    %v3939 = vld [vmem:[#allocation5 + $0xe48] sm:$0xff]
    %v3940 = vld [vmem:[#allocation5 + $0xe50] sm:$0xff]
    %v3941 = vld [vmem:[#allocation5 + $0xe58] sm:$0xff]
    %v3942 = vld [vmem:[#allocation5 + $0xe60] sm:$0xff]
    %v3943 = vld [vmem:[#allocation5 + $0xe68] sm:$0xff]
    %v3944 = vld [vmem:[#allocation5 + $0xe70] sm:$0xff]
    %v3945 = vld [vmem:[#allocation5 + $0xe78] sm:$0xff]
    %v3946 = vld [vmem:[#allocation5 + $0xe80] sm:$0xff]
    %v3947 = vld [vmem:[#allocation5 + $0xe88] sm:$0xff]
    %v3948 = vld [vmem:[#allocation5 + $0xe90] sm:$0xff]
    %v3949 = vld [vmem:[#allocation5 + $0xe98] sm:$0xff]
    %v3950 = vld [vmem:[#allocation5 + $0xea0] sm:$0xff]
    %v3951 = vld [vmem:[#allocation5 + $0xea8] sm:$0xff]
    %v3952 = vld [vmem:[#allocation5 + $0xeb0] sm:$0xff]
    %v3953 = vld [vmem:[#allocation5 + $0xeb8] sm:$0xff]
    %v3954 = vld [vmem:[#allocation5 + $0xec0] sm:$0xff]
    %v3955 = vld [vmem:[#allocation5 + $0xec8] sm:$0xff]
    %v3956 = vld [vmem:[#allocation5 + $0xed0] sm:$0xff]
    %v3957 = vld [vmem:[#allocation5 + $0xed8] sm:$0xff]
    %v3958 = vld [vmem:[#allocation5 + $0xee0] sm:$0xff]
    %v3959 = vld [vmem:[#allocation5 + $0xee8] sm:$0xff]
    %v3960 = vld [vmem:[#allocation5 + $0xef0] sm:$0xff]
    %v3961 = vld [vmem:[#allocation5 + $0xef8] sm:$0xff]
    %v3962 = vld [vmem:[#allocation5 + $0xf00] sm:$0xff]
    %v3963 = vld [vmem:[#allocation5 + $0xf08] sm:$0xff]
    %v3964 = vld [vmem:[#allocation5 + $0xf10] sm:$0xff]
    %v3965 = vld [vmem:[#allocation5 + $0xf18] sm:$0xff]
    %v3966 = vld [vmem:[#allocation5 + $0xf20] sm:$0xff]
    %v3967 = vld [vmem:[#allocation5 + $0xf28] sm:$0xff]
    %v3968 = vld [vmem:[#allocation5 + $0xf30] sm:$0xff]
    %v3969 = vld [vmem:[#allocation5 + $0xf38] sm:$0xff]
    %v3970 = vld [vmem:[#allocation5 + $0xf40] sm:$0xff]
    %v3971 = vld [vmem:[#allocation5 + $0xf48] sm:$0xff]
    %v3972 = vld [vmem:[#allocation5 + $0xf50] sm:$0xff]
    %v3973 = vld [vmem:[#allocation5 + $0xf58] sm:$0xff]
    %v3974 = vld [vmem:[#allocation5 + $0xf60] sm:$0xff]
    %v3975 = vld [vmem:[#allocation5 + $0xf68] sm:$0xff]
    %v3976 = vld [vmem:[#allocation5 + $0xf70] sm:$0xff]
    %v3977 = vld [vmem:[#allocation5 + $0xf78] sm:$0xff]
    %v3978 = vld [vmem:[#allocation5 + $0xf80] sm:$0xff]
    %v3979 = vld [vmem:[#allocation5 + $0xf88] sm:$0xff]
    %v3980 = vld [vmem:[#allocation5 + $0xf90] sm:$0xff]
    %v3981 = vld [vmem:[#allocation5 + $0xf98] sm:$0xff]
    %v3982 = vld [vmem:[#allocation5 + $0xfa0] sm:$0xff]
    %v3983 = vld [vmem:[#allocation5 + $0xfa8] sm:$0xff]
    %v3984 = vld [vmem:[#allocation5 + $0xfb0] sm:$0xff]
    %v3985 = vld [vmem:[#allocation5 + $0xfb8] sm:$0xff]
    %v3986 = vld [vmem:[#allocation5 + $0xfc0] sm:$0xff]
    %v3987 = vld [vmem:[#allocation5 + $0xfc8] sm:$0xff]
    %v3988 = vld [vmem:[#allocation5 + $0xfd0] sm:$0xff]
    %v3989 = vld [vmem:[#allocation5 + $0xfd8] sm:$0xff]
    %v3990 = vld [vmem:[#allocation5 + $0xfe0] sm:$0xff]
    %v3991 = vld [vmem:[#allocation5 + $0xfe8] sm:$0xff]
    %v3992 = vld [vmem:[#allocation5 + $0xff0] sm:$0xff]
    %v3993 = vld [vmem:[#allocation5 + $0xff8] sm:$0xff]
    %v4506 = vunpack.c.l.b16 %v3482
    %v4507 = vunpack.c.h.b16 %v3482
    %v4508 = vunpack.c.l.b16 %v3483
    %v4509 = vunpack.c.h.b16 %v3483
    %v4510 = vunpack.c.l.b16 %v3484
    %v4511 = vunpack.c.h.b16 %v3484
    %v4512 = vunpack.c.l.b16 %v3485
    %v4513 = vunpack.c.h.b16 %v3485
    %v4514 = vunpack.c.l.b16 %v3486
    %v4515 = vunpack.c.h.b16 %v3486
    %v4516 = vunpack.c.l.b16 %v3487
    %v4517 = vunpack.c.h.b16 %v3487
    %v4518 = vunpack.c.l.b16 %v3488
    %v4519 = vunpack.c.h.b16 %v3488
    %v4520 = vunpack.c.l.b16 %v3489
    %v4521 = vunpack.c.h.b16 %v3489
    %v4522 = vunpack.c.l.b16 %v3490
    %v4523 = vunpack.c.h.b16 %v3490
    %v4524 = vunpack.c.l.b16 %v3491
    %v4525 = vunpack.c.h.b16 %v3491
    %v4526 = vunpack.c.l.b16 %v3492
    %v4527 = vunpack.c.h.b16 %v3492
    %v4528 = vunpack.c.l.b16 %v3493
    %v4529 = vunpack.c.h.b16 %v3493
    %v4530 = vunpack.c.l.b16 %v3494
    %v4531 = vunpack.c.h.b16 %v3494
    %v4532 = vunpack.c.l.b16 %v3495
    %v4533 = vunpack.c.h.b16 %v3495
    %v4534 = vunpack.c.l.b16 %v3496
    %v4535 = vunpack.c.h.b16 %v3496
    %v4536 = vunpack.c.l.b16 %v3497
    %v4537 = vunpack.c.h.b16 %v3497
    %v4538 = vunpack.c.l.b16 %v3498
    %v4539 = vunpack.c.h.b16 %v3498
    %v4540 = vunpack.c.l.b16 %v3499
    %v4541 = vunpack.c.h.b16 %v3499
    %v4542 = vunpack.c.l.b16 %v3500
    %v4543 = vunpack.c.h.b16 %v3500
    %v4544 = vunpack.c.l.b16 %v3501
    %v4545 = vunpack.c.h.b16 %v3501
    %v4546 = vunpack.c.l.b16 %v3502
    %v4547 = vunpack.c.h.b16 %v3502
    %v4548 = vunpack.c.l.b16 %v3503
    %v4549 = vunpack.c.h.b16 %v3503
    %v4550 = vunpack.c.l.b16 %v3504
    %v4551 = vunpack.c.h.b16 %v3504
    %v4552 = vunpack.c.l.b16 %v3505
    %v4553 = vunpack.c.h.b16 %v3505
    %v4554 = vunpack.c.l.b16 %v3506
    %v4555 = vunpack.c.h.b16 %v3506
    %v4556 = vunpack.c.l.b16 %v3507
    %v4557 = vunpack.c.h.b16 %v3507
    %v4558 = vunpack.c.l.b16 %v3508
    %v4559 = vunpack.c.h.b16 %v3508
    %v4560 = vunpack.c.l.b16 %v3509
    %v4561 = vunpack.c.h.b16 %v3509
    %v4562 = vunpack.c.l.b16 %v3510
    %v4563 = vunpack.c.h.b16 %v3510
    %v4564 = vunpack.c.l.b16 %v3511
    %v4565 = vunpack.c.h.b16 %v3511
    %v4566 = vunpack.c.l.b16 %v3512
    %v4567 = vunpack.c.h.b16 %v3512
    %v4568 = vunpack.c.l.b16 %v3513
    %v4569 = vunpack.c.h.b16 %v3513
    %v4570 = vunpack.c.l.b16 %v3514
    %v4571 = vunpack.c.h.b16 %v3514
    %v4572 = vunpack.c.l.b16 %v3515
    %v4573 = vunpack.c.h.b16 %v3515
    %v4574 = vunpack.c.l.b16 %v3516
    %v4575 = vunpack.c.h.b16 %v3516
    %v4576 = vunpack.c.l.b16 %v3517
    %v4577 = vunpack.c.h.b16 %v3517
    %v4578 = vunpack.c.l.b16 %v3518
    %v4579 = vunpack.c.h.b16 %v3518
    %v4580 = vunpack.c.l.b16 %v3519
    %v4581 = vunpack.c.h.b16 %v3519
    %v4582 = vunpack.c.l.b16 %v3520
    %v4583 = vunpack.c.h.b16 %v3520
    %v4584 = vunpack.c.l.b16 %v3521
    %v4585 = vunpack.c.h.b16 %v3521
    %v4586 = vunpack.c.l.b16 %v3522
    %v4587 = vunpack.c.h.b16 %v3522
    %v4588 = vunpack.c.l.b16 %v3523
    %v4589 = vunpack.c.h.b16 %v3523
    %v4590 = vunpack.c.l.b16 %v3524
    %v4591 = vunpack.c.h.b16 %v3524
    %v4592 = vunpack.c.l.b16 %v3525
    %v4593 = vunpack.c.h.b16 %v3525
    %v4594 = vunpack.c.l.b16 %v3526
    %v4595 = vunpack.c.h.b16 %v3526
    %v4596 = vunpack.c.l.b16 %v3527
    %v4597 = vunpack.c.h.b16 %v3527
    %v4598 = vunpack.c.l.b16 %v3528
    %v4599 = vunpack.c.h.b16 %v3528
    %v4600 = vunpack.c.l.b16 %v3529
    %v4601 = vunpack.c.h.b16 %v3529
    %v4602 = vunpack.c.l.b16 %v3530
    %v4603 = vunpack.c.h.b16 %v3530
    %v4604 = vunpack.c.l.b16 %v3531
    %v4605 = vunpack.c.h.b16 %v3531
    %v4606 = vunpack.c.l.b16 %v3532
    %v4607 = vunpack.c.h.b16 %v3532
    %v4608 = vunpack.c.l.b16 %v3533
    %v4609 = vunpack.c.h.b16 %v3533
    %v4610 = vunpack.c.l.b16 %v3534
    %v4611 = vunpack.c.h.b16 %v3534
    %v4612 = vunpack.c.l.b16 %v3535
    %v4613 = vunpack.c.h.b16 %v3535
    %v4614 = vunpack.c.l.b16 %v3536
    %v4615 = vunpack.c.h.b16 %v3536
    %v4616 = vunpack.c.l.b16 %v3537
    %v4617 = vunpack.c.h.b16 %v3537
    %v4618 = vunpack.c.l.b16 %v3538
    %v4619 = vunpack.c.h.b16 %v3538
    %v4620 = vunpack.c.l.b16 %v3539
    %v4621 = vunpack.c.h.b16 %v3539
    %v4622 = vunpack.c.l.b16 %v3540
    %v4623 = vunpack.c.h.b16 %v3540
    %v4624 = vunpack.c.l.b16 %v3541
    %v4625 = vunpack.c.h.b16 %v3541
    %v4626 = vunpack.c.l.b16 %v3542
    %v4627 = vunpack.c.h.b16 %v3542
    %v4628 = vunpack.c.l.b16 %v3543
    %v4629 = vunpack.c.h.b16 %v3543
    %v4630 = vunpack.c.l.b16 %v3544
    %v4631 = vunpack.c.h.b16 %v3544
    %v4632 = vunpack.c.l.b16 %v3545
    %v4633 = vunpack.c.h.b16 %v3545
    %v4634 = vunpack.c.l.b16 %v3546
    %v4635 = vunpack.c.h.b16 %v3546
    %v4636 = vunpack.c.l.b16 %v3547
    %v4637 = vunpack.c.h.b16 %v3547
    %v4638 = vunpack.c.l.b16 %v3548
    %v4639 = vunpack.c.h.b16 %v3548
    %v4640 = vunpack.c.l.b16 %v3549
    %v4641 = vunpack.c.h.b16 %v3549
    %v4642 = vunpack.c.l.b16 %v3550
    %v4643 = vunpack.c.h.b16 %v3550
    %v4644 = vunpack.c.l.b16 %v3551
    %v4645 = vunpack.c.h.b16 %v3551
    %v4646 = vunpack.c.l.b16 %v3552
    %v4647 = vunpack.c.h.b16 %v3552
    %v4648 = vunpack.c.l.b16 %v3553
    %v4649 = vunpack.c.h.b16 %v3553
    %v4650 = vunpack.c.l.b16 %v3554
    %v4651 = vunpack.c.h.b16 %v3554
    %v4652 = vunpack.c.l.b16 %v3555
    %v4653 = vunpack.c.h.b16 %v3555
    %v4654 = vunpack.c.l.b16 %v3556
    %v4655 = vunpack.c.h.b16 %v3556
    %v4656 = vunpack.c.l.b16 %v3557
    %v4657 = vunpack.c.h.b16 %v3557
    %v4658 = vunpack.c.l.b16 %v3558
    %v4659 = vunpack.c.h.b16 %v3558
    %v4660 = vunpack.c.l.b16 %v3559
    %v4661 = vunpack.c.h.b16 %v3559
    %v4662 = vunpack.c.l.b16 %v3560
    %v4663 = vunpack.c.h.b16 %v3560
    %v4664 = vunpack.c.l.b16 %v3561
    %v4665 = vunpack.c.h.b16 %v3561
    %v4666 = vunpack.c.l.b16 %v3562
    %v4667 = vunpack.c.h.b16 %v3562
    %v4668 = vunpack.c.l.b16 %v3563
    %v4669 = vunpack.c.h.b16 %v3563
    %v4670 = vunpack.c.l.b16 %v3564
    %v4671 = vunpack.c.h.b16 %v3564
    %v4672 = vunpack.c.l.b16 %v3565
    %v4673 = vunpack.c.h.b16 %v3565
    %v4674 = vunpack.c.l.b16 %v3566
    %v4675 = vunpack.c.h.b16 %v3566
    %v4676 = vunpack.c.l.b16 %v3567
    %v4677 = vunpack.c.h.b16 %v3567
    %v4678 = vunpack.c.l.b16 %v3568
    %v4679 = vunpack.c.h.b16 %v3568
    %v4680 = vunpack.c.l.b16 %v3569
    %v4681 = vunpack.c.h.b16 %v3569
    %v4682 = vunpack.c.l.b16 %v3570
    %v4683 = vunpack.c.h.b16 %v3570
    %v4684 = vunpack.c.l.b16 %v3571
    %v4685 = vunpack.c.h.b16 %v3571
    %v4686 = vunpack.c.l.b16 %v3572
    %v4687 = vunpack.c.h.b16 %v3572
    %v4688 = vunpack.c.l.b16 %v3573
    %v4689 = vunpack.c.h.b16 %v3573
    %v4690 = vunpack.c.l.b16 %v3574
    %v4691 = vunpack.c.h.b16 %v3574
    %v4692 = vunpack.c.l.b16 %v3575
    %v4693 = vunpack.c.h.b16 %v3575
    %v4694 = vunpack.c.l.b16 %v3576
    %v4695 = vunpack.c.h.b16 %v3576
    %v4696 = vunpack.c.l.b16 %v3577
    %v4697 = vunpack.c.h.b16 %v3577
    %v4698 = vunpack.c.l.b16 %v3578
    %v4699 = vunpack.c.h.b16 %v3578
    %v4700 = vunpack.c.l.b16 %v3579
    %v4701 = vunpack.c.h.b16 %v3579
    %v4702 = vunpack.c.l.b16 %v3580
    %v4703 = vunpack.c.h.b16 %v3580
    %v4704 = vunpack.c.l.b16 %v3581
    %v4705 = vunpack.c.h.b16 %v3581
    %v4706 = vunpack.c.l.b16 %v3582
    %v4707 = vunpack.c.h.b16 %v3582
    %v4708 = vunpack.c.l.b16 %v3583
    %v4709 = vunpack.c.h.b16 %v3583
    %v4710 = vunpack.c.l.b16 %v3584
    %v4711 = vunpack.c.h.b16 %v3584
    %v4712 = vunpack.c.l.b16 %v3585
    %v4713 = vunpack.c.h.b16 %v3585
    %v4714 = vunpack.c.l.b16 %v3586
    %v4715 = vunpack.c.h.b16 %v3586
    %v4716 = vunpack.c.l.b16 %v3587
    %v4717 = vunpack.c.h.b16 %v3587
    %v4718 = vunpack.c.l.b16 %v3588
    %v4719 = vunpack.c.h.b16 %v3588
    %v4720 = vunpack.c.l.b16 %v3589
    %v4721 = vunpack.c.h.b16 %v3589
    %v4722 = vunpack.c.l.b16 %v3590
    %v4723 = vunpack.c.h.b16 %v3590
    %v4724 = vunpack.c.l.b16 %v3591
    %v4725 = vunpack.c.h.b16 %v3591
    %v4726 = vunpack.c.l.b16 %v3592
    %v4727 = vunpack.c.h.b16 %v3592
    %v4728 = vunpack.c.l.b16 %v3593
    %v4729 = vunpack.c.h.b16 %v3593
    %v4730 = vunpack.c.l.b16 %v3594
    %v4731 = vunpack.c.h.b16 %v3594
    %v4732 = vunpack.c.l.b16 %v3595
    %v4733 = vunpack.c.h.b16 %v3595
    %v4734 = vunpack.c.l.b16 %v3596
    %v4735 = vunpack.c.h.b16 %v3596
    %v4736 = vunpack.c.l.b16 %v3597
    %v4737 = vunpack.c.h.b16 %v3597
    %v4738 = vunpack.c.l.b16 %v3598
    %v4739 = vunpack.c.h.b16 %v3598
    %v4740 = vunpack.c.l.b16 %v3599
    %v4741 = vunpack.c.h.b16 %v3599
    %v4742 = vunpack.c.l.b16 %v3600
    %v4743 = vunpack.c.h.b16 %v3600
    %v4744 = vunpack.c.l.b16 %v3601
    %v4745 = vunpack.c.h.b16 %v3601
    %v4746 = vunpack.c.l.b16 %v3602
    %v4747 = vunpack.c.h.b16 %v3602
    %v4748 = vunpack.c.l.b16 %v3603
    %v4749 = vunpack.c.h.b16 %v3603
    %v4750 = vunpack.c.l.b16 %v3604
    %v4751 = vunpack.c.h.b16 %v3604
    %v4752 = vunpack.c.l.b16 %v3605
    %v4753 = vunpack.c.h.b16 %v3605
    %v4754 = vunpack.c.l.b16 %v3606
    %v4755 = vunpack.c.h.b16 %v3606
    %v4756 = vunpack.c.l.b16 %v3607
    %v4757 = vunpack.c.h.b16 %v3607
    %v4758 = vunpack.c.l.b16 %v3608
    %v4759 = vunpack.c.h.b16 %v3608
    %v4760 = vunpack.c.l.b16 %v3609
    %v4761 = vunpack.c.h.b16 %v3609
    %v4762 = vunpack.c.l.b16 %v3610
    %v4763 = vunpack.c.h.b16 %v3610
    %v4764 = vunpack.c.l.b16 %v3611
    %v4765 = vunpack.c.h.b16 %v3611
    %v4766 = vunpack.c.l.b16 %v3612
    %v4767 = vunpack.c.h.b16 %v3612
    %v4768 = vunpack.c.l.b16 %v3613
    %v4769 = vunpack.c.h.b16 %v3613
    %v4770 = vunpack.c.l.b16 %v3614
    %v4771 = vunpack.c.h.b16 %v3614
    %v4772 = vunpack.c.l.b16 %v3615
    %v4773 = vunpack.c.h.b16 %v3615
    %v4774 = vunpack.c.l.b16 %v3616
    %v4775 = vunpack.c.h.b16 %v3616
    %v4776 = vunpack.c.l.b16 %v3617
    %v4777 = vunpack.c.h.b16 %v3617
    %v4778 = vunpack.c.l.b16 %v3618
    %v4779 = vunpack.c.h.b16 %v3618
    %v4780 = vunpack.c.l.b16 %v3619
    %v4781 = vunpack.c.h.b16 %v3619
    %v4782 = vunpack.c.l.b16 %v3620
    %v4783 = vunpack.c.h.b16 %v3620
    %v4784 = vunpack.c.l.b16 %v3621
    %v4785 = vunpack.c.h.b16 %v3621
    %v4786 = vunpack.c.l.b16 %v3622
    %v4787 = vunpack.c.h.b16 %v3622
    %v4788 = vunpack.c.l.b16 %v3623
    %v4789 = vunpack.c.h.b16 %v3623
    %v4790 = vunpack.c.l.b16 %v3624
    %v4791 = vunpack.c.h.b16 %v3624
    %v4792 = vunpack.c.l.b16 %v3625
    %v4793 = vunpack.c.h.b16 %v3625
    %v4794 = vunpack.c.l.b16 %v3626
    %v4795 = vunpack.c.h.b16 %v3626
    %v4796 = vunpack.c.l.b16 %v3627
    %v4797 = vunpack.c.h.b16 %v3627
    %v4798 = vunpack.c.l.b16 %v3628
    %v4799 = vunpack.c.h.b16 %v3628
    %v4800 = vunpack.c.l.b16 %v3629
    %v4801 = vunpack.c.h.b16 %v3629
    %v4802 = vunpack.c.l.b16 %v3630
    %v4803 = vunpack.c.h.b16 %v3630
    %v4804 = vunpack.c.l.b16 %v3631
    %v4805 = vunpack.c.h.b16 %v3631
    %v4806 = vunpack.c.l.b16 %v3632
    %v4807 = vunpack.c.h.b16 %v3632
    %v4808 = vunpack.c.l.b16 %v3633
    %v4809 = vunpack.c.h.b16 %v3633
    %v4810 = vunpack.c.l.b16 %v3634
    %v4811 = vunpack.c.h.b16 %v3634
    %v4812 = vunpack.c.l.b16 %v3635
    %v4813 = vunpack.c.h.b16 %v3635
    %v4814 = vunpack.c.l.b16 %v3636
    %v4815 = vunpack.c.h.b16 %v3636
    %v4816 = vunpack.c.l.b16 %v3637
    %v4817 = vunpack.c.h.b16 %v3637
    %v4818 = vunpack.c.l.b16 %v3638
    %v4819 = vunpack.c.h.b16 %v3638
    %v4820 = vunpack.c.l.b16 %v3639
    %v4821 = vunpack.c.h.b16 %v3639
    %v4822 = vunpack.c.l.b16 %v3640
    %v4823 = vunpack.c.h.b16 %v3640
    %v4824 = vunpack.c.l.b16 %v3641
    %v4825 = vunpack.c.h.b16 %v3641
    %v4826 = vunpack.c.l.b16 %v3642
    %v4827 = vunpack.c.h.b16 %v3642
    %v4828 = vunpack.c.l.b16 %v3643
    %v4829 = vunpack.c.h.b16 %v3643
    %v4830 = vunpack.c.l.b16 %v3644
    %v4831 = vunpack.c.h.b16 %v3644
    %v4832 = vunpack.c.l.b16 %v3645
    %v4833 = vunpack.c.h.b16 %v3645
    %v4834 = vunpack.c.l.b16 %v3646
    %v4835 = vunpack.c.h.b16 %v3646
    %v4836 = vunpack.c.l.b16 %v3647
    %v4837 = vunpack.c.h.b16 %v3647
    %v4838 = vunpack.c.l.b16 %v3648
    %v4839 = vunpack.c.h.b16 %v3648
    %v4840 = vunpack.c.l.b16 %v3649
    %v4841 = vunpack.c.h.b16 %v3649
    %v4842 = vunpack.c.l.b16 %v3650
    %v4843 = vunpack.c.h.b16 %v3650
    %v4844 = vunpack.c.l.b16 %v3651
    %v4845 = vunpack.c.h.b16 %v3651
    %v4846 = vunpack.c.l.b16 %v3652
    %v4847 = vunpack.c.h.b16 %v3652
    %v4848 = vunpack.c.l.b16 %v3653
    %v4849 = vunpack.c.h.b16 %v3653
    %v4850 = vunpack.c.l.b16 %v3654
    %v4851 = vunpack.c.h.b16 %v3654
    %v4852 = vunpack.c.l.b16 %v3655
    %v4853 = vunpack.c.h.b16 %v3655
    %v4854 = vunpack.c.l.b16 %v3656
    %v4855 = vunpack.c.h.b16 %v3656
    %v4856 = vunpack.c.l.b16 %v3657
    %v4857 = vunpack.c.h.b16 %v3657
    %v4858 = vunpack.c.l.b16 %v3658
    %v4859 = vunpack.c.h.b16 %v3658
    %v4860 = vunpack.c.l.b16 %v3659
    %v4861 = vunpack.c.h.b16 %v3659
    %v4862 = vunpack.c.l.b16 %v3660
    %v4863 = vunpack.c.h.b16 %v3660
    %v4864 = vunpack.c.l.b16 %v3661
    %v4865 = vunpack.c.h.b16 %v3661
    %v4866 = vunpack.c.l.b16 %v3662
    %v4867 = vunpack.c.h.b16 %v3662
    %v4868 = vunpack.c.l.b16 %v3663
    %v4869 = vunpack.c.h.b16 %v3663
    %v4870 = vunpack.c.l.b16 %v3664
    %v4871 = vunpack.c.h.b16 %v3664
    %v4872 = vunpack.c.l.b16 %v3665
    %v4873 = vunpack.c.h.b16 %v3665
    %v4874 = vunpack.c.l.b16 %v3666
    %v4875 = vunpack.c.h.b16 %v3666
    %v4876 = vunpack.c.l.b16 %v3667
    %v4877 = vunpack.c.h.b16 %v3667
    %v4878 = vunpack.c.l.b16 %v3668
    %v4879 = vunpack.c.h.b16 %v3668
    %v4880 = vunpack.c.l.b16 %v3669
    %v4881 = vunpack.c.h.b16 %v3669
    %v4882 = vunpack.c.l.b16 %v3670
    %v4883 = vunpack.c.h.b16 %v3670
    %v4884 = vunpack.c.l.b16 %v3671
    %v4885 = vunpack.c.h.b16 %v3671
    %v4886 = vunpack.c.l.b16 %v3672
    %v4887 = vunpack.c.h.b16 %v3672
    %v4888 = vunpack.c.l.b16 %v3673
    %v4889 = vunpack.c.h.b16 %v3673
    %v4890 = vunpack.c.l.b16 %v3674
    %v4891 = vunpack.c.h.b16 %v3674
    %v4892 = vunpack.c.l.b16 %v3675
    %v4893 = vunpack.c.h.b16 %v3675
    %v4894 = vunpack.c.l.b16 %v3676
    %v4895 = vunpack.c.h.b16 %v3676
    %v4896 = vunpack.c.l.b16 %v3677
    %v4897 = vunpack.c.h.b16 %v3677
    %v4898 = vunpack.c.l.b16 %v3678
    %v4899 = vunpack.c.h.b16 %v3678
    %v4900 = vunpack.c.l.b16 %v3679
    %v4901 = vunpack.c.h.b16 %v3679
    %v4902 = vunpack.c.l.b16 %v3680
    %v4903 = vunpack.c.h.b16 %v3680
    %v4904 = vunpack.c.l.b16 %v3681
    %v4905 = vunpack.c.h.b16 %v3681
    %v4906 = vunpack.c.l.b16 %v3682
    %v4907 = vunpack.c.h.b16 %v3682
    %v4908 = vunpack.c.l.b16 %v3683
    %v4909 = vunpack.c.h.b16 %v3683
    %v4910 = vunpack.c.l.b16 %v3684
    %v4911 = vunpack.c.h.b16 %v3684
    %v4912 = vunpack.c.l.b16 %v3685
    %v4913 = vunpack.c.h.b16 %v3685
    %v4914 = vunpack.c.l.b16 %v3686
    %v4915 = vunpack.c.h.b16 %v3686
    %v4916 = vunpack.c.l.b16 %v3687
    %v4917 = vunpack.c.h.b16 %v3687
    %v4918 = vunpack.c.l.b16 %v3688
    %v4919 = vunpack.c.h.b16 %v3688
    %v4920 = vunpack.c.l.b16 %v3689
    %v4921 = vunpack.c.h.b16 %v3689
    %v4922 = vunpack.c.l.b16 %v3690
    %v4923 = vunpack.c.h.b16 %v3690
    %v4924 = vunpack.c.l.b16 %v3691
    %v4925 = vunpack.c.h.b16 %v3691
    %v4926 = vunpack.c.l.b16 %v3692
    %v4927 = vunpack.c.h.b16 %v3692
    %v4928 = vunpack.c.l.b16 %v3693
    %v4929 = vunpack.c.h.b16 %v3693
    %v4930 = vunpack.c.l.b16 %v3694
    %v4931 = vunpack.c.h.b16 %v3694
    %v4932 = vunpack.c.l.b16 %v3695
    %v4933 = vunpack.c.h.b16 %v3695
    %v4934 = vunpack.c.l.b16 %v3696
    %v4935 = vunpack.c.h.b16 %v3696
    %v4936 = vunpack.c.l.b16 %v3697
    %v4937 = vunpack.c.h.b16 %v3697
    %v4938 = vunpack.c.l.b16 %v3698
    %v4939 = vunpack.c.h.b16 %v3698
    %v4940 = vunpack.c.l.b16 %v3699
    %v4941 = vunpack.c.h.b16 %v3699
    %v4942 = vunpack.c.l.b16 %v3700
    %v4943 = vunpack.c.h.b16 %v3700
    %v4944 = vunpack.c.l.b16 %v3701
    %v4945 = vunpack.c.h.b16 %v3701
    %v4946 = vunpack.c.l.b16 %v3702
    %v4947 = vunpack.c.h.b16 %v3702
    %v4948 = vunpack.c.l.b16 %v3703
    %v4949 = vunpack.c.h.b16 %v3703
    %v4950 = vunpack.c.l.b16 %v3704
    %v4951 = vunpack.c.h.b16 %v3704
    %v4952 = vunpack.c.l.b16 %v3705
    %v4953 = vunpack.c.h.b16 %v3705
    %v4954 = vunpack.c.l.b16 %v3706
    %v4955 = vunpack.c.h.b16 %v3706
    %v4956 = vunpack.c.l.b16 %v3707
    %v4957 = vunpack.c.h.b16 %v3707
    %v4958 = vunpack.c.l.b16 %v3708
    %v4959 = vunpack.c.h.b16 %v3708
    %v4960 = vunpack.c.l.b16 %v3709
    %v4961 = vunpack.c.h.b16 %v3709
    %v4962 = vunpack.c.l.b16 %v3710
    %v4963 = vunpack.c.h.b16 %v3710
    %v4964 = vunpack.c.l.b16 %v3711
    %v4965 = vunpack.c.h.b16 %v3711
    %v4966 = vunpack.c.l.b16 %v3712
    %v4967 = vunpack.c.h.b16 %v3712
    %v4968 = vunpack.c.l.b16 %v3713
    %v4969 = vunpack.c.h.b16 %v3713
    %v4970 = vunpack.c.l.b16 %v3714
    %v4971 = vunpack.c.h.b16 %v3714
    %v4972 = vunpack.c.l.b16 %v3715
    %v4973 = vunpack.c.h.b16 %v3715
    %v4974 = vunpack.c.l.b16 %v3716
    %v4975 = vunpack.c.h.b16 %v3716
    %v4976 = vunpack.c.l.b16 %v3717
    %v4977 = vunpack.c.h.b16 %v3717
    %v4978 = vunpack.c.l.b16 %v3718
    %v4979 = vunpack.c.h.b16 %v3718
    %v4980 = vunpack.c.l.b16 %v3719
    %v4981 = vunpack.c.h.b16 %v3719
    %v4982 = vunpack.c.l.b16 %v3720
    %v4983 = vunpack.c.h.b16 %v3720
    %v4984 = vunpack.c.l.b16 %v3721
    %v4985 = vunpack.c.h.b16 %v3721
    %v4986 = vunpack.c.l.b16 %v3722
    %v4987 = vunpack.c.h.b16 %v3722
    %v4988 = vunpack.c.l.b16 %v3723
    %v4989 = vunpack.c.h.b16 %v3723
    %v4990 = vunpack.c.l.b16 %v3724
    %v4991 = vunpack.c.h.b16 %v3724
    %v4992 = vunpack.c.l.b16 %v3725
    %v4993 = vunpack.c.h.b16 %v3725
    %v4994 = vunpack.c.l.b16 %v3726
    %v4995 = vunpack.c.h.b16 %v3726
    %v4996 = vunpack.c.l.b16 %v3727
    %v4997 = vunpack.c.h.b16 %v3727
    %v4998 = vunpack.c.l.b16 %v3728
    %v4999 = vunpack.c.h.b16 %v3728
    %v5000 = vunpack.c.l.b16 %v3729
    %v5001 = vunpack.c.h.b16 %v3729
    %v5002 = vunpack.c.l.b16 %v3730
    %v5003 = vunpack.c.h.b16 %v3730
    %v5004 = vunpack.c.l.b16 %v3731
    %v5005 = vunpack.c.h.b16 %v3731
    %v5006 = vunpack.c.l.b16 %v3732
    %v5007 = vunpack.c.h.b16 %v3732
    %v5008 = vunpack.c.l.b16 %v3733
    %v5009 = vunpack.c.h.b16 %v3733
    %v5010 = vunpack.c.l.b16 %v3734
    %v5011 = vunpack.c.h.b16 %v3734
    %v5012 = vunpack.c.l.b16 %v3735
    %v5013 = vunpack.c.h.b16 %v3735
    %v5014 = vunpack.c.l.b16 %v3736
    %v5015 = vunpack.c.h.b16 %v3736
    %v5016 = vunpack.c.l.b16 %v3737
    %v5017 = vunpack.c.h.b16 %v3737
    %v5018 = vunpack.c.l.b16 %v3738
    %v5019 = vunpack.c.h.b16 %v3738
    %v5020 = vunpack.c.l.b16 %v3739
    %v5021 = vunpack.c.h.b16 %v3739
    %v5022 = vunpack.c.l.b16 %v3740
    %v5023 = vunpack.c.h.b16 %v3740
    %v5024 = vunpack.c.l.b16 %v3741
    %v5025 = vunpack.c.h.b16 %v3741
    %v5026 = vunpack.c.l.b16 %v3742
    %v5027 = vunpack.c.h.b16 %v3742
    %v5028 = vunpack.c.l.b16 %v3743
    %v5029 = vunpack.c.h.b16 %v3743
    %v5030 = vunpack.c.l.b16 %v3744
    %v5031 = vunpack.c.h.b16 %v3744
    %v5032 = vunpack.c.l.b16 %v3745
    %v5033 = vunpack.c.h.b16 %v3745
    %v5034 = vunpack.c.l.b16 %v3746
    %v5035 = vunpack.c.h.b16 %v3746
    %v5036 = vunpack.c.l.b16 %v3747
    %v5037 = vunpack.c.h.b16 %v3747
    %v5038 = vunpack.c.l.b16 %v3748
    %v5039 = vunpack.c.h.b16 %v3748
    %v5040 = vunpack.c.l.b16 %v3749
    %v5041 = vunpack.c.h.b16 %v3749
    %v5042 = vunpack.c.l.b16 %v3750
    %v5043 = vunpack.c.h.b16 %v3750
    %v5044 = vunpack.c.l.b16 %v3751
    %v5045 = vunpack.c.h.b16 %v3751
    %v5046 = vunpack.c.l.b16 %v3752
    %v5047 = vunpack.c.h.b16 %v3752
    %v5048 = vunpack.c.l.b16 %v3753
    %v5049 = vunpack.c.h.b16 %v3753
    %v5050 = vunpack.c.l.b16 %v3754
    %v5051 = vunpack.c.h.b16 %v3754
    %v5052 = vunpack.c.l.b16 %v3755
    %v5053 = vunpack.c.h.b16 %v3755
    %v5054 = vunpack.c.l.b16 %v3756
    %v5055 = vunpack.c.h.b16 %v3756
    %v5056 = vunpack.c.l.b16 %v3757
    %v5057 = vunpack.c.h.b16 %v3757
    %v5058 = vunpack.c.l.b16 %v3758
    %v5059 = vunpack.c.h.b16 %v3758
    %v5060 = vunpack.c.l.b16 %v3759
    %v5061 = vunpack.c.h.b16 %v3759
    %v5062 = vunpack.c.l.b16 %v3760
    %v5063 = vunpack.c.h.b16 %v3760
    %v5064 = vunpack.c.l.b16 %v3761
    %v5065 = vunpack.c.h.b16 %v3761
    %v5066 = vunpack.c.l.b16 %v3762
    %v5067 = vunpack.c.h.b16 %v3762
    %v5068 = vunpack.c.l.b16 %v3763
    %v5069 = vunpack.c.h.b16 %v3763
    %v5070 = vunpack.c.l.b16 %v3764
    %v5071 = vunpack.c.h.b16 %v3764
    %v5072 = vunpack.c.l.b16 %v3765
    %v5073 = vunpack.c.h.b16 %v3765
    %v5074 = vunpack.c.l.b16 %v3766
    %v5075 = vunpack.c.h.b16 %v3766
    %v5076 = vunpack.c.l.b16 %v3767
    %v5077 = vunpack.c.h.b16 %v3767
    %v5078 = vunpack.c.l.b16 %v3768
    %v5079 = vunpack.c.h.b16 %v3768
    %v5080 = vunpack.c.l.b16 %v3769
    %v5081 = vunpack.c.h.b16 %v3769
    %v5082 = vunpack.c.l.b16 %v3770
    %v5083 = vunpack.c.h.b16 %v3770
    %v5084 = vunpack.c.l.b16 %v3771
    %v5085 = vunpack.c.h.b16 %v3771
    %v5086 = vunpack.c.l.b16 %v3772
    %v5087 = vunpack.c.h.b16 %v3772
    %v5088 = vunpack.c.l.b16 %v3773
    %v5089 = vunpack.c.h.b16 %v3773
    %v5090 = vunpack.c.l.b16 %v3774
    %v5091 = vunpack.c.h.b16 %v3774
    %v5092 = vunpack.c.l.b16 %v3775
    %v5093 = vunpack.c.h.b16 %v3775
    %v5094 = vunpack.c.l.b16 %v3776
    %v5095 = vunpack.c.h.b16 %v3776
    %v5096 = vunpack.c.l.b16 %v3777
    %v5097 = vunpack.c.h.b16 %v3777
    %v5098 = vunpack.c.l.b16 %v3778
    %v5099 = vunpack.c.h.b16 %v3778
    %v5100 = vunpack.c.l.b16 %v3779
    %v5101 = vunpack.c.h.b16 %v3779
    %v5102 = vunpack.c.l.b16 %v3780
    %v5103 = vunpack.c.h.b16 %v3780
    %v5104 = vunpack.c.l.b16 %v3781
    %v5105 = vunpack.c.h.b16 %v3781
    %v5106 = vunpack.c.l.b16 %v3782
    %v5107 = vunpack.c.h.b16 %v3782
    %v5108 = vunpack.c.l.b16 %v3783
    %v5109 = vunpack.c.h.b16 %v3783
    %v5110 = vunpack.c.l.b16 %v3784
    %v5111 = vunpack.c.h.b16 %v3784
    %v5112 = vunpack.c.l.b16 %v3785
    %v5113 = vunpack.c.h.b16 %v3785
    %v5114 = vunpack.c.l.b16 %v3786
    %v5115 = vunpack.c.h.b16 %v3786
    %v5116 = vunpack.c.l.b16 %v3787
    %v5117 = vunpack.c.h.b16 %v3787
    %v5118 = vunpack.c.l.b16 %v3788
    %v5119 = vunpack.c.h.b16 %v3788
    %v5120 = vunpack.c.l.b16 %v3789
    %v5121 = vunpack.c.h.b16 %v3789
    %v5122 = vunpack.c.l.b16 %v3790
    %v5123 = vunpack.c.h.b16 %v3790
    %v5124 = vunpack.c.l.b16 %v3791
    %v5125 = vunpack.c.h.b16 %v3791
    %v5126 = vunpack.c.l.b16 %v3792
    %v5127 = vunpack.c.h.b16 %v3792
    %v5128 = vunpack.c.l.b16 %v3793
    %v5129 = vunpack.c.h.b16 %v3793
    %v5130 = vunpack.c.l.b16 %v3794
    %v5131 = vunpack.c.h.b16 %v3794
    %v5132 = vunpack.c.l.b16 %v3795
    %v5133 = vunpack.c.h.b16 %v3795
    %v5134 = vunpack.c.l.b16 %v3796
    %v5135 = vunpack.c.h.b16 %v3796
    %v5136 = vunpack.c.l.b16 %v3797
    %v5137 = vunpack.c.h.b16 %v3797
    %v5138 = vunpack.c.l.b16 %v3798
    %v5139 = vunpack.c.h.b16 %v3798
    %v5140 = vunpack.c.l.b16 %v3799
    %v5141 = vunpack.c.h.b16 %v3799
    %v5142 = vunpack.c.l.b16 %v3800
    %v5143 = vunpack.c.h.b16 %v3800
    %v5144 = vunpack.c.l.b16 %v3801
    %v5145 = vunpack.c.h.b16 %v3801
    %v5146 = vunpack.c.l.b16 %v3802
    %v5147 = vunpack.c.h.b16 %v3802
    %v5148 = vunpack.c.l.b16 %v3803
    %v5149 = vunpack.c.h.b16 %v3803
    %v5150 = vunpack.c.l.b16 %v3804
    %v5151 = vunpack.c.h.b16 %v3804
    %v5152 = vunpack.c.l.b16 %v3805
    %v5153 = vunpack.c.h.b16 %v3805
    %v5154 = vunpack.c.l.b16 %v3806
    %v5155 = vunpack.c.h.b16 %v3806
    %v5156 = vunpack.c.l.b16 %v3807
    %v5157 = vunpack.c.h.b16 %v3807
    %v5158 = vunpack.c.l.b16 %v3808
    %v5159 = vunpack.c.h.b16 %v3808
    %v5160 = vunpack.c.l.b16 %v3809
    %v5161 = vunpack.c.h.b16 %v3809
    %v5162 = vunpack.c.l.b16 %v3810
    %v5163 = vunpack.c.h.b16 %v3810
    %v5164 = vunpack.c.l.b16 %v3811
    %v5165 = vunpack.c.h.b16 %v3811
    %v5166 = vunpack.c.l.b16 %v3812
    %v5167 = vunpack.c.h.b16 %v3812
    %v5168 = vunpack.c.l.b16 %v3813
    %v5169 = vunpack.c.h.b16 %v3813
    %v5170 = vunpack.c.l.b16 %v3814
    %v5171 = vunpack.c.h.b16 %v3814
    %v5172 = vunpack.c.l.b16 %v3815
    %v5173 = vunpack.c.h.b16 %v3815
    %v5174 = vunpack.c.l.b16 %v3816
    %v5175 = vunpack.c.h.b16 %v3816
    %v5176 = vunpack.c.l.b16 %v3817
    %v5177 = vunpack.c.h.b16 %v3817
    %v5178 = vunpack.c.l.b16 %v3818
    %v5179 = vunpack.c.h.b16 %v3818
    %v5180 = vunpack.c.l.b16 %v3819
    %v5181 = vunpack.c.h.b16 %v3819
    %v5182 = vunpack.c.l.b16 %v3820
    %v5183 = vunpack.c.h.b16 %v3820
    %v5184 = vunpack.c.l.b16 %v3821
    %v5185 = vunpack.c.h.b16 %v3821
    %v5186 = vunpack.c.l.b16 %v3822
    %v5187 = vunpack.c.h.b16 %v3822
    %v5188 = vunpack.c.l.b16 %v3823
    %v5189 = vunpack.c.h.b16 %v3823
    %v5190 = vunpack.c.l.b16 %v3824
    %v5191 = vunpack.c.h.b16 %v3824
    %v5192 = vunpack.c.l.b16 %v3825
    %v5193 = vunpack.c.h.b16 %v3825
    %v5194 = vunpack.c.l.b16 %v3826
    %v5195 = vunpack.c.h.b16 %v3826
    %v5196 = vunpack.c.l.b16 %v3827
    %v5197 = vunpack.c.h.b16 %v3827
    %v5198 = vunpack.c.l.b16 %v3828
    %v5199 = vunpack.c.h.b16 %v3828
    %v5200 = vunpack.c.l.b16 %v3829
    %v5201 = vunpack.c.h.b16 %v3829
    %v5202 = vunpack.c.l.b16 %v3830
    %v5203 = vunpack.c.h.b16 %v3830
    %v5204 = vunpack.c.l.b16 %v3831
    %v5205 = vunpack.c.h.b16 %v3831
    %v5206 = vunpack.c.l.b16 %v3832
    %v5207 = vunpack.c.h.b16 %v3832
    %v5208 = vunpack.c.l.b16 %v3833
    %v5209 = vunpack.c.h.b16 %v3833
    %v5210 = vunpack.c.l.b16 %v3834
    %v5211 = vunpack.c.h.b16 %v3834
    %v5212 = vunpack.c.l.b16 %v3835
    %v5213 = vunpack.c.h.b16 %v3835
    %v5214 = vunpack.c.l.b16 %v3836
    %v5215 = vunpack.c.h.b16 %v3836
    %v5216 = vunpack.c.l.b16 %v3837
    %v5217 = vunpack.c.h.b16 %v3837
    %v5218 = vunpack.c.l.b16 %v3838
    %v5219 = vunpack.c.h.b16 %v3838
    %v5220 = vunpack.c.l.b16 %v3839
    %v5221 = vunpack.c.h.b16 %v3839
    %v5222 = vunpack.c.l.b16 %v3840
    %v5223 = vunpack.c.h.b16 %v3840
    %v5224 = vunpack.c.l.b16 %v3841
    %v5225 = vunpack.c.h.b16 %v3841
    %v5226 = vunpack.c.l.b16 %v3842
    %v5227 = vunpack.c.h.b16 %v3842
    %v5228 = vunpack.c.l.b16 %v3843
    %v5229 = vunpack.c.h.b16 %v3843
    %v5230 = vunpack.c.l.b16 %v3844
    %v5231 = vunpack.c.h.b16 %v3844
    %v5232 = vunpack.c.l.b16 %v3845
    %v5233 = vunpack.c.h.b16 %v3845
    %v5234 = vunpack.c.l.b16 %v3846
    %v5235 = vunpack.c.h.b16 %v3846
    %v5236 = vunpack.c.l.b16 %v3847
    %v5237 = vunpack.c.h.b16 %v3847
    %v5238 = vunpack.c.l.b16 %v3848
    %v5239 = vunpack.c.h.b16 %v3848
    %v5240 = vunpack.c.l.b16 %v3849
    %v5241 = vunpack.c.h.b16 %v3849
    %v5242 = vunpack.c.l.b16 %v3850
    %v5243 = vunpack.c.h.b16 %v3850
    %v5244 = vunpack.c.l.b16 %v3851
    %v5245 = vunpack.c.h.b16 %v3851
    %v5246 = vunpack.c.l.b16 %v3852
    %v5247 = vunpack.c.h.b16 %v3852
    %v5248 = vunpack.c.l.b16 %v3853
    %v5249 = vunpack.c.h.b16 %v3853
    %v5250 = vunpack.c.l.b16 %v3854
    %v5251 = vunpack.c.h.b16 %v3854
    %v5252 = vunpack.c.l.b16 %v3855
    %v5253 = vunpack.c.h.b16 %v3855
    %v5254 = vunpack.c.l.b16 %v3856
    %v5255 = vunpack.c.h.b16 %v3856
    %v5256 = vunpack.c.l.b16 %v3857
    %v5257 = vunpack.c.h.b16 %v3857
    %v5258 = vunpack.c.l.b16 %v3858
    %v5259 = vunpack.c.h.b16 %v3858
    %v5260 = vunpack.c.l.b16 %v3859
    %v5261 = vunpack.c.h.b16 %v3859
    %v5262 = vunpack.c.l.b16 %v3860
    %v5263 = vunpack.c.h.b16 %v3860
    %v5264 = vunpack.c.l.b16 %v3861
    %v5265 = vunpack.c.h.b16 %v3861
    %v5266 = vunpack.c.l.b16 %v3862
    %v5267 = vunpack.c.h.b16 %v3862
    %v5268 = vunpack.c.l.b16 %v3863
    %v5269 = vunpack.c.h.b16 %v3863
    %v5270 = vunpack.c.l.b16 %v3864
    %v5271 = vunpack.c.h.b16 %v3864
    %v5272 = vunpack.c.l.b16 %v3865
    %v5273 = vunpack.c.h.b16 %v3865
    %v5274 = vunpack.c.l.b16 %v3866
    %v5275 = vunpack.c.h.b16 %v3866
    %v5276 = vunpack.c.l.b16 %v3867
    %v5277 = vunpack.c.h.b16 %v3867
    %v5278 = vunpack.c.l.b16 %v3868
    %v5279 = vunpack.c.h.b16 %v3868
    %v5280 = vunpack.c.l.b16 %v3869
    %v5281 = vunpack.c.h.b16 %v3869
    %v5282 = vunpack.c.l.b16 %v3870
    %v5283 = vunpack.c.h.b16 %v3870
    %v5284 = vunpack.c.l.b16 %v3871
    %v5285 = vunpack.c.h.b16 %v3871
    %v5286 = vunpack.c.l.b16 %v3872
    %v5287 = vunpack.c.h.b16 %v3872
    %v5288 = vunpack.c.l.b16 %v3873
    %v5289 = vunpack.c.h.b16 %v3873
    %v5290 = vunpack.c.l.b16 %v3874
    %v5291 = vunpack.c.h.b16 %v3874
    %v5292 = vunpack.c.l.b16 %v3875
    %v5293 = vunpack.c.h.b16 %v3875
    %v5294 = vunpack.c.l.b16 %v3876
    %v5295 = vunpack.c.h.b16 %v3876
    %v5296 = vunpack.c.l.b16 %v3877
    %v5297 = vunpack.c.h.b16 %v3877
    %v5298 = vunpack.c.l.b16 %v3878
    %v5299 = vunpack.c.h.b16 %v3878
    %v5300 = vunpack.c.l.b16 %v3879
    %v5301 = vunpack.c.h.b16 %v3879
    %v5302 = vunpack.c.l.b16 %v3880
    %v5303 = vunpack.c.h.b16 %v3880
    %v5304 = vunpack.c.l.b16 %v3881
    %v5305 = vunpack.c.h.b16 %v3881
    %v5306 = vunpack.c.l.b16 %v3882
    %v5307 = vunpack.c.h.b16 %v3882
    %v5308 = vunpack.c.l.b16 %v3883
    %v5309 = vunpack.c.h.b16 %v3883
    %v5310 = vunpack.c.l.b16 %v3884
    %v5311 = vunpack.c.h.b16 %v3884
    %v5312 = vunpack.c.l.b16 %v3885
    %v5313 = vunpack.c.h.b16 %v3885
    %v5314 = vunpack.c.l.b16 %v3886
    %v5315 = vunpack.c.h.b16 %v3886
    %v5316 = vunpack.c.l.b16 %v3887
    %v5317 = vunpack.c.h.b16 %v3887
    %v5318 = vunpack.c.l.b16 %v3888
    %v5319 = vunpack.c.h.b16 %v3888
    %v5320 = vunpack.c.l.b16 %v3889
    %v5321 = vunpack.c.h.b16 %v3889
    %v5322 = vunpack.c.l.b16 %v3890
    %v5323 = vunpack.c.h.b16 %v3890
    %v5324 = vunpack.c.l.b16 %v3891
    %v5325 = vunpack.c.h.b16 %v3891
    %v5326 = vunpack.c.l.b16 %v3892
    %v5327 = vunpack.c.h.b16 %v3892
    %v5328 = vunpack.c.l.b16 %v3893
    %v5329 = vunpack.c.h.b16 %v3893
    %v5330 = vunpack.c.l.b16 %v3894
    %v5331 = vunpack.c.h.b16 %v3894
    %v5332 = vunpack.c.l.b16 %v3895
    %v5333 = vunpack.c.h.b16 %v3895
    %v5334 = vunpack.c.l.b16 %v3896
    %v5335 = vunpack.c.h.b16 %v3896
    %v5336 = vunpack.c.l.b16 %v3897
    %v5337 = vunpack.c.h.b16 %v3897
    %v5338 = vunpack.c.l.b16 %v3898
    %v5339 = vunpack.c.h.b16 %v3898
    %v5340 = vunpack.c.l.b16 %v3899
    %v5341 = vunpack.c.h.b16 %v3899
    %v5342 = vunpack.c.l.b16 %v3900
    %v5343 = vunpack.c.h.b16 %v3900
    %v5344 = vunpack.c.l.b16 %v3901
    %v5345 = vunpack.c.h.b16 %v3901
    %v5346 = vunpack.c.l.b16 %v3902
    %v5347 = vunpack.c.h.b16 %v3902
    %v5348 = vunpack.c.l.b16 %v3903
    %v5349 = vunpack.c.h.b16 %v3903
    %v5350 = vunpack.c.l.b16 %v3904
    %v5351 = vunpack.c.h.b16 %v3904
    %v5352 = vunpack.c.l.b16 %v3905
    %v5353 = vunpack.c.h.b16 %v3905
    %v5354 = vunpack.c.l.b16 %v3906
    %v5355 = vunpack.c.h.b16 %v3906
    %v5356 = vunpack.c.l.b16 %v3907
    %v5357 = vunpack.c.h.b16 %v3907
    %v5358 = vunpack.c.l.b16 %v3908
    %v5359 = vunpack.c.h.b16 %v3908
    %v5360 = vunpack.c.l.b16 %v3909
    %v5361 = vunpack.c.h.b16 %v3909
    %v5362 = vunpack.c.l.b16 %v3910
    %v5363 = vunpack.c.h.b16 %v3910
    %v5364 = vunpack.c.l.b16 %v3911
    %v5365 = vunpack.c.h.b16 %v3911
    %v5366 = vunpack.c.l.b16 %v3912
    %v5367 = vunpack.c.h.b16 %v3912
    %v5368 = vunpack.c.l.b16 %v3913
    %v5369 = vunpack.c.h.b16 %v3913
    %v5370 = vunpack.c.l.b16 %v3914
    %v5371 = vunpack.c.h.b16 %v3914
    %v5372 = vunpack.c.l.b16 %v3915
    %v5373 = vunpack.c.h.b16 %v3915
    %v5374 = vunpack.c.l.b16 %v3916
    %v5375 = vunpack.c.h.b16 %v3916
    %v5376 = vunpack.c.l.b16 %v3917
    %v5377 = vunpack.c.h.b16 %v3917
    %v5378 = vunpack.c.l.b16 %v3918
    %v5379 = vunpack.c.h.b16 %v3918
    %v5380 = vunpack.c.l.b16 %v3919
    %v5381 = vunpack.c.h.b16 %v3919
    %v5382 = vunpack.c.l.b16 %v3920
    %v5383 = vunpack.c.h.b16 %v3920
    %v5384 = vunpack.c.l.b16 %v3921
    %v5385 = vunpack.c.h.b16 %v3921
    %v5386 = vunpack.c.l.b16 %v3922
    %v5387 = vunpack.c.h.b16 %v3922
    %v5388 = vunpack.c.l.b16 %v3923
    %v5389 = vunpack.c.h.b16 %v3923
    %v5390 = vunpack.c.l.b16 %v3924
    %v5391 = vunpack.c.h.b16 %v3924
    %v5392 = vunpack.c.l.b16 %v3925
    %v5393 = vunpack.c.h.b16 %v3925
    %v5394 = vunpack.c.l.b16 %v3926
    %v5395 = vunpack.c.h.b16 %v3926
    %v5396 = vunpack.c.l.b16 %v3927
    %v5397 = vunpack.c.h.b16 %v3927
    %v5398 = vunpack.c.l.b16 %v3928
    %v5399 = vunpack.c.h.b16 %v3928
    %v5400 = vunpack.c.l.b16 %v3929
    %v5401 = vunpack.c.h.b16 %v3929
    %v5402 = vunpack.c.l.b16 %v3930
    %v5403 = vunpack.c.h.b16 %v3930
    %v5404 = vunpack.c.l.b16 %v3931
    %v5405 = vunpack.c.h.b16 %v3931
    %v5406 = vunpack.c.l.b16 %v3932
    %v5407 = vunpack.c.h.b16 %v3932
    %v5408 = vunpack.c.l.b16 %v3933
    %v5409 = vunpack.c.h.b16 %v3933
    %v5410 = vunpack.c.l.b16 %v3934
    %v5411 = vunpack.c.h.b16 %v3934
    %v5412 = vunpack.c.l.b16 %v3935
    %v5413 = vunpack.c.h.b16 %v3935
    %v5414 = vunpack.c.l.b16 %v3936
    %v5415 = vunpack.c.h.b16 %v3936
    %v5416 = vunpack.c.l.b16 %v3937
    %v5417 = vunpack.c.h.b16 %v3937
    %v5418 = vunpack.c.l.b16 %v3938
    %v5419 = vunpack.c.h.b16 %v3938
    %v5420 = vunpack.c.l.b16 %v3939
    %v5421 = vunpack.c.h.b16 %v3939
    %v5422 = vunpack.c.l.b16 %v3940
    %v5423 = vunpack.c.h.b16 %v3940
    %v5424 = vunpack.c.l.b16 %v3941
    %v5425 = vunpack.c.h.b16 %v3941
    %v5426 = vunpack.c.l.b16 %v3942
    %v5427 = vunpack.c.h.b16 %v3942
    %v5428 = vunpack.c.l.b16 %v3943
    %v5429 = vunpack.c.h.b16 %v3943
    %v5430 = vunpack.c.l.b16 %v3944
    %v5431 = vunpack.c.h.b16 %v3944
    %v5432 = vunpack.c.l.b16 %v3945
    %v5433 = vunpack.c.h.b16 %v3945
    %v5434 = vunpack.c.l.b16 %v3946
    %v5435 = vunpack.c.h.b16 %v3946
    %v5436 = vunpack.c.l.b16 %v3947
    %v5437 = vunpack.c.h.b16 %v3947
    %v5438 = vunpack.c.l.b16 %v3948
    %v5439 = vunpack.c.h.b16 %v3948
    %v5440 = vunpack.c.l.b16 %v3949
    %v5441 = vunpack.c.h.b16 %v3949
    %v5442 = vunpack.c.l.b16 %v3950
    %v5443 = vunpack.c.h.b16 %v3950
    %v5444 = vunpack.c.l.b16 %v3951
    %v5445 = vunpack.c.h.b16 %v3951
    %v5446 = vunpack.c.l.b16 %v3952
    %v5447 = vunpack.c.h.b16 %v3952
    %v5448 = vunpack.c.l.b16 %v3953
    %v5449 = vunpack.c.h.b16 %v3953
    %v5450 = vunpack.c.l.b16 %v3954
    %v5451 = vunpack.c.h.b16 %v3954
    %v5452 = vunpack.c.l.b16 %v3955
    %v5453 = vunpack.c.h.b16 %v3955
    %v5454 = vunpack.c.l.b16 %v3956
    %v5455 = vunpack.c.h.b16 %v3956
    %v5456 = vunpack.c.l.b16 %v3957
    %v5457 = vunpack.c.h.b16 %v3957
    %v5458 = vunpack.c.l.b16 %v3958
    %v5459 = vunpack.c.h.b16 %v3958
    %v5460 = vunpack.c.l.b16 %v3959
    %v5461 = vunpack.c.h.b16 %v3959
    %v5462 = vunpack.c.l.b16 %v3960
    %v5463 = vunpack.c.h.b16 %v3960
    %v5464 = vunpack.c.l.b16 %v3961
    %v5465 = vunpack.c.h.b16 %v3961
    %v5466 = vunpack.c.l.b16 %v3962
    %v5467 = vunpack.c.h.b16 %v3962
    %v5468 = vunpack.c.l.b16 %v3963
    %v5469 = vunpack.c.h.b16 %v3963
    %v5470 = vunpack.c.l.b16 %v3964
    %v5471 = vunpack.c.h.b16 %v3964
    %v5472 = vunpack.c.l.b16 %v3965
    %v5473 = vunpack.c.h.b16 %v3965
    %v5474 = vunpack.c.l.b16 %v3966
    %v5475 = vunpack.c.h.b16 %v3966
    %v5476 = vunpack.c.l.b16 %v3967
    %v5477 = vunpack.c.h.b16 %v3967
    %v5478 = vunpack.c.l.b16 %v3968
    %v5479 = vunpack.c.h.b16 %v3968
    %v5480 = vunpack.c.l.b16 %v3969
    %v5481 = vunpack.c.h.b16 %v3969
    %v5482 = vunpack.c.l.b16 %v3970
    %v5483 = vunpack.c.h.b16 %v3970
    %v5484 = vunpack.c.l.b16 %v3971
    %v5485 = vunpack.c.h.b16 %v3971
    %v5486 = vunpack.c.l.b16 %v3972
    %v5487 = vunpack.c.h.b16 %v3972
    %v5488 = vunpack.c.l.b16 %v3973
    %v5489 = vunpack.c.h.b16 %v3973
    %v5490 = vunpack.c.l.b16 %v3974
    %v5491 = vunpack.c.h.b16 %v3974
    %v5492 = vunpack.c.l.b16 %v3975
    %v5493 = vunpack.c.h.b16 %v3975
    %v5494 = vunpack.c.l.b16 %v3976
    %v5495 = vunpack.c.h.b16 %v3976
    %v5496 = vunpack.c.l.b16 %v3977
    %v5497 = vunpack.c.h.b16 %v3977
    %v5498 = vunpack.c.l.b16 %v3978
    %v5499 = vunpack.c.h.b16 %v3978
    %v5500 = vunpack.c.l.b16 %v3979
    %v5501 = vunpack.c.h.b16 %v3979
    %v5502 = vunpack.c.l.b16 %v3980
    %v5503 = vunpack.c.h.b16 %v3980
    %v5504 = vunpack.c.l.b16 %v3981
    %v5505 = vunpack.c.h.b16 %v3981
    %v5506 = vunpack.c.l.b16 %v3982
    %v5507 = vunpack.c.h.b16 %v3982
    %v5508 = vunpack.c.l.b16 %v3983
    %v5509 = vunpack.c.h.b16 %v3983
    %v5510 = vunpack.c.l.b16 %v3984
    %v5511 = vunpack.c.h.b16 %v3984
    %v5512 = vunpack.c.l.b16 %v3985
    %v5513 = vunpack.c.h.b16 %v3985
    %v5514 = vunpack.c.l.b16 %v3986
    %v5515 = vunpack.c.h.b16 %v3986
    %v5516 = vunpack.c.l.b16 %v3987
    %v5517 = vunpack.c.h.b16 %v3987
    %v5518 = vunpack.c.l.b16 %v3988
    %v5519 = vunpack.c.h.b16 %v3988
    %v5520 = vunpack.c.l.b16 %v3989
    %v5521 = vunpack.c.h.b16 %v3989
    %v5522 = vunpack.c.l.b16 %v3990
    %v5523 = vunpack.c.h.b16 %v3990
    %v5524 = vunpack.c.l.b16 %v3991
    %v5525 = vunpack.c.h.b16 %v3991
    %v5526 = vunpack.c.l.b16 %v3992
    %v5527 = vunpack.c.h.b16 %v3992
    %v5528 = vunpack.c.l.b16 %v3993
    %v5529 = vunpack.c.h.b16 %v3993
    %v5530 = vpack.c.b16 %v4514, %v4506
    %v5531 = vpack.c.b16 %v4515, %v4507
    %v5532 = vpack.c.b16 %v4516, %v4508
    %v5533 = vpack.c.b16 %v4517, %v4509
    %v5534 = vpack.c.b16 %v4518, %v4510
    %v5535 = vpack.c.b16 %v4519, %v4511
    %v5536 = vpack.c.b16 %v4520, %v4512
    %v5537 = vpack.c.b16 %v4521, %v4513
    %v5538 = vpack.c.b16 %v4530, %v4522
    %v5539 = vpack.c.b16 %v4531, %v4523
    %v5540 = vpack.c.b16 %v4532, %v4524
    %v5541 = vpack.c.b16 %v4533, %v4525
    %v5542 = vpack.c.b16 %v4534, %v4526
    %v5543 = vpack.c.b16 %v4535, %v4527
    %v5544 = vpack.c.b16 %v4536, %v4528
    %v5545 = vpack.c.b16 %v4537, %v4529
    %v5546 = vpack.c.b16 %v4546, %v4538
    %v5547 = vpack.c.b16 %v4547, %v4539
    %v5548 = vpack.c.b16 %v4548, %v4540
    %v5549 = vpack.c.b16 %v4549, %v4541
    %v5550 = vpack.c.b16 %v4550, %v4542
    %v5551 = vpack.c.b16 %v4551, %v4543
    %v5552 = vpack.c.b16 %v4552, %v4544
    %v5553 = vpack.c.b16 %v4553, %v4545
    %v5554 = vpack.c.b16 %v4562, %v4554
    %v5555 = vpack.c.b16 %v4563, %v4555
    %v5556 = vpack.c.b16 %v4564, %v4556
    %v5557 = vpack.c.b16 %v4565, %v4557
    %v5558 = vpack.c.b16 %v4566, %v4558
    %v5559 = vpack.c.b16 %v4567, %v4559
    %v5560 = vpack.c.b16 %v4568, %v4560
    %v5561 = vpack.c.b16 %v4569, %v4561
    %v5562 = vpack.c.b16 %v4578, %v4570
    %v5563 = vpack.c.b16 %v4579, %v4571
    %v5564 = vpack.c.b16 %v4580, %v4572
    %v5565 = vpack.c.b16 %v4581, %v4573
    %v5566 = vpack.c.b16 %v4582, %v4574
    %v5567 = vpack.c.b16 %v4583, %v4575
    %v5568 = vpack.c.b16 %v4584, %v4576
    %v5569 = vpack.c.b16 %v4585, %v4577
    %v5570 = vpack.c.b16 %v4594, %v4586
    %v5571 = vpack.c.b16 %v4595, %v4587
    %v5572 = vpack.c.b16 %v4596, %v4588
    %v5573 = vpack.c.b16 %v4597, %v4589
    %v5574 = vpack.c.b16 %v4598, %v4590
    %v5575 = vpack.c.b16 %v4599, %v4591
    %v5576 = vpack.c.b16 %v4600, %v4592
    %v5577 = vpack.c.b16 %v4601, %v4593
    %v5578 = vpack.c.b16 %v4610, %v4602
    %v5579 = vpack.c.b16 %v4611, %v4603
    %v5580 = vpack.c.b16 %v4612, %v4604
    %v5581 = vpack.c.b16 %v4613, %v4605
    %v5582 = vpack.c.b16 %v4614, %v4606
    %v5583 = vpack.c.b16 %v4615, %v4607
    %v5584 = vpack.c.b16 %v4616, %v4608
    %v5585 = vpack.c.b16 %v4617, %v4609
    %v5586 = vpack.c.b16 %v4626, %v4618
    %v5587 = vpack.c.b16 %v4627, %v4619
    %v5588 = vpack.c.b16 %v4628, %v4620
    %v5589 = vpack.c.b16 %v4629, %v4621
    %v5590 = vpack.c.b16 %v4630, %v4622
    %v5591 = vpack.c.b16 %v4631, %v4623
    %v5592 = vpack.c.b16 %v4632, %v4624
    %v5593 = vpack.c.b16 %v4633, %v4625
    %v5594 = vpack.c.b16 %v4642, %v4634
    %v5595 = vpack.c.b16 %v4643, %v4635
    %v5596 = vpack.c.b16 %v4644, %v4636
    %v5597 = vpack.c.b16 %v4645, %v4637
    %v5598 = vpack.c.b16 %v4646, %v4638
    %v5599 = vpack.c.b16 %v4647, %v4639
    %v5600 = vpack.c.b16 %v4648, %v4640
    %v5601 = vpack.c.b16 %v4649, %v4641
    %v5602 = vpack.c.b16 %v4658, %v4650
    %v5603 = vpack.c.b16 %v4659, %v4651
    %v5604 = vpack.c.b16 %v4660, %v4652
    %v5605 = vpack.c.b16 %v4661, %v4653
    %v5606 = vpack.c.b16 %v4662, %v4654
    %v5607 = vpack.c.b16 %v4663, %v4655
    %v5608 = vpack.c.b16 %v4664, %v4656
    %v5609 = vpack.c.b16 %v4665, %v4657
    %v5610 = vpack.c.b16 %v4674, %v4666
    %v5611 = vpack.c.b16 %v4675, %v4667
    %v5612 = vpack.c.b16 %v4676, %v4668
    %v5613 = vpack.c.b16 %v4677, %v4669
    %v5614 = vpack.c.b16 %v4678, %v4670
    %v5615 = vpack.c.b16 %v4679, %v4671
    %v5616 = vpack.c.b16 %v4680, %v4672
    %v5617 = vpack.c.b16 %v4681, %v4673
    %v5618 = vpack.c.b16 %v4690, %v4682
    %v5619 = vpack.c.b16 %v4691, %v4683
    %v5620 = vpack.c.b16 %v4692, %v4684
    %v5621 = vpack.c.b16 %v4693, %v4685
    %v5622 = vpack.c.b16 %v4694, %v4686
    %v5623 = vpack.c.b16 %v4695, %v4687
    %v5624 = vpack.c.b16 %v4696, %v4688
    %v5625 = vpack.c.b16 %v4697, %v4689
    %v5626 = vpack.c.b16 %v4706, %v4698
    %v5627 = vpack.c.b16 %v4707, %v4699
    %v5628 = vpack.c.b16 %v4708, %v4700
    %v5629 = vpack.c.b16 %v4709, %v4701
    %v5630 = vpack.c.b16 %v4710, %v4702
    %v5631 = vpack.c.b16 %v4711, %v4703
    %v5632 = vpack.c.b16 %v4712, %v4704
    %v5633 = vpack.c.b16 %v4713, %v4705
    %v5634 = vpack.c.b16 %v4722, %v4714
    %v5635 = vpack.c.b16 %v4723, %v4715
    %v5636 = vpack.c.b16 %v4724, %v4716
    %v5637 = vpack.c.b16 %v4725, %v4717
    %v5638 = vpack.c.b16 %v4726, %v4718
    %v5639 = vpack.c.b16 %v4727, %v4719
    %v5640 = vpack.c.b16 %v4728, %v4720
    %v5641 = vpack.c.b16 %v4729, %v4721
    %v5642 = vpack.c.b16 %v4738, %v4730
    %v5643 = vpack.c.b16 %v4739, %v4731
    %v5644 = vpack.c.b16 %v4740, %v4732
    %v5645 = vpack.c.b16 %v4741, %v4733
    %v5646 = vpack.c.b16 %v4742, %v4734
    %v5647 = vpack.c.b16 %v4743, %v4735
    %v5648 = vpack.c.b16 %v4744, %v4736
    %v5649 = vpack.c.b16 %v4745, %v4737
    %v5650 = vpack.c.b16 %v4754, %v4746
    %v5651 = vpack.c.b16 %v4755, %v4747
    %v5652 = vpack.c.b16 %v4756, %v4748
    %v5653 = vpack.c.b16 %v4757, %v4749
    %v5654 = vpack.c.b16 %v4758, %v4750
    %v5655 = vpack.c.b16 %v4759, %v4751
    %v5656 = vpack.c.b16 %v4760, %v4752
    %v5657 = vpack.c.b16 %v4761, %v4753
    %v5658 = vpack.c.b16 %v4770, %v4762
    %v5659 = vpack.c.b16 %v4771, %v4763
    %v5660 = vpack.c.b16 %v4772, %v4764
    %v5661 = vpack.c.b16 %v4773, %v4765
    %v5662 = vpack.c.b16 %v4774, %v4766
    %v5663 = vpack.c.b16 %v4775, %v4767
    %v5664 = vpack.c.b16 %v4776, %v4768
    %v5665 = vpack.c.b16 %v4777, %v4769
    %v5666 = vpack.c.b16 %v4786, %v4778
    %v5667 = vpack.c.b16 %v4787, %v4779
    %v5668 = vpack.c.b16 %v4788, %v4780
    %v5669 = vpack.c.b16 %v4789, %v4781
    %v5670 = vpack.c.b16 %v4790, %v4782
    %v5671 = vpack.c.b16 %v4791, %v4783
    %v5672 = vpack.c.b16 %v4792, %v4784
    %v5673 = vpack.c.b16 %v4793, %v4785
    %v5674 = vpack.c.b16 %v4802, %v4794
    %v5675 = vpack.c.b16 %v4803, %v4795
    %v5676 = vpack.c.b16 %v4804, %v4796
    %v5677 = vpack.c.b16 %v4805, %v4797
    %v5678 = vpack.c.b16 %v4806, %v4798
    %v5679 = vpack.c.b16 %v4807, %v4799
    %v5680 = vpack.c.b16 %v4808, %v4800
    %v5681 = vpack.c.b16 %v4809, %v4801
    %v5682 = vpack.c.b16 %v4818, %v4810
    %v5683 = vpack.c.b16 %v4819, %v4811
    %v5684 = vpack.c.b16 %v4820, %v4812
    %v5685 = vpack.c.b16 %v4821, %v4813
    %v5686 = vpack.c.b16 %v4822, %v4814
    %v5687 = vpack.c.b16 %v4823, %v4815
    %v5688 = vpack.c.b16 %v4824, %v4816
    %v5689 = vpack.c.b16 %v4825, %v4817
    %v5690 = vpack.c.b16 %v4834, %v4826
    %v5691 = vpack.c.b16 %v4835, %v4827
    %v5692 = vpack.c.b16 %v4836, %v4828
    %v5693 = vpack.c.b16 %v4837, %v4829
    %v5694 = vpack.c.b16 %v4838, %v4830
    %v5695 = vpack.c.b16 %v4839, %v4831
    %v5696 = vpack.c.b16 %v4840, %v4832
    %v5697 = vpack.c.b16 %v4841, %v4833
    %v5698 = vpack.c.b16 %v4850, %v4842
    %v5699 = vpack.c.b16 %v4851, %v4843
    %v5700 = vpack.c.b16 %v4852, %v4844
    %v5701 = vpack.c.b16 %v4853, %v4845
    %v5702 = vpack.c.b16 %v4854, %v4846
    %v5703 = vpack.c.b16 %v4855, %v4847
    %v5704 = vpack.c.b16 %v4856, %v4848
    %v5705 = vpack.c.b16 %v4857, %v4849
    %v5706 = vpack.c.b16 %v4866, %v4858
    %v5707 = vpack.c.b16 %v4867, %v4859
    %v5708 = vpack.c.b16 %v4868, %v4860
    %v5709 = vpack.c.b16 %v4869, %v4861
    %v5710 = vpack.c.b16 %v4870, %v4862
    %v5711 = vpack.c.b16 %v4871, %v4863
    %v5712 = vpack.c.b16 %v4872, %v4864
    %v5713 = vpack.c.b16 %v4873, %v4865
    %v5714 = vpack.c.b16 %v4882, %v4874
    %v5715 = vpack.c.b16 %v4883, %v4875
    %v5716 = vpack.c.b16 %v4884, %v4876
    %v5717 = vpack.c.b16 %v4885, %v4877
    %v5718 = vpack.c.b16 %v4886, %v4878
    %v5719 = vpack.c.b16 %v4887, %v4879
    %v5720 = vpack.c.b16 %v4888, %v4880
    %v5721 = vpack.c.b16 %v4889, %v4881
    %v5722 = vpack.c.b16 %v4898, %v4890
    %v5723 = vpack.c.b16 %v4899, %v4891
    %v5724 = vpack.c.b16 %v4900, %v4892
    %v5725 = vpack.c.b16 %v4901, %v4893
    %v5726 = vpack.c.b16 %v4902, %v4894
    %v5727 = vpack.c.b16 %v4903, %v4895
    %v5728 = vpack.c.b16 %v4904, %v4896
    %v5729 = vpack.c.b16 %v4905, %v4897
    %v5730 = vpack.c.b16 %v4914, %v4906
    %v5731 = vpack.c.b16 %v4915, %v4907
    %v5732 = vpack.c.b16 %v4916, %v4908
    %v5733 = vpack.c.b16 %v4917, %v4909
    %v5734 = vpack.c.b16 %v4918, %v4910
    %v5735 = vpack.c.b16 %v4919, %v4911
    %v5736 = vpack.c.b16 %v4920, %v4912
    %v5737 = vpack.c.b16 %v4921, %v4913
    %v5738 = vpack.c.b16 %v4930, %v4922
    %v5739 = vpack.c.b16 %v4931, %v4923
    %v5740 = vpack.c.b16 %v4932, %v4924
    %v5741 = vpack.c.b16 %v4933, %v4925
    %v5742 = vpack.c.b16 %v4934, %v4926
    %v5743 = vpack.c.b16 %v4935, %v4927
    %v5744 = vpack.c.b16 %v4936, %v4928
    %v5745 = vpack.c.b16 %v4937, %v4929
    %v5746 = vpack.c.b16 %v4946, %v4938
    %v5747 = vpack.c.b16 %v4947, %v4939
    %v5748 = vpack.c.b16 %v4948, %v4940
    %v5749 = vpack.c.b16 %v4949, %v4941
    %v5750 = vpack.c.b16 %v4950, %v4942
    %v5751 = vpack.c.b16 %v4951, %v4943
    %v5752 = vpack.c.b16 %v4952, %v4944
    %v5753 = vpack.c.b16 %v4953, %v4945
    %v5754 = vpack.c.b16 %v4962, %v4954
    %v5755 = vpack.c.b16 %v4963, %v4955
    %v5756 = vpack.c.b16 %v4964, %v4956
    %v5757 = vpack.c.b16 %v4965, %v4957
    %v5758 = vpack.c.b16 %v4966, %v4958
    %v5759 = vpack.c.b16 %v4967, %v4959
    %v5760 = vpack.c.b16 %v4968, %v4960
    %v5761 = vpack.c.b16 %v4969, %v4961
    %v5762 = vpack.c.b16 %v4978, %v4970
    %v5763 = vpack.c.b16 %v4979, %v4971
    %v5764 = vpack.c.b16 %v4980, %v4972
    %v5765 = vpack.c.b16 %v4981, %v4973
    %v5766 = vpack.c.b16 %v4982, %v4974
    %v5767 = vpack.c.b16 %v4983, %v4975
    %v5768 = vpack.c.b16 %v4984, %v4976
    %v5769 = vpack.c.b16 %v4985, %v4977
    %v5770 = vpack.c.b16 %v4994, %v4986
    %v5771 = vpack.c.b16 %v4995, %v4987
    %v5772 = vpack.c.b16 %v4996, %v4988
    %v5773 = vpack.c.b16 %v4997, %v4989
    %v5774 = vpack.c.b16 %v4998, %v4990
    %v5775 = vpack.c.b16 %v4999, %v4991
    %v5776 = vpack.c.b16 %v5000, %v4992
    %v5777 = vpack.c.b16 %v5001, %v4993
    %v5778 = vpack.c.b16 %v5010, %v5002
    %v5779 = vpack.c.b16 %v5011, %v5003
    %v5780 = vpack.c.b16 %v5012, %v5004
    %v5781 = vpack.c.b16 %v5013, %v5005
    %v5782 = vpack.c.b16 %v5014, %v5006
    %v5783 = vpack.c.b16 %v5015, %v5007
    %v5784 = vpack.c.b16 %v5016, %v5008
    %v5785 = vpack.c.b16 %v5017, %v5009
    %v5786 = vpack.c.b16 %v5026, %v5018
    %v5787 = vpack.c.b16 %v5027, %v5019
    %v5788 = vpack.c.b16 %v5028, %v5020
    %v5789 = vpack.c.b16 %v5029, %v5021
    %v5790 = vpack.c.b16 %v5030, %v5022
    %v5791 = vpack.c.b16 %v5031, %v5023
    %v5792 = vpack.c.b16 %v5032, %v5024
    %v5793 = vpack.c.b16 %v5033, %v5025
    %v5794 = vpack.c.b16 %v5042, %v5034
    %v5795 = vpack.c.b16 %v5043, %v5035
    %v5796 = vpack.c.b16 %v5044, %v5036
    %v5797 = vpack.c.b16 %v5045, %v5037
    %v5798 = vpack.c.b16 %v5046, %v5038
    %v5799 = vpack.c.b16 %v5047, %v5039
    %v5800 = vpack.c.b16 %v5048, %v5040
    %v5801 = vpack.c.b16 %v5049, %v5041
    %v5802 = vpack.c.b16 %v5058, %v5050
    %v5803 = vpack.c.b16 %v5059, %v5051
    %v5804 = vpack.c.b16 %v5060, %v5052
    %v5805 = vpack.c.b16 %v5061, %v5053
    %v5806 = vpack.c.b16 %v5062, %v5054
    %v5807 = vpack.c.b16 %v5063, %v5055
    %v5808 = vpack.c.b16 %v5064, %v5056
    %v5809 = vpack.c.b16 %v5065, %v5057
    %v5810 = vpack.c.b16 %v5074, %v5066
    %v5811 = vpack.c.b16 %v5075, %v5067
    %v5812 = vpack.c.b16 %v5076, %v5068
    %v5813 = vpack.c.b16 %v5077, %v5069
    %v5814 = vpack.c.b16 %v5078, %v5070
    %v5815 = vpack.c.b16 %v5079, %v5071
    %v5816 = vpack.c.b16 %v5080, %v5072
    %v5817 = vpack.c.b16 %v5081, %v5073
    %v5818 = vpack.c.b16 %v5090, %v5082
    %v5819 = vpack.c.b16 %v5091, %v5083
    %v5820 = vpack.c.b16 %v5092, %v5084
    %v5821 = vpack.c.b16 %v5093, %v5085
    %v5822 = vpack.c.b16 %v5094, %v5086
    %v5823 = vpack.c.b16 %v5095, %v5087
    %v5824 = vpack.c.b16 %v5096, %v5088
    %v5825 = vpack.c.b16 %v5097, %v5089
    %v5826 = vpack.c.b16 %v5106, %v5098
    %v5827 = vpack.c.b16 %v5107, %v5099
    %v5828 = vpack.c.b16 %v5108, %v5100
    %v5829 = vpack.c.b16 %v5109, %v5101
    %v5830 = vpack.c.b16 %v5110, %v5102
    %v5831 = vpack.c.b16 %v5111, %v5103
    %v5832 = vpack.c.b16 %v5112, %v5104
    %v5833 = vpack.c.b16 %v5113, %v5105
    %v5834 = vpack.c.b16 %v5122, %v5114
    %v5835 = vpack.c.b16 %v5123, %v5115
    %v5836 = vpack.c.b16 %v5124, %v5116
    %v5837 = vpack.c.b16 %v5125, %v5117
    %v5838 = vpack.c.b16 %v5126, %v5118
    %v5839 = vpack.c.b16 %v5127, %v5119
    %v5840 = vpack.c.b16 %v5128, %v5120
    %v5841 = vpack.c.b16 %v5129, %v5121
    %v5842 = vpack.c.b16 %v5138, %v5130
    %v5843 = vpack.c.b16 %v5139, %v5131
    %v5844 = vpack.c.b16 %v5140, %v5132
    %v5845 = vpack.c.b16 %v5141, %v5133
    %v5846 = vpack.c.b16 %v5142, %v5134
    %v5847 = vpack.c.b16 %v5143, %v5135
    %v5848 = vpack.c.b16 %v5144, %v5136
    %v5849 = vpack.c.b16 %v5145, %v5137
    %v5850 = vpack.c.b16 %v5154, %v5146
    %v5851 = vpack.c.b16 %v5155, %v5147
    %v5852 = vpack.c.b16 %v5156, %v5148
    %v5853 = vpack.c.b16 %v5157, %v5149
    %v5854 = vpack.c.b16 %v5158, %v5150
    %v5855 = vpack.c.b16 %v5159, %v5151
    %v5856 = vpack.c.b16 %v5160, %v5152
    %v5857 = vpack.c.b16 %v5161, %v5153
    %v5858 = vpack.c.b16 %v5170, %v5162
    %v5859 = vpack.c.b16 %v5171, %v5163
    %v5860 = vpack.c.b16 %v5172, %v5164
    %v5861 = vpack.c.b16 %v5173, %v5165
    %v5862 = vpack.c.b16 %v5174, %v5166
    %v5863 = vpack.c.b16 %v5175, %v5167
    %v5864 = vpack.c.b16 %v5176, %v5168
    %v5865 = vpack.c.b16 %v5177, %v5169
    %v5866 = vpack.c.b16 %v5186, %v5178
    %v5867 = vpack.c.b16 %v5187, %v5179
    %v5868 = vpack.c.b16 %v5188, %v5180
    %v5869 = vpack.c.b16 %v5189, %v5181
    %v5870 = vpack.c.b16 %v5190, %v5182
    %v5871 = vpack.c.b16 %v5191, %v5183
    %v5872 = vpack.c.b16 %v5192, %v5184
    %v5873 = vpack.c.b16 %v5193, %v5185
    %v5874 = vpack.c.b16 %v5202, %v5194
    %v5875 = vpack.c.b16 %v5203, %v5195
    %v5876 = vpack.c.b16 %v5204, %v5196
    %v5877 = vpack.c.b16 %v5205, %v5197
    %v5878 = vpack.c.b16 %v5206, %v5198
    %v5879 = vpack.c.b16 %v5207, %v5199
    %v5880 = vpack.c.b16 %v5208, %v5200
    %v5881 = vpack.c.b16 %v5209, %v5201
    %v5882 = vpack.c.b16 %v5218, %v5210
    %v5883 = vpack.c.b16 %v5219, %v5211
    %v5884 = vpack.c.b16 %v5220, %v5212
    %v5885 = vpack.c.b16 %v5221, %v5213
    %v5886 = vpack.c.b16 %v5222, %v5214
    %v5887 = vpack.c.b16 %v5223, %v5215
    %v5888 = vpack.c.b16 %v5224, %v5216
    %v5889 = vpack.c.b16 %v5225, %v5217
    %v5890 = vpack.c.b16 %v5234, %v5226
    %v5891 = vpack.c.b16 %v5235, %v5227
    %v5892 = vpack.c.b16 %v5236, %v5228
    %v5893 = vpack.c.b16 %v5237, %v5229
    %v5894 = vpack.c.b16 %v5238, %v5230
    %v5895 = vpack.c.b16 %v5239, %v5231
    %v5896 = vpack.c.b16 %v5240, %v5232
    %v5897 = vpack.c.b16 %v5241, %v5233
    %v5898 = vpack.c.b16 %v5250, %v5242
    %v5899 = vpack.c.b16 %v5251, %v5243
    %v5900 = vpack.c.b16 %v5252, %v5244
    %v5901 = vpack.c.b16 %v5253, %v5245
    %v5902 = vpack.c.b16 %v5254, %v5246
    %v5903 = vpack.c.b16 %v5255, %v5247
    %v5904 = vpack.c.b16 %v5256, %v5248
    %v5905 = vpack.c.b16 %v5257, %v5249
    %v5906 = vpack.c.b16 %v5266, %v5258
    %v5907 = vpack.c.b16 %v5267, %v5259
    %v5908 = vpack.c.b16 %v5268, %v5260
    %v5909 = vpack.c.b16 %v5269, %v5261
    %v5910 = vpack.c.b16 %v5270, %v5262
    %v5911 = vpack.c.b16 %v5271, %v5263
    %v5912 = vpack.c.b16 %v5272, %v5264
    %v5913 = vpack.c.b16 %v5273, %v5265
    %v5914 = vpack.c.b16 %v5282, %v5274
    %v5915 = vpack.c.b16 %v5283, %v5275
    %v5916 = vpack.c.b16 %v5284, %v5276
    %v5917 = vpack.c.b16 %v5285, %v5277
    %v5918 = vpack.c.b16 %v5286, %v5278
    %v5919 = vpack.c.b16 %v5287, %v5279
    %v5920 = vpack.c.b16 %v5288, %v5280
    %v5921 = vpack.c.b16 %v5289, %v5281
    %v5922 = vpack.c.b16 %v5298, %v5290
    %v5923 = vpack.c.b16 %v5299, %v5291
    %v5924 = vpack.c.b16 %v5300, %v5292
    %v5925 = vpack.c.b16 %v5301, %v5293
    %v5926 = vpack.c.b16 %v5302, %v5294
    %v5927 = vpack.c.b16 %v5303, %v5295
    %v5928 = vpack.c.b16 %v5304, %v5296
    %v5929 = vpack.c.b16 %v5305, %v5297
    %v5930 = vpack.c.b16 %v5314, %v5306
    %v5931 = vpack.c.b16 %v5315, %v5307
    %v5932 = vpack.c.b16 %v5316, %v5308
    %v5933 = vpack.c.b16 %v5317, %v5309
    %v5934 = vpack.c.b16 %v5318, %v5310
    %v5935 = vpack.c.b16 %v5319, %v5311
    %v5936 = vpack.c.b16 %v5320, %v5312
    %v5937 = vpack.c.b16 %v5321, %v5313
    %v5938 = vpack.c.b16 %v5330, %v5322
    %v5939 = vpack.c.b16 %v5331, %v5323
    %v5940 = vpack.c.b16 %v5332, %v5324
    %v5941 = vpack.c.b16 %v5333, %v5325
    %v5942 = vpack.c.b16 %v5334, %v5326
    %v5943 = vpack.c.b16 %v5335, %v5327
    %v5944 = vpack.c.b16 %v5336, %v5328
    %v5945 = vpack.c.b16 %v5337, %v5329
    %v5946 = vpack.c.b16 %v5346, %v5338
    %v5947 = vpack.c.b16 %v5347, %v5339
    %v5948 = vpack.c.b16 %v5348, %v5340
    %v5949 = vpack.c.b16 %v5349, %v5341
    %v5950 = vpack.c.b16 %v5350, %v5342
    %v5951 = vpack.c.b16 %v5351, %v5343
    %v5952 = vpack.c.b16 %v5352, %v5344
    %v5953 = vpack.c.b16 %v5353, %v5345
    %v5954 = vpack.c.b16 %v5362, %v5354
    %v5955 = vpack.c.b16 %v5363, %v5355
    %v5956 = vpack.c.b16 %v5364, %v5356
    %v5957 = vpack.c.b16 %v5365, %v5357
    %v5958 = vpack.c.b16 %v5366, %v5358
    %v5959 = vpack.c.b16 %v5367, %v5359
    %v5960 = vpack.c.b16 %v5368, %v5360
    %v5961 = vpack.c.b16 %v5369, %v5361
    %v5962 = vpack.c.b16 %v5378, %v5370
    %v5963 = vpack.c.b16 %v5379, %v5371
    %v5964 = vpack.c.b16 %v5380, %v5372
    %v5965 = vpack.c.b16 %v5381, %v5373
    %v5966 = vpack.c.b16 %v5382, %v5374
    %v5967 = vpack.c.b16 %v5383, %v5375
    %v5968 = vpack.c.b16 %v5384, %v5376
    %v5969 = vpack.c.b16 %v5385, %v5377
    %v5970 = vpack.c.b16 %v5394, %v5386
    %v5971 = vpack.c.b16 %v5395, %v5387
    %v5972 = vpack.c.b16 %v5396, %v5388
    %v5973 = vpack.c.b16 %v5397, %v5389
    %v5974 = vpack.c.b16 %v5398, %v5390
    %v5975 = vpack.c.b16 %v5399, %v5391
    %v5976 = vpack.c.b16 %v5400, %v5392
    %v5977 = vpack.c.b16 %v5401, %v5393
    %v5978 = vpack.c.b16 %v5410, %v5402
    %v5979 = vpack.c.b16 %v5411, %v5403
    %v5980 = vpack.c.b16 %v5412, %v5404
    %v5981 = vpack.c.b16 %v5413, %v5405
    %v5982 = vpack.c.b16 %v5414, %v5406
    %v5983 = vpack.c.b16 %v5415, %v5407
    %v5984 = vpack.c.b16 %v5416, %v5408
    %v5985 = vpack.c.b16 %v5417, %v5409
    %v5986 = vpack.c.b16 %v5426, %v5418
    %v5987 = vpack.c.b16 %v5427, %v5419
    %v5988 = vpack.c.b16 %v5428, %v5420
    %v5989 = vpack.c.b16 %v5429, %v5421
    %v5990 = vpack.c.b16 %v5430, %v5422
    %v5991 = vpack.c.b16 %v5431, %v5423
    %v5992 = vpack.c.b16 %v5432, %v5424
    %v5993 = vpack.c.b16 %v5433, %v5425
    %v5994 = vpack.c.b16 %v5442, %v5434
    %v5995 = vpack.c.b16 %v5443, %v5435
    %v5996 = vpack.c.b16 %v5444, %v5436
    %v5997 = vpack.c.b16 %v5445, %v5437
    %v5998 = vpack.c.b16 %v5446, %v5438
    %v5999 = vpack.c.b16 %v5447, %v5439
    %v6000 = vpack.c.b16 %v5448, %v5440
    %v6001 = vpack.c.b16 %v5449, %v5441
    %v6002 = vpack.c.b16 %v5458, %v5450
    %v6003 = vpack.c.b16 %v5459, %v5451
    %v6004 = vpack.c.b16 %v5460, %v5452
    %v6005 = vpack.c.b16 %v5461, %v5453
    %v6006 = vpack.c.b16 %v5462, %v5454
    %v6007 = vpack.c.b16 %v5463, %v5455
    %v6008 = vpack.c.b16 %v5464, %v5456
    %v6009 = vpack.c.b16 %v5465, %v5457
    %v6010 = vpack.c.b16 %v5474, %v5466
    %v6011 = vpack.c.b16 %v5475, %v5467
    %v6012 = vpack.c.b16 %v5476, %v5468
    %v6013 = vpack.c.b16 %v5477, %v5469
    %v6014 = vpack.c.b16 %v5478, %v5470
    %v6015 = vpack.c.b16 %v5479, %v5471
    %v6016 = vpack.c.b16 %v5480, %v5472
    %v6017 = vpack.c.b16 %v5481, %v5473
    %v6018 = vpack.c.b16 %v5490, %v5482
    %v6019 = vpack.c.b16 %v5491, %v5483
    %v6020 = vpack.c.b16 %v5492, %v5484
    %v6021 = vpack.c.b16 %v5493, %v5485
    %v6022 = vpack.c.b16 %v5494, %v5486
    %v6023 = vpack.c.b16 %v5495, %v5487
    %v6024 = vpack.c.b16 %v5496, %v5488
    %v6025 = vpack.c.b16 %v5497, %v5489
    %v6026 = vpack.c.b16 %v5506, %v5498
    %v6027 = vpack.c.b16 %v5507, %v5499
    %v6028 = vpack.c.b16 %v5508, %v5500
    %v6029 = vpack.c.b16 %v5509, %v5501
    %v6030 = vpack.c.b16 %v5510, %v5502
    %v6031 = vpack.c.b16 %v5511, %v5503
    %v6032 = vpack.c.b16 %v5512, %v5504
    %v6033 = vpack.c.b16 %v5513, %v5505
    %v6034 = vpack.c.b16 %v5522, %v5514
    %v6035 = vpack.c.b16 %v5523, %v5515
    %v6036 = vpack.c.b16 %v5524, %v5516
    %v6037 = vpack.c.b16 %v5525, %v5517
    %v6038 = vpack.c.b16 %v5526, %v5518
    %v6039 = vpack.c.b16 %v5527, %v5519
    %v6040 = vpack.c.b16 %v5528, %v5520
    %v6041 = vpack.c.b16 %v5529, %v5521
    %6554 = vmatprep.subr.bf16.mxu0 %v5531
    %6555 = vmatpush1.bf16.msra.mxu0 %v5530
    %6556 = vmatprep.subr.bf16.mxu0 %v5539
    %6557 = vmatpush1.bf16.msra.mxu0 %v5538
    %6558 = vmatprep.subr.bf16.mxu0 %v5547
    %6559 = vmatpush1.bf16.msra.mxu0 %v5546
    %6560 = vmatprep.subr.bf16.mxu0 %v5555
    %6561 = vmatpush1.bf16.msra.mxu0 %v5554
    %6562 = vmatprep.subr.bf16.mxu0 %v5563
    %6563 = vmatpush1.bf16.msra.mxu0 %v5562
    %6564 = vmatprep.subr.bf16.mxu0 %v5571
    %6565 = vmatpush1.bf16.msra.mxu0 %v5570
    %6566 = vmatprep.subr.bf16.mxu0 %v5579
    %6567 = vmatpush1.bf16.msra.mxu0 %v5578
    %6568 = vmatprep.subr.bf16.mxu0 %v5587
    %6569 = vmatpush1.bf16.msra.mxu0 %v5586
    %6570 = vmatprep.subr.bf16.mxu0 %v5595
    %6571 = vmatpush1.bf16.msra.mxu0 %v5594
    %6572 = vmatprep.subr.bf16.mxu0 %v5603
    %6573 = vmatpush1.bf16.msra.mxu0 %v5602
    %6574 = vmatprep.subr.bf16.mxu0 %v5611
    %6575 = vmatpush1.bf16.msra.mxu0 %v5610
    %6576 = vmatprep.subr.bf16.mxu0 %v5619
    %6577 = vmatpush1.bf16.msra.mxu0 %v5618
    %6578 = vmatprep.subr.bf16.mxu0 %v5627
    %6579 = vmatpush1.bf16.msra.mxu0 %v5626
    %6580 = vmatprep.subr.bf16.mxu0 %v5635
    %6581 = vmatpush1.bf16.msra.mxu0 %v5634
    %6582 = vmatprep.subr.bf16.mxu0 %v5643
    %6583 = vmatpush1.bf16.msra.mxu0 %v5642
    %6584 = vmatprep.subr.bf16.mxu0 %v5651
    %6585 = vmatpush1.bf16.msra.mxu0 %v5650
    %6586 = vmatprep.mubr.bf16.mxu0 %v3475
    %6587 = vmatmul.mubr.bf16.gmra.mrb[0].mxu0 %v3474
    %v6588 = vpop.f32.mrb[0].mxu0
    %v6589 = vadd.f32 0.0, %v6588
    %v6590 = vpop.f32.mrb[0].mxu0
    %v6591 = vadd.f32 0.0, %v6590
    %v6592 = vpop.f32.mrb[0].mxu0
    %v6593 = vpop.f32.mrb[0].mxu0
    %6594 = vdwg.mxu0
    %6595 = vmatprep.subr.bf16.mxu0 %v5659
    %6596 = vmatpush1.bf16.msra.mxu0 %v5658
    %6597 = vmatprep.subr.bf16.mxu0 %v5667
    %6598 = vmatpush1.bf16.msra.mxu0 %v5666
    %6599 = vmatprep.subr.bf16.mxu0 %v5675
    %6600 = vmatpush1.bf16.msra.mxu0 %v5674
    %6601 = vmatprep.subr.bf16.mxu0 %v5683
    %6602 = vmatpush1.bf16.msra.mxu0 %v5682
    %6603 = vmatprep.subr.bf16.mxu0 %v5691
    %6604 = vmatpush1.bf16.msra.mxu0 %v5690
    %6605 = vmatprep.subr.bf16.mxu0 %v5699
    %6606 = vmatpush1.bf16.msra.mxu0 %v5698
    %6607 = vmatprep.subr.bf16.mxu0 %v5707
    %6608 = vmatpush1.bf16.msra.mxu0 %v5706
    %6609 = vmatprep.subr.bf16.mxu0 %v5715
    %6610 = vmatpush1.bf16.msra.mxu0 %v5714
    %6611 = vmatprep.subr.bf16.mxu0 %v5723
    %6612 = vmatpush1.bf16.msra.mxu0 %v5722
    %6613 = vmatprep.subr.bf16.mxu0 %v5731
    %6614 = vmatpush1.bf16.msra.mxu0 %v5730
    %6615 = vmatprep.subr.bf16.mxu0 %v5739
    %6616 = vmatpush1.bf16.msra.mxu0 %v5738
    %6617 = vmatprep.subr.bf16.mxu0 %v5747
    %6618 = vmatpush1.bf16.msra.mxu0 %v5746
    %6619 = vmatprep.subr.bf16.mxu0 %v5755
    %6620 = vmatpush1.bf16.msra.mxu0 %v5754
    %6621 = vmatprep.subr.bf16.mxu0 %v5763
    %6622 = vmatpush1.bf16.msra.mxu0 %v5762
    %6623 = vmatprep.subr.bf16.mxu0 %v5771
    %6624 = vmatpush1.bf16.msra.mxu0 %v5770
    %6625 = vmatprep.subr.bf16.mxu0 %v5779
    %6626 = vmatpush1.bf16.msra.mxu0 %v5778
    %6627 = vmatprep.mubr.bf16.mxu0 %v3477
    %6628 = vmatmul.mubr.bf16.gmra.mrb[0].mxu0 %v3476
    %v6629 = vpop.f32.mrb[0].mxu0
    %v6630 = vadd.f32 %v6589, %v6629
    %v6631 = vpop.f32.mrb[0].mxu0
    %v6632 = vadd.f32 %v6591, %v6631
    %v6633 = vpop.f32.mrb[0].mxu0
    %v6634 = vpop.f32.mrb[0].mxu0
    %6635 = vdwg.mxu0
    %6636 = vmatprep.subr.bf16.mxu0 %v5787
    %6637 = vmatpush1.bf16.msra.mxu0 %v5786
    %6638 = vmatprep.subr.bf16.mxu0 %v5795
    %6639 = vmatpush1.bf16.msra.mxu0 %v5794
    %6640 = vmatprep.subr.bf16.mxu0 %v5803
    %6641 = vmatpush1.bf16.msra.mxu0 %v5802
    %6642 = vmatprep.subr.bf16.mxu0 %v5811
    %6643 = vmatpush1.bf16.msra.mxu0 %v5810
    %6644 = vmatprep.subr.bf16.mxu0 %v5819
    %6645 = vmatpush1.bf16.msra.mxu0 %v5818
    %6646 = vmatprep.subr.bf16.mxu0 %v5827
    %6647 = vmatpush1.bf16.msra.mxu0 %v5826
    %6648 = vmatprep.subr.bf16.mxu0 %v5835
    %6649 = vmatpush1.bf16.msra.mxu0 %v5834
    %6650 = vmatprep.subr.bf16.mxu0 %v5843
    %6651 = vmatpush1.bf16.msra.mxu0 %v5842
    %6652 = vmatprep.subr.bf16.mxu0 %v5851
    %6653 = vmatpush1.bf16.msra.mxu0 %v5850
    %6654 = vmatprep.subr.bf16.mxu0 %v5859
    %6655 = vmatpush1.bf16.msra.mxu0 %v5858
    %6656 = vmatprep.subr.bf16.mxu0 %v5867
    %6657 = vmatpush1.bf16.msra.mxu0 %v5866
    %6658 = vmatprep.subr.bf16.mxu0 %v5875
    %6659 = vmatpush1.bf16.msra.mxu0 %v5874
    %6660 = vmatprep.subr.bf16.mxu0 %v5883
    %6661 = vmatpush1.bf16.msra.mxu0 %v5882
    %6662 = vmatprep.subr.bf16.mxu0 %v5891
    %6663 = vmatpush1.bf16.msra.mxu0 %v5890
    %6664 = vmatprep.subr.bf16.mxu0 %v5899
    %6665 = vmatpush1.bf16.msra.mxu0 %v5898
    %6666 = vmatprep.subr.bf16.mxu0 %v5907
    %6667 = vmatpush1.bf16.msra.mxu0 %v5906
    %6668 = vmatprep.mubr.bf16.mxu0 %v3479
    %6669 = vmatmul.mubr.bf16.gmra.mrb[0].mxu0 %v3478
    %v6670 = vpop.f32.mrb[0].mxu0
    %v6671 = vadd.f32 %v6630, %v6670
    %v6672 = vpop.f32.mrb[0].mxu0
    %v6673 = vadd.f32 %v6632, %v6672
    %v6674 = vpop.f32.mrb[0].mxu0
    %v6675 = vpop.f32.mrb[0].mxu0
    %6676 = vdwg.mxu0
    %6677 = vmatprep.subr.bf16.mxu0 %v5915
    %6678 = vmatpush1.bf16.msra.mxu0 %v5914
    %6679 = vmatprep.subr.bf16.mxu0 %v5923
    %6680 = vmatpush1.bf16.msra.mxu0 %v5922
    %6681 = vmatprep.subr.bf16.mxu0 %v5931
    %6682 = vmatpush1.bf16.msra.mxu0 %v5930
    %6683 = vmatprep.subr.bf16.mxu0 %v5939
    %6684 = vmatpush1.bf16.msra.mxu0 %v5938
    %6685 = vmatprep.subr.bf16.mxu0 %v5947
    %6686 = vmatpush1.bf16.msra.mxu0 %v5946
    %6687 = vmatprep.subr.bf16.mxu0 %v5955
    %6688 = vmatpush1.bf16.msra.mxu0 %v5954
    %6689 = vmatprep.subr.bf16.mxu0 %v5963
    %6690 = vmatpush1.bf16.msra.mxu0 %v5962
    %6691 = vmatprep.subr.bf16.mxu0 %v5971
    %6692 = vmatpush1.bf16.msra.mxu0 %v5970
    %6693 = vmatprep.subr.bf16.mxu0 %v5979
    %6694 = vmatpush1.bf16.msra.mxu0 %v5978
    %6695 = vmatprep.subr.bf16.mxu0 %v5987
    %6696 = vmatpush1.bf16.msra.mxu0 %v5986
    %6697 = vmatprep.subr.bf16.mxu0 %v5995
    %6698 = vmatpush1.bf16.msra.mxu0 %v5994
    %6699 = vmatprep.subr.bf16.mxu0 %v6003
    %6700 = vmatpush1.bf16.msra.mxu0 %v6002
    %6701 = vmatprep.subr.bf16.mxu0 %v6011
    %6702 = vmatpush1.bf16.msra.mxu0 %v6010
    %6703 = vmatprep.subr.bf16.mxu0 %v6019
    %6704 = vmatpush1.bf16.msra.mxu0 %v6018
    %6705 = vmatprep.subr.bf16.mxu0 %v6027
    %6706 = vmatpush1.bf16.msra.mxu0 %v6026
    %6707 = vmatprep.subr.bf16.mxu0 %v6035
    %6708 = vmatpush1.bf16.msra.mxu0 %v6034
    %6709 = vmatprep.mubr.bf16.mxu0 %v3481
    %6710 = vmatmul.mubr.bf16.gmra.mrb[0].mxu0 %v3480
    %v6711 = vpop.f32.mrb[0].mxu0
    %v6712 = vadd.f32 %v6671, %v6711
    %v6713 = vpop.f32.mrb[0].mxu0
    %v6714 = vadd.f32 %v6673, %v6713
    %v6715 = vpop.f32.mrb[0].mxu0
    %v6716 = vpop.f32.mrb[0].mxu0
    %6717 = vdwg.mxu0
    %6718 = vmatprep.subr.bf16.mxu0 %v5533
    %6719 = vmatpush1.bf16.msra.mxu0 %v5532
    %6720 = vmatprep.subr.bf16.mxu0 %v5541
    %6721 = vmatpush1.bf16.msra.mxu0 %v5540
    %6722 = vmatprep.subr.bf16.mxu0 %v5549
    %6723 = vmatpush1.bf16.msra.mxu0 %v5548
    %6724 = vmatprep.subr.bf16.mxu0 %v5557
    %6725 = vmatpush1.bf16.msra.mxu0 %v5556
    %6726 = vmatprep.subr.bf16.mxu0 %v5565
    %6727 = vmatpush1.bf16.msra.mxu0 %v5564
    %6728 = vmatprep.subr.bf16.mxu0 %v5573
    %6729 = vmatpush1.bf16.msra.mxu0 %v5572
    %6730 = vmatprep.subr.bf16.mxu0 %v5581
    %6731 = vmatpush1.bf16.msra.mxu0 %v5580
    %6732 = vmatprep.subr.bf16.mxu0 %v5589
    %6733 = vmatpush1.bf16.msra.mxu0 %v5588
    %6734 = vmatprep.subr.bf16.mxu0 %v5597
    %6735 = vmatpush1.bf16.msra.mxu0 %v5596
    %6736 = vmatprep.subr.bf16.mxu0 %v5605
    %6737 = vmatpush1.bf16.msra.mxu0 %v5604
    %6738 = vmatprep.subr.bf16.mxu0 %v5613
    %6739 = vmatpush1.bf16.msra.mxu0 %v5612
    %6740 = vmatprep.subr.bf16.mxu0 %v5621
    %6741 = vmatpush1.bf16.msra.mxu0 %v5620
    %6742 = vmatprep.subr.bf16.mxu0 %v5629
    %6743 = vmatpush1.bf16.msra.mxu0 %v5628
    %6744 = vmatprep.subr.bf16.mxu0 %v5637
    %6745 = vmatpush1.bf16.msra.mxu0 %v5636
    %6746 = vmatprep.subr.bf16.mxu0 %v5645
    %6747 = vmatpush1.bf16.msra.mxu0 %v5644
    %6748 = vmatprep.subr.bf16.mxu0 %v5653
    %6749 = vmatpush1.bf16.msra.mxu0 %v5652
    %6750 = vmatprep.mubr.bf16.mxu0 %v3475
    %6751 = vmatmul.mubr.bf16.gmra.mrb[0].mxu0 %v3474
    %v6752 = vpop.f32.mrb[0].mxu0
    %v6753 = vadd.f32 0.0, %v6752
    %v6754 = vpop.f32.mrb[0].mxu0
    %v6755 = vadd.f32 0.0, %v6754
    %v6756 = vpop.f32.mrb[0].mxu0
    %v6757 = vpop.f32.mrb[0].mxu0
    %6758 = vdwg.mxu0
    %6759 = vmatprep.subr.bf16.mxu0 %v5661
    %6760 = vmatpush1.bf16.msra.mxu0 %v5660
    %6761 = vmatprep.subr.bf16.mxu0 %v5669
    %6762 = vmatpush1.bf16.msra.mxu0 %v5668
    %6763 = vmatprep.subr.bf16.mxu0 %v5677
    %6764 = vmatpush1.bf16.msra.mxu0 %v5676
    %6765 = vmatprep.subr.bf16.mxu0 %v5685
    %6766 = vmatpush1.bf16.msra.mxu0 %v5684
    %6767 = vmatprep.subr.bf16.mxu0 %v5693
    %6768 = vmatpush1.bf16.msra.mxu0 %v5692
    %6769 = vmatprep.subr.bf16.mxu0 %v5701
    %6770 = vmatpush1.bf16.msra.mxu0 %v5700
    %6771 = vmatprep.subr.bf16.mxu0 %v5709
    %6772 = vmatpush1.bf16.msra.mxu0 %v5708
    %6773 = vmatprep.subr.bf16.mxu0 %v5717
    %6774 = vmatpush1.bf16.msra.mxu0 %v5716
    %6775 = vmatprep.subr.bf16.mxu0 %v5725
    %6776 = vmatpush1.bf16.msra.mxu0 %v5724
    %6777 = vmatprep.subr.bf16.mxu0 %v5733
    %6778 = vmatpush1.bf16.msra.mxu0 %v5732
    %6779 = vmatprep.subr.bf16.mxu0 %v5741
    %6780 = vmatpush1.bf16.msra.mxu0 %v5740
    %6781 = vmatprep.subr.bf16.mxu0 %v5749
    %6782 = vmatpush1.bf16.msra.mxu0 %v5748
    %6783 = vmatprep.subr.bf16.mxu0 %v5757
    %6784 = vmatpush1.bf16.msra.mxu0 %v5756
    %6785 = vmatprep.subr.bf16.mxu0 %v5765
    %6786 = vmatpush1.bf16.msra.mxu0 %v5764
    %6787 = vmatprep.subr.bf16.mxu0 %v5773
    %6788 = vmatpush1.bf16.msra.mxu0 %v5772
    %6789 = vmatprep.subr.bf16.mxu0 %v5781
    %6790 = vmatpush1.bf16.msra.mxu0 %v5780
    %6791 = vmatprep.mubr.bf16.mxu0 %v3477
    %6792 = vmatmul.mubr.bf16.gmra.mrb[0].mxu0 %v3476
    %v6793 = vpop.f32.mrb[0].mxu0
    %v6794 = vadd.f32 %v6753, %v6793
    %v6795 = vpop.f32.mrb[0].mxu0
    %v6796 = vadd.f32 %v6755, %v6795
    %v6797 = vpop.f32.mrb[0].mxu0
    %v6798 = vpop.f32.mrb[0].mxu0
    %6799 = vdwg.mxu0
    %6800 = vmatprep.subr.bf16.mxu0 %v5789
    %6801 = vmatpush1.bf16.msra.mxu0 %v5788
    %6802 = vmatprep.subr.bf16.mxu0 %v5797
    %6803 = vmatpush1.bf16.msra.mxu0 %v5796
    %6804 = vmatprep.subr.bf16.mxu0 %v5805
    %6805 = vmatpush1.bf16.msra.mxu0 %v5804
    %6806 = vmatprep.subr.bf16.mxu0 %v5813
    %6807 = vmatpush1.bf16.msra.mxu0 %v5812
    %6808 = vmatprep.subr.bf16.mxu0 %v5821
    %6809 = vmatpush1.bf16.msra.mxu0 %v5820
    %6810 = vmatprep.subr.bf16.mxu0 %v5829
    %6811 = vmatpush1.bf16.msra.mxu0 %v5828
    %6812 = vmatprep.subr.bf16.mxu0 %v5837
    %6813 = vmatpush1.bf16.msra.mxu0 %v5836
    %6814 = vmatprep.subr.bf16.mxu0 %v5845
    %6815 = vmatpush1.bf16.msra.mxu0 %v5844
    %6816 = vmatprep.subr.bf16.mxu0 %v5853
    %6817 = vmatpush1.bf16.msra.mxu0 %v5852
    %6818 = vmatprep.subr.bf16.mxu0 %v5861
    %6819 = vmatpush1.bf16.msra.mxu0 %v5860
    %6820 = vmatprep.subr.bf16.mxu0 %v5869
    %6821 = vmatpush1.bf16.msra.mxu0 %v5868
    %6822 = vmatprep.subr.bf16.mxu0 %v5877
    %6823 = vmatpush1.bf16.msra.mxu0 %v5876
    %6824 = vmatprep.subr.bf16.mxu0 %v5885
    %6825 = vmatpush1.bf16.msra.mxu0 %v5884
    %6826 = vmatprep.subr.bf16.mxu0 %v5893
    %6827 = vmatpush1.bf16.msra.mxu0 %v5892
    %6828 = vmatprep.subr.bf16.mxu0 %v5901
    %6829 = vmatpush1.bf16.msra.mxu0 %v5900
    %6830 = vmatprep.subr.bf16.mxu0 %v5909
    %6831 = vmatpush1.bf16.msra.mxu0 %v5908
    %6832 = vmatprep.mubr.bf16.mxu0 %v3479
    %6833 = vmatmul.mubr.bf16.gmra.mrb[0].mxu0 %v3478
    %v6834 = vpop.f32.mrb[0].mxu0
    %v6835 = vadd.f32 %v6794, %v6834
    %v6836 = vpop.f32.mrb[0].mxu0
    %v6837 = vadd.f32 %v6796, %v6836
    %v6838 = vpop.f32.mrb[0].mxu0
    %v6839 = vpop.f32.mrb[0].mxu0
    %6840 = vdwg.mxu0
    %6841 = vmatprep.subr.bf16.mxu0 %v5917
    %6842 = vmatpush1.bf16.msra.mxu0 %v5916
    %6843 = vmatprep.subr.bf16.mxu0 %v5925
    %6844 = vmatpush1.bf16.msra.mxu0 %v5924
    %6845 = vmatprep.subr.bf16.mxu0 %v5933
    %6846 = vmatpush1.bf16.msra.mxu0 %v5932
    %6847 = vmatprep.subr.bf16.mxu0 %v5941
    %6848 = vmatpush1.bf16.msra.mxu0 %v5940
    %6849 = vmatprep.subr.bf16.mxu0 %v5949
    %6850 = vmatpush1.bf16.msra.mxu0 %v5948
    %6851 = vmatprep.subr.bf16.mxu0 %v5957
    %6852 = vmatpush1.bf16.msra.mxu0 %v5956
    %6853 = vmatprep.subr.bf16.mxu0 %v5965
    %6854 = vmatpush1.bf16.msra.mxu0 %v5964
    %6855 = vmatprep.subr.bf16.mxu0 %v5973
    %6856 = vmatpush1.bf16.msra.mxu0 %v5972
    %6857 = vmatprep.subr.bf16.mxu0 %v5981
    %6858 = vmatpush1.bf16.msra.mxu0 %v5980
    %6859 = vmatprep.subr.bf16.mxu0 %v5989
    %6860 = vmatpush1.bf16.msra.mxu0 %v5988
    %6861 = vmatprep.subr.bf16.mxu0 %v5997
    %6862 = vmatpush1.bf16.msra.mxu0 %v5996
    %6863 = vmatprep.subr.bf16.mxu0 %v6005
    %6864 = vmatpush1.bf16.msra.mxu0 %v6004
    %6865 = vmatprep.subr.bf16.mxu0 %v6013
    %6866 = vmatpush1.bf16.msra.mxu0 %v6012
    %6867 = vmatprep.subr.bf16.mxu0 %v6021
    %6868 = vmatpush1.bf16.msra.mxu0 %v6020
    %6869 = vmatprep.subr.bf16.mxu0 %v6029
    %6870 = vmatpush1.bf16.msra.mxu0 %v6028
    %6871 = vmatprep.subr.bf16.mxu0 %v6037
    %6872 = vmatpush1.bf16.msra.mxu0 %v6036
    %6873 = vmatprep.mubr.bf16.mxu0 %v3481
    %6874 = vmatmul.mubr.bf16.gmra.mrb[0].mxu0 %v3480
    %v6875 = vpop.f32.mrb[0].mxu0
    %v6876 = vadd.f32 %v6835, %v6875
    %v6877 = vpop.f32.mrb[0].mxu0
    %v6878 = vadd.f32 %v6837, %v6877
    %v6879 = vpop.f32.mrb[0].mxu0
    %v6880 = vpop.f32.mrb[0].mxu0
    %6881 = vdwg.mxu0
    %6882 = vmatprep.subr.bf16.mxu0 %v5535
    %6883 = vmatpush1.bf16.msra.mxu0 %v5534
    %6884 = vmatprep.subr.bf16.mxu0 %v5543
    %6885 = vmatpush1.bf16.msra.mxu0 %v5542
    %6886 = vmatprep.subr.bf16.mxu0 %v5551
    %6887 = vmatpush1.bf16.msra.mxu0 %v5550
    %6888 = vmatprep.subr.bf16.mxu0 %v5559
    %6889 = vmatpush1.bf16.msra.mxu0 %v5558
    %6890 = vmatprep.subr.bf16.mxu0 %v5567
    %6891 = vmatpush1.bf16.msra.mxu0 %v5566
    %6892 = vmatprep.subr.bf16.mxu0 %v5575
    %6893 = vmatpush1.bf16.msra.mxu0 %v5574
    %6894 = vmatprep.subr.bf16.mxu0 %v5583
    %6895 = vmatpush1.bf16.msra.mxu0 %v5582
    %6896 = vmatprep.subr.bf16.mxu0 %v5591
    %6897 = vmatpush1.bf16.msra.mxu0 %v5590
    %6898 = vmatprep.subr.bf16.mxu0 %v5599
    %6899 = vmatpush1.bf16.msra.mxu0 %v5598
    %6900 = vmatprep.subr.bf16.mxu0 %v5607
    %6901 = vmatpush1.bf16.msra.mxu0 %v5606
    %6902 = vmatprep.subr.bf16.mxu0 %v5615
    %6903 = vmatpush1.bf16.msra.mxu0 %v5614
    %6904 = vmatprep.subr.bf16.mxu0 %v5623
    %6905 = vmatpush1.bf16.msra.mxu0 %v5622
    %6906 = vmatprep.subr.bf16.mxu0 %v5631
    %6907 = vmatpush1.bf16.msra.mxu0 %v5630
    %6908 = vmatprep.subr.bf16.mxu0 %v5639
    %6909 = vmatpush1.bf16.msra.mxu0 %v5638
    %6910 = vmatprep.subr.bf16.mxu0 %v5647
    %6911 = vmatpush1.bf16.msra.mxu0 %v5646
    %6912 = vmatprep.subr.bf16.mxu0 %v5655
    %6913 = vmatpush1.bf16.msra.mxu0 %v5654
    %6914 = vmatprep.mubr.bf16.mxu0 %v3475
    %6915 = vmatmul.mubr.bf16.gmra.mrb[0].mxu0 %v3474
    %v6916 = vpop.f32.mrb[0].mxu0
    %v6917 = vadd.f32 0.0, %v6916
    %v6918 = vpop.f32.mrb[0].mxu0
    %v6919 = vadd.f32 0.0, %v6918
    %v6920 = vpop.f32.mrb[0].mxu0
    %v6921 = vpop.f32.mrb[0].mxu0
    %6922 = vdwg.mxu0
    %6923 = vmatprep.subr.bf16.mxu0 %v5663
    %6924 = vmatpush1.bf16.msra.mxu0 %v5662
    %6925 = vmatprep.subr.bf16.mxu0 %v5671
    %6926 = vmatpush1.bf16.msra.mxu0 %v5670
    %6927 = vmatprep.subr.bf16.mxu0 %v5679
    %6928 = vmatpush1.bf16.msra.mxu0 %v5678
    %6929 = vmatprep.subr.bf16.mxu0 %v5687
    %6930 = vmatpush1.bf16.msra.mxu0 %v5686
    %6931 = vmatprep.subr.bf16.mxu0 %v5695
    %6932 = vmatpush1.bf16.msra.mxu0 %v5694
    %6933 = vmatprep.subr.bf16.mxu0 %v5703
    %6934 = vmatpush1.bf16.msra.mxu0 %v5702
    %6935 = vmatprep.subr.bf16.mxu0 %v5711
    %6936 = vmatpush1.bf16.msra.mxu0 %v5710
    %6937 = vmatprep.subr.bf16.mxu0 %v5719
    %6938 = vmatpush1.bf16.msra.mxu0 %v5718
    %6939 = vmatprep.subr.bf16.mxu0 %v5727
    %6940 = vmatpush1.bf16.msra.mxu0 %v5726
    %6941 = vmatprep.subr.bf16.mxu0 %v5735
    %6942 = vmatpush1.bf16.msra.mxu0 %v5734
    %6943 = vmatprep.subr.bf16.mxu0 %v5743
    %6944 = vmatpush1.bf16.msra.mxu0 %v5742
    %6945 = vmatprep.subr.bf16.mxu0 %v5751
    %6946 = vmatpush1.bf16.msra.mxu0 %v5750
    %6947 = vmatprep.subr.bf16.mxu0 %v5759
    %6948 = vmatpush1.bf16.msra.mxu0 %v5758
    %6949 = vmatprep.subr.bf16.mxu0 %v5767
    %6950 = vmatpush1.bf16.msra.mxu0 %v5766
    %6951 = vmatprep.subr.bf16.mxu0 %v5775
    %6952 = vmatpush1.bf16.msra.mxu0 %v5774
    %6953 = vmatprep.subr.bf16.mxu0 %v5783
    %6954 = vmatpush1.bf16.msra.mxu0 %v5782
    %6955 = vmatprep.mubr.bf16.mxu0 %v3477
    %6956 = vmatmul.mubr.bf16.gmra.mrb[0].mxu0 %v3476
    %v6957 = vpop.f32.mrb[0].mxu0
    %v6958 = vadd.f32 %v6917, %v6957
    %v6959 = vpop.f32.mrb[0].mxu0
    %v6960 = vadd.f32 %v6919, %v6959
    %v6961 = vpop.f32.mrb[0].mxu0
    %v6962 = vpop.f32.mrb[0].mxu0
    %6963 = vdwg.mxu0
    %6964 = vmatprep.subr.bf16.mxu0 %v5791
    %6965 = vmatpush1.bf16.msra.mxu0 %v5790
    %6966 = vmatprep.subr.bf16.mxu0 %v5799
    %6967 = vmatpush1.bf16.msra.mxu0 %v5798
    %6968 = vmatprep.subr.bf16.mxu0 %v5807
    %6969 = vmatpush1.bf16.msra.mxu0 %v5806
    %6970 = vmatprep.subr.bf16.mxu0 %v5815
    %6971 = vmatpush1.bf16.msra.mxu0 %v5814
    %6972 = vmatprep.subr.bf16.mxu0 %v5823
    %6973 = vmatpush1.bf16.msra.mxu0 %v5822
    %6974 = vmatprep.subr.bf16.mxu0 %v5831
    %6975 = vmatpush1.bf16.msra.mxu0 %v5830
    %6976 = vmatprep.subr.bf16.mxu0 %v5839
    %6977 = vmatpush1.bf16.msra.mxu0 %v5838
    %6978 = vmatprep.subr.bf16.mxu0 %v5847
    %6979 = vmatpush1.bf16.msra.mxu0 %v5846
    %6980 = vmatprep.subr.bf16.mxu0 %v5855
    %6981 = vmatpush1.bf16.msra.mxu0 %v5854
    %6982 = vmatprep.subr.bf16.mxu0 %v5863
    %6983 = vmatpush1.bf16.msra.mxu0 %v5862
    %6984 = vmatprep.subr.bf16.mxu0 %v5871
    %6985 = vmatpush1.bf16.msra.mxu0 %v5870
    %6986 = vmatprep.subr.bf16.mxu0 %v5879
    %6987 = vmatpush1.bf16.msra.mxu0 %v5878
    %6988 = vmatprep.subr.bf16.mxu0 %v5887
    %6989 = vmatpush1.bf16.msra.mxu0 %v5886
    %6990 = vmatprep.subr.bf16.mxu0 %v5895
    %6991 = vmatpush1.bf16.msra.mxu0 %v5894
    %6992 = vmatprep.subr.bf16.mxu0 %v5903
    %6993 = vmatpush1.bf16.msra.mxu0 %v5902
    %6994 = vmatprep.subr.bf16.mxu0 %v5911
    %6995 = vmatpush1.bf16.msra.mxu0 %v5910
    %6996 = vmatprep.mubr.bf16.mxu0 %v3479
    %6997 = vmatmul.mubr.bf16.gmra.mrb[0].mxu0 %v3478
    %v6998 = vpop.f32.mrb[0].mxu0
    %v6999 = vadd.f32 %v6958, %v6998
    %v7000 = vpop.f32.mrb[0].mxu0
    %v7001 = vadd.f32 %v6960, %v7000
    %v7002 = vpop.f32.mrb[0].mxu0
    %v7003 = vpop.f32.mrb[0].mxu0
    %7004 = vdwg.mxu0
    %7005 = vmatprep.subr.bf16.mxu0 %v5919
    %7006 = vmatpush1.bf16.msra.mxu0 %v5918
    %7007 = vmatprep.subr.bf16.mxu0 %v5927
    %7008 = vmatpush1.bf16.msra.mxu0 %v5926
    %7009 = vmatprep.subr.bf16.mxu0 %v5935
    %7010 = vmatpush1.bf16.msra.mxu0 %v5934
    %7011 = vmatprep.subr.bf16.mxu0 %v5943
    %7012 = vmatpush1.bf16.msra.mxu0 %v5942
    %7013 = vmatprep.subr.bf16.mxu0 %v5951
    %7014 = vmatpush1.bf16.msra.mxu0 %v5950
    %7015 = vmatprep.subr.bf16.mxu0 %v5959
    %7016 = vmatpush1.bf16.msra.mxu0 %v5958
    %7017 = vmatprep.subr.bf16.mxu0 %v5967
    %7018 = vmatpush1.bf16.msra.mxu0 %v5966
    %7019 = vmatprep.subr.bf16.mxu0 %v5975
    %7020 = vmatpush1.bf16.msra.mxu0 %v5974
    %7021 = vmatprep.subr.bf16.mxu0 %v5983
    %7022 = vmatpush1.bf16.msra.mxu0 %v5982
    %7023 = vmatprep.subr.bf16.mxu0 %v5991
    %7024 = vmatpush1.bf16.msra.mxu0 %v5990
    %7025 = vmatprep.subr.bf16.mxu0 %v5999
    %7026 = vmatpush1.bf16.msra.mxu0 %v5998
    %7027 = vmatprep.subr.bf16.mxu0 %v6007
    %7028 = vmatpush1.bf16.msra.mxu0 %v6006
    %7029 = vmatprep.subr.bf16.mxu0 %v6015
    %7030 = vmatpush1.bf16.msra.mxu0 %v6014
    %7031 = vmatprep.subr.bf16.mxu0 %v6023
    %7032 = vmatpush1.bf16.msra.mxu0 %v6022
    %7033 = vmatprep.subr.bf16.mxu0 %v6031
    %7034 = vmatpush1.bf16.msra.mxu0 %v6030
    %7035 = vmatprep.subr.bf16.mxu0 %v6039
    %7036 = vmatpush1.bf16.msra.mxu0 %v6038
    %7037 = vmatprep.mubr.bf16.mxu0 %v3481
    %7038 = vmatmul.mubr.bf16.gmra.mrb[0].mxu0 %v3480
    %v7039 = vpop.f32.mrb[0].mxu0
    %v7040 = vadd.f32 %v6999, %v7039
    %v7041 = vpop.f32.mrb[0].mxu0
    %v7042 = vadd.f32 %v7001, %v7041
    %v7043 = vpop.f32.mrb[0].mxu0
    %v7044 = vpop.f32.mrb[0].mxu0
    %7045 = vdwg.mxu0
    %7046 = vmatprep.subr.bf16.mxu0 %v5537
    %7047 = vmatpush1.bf16.msra.mxu0 %v5536
    %7048 = vmatprep.subr.bf16.mxu0 %v5545
    %7049 = vmatpush1.bf16.msra.mxu0 %v5544
    %7050 = vmatprep.subr.bf16.mxu0 %v5553
    %7051 = vmatpush1.bf16.msra.mxu0 %v5552
    %7052 = vmatprep.subr.bf16.mxu0 %v5561
    %7053 = vmatpush1.bf16.msra.mxu0 %v5560
    %7054 = vmatprep.subr.bf16.mxu0 %v5569
    %7055 = vmatpush1.bf16.msra.mxu0 %v5568
    %7056 = vmatprep.subr.bf16.mxu0 %v5577
    %7057 = vmatpush1.bf16.msra.mxu0 %v5576
    %7058 = vmatprep.subr.bf16.mxu0 %v5585
    %7059 = vmatpush1.bf16.msra.mxu0 %v5584
    %7060 = vmatprep.subr.bf16.mxu0 %v5593
    %7061 = vmatpush1.bf16.msra.mxu0 %v5592
    %7062 = vmatprep.subr.bf16.mxu0 %v5601
    %7063 = vmatpush1.bf16.msra.mxu0 %v5600
    %7064 = vmatprep.subr.bf16.mxu0 %v5609
    %7065 = vmatpush1.bf16.msra.mxu0 %v5608
    %7066 = vmatprep.subr.bf16.mxu0 %v5617
    %7067 = vmatpush1.bf16.msra.mxu0 %v5616
    %7068 = vmatprep.subr.bf16.mxu0 %v5625
    %7069 = vmatpush1.bf16.msra.mxu0 %v5624
    %7070 = vmatprep.subr.bf16.mxu0 %v5633
    %7071 = vmatpush1.bf16.msra.mxu0 %v5632
    %7072 = vmatprep.subr.bf16.mxu0 %v5641
    %7073 = vmatpush1.bf16.msra.mxu0 %v5640
    %7074 = vmatprep.subr.bf16.mxu0 %v5649
    %7075 = vmatpush1.bf16.msra.mxu0 %v5648
    %7076 = vmatprep.subr.bf16.mxu0 %v5657
    %7077 = vmatpush1.bf16.msra.mxu0 %v5656
    %7078 = vmatprep.mubr.bf16.mxu0 %v3475
    %7079 = vmatmul.mubr.bf16.gmra.mrb[0].mxu0 %v3474
    %v7080 = vpop.f32.mrb[0].mxu0
    %v7081 = vadd.f32 0.0, %v7080
    %v7082 = vpop.f32.mrb[0].mxu0
    %v7083 = vadd.f32 0.0, %v7082
    %v7084 = vpop.f32.mrb[0].mxu0
    %v7085 = vpop.f32.mrb[0].mxu0
    %7086 = vdwg.mxu0
    %7087 = vmatprep.subr.bf16.mxu0 %v5665
    %7088 = vmatpush1.bf16.msra.mxu0 %v5664
    %7089 = vmatprep.subr.bf16.mxu0 %v5673
    %7090 = vmatpush1.bf16.msra.mxu0 %v5672
    %7091 = vmatprep.subr.bf16.mxu0 %v5681
    %7092 = vmatpush1.bf16.msra.mxu0 %v5680
    %7093 = vmatprep.subr.bf16.mxu0 %v5689
    %7094 = vmatpush1.bf16.msra.mxu0 %v5688
    %7095 = vmatprep.subr.bf16.mxu0 %v5697
    %7096 = vmatpush1.bf16.msra.mxu0 %v5696
    %7097 = vmatprep.subr.bf16.mxu0 %v5705
    %7098 = vmatpush1.bf16.msra.mxu0 %v5704
    %7099 = vmatprep.subr.bf16.mxu0 %v5713
    %7100 = vmatpush1.bf16.msra.mxu0 %v5712
    %7101 = vmatprep.subr.bf16.mxu0 %v5721
    %7102 = vmatpush1.bf16.msra.mxu0 %v5720
    %7103 = vmatprep.subr.bf16.mxu0 %v5729
    %7104 = vmatpush1.bf16.msra.mxu0 %v5728
    %7105 = vmatprep.subr.bf16.mxu0 %v5737
    %7106 = vmatpush1.bf16.msra.mxu0 %v5736
    %7107 = vmatprep.subr.bf16.mxu0 %v5745
    %7108 = vmatpush1.bf16.msra.mxu0 %v5744
    %7109 = vmatprep.subr.bf16.mxu0 %v5753
    %7110 = vmatpush1.bf16.msra.mxu0 %v5752
    %7111 = vmatprep.subr.bf16.mxu0 %v5761
    %7112 = vmatpush1.bf16.msra.mxu0 %v5760
    %7113 = vmatprep.subr.bf16.mxu0 %v5769
    %7114 = vmatpush1.bf16.msra.mxu0 %v5768
    %7115 = vmatprep.subr.bf16.mxu0 %v5777
    %7116 = vmatpush1.bf16.msra.mxu0 %v5776
    %7117 = vmatprep.subr.bf16.mxu0 %v5785
    %7118 = vmatpush1.bf16.msra.mxu0 %v5784
    %7119 = vmatprep.mubr.bf16.mxu0 %v3477
    %7120 = vmatmul.mubr.bf16.gmra.mrb[0].mxu0 %v3476
    %v7121 = vpop.f32.mrb[0].mxu0
    %v7122 = vadd.f32 %v7081, %v7121
    %v7123 = vpop.f32.mrb[0].mxu0
    %v7124 = vadd.f32 %v7083, %v7123
    %v7125 = vpop.f32.mrb[0].mxu0
    %v7126 = vpop.f32.mrb[0].mxu0
    %7127 = vdwg.mxu0
    %7128 = vmatprep.subr.bf16.mxu0 %v5793
    %7129 = vmatpush1.bf16.msra.mxu0 %v5792
    %7130 = vmatprep.subr.bf16.mxu0 %v5801
    %7131 = vmatpush1.bf16.msra.mxu0 %v5800
    %7132 = vmatprep.subr.bf16.mxu0 %v5809
    %7133 = vmatpush1.bf16.msra.mxu0 %v5808
    %7134 = vmatprep.subr.bf16.mxu0 %v5817
    %7135 = vmatpush1.bf16.msra.mxu0 %v5816
    %7136 = vmatprep.subr.bf16.mxu0 %v5825
    %7137 = vmatpush1.bf16.msra.mxu0 %v5824
    %7138 = vmatprep.subr.bf16.mxu0 %v5833
    %7139 = vmatpush1.bf16.msra.mxu0 %v5832
    %7140 = vmatprep.subr.bf16.mxu0 %v5841
    %7141 = vmatpush1.bf16.msra.mxu0 %v5840
    %7142 = vmatprep.subr.bf16.mxu0 %v5849
    %7143 = vmatpush1.bf16.msra.mxu0 %v5848
    %7144 = vmatprep.subr.bf16.mxu0 %v5857
    %7145 = vmatpush1.bf16.msra.mxu0 %v5856
    %7146 = vmatprep.subr.bf16.mxu0 %v5865
    %7147 = vmatpush1.bf16.msra.mxu0 %v5864
    %7148 = vmatprep.subr.bf16.mxu0 %v5873
    %7149 = vmatpush1.bf16.msra.mxu0 %v5872
    %7150 = vmatprep.subr.bf16.mxu0 %v5881
    %7151 = vmatpush1.bf16.msra.mxu0 %v5880
    %7152 = vmatprep.subr.bf16.mxu0 %v5889
    %7153 = vmatpush1.bf16.msra.mxu0 %v5888
    %7154 = vmatprep.subr.bf16.mxu0 %v5897
    %7155 = vmatpush1.bf16.msra.mxu0 %v5896
    %7156 = vmatprep.subr.bf16.mxu0 %v5905
    %7157 = vmatpush1.bf16.msra.mxu0 %v5904
    %7158 = vmatprep.subr.bf16.mxu0 %v5913
    %7159 = vmatpush1.bf16.msra.mxu0 %v5912
    %7160 = vmatprep.mubr.bf16.mxu0 %v3479
    %7161 = vmatmul.mubr.bf16.gmra.mrb[0].mxu0 %v3478
    %v7162 = vpop.f32.mrb[0].mxu0
    %v7163 = vadd.f32 %v7122, %v7162
    %v7164 = vpop.f32.mrb[0].mxu0
    %v7165 = vadd.f32 %v7124, %v7164
    %v7166 = vpop.f32.mrb[0].mxu0
    %v7167 = vpop.f32.mrb[0].mxu0
    %7168 = vdwg.mxu0
    %7169 = vmatprep.subr.bf16.mxu0 %v5921
    %7170 = vmatpush1.bf16.msra.mxu0 %v5920
    %7171 = vmatprep.subr.bf16.mxu0 %v5929
    %7172 = vmatpush1.bf16.msra.mxu0 %v5928
    %7173 = vmatprep.subr.bf16.mxu0 %v5937
    %7174 = vmatpush1.bf16.msra.mxu0 %v5936
    %7175 = vmatprep.subr.bf16.mxu0 %v5945
    %7176 = vmatpush1.bf16.msra.mxu0 %v5944
    %7177 = vmatprep.subr.bf16.mxu0 %v5953
    %7178 = vmatpush1.bf16.msra.mxu0 %v5952
    %7179 = vmatprep.subr.bf16.mxu0 %v5961
    %7180 = vmatpush1.bf16.msra.mxu0 %v5960
    %7181 = vmatprep.subr.bf16.mxu0 %v5969
    %7182 = vmatpush1.bf16.msra.mxu0 %v5968
    %7183 = vmatprep.subr.bf16.mxu0 %v5977
    %7184 = vmatpush1.bf16.msra.mxu0 %v5976
    %7185 = vmatprep.subr.bf16.mxu0 %v5985
    %7186 = vmatpush1.bf16.msra.mxu0 %v5984
    %7187 = vmatprep.subr.bf16.mxu0 %v5993
    %7188 = vmatpush1.bf16.msra.mxu0 %v5992
    %7189 = vmatprep.subr.bf16.mxu0 %v6001
    %7190 = vmatpush1.bf16.msra.mxu0 %v6000
    %7191 = vmatprep.subr.bf16.mxu0 %v6009
    %7192 = vmatpush1.bf16.msra.mxu0 %v6008
    %7193 = vmatprep.subr.bf16.mxu0 %v6017
    %7194 = vmatpush1.bf16.msra.mxu0 %v6016
    %7195 = vmatprep.subr.bf16.mxu0 %v6025
    %7196 = vmatpush1.bf16.msra.mxu0 %v6024
    %7197 = vmatprep.subr.bf16.mxu0 %v6033
    %7198 = vmatpush1.bf16.msra.mxu0 %v6032
    %7199 = vmatprep.subr.bf16.mxu0 %v6041
    %7200 = vmatpush1.bf16.msra.mxu0 %v6040
    %7201 = vmatprep.mubr.bf16.mxu0 %v3481
    %7202 = vmatmul.mubr.bf16.gmra.mrb[0].mxu0 %v3480
    %v7203 = vpop.f32.mrb[0].mxu0
    %v7204 = vadd.f32 %v7163, %v7203
    %v7205 = vpop.f32.mrb[0].mxu0
    %v7206 = vadd.f32 %v7165, %v7205
    %v7207 = vpop.f32.mrb[0].mxu0
    %v7208 = vpop.f32.mrb[0].mxu0
    %7209 = vdwg.mxu0
    %v7210 = vmax.f32 %v6712, 0.0
    %v7211 = vmax.f32 %v6714, 0.0
    %v7212 = vmax.f32 %v6876, 0.0
    %v7213 = vmax.f32 %v6878, 0.0
    %v7214 = vmax.f32 %v7040, 0.0
    %v7215 = vmax.f32 %v7042, 0.0
    %v7216 = vmax.f32 %v7204, 0.0
    %v7217 = vmax.f32 %v7206, 0.0
    %v7218 = vpack.c.bf16 %v7210, %v7210
    %v7219 = vpack.c.bf16 %v7211, %v7211
    %v7220 = vpack.c.bf16 %v7212, %v7212
    %v7221 = vpack.c.bf16 %v7213, %v7213
    %v7222 = vpack.c.bf16 %v7214, %v7214
    %v7223 = vpack.c.bf16 %v7215, %v7215
    %v7224 = vpack.c.bf16 %v7216, %v7216
    %v7225 = vpack.c.bf16 %v7217, %v7217
    %v7226 = vld [vmem:[#allocation7] sm:$0xff]
    %v7227 = vld [vmem:[#allocation7 + $0x8] sm:$0xff]
    %v7228 = vld [vmem:[#allocation7 + $0x10] sm:$0xff]
    %v7229 = vld [vmem:[#allocation7 + $0x18] sm:$0xff]
    %v7230 = vld [vmem:[#allocation7 + $0x20] sm:$0xff]
    %v7231 = vld [vmem:[#allocation7 + $0x28] sm:$0xff]
    %v7232 = vld [vmem:[#allocation7 + $0x30] sm:$0xff]
    %v7233 = vld [vmem:[#allocation7 + $0x38] sm:$0xff]
    %v7234 = vld [vmem:[#allocation7 + $0x40] sm:$0xff]
    %v7235 = vld [vmem:[#allocation7 + $0x48] sm:$0xff]
    %v7236 = vld [vmem:[#allocation7 + $0x50] sm:$0xff]
    %v7237 = vld [vmem:[#allocation7 + $0x58] sm:$0xff]
    %v7238 = vld [vmem:[#allocation7 + $0x60] sm:$0xff]
    %v7239 = vld [vmem:[#allocation7 + $0x68] sm:$0xff]
    %v7240 = vld [vmem:[#allocation7 + $0x70] sm:$0xff]
    %v7241 = vld [vmem:[#allocation7 + $0x78] sm:$0xff]
    %v7242 = vld [vmem:[#allocation7 + $0x80] sm:$0xff]
    %v7243 = vld [vmem:[#allocation7 + $0x88] sm:$0xff]
    %v7244 = vld [vmem:[#allocation7 + $0x90] sm:$0xff]
    %v7245 = vld [vmem:[#allocation7 + $0x98] sm:$0xff]
    %v7246 = vld [vmem:[#allocation7 + $0xa0] sm:$0xff]
    %v7247 = vld [vmem:[#allocation7 + $0xa8] sm:$0xff]
    %v7248 = vld [vmem:[#allocation7 + $0xb0] sm:$0xff]
    %v7249 = vld [vmem:[#allocation7 + $0xb8] sm:$0xff]
    %v7250 = vld [vmem:[#allocation7 + $0xc0] sm:$0xff]
    %v7251 = vld [vmem:[#allocation7 + $0xc8] sm:$0xff]
    %v7252 = vld [vmem:[#allocation7 + $0xd0] sm:$0xff]
    %v7253 = vld [vmem:[#allocation7 + $0xd8] sm:$0xff]
    %v7254 = vld [vmem:[#allocation7 + $0xe0] sm:$0xff]
    %v7255 = vld [vmem:[#allocation7 + $0xe8] sm:$0xff]
    %v7256 = vld [vmem:[#allocation7 + $0xf0] sm:$0xff]
    %v7257 = vld [vmem:[#allocation7 + $0xf8] sm:$0xff]
    %v7258 = vld [vmem:[#allocation7 + $0x100] sm:$0xff]
    %v7259 = vld [vmem:[#allocation7 + $0x108] sm:$0xff]
    %v7260 = vld [vmem:[#allocation7 + $0x110] sm:$0xff]
    %v7261 = vld [vmem:[#allocation7 + $0x118] sm:$0xff]
    %v7262 = vld [vmem:[#allocation7 + $0x120] sm:$0xff]
    %v7263 = vld [vmem:[#allocation7 + $0x128] sm:$0xff]
    %v7264 = vld [vmem:[#allocation7 + $0x130] sm:$0xff]
    %v7265 = vld [vmem:[#allocation7 + $0x138] sm:$0xff]
    %v7266 = vld [vmem:[#allocation7 + $0x140] sm:$0xff]
    %v7267 = vld [vmem:[#allocation7 + $0x148] sm:$0xff]
    %v7268 = vld [vmem:[#allocation7 + $0x150] sm:$0xff]
    %v7269 = vld [vmem:[#allocation7 + $0x158] sm:$0xff]
    %v7270 = vld [vmem:[#allocation7 + $0x160] sm:$0xff]
    %v7271 = vld [vmem:[#allocation7 + $0x168] sm:$0xff]
    %v7272 = vld [vmem:[#allocation7 + $0x170] sm:$0xff]
    %v7273 = vld [vmem:[#allocation7 + $0x178] sm:$0xff]
    %v7274 = vld [vmem:[#allocation7 + $0x180] sm:$0xff]
    %v7275 = vld [vmem:[#allocation7 + $0x188] sm:$0xff]
    %v7276 = vld [vmem:[#allocation7 + $0x190] sm:$0xff]
    %v7277 = vld [vmem:[#allocation7 + $0x198] sm:$0xff]
    %v7278 = vld [vmem:[#allocation7 + $0x1a0] sm:$0xff]
    %v7279 = vld [vmem:[#allocation7 + $0x1a8] sm:$0xff]
    %v7280 = vld [vmem:[#allocation7 + $0x1b0] sm:$0xff]
    %v7281 = vld [vmem:[#allocation7 + $0x1b8] sm:$0xff]
    %v7282 = vld [vmem:[#allocation7 + $0x1c0] sm:$0xff]
    %v7283 = vld [vmem:[#allocation7 + $0x1c8] sm:$0xff]
    %v7284 = vld [vmem:[#allocation7 + $0x1d0] sm:$0xff]
    %v7285 = vld [vmem:[#allocation7 + $0x1d8] sm:$0xff]
    %v7286 = vld [vmem:[#allocation7 + $0x1e0] sm:$0xff]
    %v7287 = vld [vmem:[#allocation7 + $0x1e8] sm:$0xff]
    %v7288 = vld [vmem:[#allocation7 + $0x1f0] sm:$0xff]
    %v7289 = vld [vmem:[#allocation7 + $0x1f8] sm:$0xff]
    %v7290 = vld [vmem:[#allocation7 + $0x200] sm:$0xff]
    %v7291 = vld [vmem:[#allocation7 + $0x208] sm:$0xff]
    %v7292 = vld [vmem:[#allocation7 + $0x210] sm:$0xff]
    %v7293 = vld [vmem:[#allocation7 + $0x218] sm:$0xff]
    %v7294 = vld [vmem:[#allocation7 + $0x220] sm:$0xff]
    %v7295 = vld [vmem:[#allocation7 + $0x228] sm:$0xff]
    %v7296 = vld [vmem:[#allocation7 + $0x230] sm:$0xff]
    %v7297 = vld [vmem:[#allocation7 + $0x238] sm:$0xff]
    %v7298 = vld [vmem:[#allocation7 + $0x240] sm:$0xff]
    %v7299 = vld [vmem:[#allocation7 + $0x248] sm:$0xff]
    %v7300 = vld [vmem:[#allocation7 + $0x250] sm:$0xff]
    %v7301 = vld [vmem:[#allocation7 + $0x258] sm:$0xff]
    %v7302 = vld [vmem:[#allocation7 + $0x260] sm:$0xff]
    %v7303 = vld [vmem:[#allocation7 + $0x268] sm:$0xff]
    %v7304 = vld [vmem:[#allocation7 + $0x270] sm:$0xff]
    %v7305 = vld [vmem:[#allocation7 + $0x278] sm:$0xff]
    %v7306 = vld [vmem:[#allocation7 + $0x280] sm:$0xff]
    %v7307 = vld [vmem:[#allocation7 + $0x288] sm:$0xff]
    %v7308 = vld [vmem:[#allocation7 + $0x290] sm:$0xff]
    %v7309 = vld [vmem:[#allocation7 + $0x298] sm:$0xff]
    %v7310 = vld [vmem:[#allocation7 + $0x2a0] sm:$0xff]
    %v7311 = vld [vmem:[#allocation7 + $0x2a8] sm:$0xff]
    %v7312 = vld [vmem:[#allocation7 + $0x2b0] sm:$0xff]
    %v7313 = vld [vmem:[#allocation7 + $0x2b8] sm:$0xff]
    %v7314 = vld [vmem:[#allocation7 + $0x2c0] sm:$0xff]
    %v7315 = vld [vmem:[#allocation7 + $0x2c8] sm:$0xff]
    %v7316 = vld [vmem:[#allocation7 + $0x2d0] sm:$0xff]
    %v7317 = vld [vmem:[#allocation7 + $0x2d8] sm:$0xff]
    %v7318 = vld [vmem:[#allocation7 + $0x2e0] sm:$0xff]
    %v7319 = vld [vmem:[#allocation7 + $0x2e8] sm:$0xff]
    %v7320 = vld [vmem:[#allocation7 + $0x2f0] sm:$0xff]
    %v7321 = vld [vmem:[#allocation7 + $0x2f8] sm:$0xff]
    %v7322 = vld [vmem:[#allocation7 + $0x300] sm:$0xff]
    %v7323 = vld [vmem:[#allocation7 + $0x308] sm:$0xff]
    %v7324 = vld [vmem:[#allocation7 + $0x310] sm:$0xff]
    %v7325 = vld [vmem:[#allocation7 + $0x318] sm:$0xff]
    %v7326 = vld [vmem:[#allocation7 + $0x320] sm:$0xff]
    %v7327 = vld [vmem:[#allocation7 + $0x328] sm:$0xff]
    %v7328 = vld [vmem:[#allocation7 + $0x330] sm:$0xff]
    %v7329 = vld [vmem:[#allocation7 + $0x338] sm:$0xff]
    %v7330 = vld [vmem:[#allocation7 + $0x340] sm:$0xff]
    %v7331 = vld [vmem:[#allocation7 + $0x348] sm:$0xff]
    %v7332 = vld [vmem:[#allocation7 + $0x350] sm:$0xff]
    %v7333 = vld [vmem:[#allocation7 + $0x358] sm:$0xff]
    %v7334 = vld [vmem:[#allocation7 + $0x360] sm:$0xff]
    %v7335 = vld [vmem:[#allocation7 + $0x368] sm:$0xff]
    %v7336 = vld [vmem:[#allocation7 + $0x370] sm:$0xff]
    %v7337 = vld [vmem:[#allocation7 + $0x378] sm:$0xff]
    %v7338 = vld [vmem:[#allocation7 + $0x380] sm:$0xff]
    %v7339 = vld [vmem:[#allocation7 + $0x388] sm:$0xff]
    %v7340 = vld [vmem:[#allocation7 + $0x390] sm:$0xff]
    %v7341 = vld [vmem:[#allocation7 + $0x398] sm:$0xff]
    %v7342 = vld [vmem:[#allocation7 + $0x3a0] sm:$0xff]
    %v7343 = vld [vmem:[#allocation7 + $0x3a8] sm:$0xff]
    %v7344 = vld [vmem:[#allocation7 + $0x3b0] sm:$0xff]
    %v7345 = vld [vmem:[#allocation7 + $0x3b8] sm:$0xff]
    %v7346 = vld [vmem:[#allocation7 + $0x3c0] sm:$0xff]
    %v7347 = vld [vmem:[#allocation7 + $0x3c8] sm:$0xff]
    %v7348 = vld [vmem:[#allocation7 + $0x3d0] sm:$0xff]
    %v7349 = vld [vmem:[#allocation7 + $0x3d8] sm:$0xff]
    %v7350 = vld [vmem:[#allocation7 + $0x3e0] sm:$0xff]
    %v7351 = vld [vmem:[#allocation7 + $0x3e8] sm:$0xff]
    %v7352 = vld [vmem:[#allocation7 + $0x3f0] sm:$0xff]
    %v7353 = vld [vmem:[#allocation7 + $0x3f8] sm:$0xff]
    %v7354 = vld [vmem:[#allocation7 + $0x400] sm:$0xff]
    %v7355 = vld [vmem:[#allocation7 + $0x408] sm:$0xff]
    %v7356 = vld [vmem:[#allocation7 + $0x410] sm:$0xff]
    %v7357 = vld [vmem:[#allocation7 + $0x418] sm:$0xff]
    %v7358 = vld [vmem:[#allocation7 + $0x420] sm:$0xff]
    %v7359 = vld [vmem:[#allocation7 + $0x428] sm:$0xff]
    %v7360 = vld [vmem:[#allocation7 + $0x430] sm:$0xff]
    %v7361 = vld [vmem:[#allocation7 + $0x438] sm:$0xff]
    %v7362 = vld [vmem:[#allocation7 + $0x440] sm:$0xff]
    %v7363 = vld [vmem:[#allocation7 + $0x448] sm:$0xff]
    %v7364 = vld [vmem:[#allocation7 + $0x450] sm:$0xff]
    %v7365 = vld [vmem:[#allocation7 + $0x458] sm:$0xff]
    %v7366 = vld [vmem:[#allocation7 + $0x460] sm:$0xff]
    %v7367 = vld [vmem:[#allocation7 + $0x468] sm:$0xff]
    %v7368 = vld [vmem:[#allocation7 + $0x470] sm:$0xff]
    %v7369 = vld [vmem:[#allocation7 + $0x478] sm:$0xff]
    %v7370 = vld [vmem:[#allocation7 + $0x480] sm:$0xff]
    %v7371 = vld [vmem:[#allocation7 + $0x488] sm:$0xff]
    %v7372 = vld [vmem:[#allocation7 + $0x490] sm:$0xff]
    %v7373 = vld [vmem:[#allocation7 + $0x498] sm:$0xff]
    %v7374 = vld [vmem:[#allocation7 + $0x4a0] sm:$0xff]
    %v7375 = vld [vmem:[#allocation7 + $0x4a8] sm:$0xff]
    %v7376 = vld [vmem:[#allocation7 + $0x4b0] sm:$0xff]
    %v7377 = vld [vmem:[#allocation7 + $0x4b8] sm:$0xff]
    %v7378 = vld [vmem:[#allocation7 + $0x4c0] sm:$0xff]
    %v7379 = vld [vmem:[#allocation7 + $0x4c8] sm:$0xff]
    %v7380 = vld [vmem:[#allocation7 + $0x4d0] sm:$0xff]
    %v7381 = vld [vmem:[#allocation7 + $0x4d8] sm:$0xff]
    %v7382 = vld [vmem:[#allocation7 + $0x4e0] sm:$0xff]
    %v7383 = vld [vmem:[#allocation7 + $0x4e8] sm:$0xff]
    %v7384 = vld [vmem:[#allocation7 + $0x4f0] sm:$0xff]
    %v7385 = vld [vmem:[#allocation7 + $0x4f8] sm:$0xff]
    %v7386 = vld [vmem:[#allocation7 + $0x500] sm:$0xff]
    %v7387 = vld [vmem:[#allocation7 + $0x508] sm:$0xff]
    %v7388 = vld [vmem:[#allocation7 + $0x510] sm:$0xff]
    %v7389 = vld [vmem:[#allocation7 + $0x518] sm:$0xff]
    %v7390 = vld [vmem:[#allocation7 + $0x520] sm:$0xff]
    %v7391 = vld [vmem:[#allocation7 + $0x528] sm:$0xff]
    %v7392 = vld [vmem:[#allocation7 + $0x530] sm:$0xff]
    %v7393 = vld [vmem:[#allocation7 + $0x538] sm:$0xff]
    %v7394 = vld [vmem:[#allocation7 + $0x540] sm:$0xff]
    %v7395 = vld [vmem:[#allocation7 + $0x548] sm:$0xff]
    %v7396 = vld [vmem:[#allocation7 + $0x550] sm:$0xff]
    %v7397 = vld [vmem:[#allocation7 + $0x558] sm:$0xff]
    %v7398 = vld [vmem:[#allocation7 + $0x560] sm:$0xff]
    %v7399 = vld [vmem:[#allocation7 + $0x568] sm:$0xff]
    %v7400 = vld [vmem:[#allocation7 + $0x570] sm:$0xff]
    %v7401 = vld [vmem:[#allocation7 + $0x578] sm:$0xff]
    %v7402 = vld [vmem:[#allocation7 + $0x580] sm:$0xff]
    %v7403 = vld [vmem:[#allocation7 + $0x588] sm:$0xff]
    %v7404 = vld [vmem:[#allocation7 + $0x590] sm:$0xff]
    %v7405 = vld [vmem:[#allocation7 + $0x598] sm:$0xff]
    %v7406 = vld [vmem:[#allocation7 + $0x5a0] sm:$0xff]
    %v7407 = vld [vmem:[#allocation7 + $0x5a8] sm:$0xff]
    %v7408 = vld [vmem:[#allocation7 + $0x5b0] sm:$0xff]
    %v7409 = vld [vmem:[#allocation7 + $0x5b8] sm:$0xff]
    %v7410 = vld [vmem:[#allocation7 + $0x5c0] sm:$0xff]
    %v7411 = vld [vmem:[#allocation7 + $0x5c8] sm:$0xff]
    %v7412 = vld [vmem:[#allocation7 + $0x5d0] sm:$0xff]
    %v7413 = vld [vmem:[#allocation7 + $0x5d8] sm:$0xff]
    %v7414 = vld [vmem:[#allocation7 + $0x5e0] sm:$0xff]
    %v7415 = vld [vmem:[#allocation7 + $0x5e8] sm:$0xff]
    %v7416 = vld [vmem:[#allocation7 + $0x5f0] sm:$0xff]
    %v7417 = vld [vmem:[#allocation7 + $0x5f8] sm:$0xff]
    %v7418 = vld [vmem:[#allocation7 + $0x600] sm:$0xff]
    %v7419 = vld [vmem:[#allocation7 + $0x608] sm:$0xff]
    %v7420 = vld [vmem:[#allocation7 + $0x610] sm:$0xff]
    %v7421 = vld [vmem:[#allocation7 + $0x618] sm:$0xff]
    %v7422 = vld [vmem:[#allocation7 + $0x620] sm:$0xff]
    %v7423 = vld [vmem:[#allocation7 + $0x628] sm:$0xff]
    %v7424 = vld [vmem:[#allocation7 + $0x630] sm:$0xff]
    %v7425 = vld [vmem:[#allocation7 + $0x638] sm:$0xff]
    %v7426 = vld [vmem:[#allocation7 + $0x640] sm:$0xff]
    %v7427 = vld [vmem:[#allocation7 + $0x648] sm:$0xff]
    %v7428 = vld [vmem:[#allocation7 + $0x650] sm:$0xff]
    %v7429 = vld [vmem:[#allocation7 + $0x658] sm:$0xff]
    %v7430 = vld [vmem:[#allocation7 + $0x660] sm:$0xff]
    %v7431 = vld [vmem:[#allocation7 + $0x668] sm:$0xff]
    %v7432 = vld [vmem:[#allocation7 + $0x670] sm:$0xff]
    %v7433 = vld [vmem:[#allocation7 + $0x678] sm:$0xff]
    %v7434 = vld [vmem:[#allocation7 + $0x680] sm:$0xff]
    %v7435 = vld [vmem:[#allocation7 + $0x688] sm:$0xff]
    %v7436 = vld [vmem:[#allocation7 + $0x690] sm:$0xff]
    %v7437 = vld [vmem:[#allocation7 + $0x698] sm:$0xff]
    %v7438 = vld [vmem:[#allocation7 + $0x6a0] sm:$0xff]
    %v7439 = vld [vmem:[#allocation7 + $0x6a8] sm:$0xff]
    %v7440 = vld [vmem:[#allocation7 + $0x6b0] sm:$0xff]
    %v7441 = vld [vmem:[#allocation7 + $0x6b8] sm:$0xff]
    %v7442 = vld [vmem:[#allocation7 + $0x6c0] sm:$0xff]
    %v7443 = vld [vmem:[#allocation7 + $0x6c8] sm:$0xff]
    %v7444 = vld [vmem:[#allocation7 + $0x6d0] sm:$0xff]
    %v7445 = vld [vmem:[#allocation7 + $0x6d8] sm:$0xff]
    %v7446 = vld [vmem:[#allocation7 + $0x6e0] sm:$0xff]
    %v7447 = vld [vmem:[#allocation7 + $0x6e8] sm:$0xff]
    %v7448 = vld [vmem:[#allocation7 + $0x6f0] sm:$0xff]
    %v7449 = vld [vmem:[#allocation7 + $0x6f8] sm:$0xff]
    %v7450 = vld [vmem:[#allocation7 + $0x700] sm:$0xff]
    %v7451 = vld [vmem:[#allocation7 + $0x708] sm:$0xff]
    %v7452 = vld [vmem:[#allocation7 + $0x710] sm:$0xff]
    %v7453 = vld [vmem:[#allocation7 + $0x718] sm:$0xff]
    %v7454 = vld [vmem:[#allocation7 + $0x720] sm:$0xff]
    %v7455 = vld [vmem:[#allocation7 + $0x728] sm:$0xff]
    %v7456 = vld [vmem:[#allocation7 + $0x730] sm:$0xff]
    %v7457 = vld [vmem:[#allocation7 + $0x738] sm:$0xff]
    %v7458 = vld [vmem:[#allocation7 + $0x740] sm:$0xff]
    %v7459 = vld [vmem:[#allocation7 + $0x748] sm:$0xff]
    %v7460 = vld [vmem:[#allocation7 + $0x750] sm:$0xff]
    %v7461 = vld [vmem:[#allocation7 + $0x758] sm:$0xff]
    %v7462 = vld [vmem:[#allocation7 + $0x760] sm:$0xff]
    %v7463 = vld [vmem:[#allocation7 + $0x768] sm:$0xff]
    %v7464 = vld [vmem:[#allocation7 + $0x770] sm:$0xff]
    %v7465 = vld [vmem:[#allocation7 + $0x778] sm:$0xff]
    %v7466 = vld [vmem:[#allocation7 + $0x780] sm:$0xff]
    %v7467 = vld [vmem:[#allocation7 + $0x788] sm:$0xff]
    %v7468 = vld [vmem:[#allocation7 + $0x790] sm:$0xff]
    %v7469 = vld [vmem:[#allocation7 + $0x798] sm:$0xff]
    %v7470 = vld [vmem:[#allocation7 + $0x7a0] sm:$0xff]
    %v7471 = vld [vmem:[#allocation7 + $0x7a8] sm:$0xff]
    %v7472 = vld [vmem:[#allocation7 + $0x7b0] sm:$0xff]
    %v7473 = vld [vmem:[#allocation7 + $0x7b8] sm:$0xff]
    %v7474 = vld [vmem:[#allocation7 + $0x7c0] sm:$0xff]
    %v7475 = vld [vmem:[#allocation7 + $0x7c8] sm:$0xff]
    %v7476 = vld [vmem:[#allocation7 + $0x7d0] sm:$0xff]
    %v7477 = vld [vmem:[#allocation7 + $0x7d8] sm:$0xff]
    %v7478 = vld [vmem:[#allocation7 + $0x7e0] sm:$0xff]
    %v7479 = vld [vmem:[#allocation7 + $0x7e8] sm:$0xff]
    %v7480 = vld [vmem:[#allocation7 + $0x7f0] sm:$0xff]
    %v7481 = vld [vmem:[#allocation7 + $0x7f8] sm:$0xff]
    %v7738 = vunpack.c.l.b16 %v7226
    %v7739 = vunpack.c.h.b16 %v7226
    %v7740 = vunpack.c.l.b16 %v7227
    %v7741 = vunpack.c.h.b16 %v7227
    %v7742 = vunpack.c.l.b16 %v7228
    %v7743 = vunpack.c.h.b16 %v7228
    %v7744 = vunpack.c.l.b16 %v7229
    %v7745 = vunpack.c.h.b16 %v7229
    %v7746 = vunpack.c.l.b16 %v7230
    %v7747 = vunpack.c.h.b16 %v7230
    %v7748 = vunpack.c.l.b16 %v7231
    %v7749 = vunpack.c.h.b16 %v7231
    %v7750 = vunpack.c.l.b16 %v7232
    %v7751 = vunpack.c.h.b16 %v7232
    %v7752 = vunpack.c.l.b16 %v7233
    %v7753 = vunpack.c.h.b16 %v7233
    %v7754 = vunpack.c.l.b16 %v7234
    %v7755 = vunpack.c.h.b16 %v7234
    %v7756 = vunpack.c.l.b16 %v7235
    %v7757 = vunpack.c.h.b16 %v7235
    %v7758 = vunpack.c.l.b16 %v7236
    %v7759 = vunpack.c.h.b16 %v7236
    %v7760 = vunpack.c.l.b16 %v7237
    %v7761 = vunpack.c.h.b16 %v7237
    %v7762 = vunpack.c.l.b16 %v7238
    %v7763 = vunpack.c.h.b16 %v7238
    %v7764 = vunpack.c.l.b16 %v7239
    %v7765 = vunpack.c.h.b16 %v7239
    %v7766 = vunpack.c.l.b16 %v7240
    %v7767 = vunpack.c.h.b16 %v7240
    %v7768 = vunpack.c.l.b16 %v7241
    %v7769 = vunpack.c.h.b16 %v7241
    %v7770 = vunpack.c.l.b16 %v7242
    %v7771 = vunpack.c.h.b16 %v7242
    %v7772 = vunpack.c.l.b16 %v7243
    %v7773 = vunpack.c.h.b16 %v7243
    %v7774 = vunpack.c.l.b16 %v7244
    %v7775 = vunpack.c.h.b16 %v7244
    %v7776 = vunpack.c.l.b16 %v7245
    %v7777 = vunpack.c.h.b16 %v7245
    %v7778 = vunpack.c.l.b16 %v7246
    %v7779 = vunpack.c.h.b16 %v7246
    %v7780 = vunpack.c.l.b16 %v7247
    %v7781 = vunpack.c.h.b16 %v7247
    %v7782 = vunpack.c.l.b16 %v7248
    %v7783 = vunpack.c.h.b16 %v7248
    %v7784 = vunpack.c.l.b16 %v7249
    %v7785 = vunpack.c.h.b16 %v7249
    %v7786 = vunpack.c.l.b16 %v7250
    %v7787 = vunpack.c.h.b16 %v7250
    %v7788 = vunpack.c.l.b16 %v7251
    %v7789 = vunpack.c.h.b16 %v7251
    %v7790 = vunpack.c.l.b16 %v7252
    %v7791 = vunpack.c.h.b16 %v7252
    %v7792 = vunpack.c.l.b16 %v7253
    %v7793 = vunpack.c.h.b16 %v7253
    %v7794 = vunpack.c.l.b16 %v7254
    %v7795 = vunpack.c.h.b16 %v7254
    %v7796 = vunpack.c.l.b16 %v7255
    %v7797 = vunpack.c.h.b16 %v7255
    %v7798 = vunpack.c.l.b16 %v7256
    %v7799 = vunpack.c.h.b16 %v7256
    %v7800 = vunpack.c.l.b16 %v7257
    %v7801 = vunpack.c.h.b16 %v7257
    %v7802 = vunpack.c.l.b16 %v7258
    %v7803 = vunpack.c.h.b16 %v7258
    %v7804 = vunpack.c.l.b16 %v7259
    %v7805 = vunpack.c.h.b16 %v7259
    %v7806 = vunpack.c.l.b16 %v7260
    %v7807 = vunpack.c.h.b16 %v7260
    %v7808 = vunpack.c.l.b16 %v7261
    %v7809 = vunpack.c.h.b16 %v7261
    %v7810 = vunpack.c.l.b16 %v7262
    %v7811 = vunpack.c.h.b16 %v7262
    %v7812 = vunpack.c.l.b16 %v7263
    %v7813 = vunpack.c.h.b16 %v7263
    %v7814 = vunpack.c.l.b16 %v7264
    %v7815 = vunpack.c.h.b16 %v7264
    %v7816 = vunpack.c.l.b16 %v7265
    %v7817 = vunpack.c.h.b16 %v7265
    %v7818 = vunpack.c.l.b16 %v7266
    %v7819 = vunpack.c.h.b16 %v7266
    %v7820 = vunpack.c.l.b16 %v7267
    %v7821 = vunpack.c.h.b16 %v7267
    %v7822 = vunpack.c.l.b16 %v7268
    %v7823 = vunpack.c.h.b16 %v7268
    %v7824 = vunpack.c.l.b16 %v7269
    %v7825 = vunpack.c.h.b16 %v7269
    %v7826 = vunpack.c.l.b16 %v7270
    %v7827 = vunpack.c.h.b16 %v7270
    %v7828 = vunpack.c.l.b16 %v7271
    %v7829 = vunpack.c.h.b16 %v7271
    %v7830 = vunpack.c.l.b16 %v7272
    %v7831 = vunpack.c.h.b16 %v7272
    %v7832 = vunpack.c.l.b16 %v7273
    %v7833 = vunpack.c.h.b16 %v7273
    %v7834 = vunpack.c.l.b16 %v7274
    %v7835 = vunpack.c.h.b16 %v7274
    %v7836 = vunpack.c.l.b16 %v7275
    %v7837 = vunpack.c.h.b16 %v7275
    %v7838 = vunpack.c.l.b16 %v7276
    %v7839 = vunpack.c.h.b16 %v7276
    %v7840 = vunpack.c.l.b16 %v7277
    %v7841 = vunpack.c.h.b16 %v7277
    %v7842 = vunpack.c.l.b16 %v7278
    %v7843 = vunpack.c.h.b16 %v7278
    %v7844 = vunpack.c.l.b16 %v7279
    %v7845 = vunpack.c.h.b16 %v7279
    %v7846 = vunpack.c.l.b16 %v7280
    %v7847 = vunpack.c.h.b16 %v7280
    %v7848 = vunpack.c.l.b16 %v7281
    %v7849 = vunpack.c.h.b16 %v7281
    %v7850 = vunpack.c.l.b16 %v7282
    %v7851 = vunpack.c.h.b16 %v7282
    %v7852 = vunpack.c.l.b16 %v7283
    %v7853 = vunpack.c.h.b16 %v7283
    %v7854 = vunpack.c.l.b16 %v7284
    %v7855 = vunpack.c.h.b16 %v7284
    %v7856 = vunpack.c.l.b16 %v7285
    %v7857 = vunpack.c.h.b16 %v7285
    %v7858 = vunpack.c.l.b16 %v7286
    %v7859 = vunpack.c.h.b16 %v7286
    %v7860 = vunpack.c.l.b16 %v7287
    %v7861 = vunpack.c.h.b16 %v7287
    %v7862 = vunpack.c.l.b16 %v7288
    %v7863 = vunpack.c.h.b16 %v7288
    %v7864 = vunpack.c.l.b16 %v7289
    %v7865 = vunpack.c.h.b16 %v7289
    %v7866 = vunpack.c.l.b16 %v7290
    %v7867 = vunpack.c.h.b16 %v7290
    %v7868 = vunpack.c.l.b16 %v7291
    %v7869 = vunpack.c.h.b16 %v7291
    %v7870 = vunpack.c.l.b16 %v7292
    %v7871 = vunpack.c.h.b16 %v7292
    %v7872 = vunpack.c.l.b16 %v7293
    %v7873 = vunpack.c.h.b16 %v7293
    %v7874 = vunpack.c.l.b16 %v7294
    %v7875 = vunpack.c.h.b16 %v7294
    %v7876 = vunpack.c.l.b16 %v7295
    %v7877 = vunpack.c.h.b16 %v7295
    %v7878 = vunpack.c.l.b16 %v7296
    %v7879 = vunpack.c.h.b16 %v7296
    %v7880 = vunpack.c.l.b16 %v7297
    %v7881 = vunpack.c.h.b16 %v7297
    %v7882 = vunpack.c.l.b16 %v7298
    %v7883 = vunpack.c.h.b16 %v7298
    %v7884 = vunpack.c.l.b16 %v7299
    %v7885 = vunpack.c.h.b16 %v7299
    %v7886 = vunpack.c.l.b16 %v7300
    %v7887 = vunpack.c.h.b16 %v7300
    %v7888 = vunpack.c.l.b16 %v7301
    %v7889 = vunpack.c.h.b16 %v7301
    %v7890 = vunpack.c.l.b16 %v7302
    %v7891 = vunpack.c.h.b16 %v7302
    %v7892 = vunpack.c.l.b16 %v7303
    %v7893 = vunpack.c.h.b16 %v7303
    %v7894 = vunpack.c.l.b16 %v7304
    %v7895 = vunpack.c.h.b16 %v7304
    %v7896 = vunpack.c.l.b16 %v7305
    %v7897 = vunpack.c.h.b16 %v7305
    %v7898 = vunpack.c.l.b16 %v7306
    %v7899 = vunpack.c.h.b16 %v7306
    %v7900 = vunpack.c.l.b16 %v7307
    %v7901 = vunpack.c.h.b16 %v7307
    %v7902 = vunpack.c.l.b16 %v7308
    %v7903 = vunpack.c.h.b16 %v7308
    %v7904 = vunpack.c.l.b16 %v7309
    %v7905 = vunpack.c.h.b16 %v7309
    %v7906 = vunpack.c.l.b16 %v7310
    %v7907 = vunpack.c.h.b16 %v7310
    %v7908 = vunpack.c.l.b16 %v7311
    %v7909 = vunpack.c.h.b16 %v7311
    %v7910 = vunpack.c.l.b16 %v7312
    %v7911 = vunpack.c.h.b16 %v7312
    %v7912 = vunpack.c.l.b16 %v7313
    %v7913 = vunpack.c.h.b16 %v7313
    %v7914 = vunpack.c.l.b16 %v7314
    %v7915 = vunpack.c.h.b16 %v7314
    %v7916 = vunpack.c.l.b16 %v7315
    %v7917 = vunpack.c.h.b16 %v7315
    %v7918 = vunpack.c.l.b16 %v7316
    %v7919 = vunpack.c.h.b16 %v7316
    %v7920 = vunpack.c.l.b16 %v7317
    %v7921 = vunpack.c.h.b16 %v7317
    %v7922 = vunpack.c.l.b16 %v7318
    %v7923 = vunpack.c.h.b16 %v7318
    %v7924 = vunpack.c.l.b16 %v7319
    %v7925 = vunpack.c.h.b16 %v7319
    %v7926 = vunpack.c.l.b16 %v7320
    %v7927 = vunpack.c.h.b16 %v7320
    %v7928 = vunpack.c.l.b16 %v7321
    %v7929 = vunpack.c.h.b16 %v7321
    %v7930 = vunpack.c.l.b16 %v7322
    %v7931 = vunpack.c.h.b16 %v7322
    %v7932 = vunpack.c.l.b16 %v7323
    %v7933 = vunpack.c.h.b16 %v7323
    %v7934 = vunpack.c.l.b16 %v7324
    %v7935 = vunpack.c.h.b16 %v7324
    %v7936 = vunpack.c.l.b16 %v7325
    %v7937 = vunpack.c.h.b16 %v7325
    %v7938 = vunpack.c.l.b16 %v7326
    %v7939 = vunpack.c.h.b16 %v7326
    %v7940 = vunpack.c.l.b16 %v7327
    %v7941 = vunpack.c.h.b16 %v7327
    %v7942 = vunpack.c.l.b16 %v7328
    %v7943 = vunpack.c.h.b16 %v7328
    %v7944 = vunpack.c.l.b16 %v7329
    %v7945 = vunpack.c.h.b16 %v7329
    %v7946 = vunpack.c.l.b16 %v7330
    %v7947 = vunpack.c.h.b16 %v7330
    %v7948 = vunpack.c.l.b16 %v7331
    %v7949 = vunpack.c.h.b16 %v7331
    %v7950 = vunpack.c.l.b16 %v7332
    %v7951 = vunpack.c.h.b16 %v7332
    %v7952 = vunpack.c.l.b16 %v7333
    %v7953 = vunpack.c.h.b16 %v7333
    %v7954 = vunpack.c.l.b16 %v7334
    %v7955 = vunpack.c.h.b16 %v7334
    %v7956 = vunpack.c.l.b16 %v7335
    %v7957 = vunpack.c.h.b16 %v7335
    %v7958 = vunpack.c.l.b16 %v7336
    %v7959 = vunpack.c.h.b16 %v7336
    %v7960 = vunpack.c.l.b16 %v7337
    %v7961 = vunpack.c.h.b16 %v7337
    %v7962 = vunpack.c.l.b16 %v7338
    %v7963 = vunpack.c.h.b16 %v7338
    %v7964 = vunpack.c.l.b16 %v7339
    %v7965 = vunpack.c.h.b16 %v7339
    %v7966 = vunpack.c.l.b16 %v7340
    %v7967 = vunpack.c.h.b16 %v7340
    %v7968 = vunpack.c.l.b16 %v7341
    %v7969 = vunpack.c.h.b16 %v7341
    %v7970 = vunpack.c.l.b16 %v7342
    %v7971 = vunpack.c.h.b16 %v7342
    %v7972 = vunpack.c.l.b16 %v7343
    %v7973 = vunpack.c.h.b16 %v7343
    %v7974 = vunpack.c.l.b16 %v7344
    %v7975 = vunpack.c.h.b16 %v7344
    %v7976 = vunpack.c.l.b16 %v7345
    %v7977 = vunpack.c.h.b16 %v7345
    %v7978 = vunpack.c.l.b16 %v7346
    %v7979 = vunpack.c.h.b16 %v7346
    %v7980 = vunpack.c.l.b16 %v7347
    %v7981 = vunpack.c.h.b16 %v7347
    %v7982 = vunpack.c.l.b16 %v7348
    %v7983 = vunpack.c.h.b16 %v7348
    %v7984 = vunpack.c.l.b16 %v7349
    %v7985 = vunpack.c.h.b16 %v7349
    %v7986 = vunpack.c.l.b16 %v7350
    %v7987 = vunpack.c.h.b16 %v7350
    %v7988 = vunpack.c.l.b16 %v7351
    %v7989 = vunpack.c.h.b16 %v7351
    %v7990 = vunpack.c.l.b16 %v7352
    %v7991 = vunpack.c.h.b16 %v7352
    %v7992 = vunpack.c.l.b16 %v7353
    %v7993 = vunpack.c.h.b16 %v7353
    %v7994 = vunpack.c.l.b16 %v7354
    %v7995 = vunpack.c.h.b16 %v7354
    %v7996 = vunpack.c.l.b16 %v7355
    %v7997 = vunpack.c.h.b16 %v7355
    %v7998 = vunpack.c.l.b16 %v7356
    %v7999 = vunpack.c.h.b16 %v7356
    %v8000 = vunpack.c.l.b16 %v7357
    %v8001 = vunpack.c.h.b16 %v7357
    %v8002 = vunpack.c.l.b16 %v7358
    %v8003 = vunpack.c.h.b16 %v7358
    %v8004 = vunpack.c.l.b16 %v7359
    %v8005 = vunpack.c.h.b16 %v7359
    %v8006 = vunpack.c.l.b16 %v7360
    %v8007 = vunpack.c.h.b16 %v7360
    %v8008 = vunpack.c.l.b16 %v7361
    %v8009 = vunpack.c.h.b16 %v7361
    %v8010 = vunpack.c.l.b16 %v7362
    %v8011 = vunpack.c.h.b16 %v7362
    %v8012 = vunpack.c.l.b16 %v7363
    %v8013 = vunpack.c.h.b16 %v7363
    %v8014 = vunpack.c.l.b16 %v7364
    %v8015 = vunpack.c.h.b16 %v7364
    %v8016 = vunpack.c.l.b16 %v7365
    %v8017 = vunpack.c.h.b16 %v7365
    %v8018 = vunpack.c.l.b16 %v7366
    %v8019 = vunpack.c.h.b16 %v7366
    %v8020 = vunpack.c.l.b16 %v7367
    %v8021 = vunpack.c.h.b16 %v7367
    %v8022 = vunpack.c.l.b16 %v7368
    %v8023 = vunpack.c.h.b16 %v7368
    %v8024 = vunpack.c.l.b16 %v7369
    %v8025 = vunpack.c.h.b16 %v7369
    %v8026 = vunpack.c.l.b16 %v7370
    %v8027 = vunpack.c.h.b16 %v7370
    %v8028 = vunpack.c.l.b16 %v7371
    %v8029 = vunpack.c.h.b16 %v7371
    %v8030 = vunpack.c.l.b16 %v7372
    %v8031 = vunpack.c.h.b16 %v7372
    %v8032 = vunpack.c.l.b16 %v7373
    %v8033 = vunpack.c.h.b16 %v7373
    %v8034 = vunpack.c.l.b16 %v7374
    %v8035 = vunpack.c.h.b16 %v7374
    %v8036 = vunpack.c.l.b16 %v7375
    %v8037 = vunpack.c.h.b16 %v7375
    %v8038 = vunpack.c.l.b16 %v7376
    %v8039 = vunpack.c.h.b16 %v7376
    %v8040 = vunpack.c.l.b16 %v7377
    %v8041 = vunpack.c.h.b16 %v7377
    %v8042 = vunpack.c.l.b16 %v7378
    %v8043 = vunpack.c.h.b16 %v7378
    %v8044 = vunpack.c.l.b16 %v7379
    %v8045 = vunpack.c.h.b16 %v7379
    %v8046 = vunpack.c.l.b16 %v7380
    %v8047 = vunpack.c.h.b16 %v7380
    %v8048 = vunpack.c.l.b16 %v7381
    %v8049 = vunpack.c.h.b16 %v7381
    %v8050 = vunpack.c.l.b16 %v7382
    %v8051 = vunpack.c.h.b16 %v7382
    %v8052 = vunpack.c.l.b16 %v7383
    %v8053 = vunpack.c.h.b16 %v7383
    %v8054 = vunpack.c.l.b16 %v7384
    %v8055 = vunpack.c.h.b16 %v7384
    %v8056 = vunpack.c.l.b16 %v7385
    %v8057 = vunpack.c.h.b16 %v7385
    %v8058 = vunpack.c.l.b16 %v7386
    %v8059 = vunpack.c.h.b16 %v7386
    %v8060 = vunpack.c.l.b16 %v7387
    %v8061 = vunpack.c.h.b16 %v7387
    %v8062 = vunpack.c.l.b16 %v7388
    %v8063 = vunpack.c.h.b16 %v7388
    %v8064 = vunpack.c.l.b16 %v7389
    %v8065 = vunpack.c.h.b16 %v7389
    %v8066 = vunpack.c.l.b16 %v7390
    %v8067 = vunpack.c.h.b16 %v7390
    %v8068 = vunpack.c.l.b16 %v7391
    %v8069 = vunpack.c.h.b16 %v7391
    %v8070 = vunpack.c.l.b16 %v7392
    %v8071 = vunpack.c.h.b16 %v7392
    %v8072 = vunpack.c.l.b16 %v7393
    %v8073 = vunpack.c.h.b16 %v7393
    %v8074 = vunpack.c.l.b16 %v7394
    %v8075 = vunpack.c.h.b16 %v7394
    %v8076 = vunpack.c.l.b16 %v7395
    %v8077 = vunpack.c.h.b16 %v7395
    %v8078 = vunpack.c.l.b16 %v7396
    %v8079 = vunpack.c.h.b16 %v7396
    %v8080 = vunpack.c.l.b16 %v7397
    %v8081 = vunpack.c.h.b16 %v7397
    %v8082 = vunpack.c.l.b16 %v7398
    %v8083 = vunpack.c.h.b16 %v7398
    %v8084 = vunpack.c.l.b16 %v7399
    %v8085 = vunpack.c.h.b16 %v7399
    %v8086 = vunpack.c.l.b16 %v7400
    %v8087 = vunpack.c.h.b16 %v7400
    %v8088 = vunpack.c.l.b16 %v7401
    %v8089 = vunpack.c.h.b16 %v7401
    %v8090 = vunpack.c.l.b16 %v7402
    %v8091 = vunpack.c.h.b16 %v7402
    %v8092 = vunpack.c.l.b16 %v7403
    %v8093 = vunpack.c.h.b16 %v7403
    %v8094 = vunpack.c.l.b16 %v7404
    %v8095 = vunpack.c.h.b16 %v7404
    %v8096 = vunpack.c.l.b16 %v7405
    %v8097 = vunpack.c.h.b16 %v7405
    %v8098 = vunpack.c.l.b16 %v7406
    %v8099 = vunpack.c.h.b16 %v7406
    %v8100 = vunpack.c.l.b16 %v7407
    %v8101 = vunpack.c.h.b16 %v7407
    %v8102 = vunpack.c.l.b16 %v7408
    %v8103 = vunpack.c.h.b16 %v7408
    %v8104 = vunpack.c.l.b16 %v7409
    %v8105 = vunpack.c.h.b16 %v7409
    %v8106 = vunpack.c.l.b16 %v7410
    %v8107 = vunpack.c.h.b16 %v7410
    %v8108 = vunpack.c.l.b16 %v7411
    %v8109 = vunpack.c.h.b16 %v7411
    %v8110 = vunpack.c.l.b16 %v7412
    %v8111 = vunpack.c.h.b16 %v7412
    %v8112 = vunpack.c.l.b16 %v7413
    %v8113 = vunpack.c.h.b16 %v7413
    %v8114 = vunpack.c.l.b16 %v7414
    %v8115 = vunpack.c.h.b16 %v7414
    %v8116 = vunpack.c.l.b16 %v7415
    %v8117 = vunpack.c.h.b16 %v7415
    %v8118 = vunpack.c.l.b16 %v7416
    %v8119 = vunpack.c.h.b16 %v7416
    %v8120 = vunpack.c.l.b16 %v7417
    %v8121 = vunpack.c.h.b16 %v7417
    %v8122 = vunpack.c.l.b16 %v7418
    %v8123 = vunpack.c.h.b16 %v7418
    %v8124 = vunpack.c.l.b16 %v7419
    %v8125 = vunpack.c.h.b16 %v7419
    %v8126 = vunpack.c.l.b16 %v7420
    %v8127 = vunpack.c.h.b16 %v7420
    %v8128 = vunpack.c.l.b16 %v7421
    %v8129 = vunpack.c.h.b16 %v7421
    %v8130 = vunpack.c.l.b16 %v7422
    %v8131 = vunpack.c.h.b16 %v7422
    %v8132 = vunpack.c.l.b16 %v7423
    %v8133 = vunpack.c.h.b16 %v7423
    %v8134 = vunpack.c.l.b16 %v7424
    %v8135 = vunpack.c.h.b16 %v7424
    %v8136 = vunpack.c.l.b16 %v7425
    %v8137 = vunpack.c.h.b16 %v7425
    %v8138 = vunpack.c.l.b16 %v7426
    %v8139 = vunpack.c.h.b16 %v7426
    %v8140 = vunpack.c.l.b16 %v7427
    %v8141 = vunpack.c.h.b16 %v7427
    %v8142 = vunpack.c.l.b16 %v7428
    %v8143 = vunpack.c.h.b16 %v7428
    %v8144 = vunpack.c.l.b16 %v7429
    %v8145 = vunpack.c.h.b16 %v7429
    %v8146 = vunpack.c.l.b16 %v7430
    %v8147 = vunpack.c.h.b16 %v7430
    %v8148 = vunpack.c.l.b16 %v7431
    %v8149 = vunpack.c.h.b16 %v7431
    %v8150 = vunpack.c.l.b16 %v7432
    %v8151 = vunpack.c.h.b16 %v7432
    %v8152 = vunpack.c.l.b16 %v7433
    %v8153 = vunpack.c.h.b16 %v7433
    %v8154 = vunpack.c.l.b16 %v7434
    %v8155 = vunpack.c.h.b16 %v7434
    %v8156 = vunpack.c.l.b16 %v7435
    %v8157 = vunpack.c.h.b16 %v7435
    %v8158 = vunpack.c.l.b16 %v7436
    %v8159 = vunpack.c.h.b16 %v7436
    %v8160 = vunpack.c.l.b16 %v7437
    %v8161 = vunpack.c.h.b16 %v7437
    %v8162 = vunpack.c.l.b16 %v7438
    %v8163 = vunpack.c.h.b16 %v7438
    %v8164 = vunpack.c.l.b16 %v7439
    %v8165 = vunpack.c.h.b16 %v7439
    %v8166 = vunpack.c.l.b16 %v7440
    %v8167 = vunpack.c.h.b16 %v7440
    %v8168 = vunpack.c.l.b16 %v7441
    %v8169 = vunpack.c.h.b16 %v7441
    %v8170 = vunpack.c.l.b16 %v7442
    %v8171 = vunpack.c.h.b16 %v7442
    %v8172 = vunpack.c.l.b16 %v7443
    %v8173 = vunpack.c.h.b16 %v7443
    %v8174 = vunpack.c.l.b16 %v7444
    %v8175 = vunpack.c.h.b16 %v7444
    %v8176 = vunpack.c.l.b16 %v7445
    %v8177 = vunpack.c.h.b16 %v7445
    %v8178 = vunpack.c.l.b16 %v7446
    %v8179 = vunpack.c.h.b16 %v7446
    %v8180 = vunpack.c.l.b16 %v7447
    %v8181 = vunpack.c.h.b16 %v7447
    %v8182 = vunpack.c.l.b16 %v7448
    %v8183 = vunpack.c.h.b16 %v7448
    %v8184 = vunpack.c.l.b16 %v7449
    %v8185 = vunpack.c.h.b16 %v7449
    %v8186 = vunpack.c.l.b16 %v7450
    %v8187 = vunpack.c.h.b16 %v7450
    %v8188 = vunpack.c.l.b16 %v7451
    %v8189 = vunpack.c.h.b16 %v7451
    %v8190 = vunpack.c.l.b16 %v7452
    %v8191 = vunpack.c.h.b16 %v7452
    %v8192 = vunpack.c.l.b16 %v7453
    %v8193 = vunpack.c.h.b16 %v7453
    %v8194 = vunpack.c.l.b16 %v7454
    %v8195 = vunpack.c.h.b16 %v7454
    %v8196 = vunpack.c.l.b16 %v7455
    %v8197 = vunpack.c.h.b16 %v7455
    %v8198 = vunpack.c.l.b16 %v7456
    %v8199 = vunpack.c.h.b16 %v7456
    %v8200 = vunpack.c.l.b16 %v7457
    %v8201 = vunpack.c.h.b16 %v7457
    %v8202 = vunpack.c.l.b16 %v7458
    %v8203 = vunpack.c.h.b16 %v7458
    %v8204 = vunpack.c.l.b16 %v7459
    %v8205 = vunpack.c.h.b16 %v7459
    %v8206 = vunpack.c.l.b16 %v7460
    %v8207 = vunpack.c.h.b16 %v7460
    %v8208 = vunpack.c.l.b16 %v7461
    %v8209 = vunpack.c.h.b16 %v7461
    %v8210 = vunpack.c.l.b16 %v7462
    %v8211 = vunpack.c.h.b16 %v7462
    %v8212 = vunpack.c.l.b16 %v7463
    %v8213 = vunpack.c.h.b16 %v7463
    %v8214 = vunpack.c.l.b16 %v7464
    %v8215 = vunpack.c.h.b16 %v7464
    %v8216 = vunpack.c.l.b16 %v7465
    %v8217 = vunpack.c.h.b16 %v7465
    %v8218 = vunpack.c.l.b16 %v7466
    %v8219 = vunpack.c.h.b16 %v7466
    %v8220 = vunpack.c.l.b16 %v7467
    %v8221 = vunpack.c.h.b16 %v7467
    %v8222 = vunpack.c.l.b16 %v7468
    %v8223 = vunpack.c.h.b16 %v7468
    %v8224 = vunpack.c.l.b16 %v7469
    %v8225 = vunpack.c.h.b16 %v7469
    %v8226 = vunpack.c.l.b16 %v7470
    %v8227 = vunpack.c.h.b16 %v7470
    %v8228 = vunpack.c.l.b16 %v7471
    %v8229 = vunpack.c.h.b16 %v7471
    %v8230 = vunpack.c.l.b16 %v7472
    %v8231 = vunpack.c.h.b16 %v7472
    %v8232 = vunpack.c.l.b16 %v7473
    %v8233 = vunpack.c.h.b16 %v7473
    %v8234 = vunpack.c.l.b16 %v7474
    %v8235 = vunpack.c.h.b16 %v7474
    %v8236 = vunpack.c.l.b16 %v7475
    %v8237 = vunpack.c.h.b16 %v7475
    %v8238 = vunpack.c.l.b16 %v7476
    %v8239 = vunpack.c.h.b16 %v7476
    %v8240 = vunpack.c.l.b16 %v7477
    %v8241 = vunpack.c.h.b16 %v7477
    %v8242 = vunpack.c.l.b16 %v7478
    %v8243 = vunpack.c.h.b16 %v7478
    %v8244 = vunpack.c.l.b16 %v7479
    %v8245 = vunpack.c.h.b16 %v7479
    %v8246 = vunpack.c.l.b16 %v7480
    %v8247 = vunpack.c.h.b16 %v7480
    %v8248 = vunpack.c.l.b16 %v7481
    %v8249 = vunpack.c.h.b16 %v7481
    %v8250 = vpack.c.b16 %v7742, %v7738
    %v8251 = vpack.c.b16 %v7743, %v7739
    %v8252 = vpack.c.b16 %v7744, %v7740
    %v8253 = vpack.c.b16 %v7745, %v7741
    %v8254 = vpack.c.b16 %v7750, %v7746
    %v8255 = vpack.c.b16 %v7751, %v7747
    %v8256 = vpack.c.b16 %v7752, %v7748
    %v8257 = vpack.c.b16 %v7753, %v7749
    %v8258 = vpack.c.b16 %v7758, %v7754
    %v8259 = vpack.c.b16 %v7759, %v7755
    %v8260 = vpack.c.b16 %v7760, %v7756
    %v8261 = vpack.c.b16 %v7761, %v7757
    %v8262 = vpack.c.b16 %v7766, %v7762
    %v8263 = vpack.c.b16 %v7767, %v7763
    %v8264 = vpack.c.b16 %v7768, %v7764
    %v8265 = vpack.c.b16 %v7769, %v7765
    %v8266 = vpack.c.b16 %v7774, %v7770
    %v8267 = vpack.c.b16 %v7775, %v7771
    %v8268 = vpack.c.b16 %v7776, %v7772
    %v8269 = vpack.c.b16 %v7777, %v7773
    %v8270 = vpack.c.b16 %v7782, %v7778
    %v8271 = vpack.c.b16 %v7783, %v7779
    %v8272 = vpack.c.b16 %v7784, %v7780
    %v8273 = vpack.c.b16 %v7785, %v7781
    %v8274 = vpack.c.b16 %v7790, %v7786
    %v8275 = vpack.c.b16 %v7791, %v7787
    %v8276 = vpack.c.b16 %v7792, %v7788
    %v8277 = vpack.c.b16 %v7793, %v7789
    %v8278 = vpack.c.b16 %v7798, %v7794
    %v8279 = vpack.c.b16 %v7799, %v7795
    %v8280 = vpack.c.b16 %v7800, %v7796
    %v8281 = vpack.c.b16 %v7801, %v7797
    %v8282 = vpack.c.b16 %v7806, %v7802
    %v8283 = vpack.c.b16 %v7807, %v7803
    %v8284 = vpack.c.b16 %v7808, %v7804
    %v8285 = vpack.c.b16 %v7809, %v7805
    %v8286 = vpack.c.b16 %v7814, %v7810
    %v8287 = vpack.c.b16 %v7815, %v7811
    %v8288 = vpack.c.b16 %v7816, %v7812
    %v8289 = vpack.c.b16 %v7817, %v7813
    %v8290 = vpack.c.b16 %v7822, %v7818
    %v8291 = vpack.c.b16 %v7823, %v7819
    %v8292 = vpack.c.b16 %v7824, %v7820
    %v8293 = vpack.c.b16 %v7825, %v7821
    %v8294 = vpack.c.b16 %v7830, %v7826
    %v8295 = vpack.c.b16 %v7831, %v7827
    %v8296 = vpack.c.b16 %v7832, %v7828
    %v8297 = vpack.c.b16 %v7833, %v7829
    %v8298 = vpack.c.b16 %v7838, %v7834
    %v8299 = vpack.c.b16 %v7839, %v7835
    %v8300 = vpack.c.b16 %v7840, %v7836
    %v8301 = vpack.c.b16 %v7841, %v7837
    %v8302 = vpack.c.b16 %v7846, %v7842
    %v8303 = vpack.c.b16 %v7847, %v7843
    %v8304 = vpack.c.b16 %v7848, %v7844
    %v8305 = vpack.c.b16 %v7849, %v7845
    %v8306 = vpack.c.b16 %v7854, %v7850
    %v8307 = vpack.c.b16 %v7855, %v7851
    %v8308 = vpack.c.b16 %v7856, %v7852
    %v8309 = vpack.c.b16 %v7857, %v7853
    %v8310 = vpack.c.b16 %v7862, %v7858
    %v8311 = vpack.c.b16 %v7863, %v7859
    %v8312 = vpack.c.b16 %v7864, %v7860
    %v8313 = vpack.c.b16 %v7865, %v7861
    %v8314 = vpack.c.b16 %v7870, %v7866
    %v8315 = vpack.c.b16 %v7871, %v7867
    %v8316 = vpack.c.b16 %v7872, %v7868
    %v8317 = vpack.c.b16 %v7873, %v7869
    %v8318 = vpack.c.b16 %v7878, %v7874
    %v8319 = vpack.c.b16 %v7879, %v7875
    %v8320 = vpack.c.b16 %v7880, %v7876
    %v8321 = vpack.c.b16 %v7881, %v7877
    %v8322 = vpack.c.b16 %v7886, %v7882
    %v8323 = vpack.c.b16 %v7887, %v7883
    %v8324 = vpack.c.b16 %v7888, %v7884
    %v8325 = vpack.c.b16 %v7889, %v7885
    %v8326 = vpack.c.b16 %v7894, %v7890
    %v8327 = vpack.c.b16 %v7895, %v7891
    %v8328 = vpack.c.b16 %v7896, %v7892
    %v8329 = vpack.c.b16 %v7897, %v7893
    %v8330 = vpack.c.b16 %v7902, %v7898
    %v8331 = vpack.c.b16 %v7903, %v7899
    %v8332 = vpack.c.b16 %v7904, %v7900
    %v8333 = vpack.c.b16 %v7905, %v7901
    %v8334 = vpack.c.b16 %v7910, %v7906
    %v8335 = vpack.c.b16 %v7911, %v7907
    %v8336 = vpack.c.b16 %v7912, %v7908
    %v8337 = vpack.c.b16 %v7913, %v7909
    %v8338 = vpack.c.b16 %v7918, %v7914
    %v8339 = vpack.c.b16 %v7919, %v7915
    %v8340 = vpack.c.b16 %v7920, %v7916
    %v8341 = vpack.c.b16 %v7921, %v7917
    %v8342 = vpack.c.b16 %v7926, %v7922
    %v8343 = vpack.c.b16 %v7927, %v7923
    %v8344 = vpack.c.b16 %v7928, %v7924
    %v8345 = vpack.c.b16 %v7929, %v7925
    %v8346 = vpack.c.b16 %v7934, %v7930
    %v8347 = vpack.c.b16 %v7935, %v7931
    %v8348 = vpack.c.b16 %v7936, %v7932
    %v8349 = vpack.c.b16 %v7937, %v7933
    %v8350 = vpack.c.b16 %v7942, %v7938
    %v8351 = vpack.c.b16 %v7943, %v7939
    %v8352 = vpack.c.b16 %v7944, %v7940
    %v8353 = vpack.c.b16 %v7945, %v7941
    %v8354 = vpack.c.b16 %v7950, %v7946
    %v8355 = vpack.c.b16 %v7951, %v7947
    %v8356 = vpack.c.b16 %v7952, %v7948
    %v8357 = vpack.c.b16 %v7953, %v7949
    %v8358 = vpack.c.b16 %v7958, %v7954
    %v8359 = vpack.c.b16 %v7959, %v7955
    %v8360 = vpack.c.b16 %v7960, %v7956
    %v8361 = vpack.c.b16 %v7961, %v7957
    %v8362 = vpack.c.b16 %v7966, %v7962
    %v8363 = vpack.c.b16 %v7967, %v7963
    %v8364 = vpack.c.b16 %v7968, %v7964
    %v8365 = vpack.c.b16 %v7969, %v7965
    %v8366 = vpack.c.b16 %v7974, %v7970
    %v8367 = vpack.c.b16 %v7975, %v7971
    %v8368 = vpack.c.b16 %v7976, %v7972
    %v8369 = vpack.c.b16 %v7977, %v7973
    %v8370 = vpack.c.b16 %v7982, %v7978
    %v8371 = vpack.c.b16 %v7983, %v7979
    %v8372 = vpack.c.b16 %v7984, %v7980
    %v8373 = vpack.c.b16 %v7985, %v7981
    %v8374 = vpack.c.b16 %v7990, %v7986
    %v8375 = vpack.c.b16 %v7991, %v7987
    %v8376 = vpack.c.b16 %v7992, %v7988
    %v8377 = vpack.c.b16 %v7993, %v7989
    %v8378 = vpack.c.b16 %v7998, %v7994
    %v8379 = vpack.c.b16 %v7999, %v7995
    %v8380 = vpack.c.b16 %v8000, %v7996
    %v8381 = vpack.c.b16 %v8001, %v7997
    %v8382 = vpack.c.b16 %v8006, %v8002
    %v8383 = vpack.c.b16 %v8007, %v8003
    %v8384 = vpack.c.b16 %v8008, %v8004
    %v8385 = vpack.c.b16 %v8009, %v8005
    %v8386 = vpack.c.b16 %v8014, %v8010
    %v8387 = vpack.c.b16 %v8015, %v8011
    %v8388 = vpack.c.b16 %v8016, %v8012
    %v8389 = vpack.c.b16 %v8017, %v8013
    %v8390 = vpack.c.b16 %v8022, %v8018
    %v8391 = vpack.c.b16 %v8023, %v8019
    %v8392 = vpack.c.b16 %v8024, %v8020
    %v8393 = vpack.c.b16 %v8025, %v8021
    %v8394 = vpack.c.b16 %v8030, %v8026
    %v8395 = vpack.c.b16 %v8031, %v8027
    %v8396 = vpack.c.b16 %v8032, %v8028
    %v8397 = vpack.c.b16 %v8033, %v8029
    %v8398 = vpack.c.b16 %v8038, %v8034
    %v8399 = vpack.c.b16 %v8039, %v8035
    %v8400 = vpack.c.b16 %v8040, %v8036
    %v8401 = vpack.c.b16 %v8041, %v8037
    %v8402 = vpack.c.b16 %v8046, %v8042
    %v8403 = vpack.c.b16 %v8047, %v8043
    %v8404 = vpack.c.b16 %v8048, %v8044
    %v8405 = vpack.c.b16 %v8049, %v8045
    %v8406 = vpack.c.b16 %v8054, %v8050
    %v8407 = vpack.c.b16 %v8055, %v8051
    %v8408 = vpack.c.b16 %v8056, %v8052
    %v8409 = vpack.c.b16 %v8057, %v8053
    %v8410 = vpack.c.b16 %v8062, %v8058
    %v8411 = vpack.c.b16 %v8063, %v8059
    %v8412 = vpack.c.b16 %v8064, %v8060
    %v8413 = vpack.c.b16 %v8065, %v8061
    %v8414 = vpack.c.b16 %v8070, %v8066
    %v8415 = vpack.c.b16 %v8071, %v8067
    %v8416 = vpack.c.b16 %v8072, %v8068
    %v8417 = vpack.c.b16 %v8073, %v8069
    %v8418 = vpack.c.b16 %v8078, %v8074
    %v8419 = vpack.c.b16 %v8079, %v8075
    %v8420 = vpack.c.b16 %v8080, %v8076
    %v8421 = vpack.c.b16 %v8081, %v8077
    %v8422 = vpack.c.b16 %v8086, %v8082
    %v8423 = vpack.c.b16 %v8087, %v8083
    %v8424 = vpack.c.b16 %v8088, %v8084
    %v8425 = vpack.c.b16 %v8089, %v8085
    %v8426 = vpack.c.b16 %v8094, %v8090
    %v8427 = vpack.c.b16 %v8095, %v8091
    %v8428 = vpack.c.b16 %v8096, %v8092
    %v8429 = vpack.c.b16 %v8097, %v8093
    %v8430 = vpack.c.b16 %v8102, %v8098
    %v8431 = vpack.c.b16 %v8103, %v8099
    %v8432 = vpack.c.b16 %v8104, %v8100
    %v8433 = vpack.c.b16 %v8105, %v8101
    %v8434 = vpack.c.b16 %v8110, %v8106
    %v8435 = vpack.c.b16 %v8111, %v8107
    %v8436 = vpack.c.b16 %v8112, %v8108
    %v8437 = vpack.c.b16 %v8113, %v8109
    %v8438 = vpack.c.b16 %v8118, %v8114
    %v8439 = vpack.c.b16 %v8119, %v8115
    %v8440 = vpack.c.b16 %v8120, %v8116
    %v8441 = vpack.c.b16 %v8121, %v8117
    %v8442 = vpack.c.b16 %v8126, %v8122
    %v8443 = vpack.c.b16 %v8127, %v8123
    %v8444 = vpack.c.b16 %v8128, %v8124
    %v8445 = vpack.c.b16 %v8129, %v8125
    %v8446 = vpack.c.b16 %v8134, %v8130
    %v8447 = vpack.c.b16 %v8135, %v8131
    %v8448 = vpack.c.b16 %v8136, %v8132
    %v8449 = vpack.c.b16 %v8137, %v8133
    %v8450 = vpack.c.b16 %v8142, %v8138
    %v8451 = vpack.c.b16 %v8143, %v8139
    %v8452 = vpack.c.b16 %v8144, %v8140
    %v8453 = vpack.c.b16 %v8145, %v8141
    %v8454 = vpack.c.b16 %v8150, %v8146
    %v8455 = vpack.c.b16 %v8151, %v8147
    %v8456 = vpack.c.b16 %v8152, %v8148
    %v8457 = vpack.c.b16 %v8153, %v8149
    %v8458 = vpack.c.b16 %v8158, %v8154
    %v8459 = vpack.c.b16 %v8159, %v8155
    %v8460 = vpack.c.b16 %v8160, %v8156
    %v8461 = vpack.c.b16 %v8161, %v8157
    %v8462 = vpack.c.b16 %v8166, %v8162
    %v8463 = vpack.c.b16 %v8167, %v8163
    %v8464 = vpack.c.b16 %v8168, %v8164
    %v8465 = vpack.c.b16 %v8169, %v8165
    %v8466 = vpack.c.b16 %v8174, %v8170
    %v8467 = vpack.c.b16 %v8175, %v8171
    %v8468 = vpack.c.b16 %v8176, %v8172
    %v8469 = vpack.c.b16 %v8177, %v8173
    %v8470 = vpack.c.b16 %v8182, %v8178
    %v8471 = vpack.c.b16 %v8183, %v8179
    %v8472 = vpack.c.b16 %v8184, %v8180
    %v8473 = vpack.c.b16 %v8185, %v8181
    %v8474 = vpack.c.b16 %v8190, %v8186
    %v8475 = vpack.c.b16 %v8191, %v8187
    %v8476 = vpack.c.b16 %v8192, %v8188
    %v8477 = vpack.c.b16 %v8193, %v8189
    %v8478 = vpack.c.b16 %v8198, %v8194
    %v8479 = vpack.c.b16 %v8199, %v8195
    %v8480 = vpack.c.b16 %v8200, %v8196
    %v8481 = vpack.c.b16 %v8201, %v8197
    %v8482 = vpack.c.b16 %v8206, %v8202
    %v8483 = vpack.c.b16 %v8207, %v8203
    %v8484 = vpack.c.b16 %v8208, %v8204
    %v8485 = vpack.c.b16 %v8209, %v8205
    %v8486 = vpack.c.b16 %v8214, %v8210
    %v8487 = vpack.c.b16 %v8215, %v8211
    %v8488 = vpack.c.b16 %v8216, %v8212
    %v8489 = vpack.c.b16 %v8217, %v8213
    %v8490 = vpack.c.b16 %v8222, %v8218
    %v8491 = vpack.c.b16 %v8223, %v8219
    %v8492 = vpack.c.b16 %v8224, %v8220
    %v8493 = vpack.c.b16 %v8225, %v8221
    %v8494 = vpack.c.b16 %v8230, %v8226
    %v8495 = vpack.c.b16 %v8231, %v8227
    %v8496 = vpack.c.b16 %v8232, %v8228
    %v8497 = vpack.c.b16 %v8233, %v8229
    %v8498 = vpack.c.b16 %v8238, %v8234
    %v8499 = vpack.c.b16 %v8239, %v8235
    %v8500 = vpack.c.b16 %v8240, %v8236
    %v8501 = vpack.c.b16 %v8241, %v8237
    %v8502 = vpack.c.b16 %v8246, %v8242
    %v8503 = vpack.c.b16 %v8247, %v8243
    %v8504 = vpack.c.b16 %v8248, %v8244
    %v8505 = vpack.c.b16 %v8249, %v8245
    %8762 = vmatprep.subr.bf16.mxu0 %v8251
    %8763 = vmatpush1.bf16.msra.mxu0 %v8250
    %8764 = vmatprep.subr.bf16.mxu0 %v8255
    %8765 = vmatpush1.bf16.msra.mxu0 %v8254
    %8766 = vmatprep.subr.bf16.mxu0 %v8259
    %8767 = vmatpush1.bf16.msra.mxu0 %v8258
    %8768 = vmatprep.subr.bf16.mxu0 %v8263
    %8769 = vmatpush1.bf16.msra.mxu0 %v8262
    %8770 = vmatprep.subr.bf16.mxu0 %v8267
    %8771 = vmatpush1.bf16.msra.mxu0 %v8266
    %8772 = vmatprep.subr.bf16.mxu0 %v8271
    %8773 = vmatpush1.bf16.msra.mxu0 %v8270
    %8774 = vmatprep.subr.bf16.mxu0 %v8275
    %8775 = vmatpush1.bf16.msra.mxu0 %v8274
    %8776 = vmatprep.subr.bf16.mxu0 %v8279
    %8777 = vmatpush1.bf16.msra.mxu0 %v8278
    %8778 = vmatprep.subr.bf16.mxu0 %v8283
    %8779 = vmatpush1.bf16.msra.mxu0 %v8282
    %8780 = vmatprep.subr.bf16.mxu0 %v8287
    %8781 = vmatpush1.bf16.msra.mxu0 %v8286
    %8782 = vmatprep.subr.bf16.mxu0 %v8291
    %8783 = vmatpush1.bf16.msra.mxu0 %v8290
    %8784 = vmatprep.subr.bf16.mxu0 %v8295
    %8785 = vmatpush1.bf16.msra.mxu0 %v8294
    %8786 = vmatprep.subr.bf16.mxu0 %v8299
    %8787 = vmatpush1.bf16.msra.mxu0 %v8298
    %8788 = vmatprep.subr.bf16.mxu0 %v8303
    %8789 = vmatpush1.bf16.msra.mxu0 %v8302
    %8790 = vmatprep.subr.bf16.mxu0 %v8307
    %8791 = vmatpush1.bf16.msra.mxu0 %v8306
    %8792 = vmatprep.subr.bf16.mxu0 %v8311
    %8793 = vmatpush1.bf16.msra.mxu0 %v8310
    %8794 = vmatprep.mubr.bf16.mxu0 %v7219
    %8795 = vmatmul.mubr.bf16.gmra.mrb[0].mxu0 %v7218
    %v8796 = vpop.f32.mrb[0].mxu0
    %v8797 = vadd.f32 0.0, %v8796
    %v8798 = vpop.f32.mrb[0].mxu0
    %v8799 = vadd.f32 0.0, %v8798
    %v8800 = vpop.f32.mrb[0].mxu0
    %v8801 = vpop.f32.mrb[0].mxu0
    %8802 = vdwg.mxu0
    %8803 = vmatprep.subr.bf16.mxu0 %v8315
    %8804 = vmatpush1.bf16.msra.mxu0 %v8314
    %8805 = vmatprep.subr.bf16.mxu0 %v8319
    %8806 = vmatpush1.bf16.msra.mxu0 %v8318
    %8807 = vmatprep.subr.bf16.mxu0 %v8323
    %8808 = vmatpush1.bf16.msra.mxu0 %v8322
    %8809 = vmatprep.subr.bf16.mxu0 %v8327
    %8810 = vmatpush1.bf16.msra.mxu0 %v8326
    %8811 = vmatprep.subr.bf16.mxu0 %v8331
    %8812 = vmatpush1.bf16.msra.mxu0 %v8330
    %8813 = vmatprep.subr.bf16.mxu0 %v8335
    %8814 = vmatpush1.bf16.msra.mxu0 %v8334
    %8815 = vmatprep.subr.bf16.mxu0 %v8339
    %8816 = vmatpush1.bf16.msra.mxu0 %v8338
    %8817 = vmatprep.subr.bf16.mxu0 %v8343
    %8818 = vmatpush1.bf16.msra.mxu0 %v8342
    %8819 = vmatprep.subr.bf16.mxu0 %v8347
    %8820 = vmatpush1.bf16.msra.mxu0 %v8346
    %8821 = vmatprep.subr.bf16.mxu0 %v8351
    %8822 = vmatpush1.bf16.msra.mxu0 %v8350
    %8823 = vmatprep.subr.bf16.mxu0 %v8355
    %8824 = vmatpush1.bf16.msra.mxu0 %v8354
    %8825 = vmatprep.subr.bf16.mxu0 %v8359
    %8826 = vmatpush1.bf16.msra.mxu0 %v8358
    %8827 = vmatprep.subr.bf16.mxu0 %v8363
    %8828 = vmatpush1.bf16.msra.mxu0 %v8362
    %8829 = vmatprep.subr.bf16.mxu0 %v8367
    %8830 = vmatpush1.bf16.msra.mxu0 %v8366
    %8831 = vmatprep.subr.bf16.mxu0 %v8371
    %8832 = vmatpush1.bf16.msra.mxu0 %v8370
    %8833 = vmatprep.subr.bf16.mxu0 %v8375
    %8834 = vmatpush1.bf16.msra.mxu0 %v8374
    %8835 = vmatprep.mubr.bf16.mxu0 %v7221
    %8836 = vmatmul.mubr.bf16.gmra.mrb[0].mxu0 %v7220
    %v8837 = vpop.f32.mrb[0].mxu0
    %v8838 = vadd.f32 %v8797, %v8837
    %v8839 = vpop.f32.mrb[0].mxu0
    %v8840 = vadd.f32 %v8799, %v8839
    %v8841 = vpop.f32.mrb[0].mxu0
    %v8842 = vpop.f32.mrb[0].mxu0
    %8843 = vdwg.mxu0
    %8844 = vmatprep.subr.bf16.mxu0 %v8379
    %8845 = vmatpush1.bf16.msra.mxu0 %v8378
    %8846 = vmatprep.subr.bf16.mxu0 %v8383
    %8847 = vmatpush1.bf16.msra.mxu0 %v8382
    %8848 = vmatprep.subr.bf16.mxu0 %v8387
    %8849 = vmatpush1.bf16.msra.mxu0 %v8386
    %8850 = vmatprep.subr.bf16.mxu0 %v8391
    %8851 = vmatpush1.bf16.msra.mxu0 %v8390
    %8852 = vmatprep.subr.bf16.mxu0 %v8395
    %8853 = vmatpush1.bf16.msra.mxu0 %v8394
    %8854 = vmatprep.subr.bf16.mxu0 %v8399
    %8855 = vmatpush1.bf16.msra.mxu0 %v8398
    %8856 = vmatprep.subr.bf16.mxu0 %v8403
    %8857 = vmatpush1.bf16.msra.mxu0 %v8402
    %8858 = vmatprep.subr.bf16.mxu0 %v8407
    %8859 = vmatpush1.bf16.msra.mxu0 %v8406
    %8860 = vmatprep.subr.bf16.mxu0 %v8411
    %8861 = vmatpush1.bf16.msra.mxu0 %v8410
    %8862 = vmatprep.subr.bf16.mxu0 %v8415
    %8863 = vmatpush1.bf16.msra.mxu0 %v8414
    %8864 = vmatprep.subr.bf16.mxu0 %v8419
    %8865 = vmatpush1.bf16.msra.mxu0 %v8418
    %8866 = vmatprep.subr.bf16.mxu0 %v8423
    %8867 = vmatpush1.bf16.msra.mxu0 %v8422
    %8868 = vmatprep.subr.bf16.mxu0 %v8427
    %8869 = vmatpush1.bf16.msra.mxu0 %v8426
    %8870 = vmatprep.subr.bf16.mxu0 %v8431
    %8871 = vmatpush1.bf16.msra.mxu0 %v8430
    %8872 = vmatprep.subr.bf16.mxu0 %v8435
    %8873 = vmatpush1.bf16.msra.mxu0 %v8434
    %8874 = vmatprep.subr.bf16.mxu0 %v8439
    %8875 = vmatpush1.bf16.msra.mxu0 %v8438
    %8876 = vmatprep.mubr.bf16.mxu0 %v7223
    %8877 = vmatmul.mubr.bf16.gmra.mrb[0].mxu0 %v7222
    %v8878 = vpop.f32.mrb[0].mxu0
    %v8879 = vadd.f32 %v8838, %v8878
    %v8880 = vpop.f32.mrb[0].mxu0
    %v8881 = vadd.f32 %v8840, %v8880
    %v8882 = vpop.f32.mrb[0].mxu0
    %v8883 = vpop.f32.mrb[0].mxu0
    %8884 = vdwg.mxu0
    %8885 = vmatprep.subr.bf16.mxu0 %v8443
    %8886 = vmatpush1.bf16.msra.mxu0 %v8442
    %8887 = vmatprep.subr.bf16.mxu0 %v8447
    %8888 = vmatpush1.bf16.msra.mxu0 %v8446
    %8889 = vmatprep.subr.bf16.mxu0 %v8451
    %8890 = vmatpush1.bf16.msra.mxu0 %v8450
    %8891 = vmatprep.subr.bf16.mxu0 %v8455
    %8892 = vmatpush1.bf16.msra.mxu0 %v8454
    %8893 = vmatprep.subr.bf16.mxu0 %v8459
    %8894 = vmatpush1.bf16.msra.mxu0 %v8458
    %8895 = vmatprep.subr.bf16.mxu0 %v8463
    %8896 = vmatpush1.bf16.msra.mxu0 %v8462
    %8897 = vmatprep.subr.bf16.mxu0 %v8467
    %8898 = vmatpush1.bf16.msra.mxu0 %v8466
    %8899 = vmatprep.subr.bf16.mxu0 %v8471
    %8900 = vmatpush1.bf16.msra.mxu0 %v8470
    %8901 = vmatprep.subr.bf16.mxu0 %v8475
    %8902 = vmatpush1.bf16.msra.mxu0 %v8474
    %8903 = vmatprep.subr.bf16.mxu0 %v8479
    %8904 = vmatpush1.bf16.msra.mxu0 %v8478
    %8905 = vmatprep.subr.bf16.mxu0 %v8483
    %8906 = vmatpush1.bf16.msra.mxu0 %v8482
    %8907 = vmatprep.subr.bf16.mxu0 %v8487
    %8908 = vmatpush1.bf16.msra.mxu0 %v8486
    %8909 = vmatprep.subr.bf16.mxu0 %v8491
    %8910 = vmatpush1.bf16.msra.mxu0 %v8490
    %8911 = vmatprep.subr.bf16.mxu0 %v8495
    %8912 = vmatpush1.bf16.msra.mxu0 %v8494
    %8913 = vmatprep.subr.bf16.mxu0 %v8499
    %8914 = vmatpush1.bf16.msra.mxu0 %v8498
    %8915 = vmatprep.subr.bf16.mxu0 %v8503
    %8916 = vmatpush1.bf16.msra.mxu0 %v8502
    %8917 = vmatprep.mubr.bf16.mxu0 %v7225
    %8918 = vmatmul.mubr.bf16.gmra.mrb[0].mxu0 %v7224
    %v8919 = vpop.f32.mrb[0].mxu0
    %v8920 = vadd.f32 %v8879, %v8919
    %v8921 = vpop.f32.mrb[0].mxu0
    %v8922 = vadd.f32 %v8881, %v8921
    %v8923 = vpop.f32.mrb[0].mxu0
    %v8924 = vpop.f32.mrb[0].mxu0
    %8925 = vdwg.mxu0
    %8926 = vmatprep.subr.bf16.mxu0 %v8253
    %8927 = vmatpush1.bf16.msra.mxu0 %v8252
    %8928 = vmatprep.subr.bf16.mxu0 %v8257
    %8929 = vmatpush1.bf16.msra.mxu0 %v8256
    %8930 = vmatprep.subr.bf16.mxu0 %v8261
    %8931 = vmatpush1.bf16.msra.mxu0 %v8260
    %8932 = vmatprep.subr.bf16.mxu0 %v8265
    %8933 = vmatpush1.bf16.msra.mxu0 %v8264
    %8934 = vmatprep.subr.bf16.mxu0 %v8269
    %8935 = vmatpush1.bf16.msra.mxu0 %v8268
    %8936 = vmatprep.subr.bf16.mxu0 %v8273
    %8937 = vmatpush1.bf16.msra.mxu0 %v8272
    %8938 = vmatprep.subr.bf16.mxu0 %v8277
    %8939 = vmatpush1.bf16.msra.mxu0 %v8276
    %8940 = vmatprep.subr.bf16.mxu0 %v8281
    %8941 = vmatpush1.bf16.msra.mxu0 %v8280
    %8942 = vmatprep.subr.bf16.mxu0 %v8285
    %8943 = vmatpush1.bf16.msra.mxu0 %v8284
    %8944 = vmatprep.subr.bf16.mxu0 %v8289
    %8945 = vmatpush1.bf16.msra.mxu0 %v8288
    %8946 = vmatprep.subr.bf16.mxu0 %v8293
    %8947 = vmatpush1.bf16.msra.mxu0 %v8292
    %8948 = vmatprep.subr.bf16.mxu0 %v8297
    %8949 = vmatpush1.bf16.msra.mxu0 %v8296
    %8950 = vmatprep.subr.bf16.mxu0 %v8301
    %8951 = vmatpush1.bf16.msra.mxu0 %v8300
    %8952 = vmatprep.subr.bf16.mxu0 %v8305
    %8953 = vmatpush1.bf16.msra.mxu0 %v8304
    %8954 = vmatprep.subr.bf16.mxu0 %v8309
    %8955 = vmatpush1.bf16.msra.mxu0 %v8308
    %8956 = vmatprep.subr.bf16.mxu0 %v8313
    %8957 = vmatpush1.bf16.msra.mxu0 %v8312
    %8958 = vmatprep.mubr.bf16.mxu0 %v7219
    %8959 = vmatmul.mubr.bf16.gmra.mrb[0].mxu0 %v7218
    %v8960 = vpop.f32.mrb[0].mxu0
    %v8961 = vadd.f32 0.0, %v8960
    %v8962 = vpop.f32.mrb[0].mxu0
    %v8963 = vadd.f32 0.0, %v8962
    %v8964 = vpop.f32.mrb[0].mxu0
    %v8965 = vpop.f32.mrb[0].mxu0
    %8966 = vdwg.mxu0
    %8967 = vmatprep.subr.bf16.mxu0 %v8317
    %8968 = vmatpush1.bf16.msra.mxu0 %v8316
    %8969 = vmatprep.subr.bf16.mxu0 %v8321
    %8970 = vmatpush1.bf16.msra.mxu0 %v8320
    %8971 = vmatprep.subr.bf16.mxu0 %v8325
    %8972 = vmatpush1.bf16.msra.mxu0 %v8324
    %8973 = vmatprep.subr.bf16.mxu0 %v8329
    %8974 = vmatpush1.bf16.msra.mxu0 %v8328
    %8975 = vmatprep.subr.bf16.mxu0 %v8333
    %8976 = vmatpush1.bf16.msra.mxu0 %v8332
    %8977 = vmatprep.subr.bf16.mxu0 %v8337
    %8978 = vmatpush1.bf16.msra.mxu0 %v8336
    %8979 = vmatprep.subr.bf16.mxu0 %v8341
    %8980 = vmatpush1.bf16.msra.mxu0 %v8340
    %8981 = vmatprep.subr.bf16.mxu0 %v8345
    %8982 = vmatpush1.bf16.msra.mxu0 %v8344
    %8983 = vmatprep.subr.bf16.mxu0 %v8349
    %8984 = vmatpush1.bf16.msra.mxu0 %v8348
    %8985 = vmatprep.subr.bf16.mxu0 %v8353
    %8986 = vmatpush1.bf16.msra.mxu0 %v8352
    %8987 = vmatprep.subr.bf16.mxu0 %v8357
    %8988 = vmatpush1.bf16.msra.mxu0 %v8356
    %8989 = vmatprep.subr.bf16.mxu0 %v8361
    %8990 = vmatpush1.bf16.msra.mxu0 %v8360
    %8991 = vmatprep.subr.bf16.mxu0 %v8365
    %8992 = vmatpush1.bf16.msra.mxu0 %v8364
    %8993 = vmatprep.subr.bf16.mxu0 %v8369
    %8994 = vmatpush1.bf16.msra.mxu0 %v8368
    %8995 = vmatprep.subr.bf16.mxu0 %v8373
    %8996 = vmatpush1.bf16.msra.mxu0 %v8372
    %8997 = vmatprep.subr.bf16.mxu0 %v8377
    %8998 = vmatpush1.bf16.msra.mxu0 %v8376
    %8999 = vmatprep.mubr.bf16.mxu0 %v7221
    %9000 = vmatmul.mubr.bf16.gmra.mrb[0].mxu0 %v7220
    %v9001 = vpop.f32.mrb[0].mxu0
    %v9002 = vadd.f32 %v8961, %v9001
    %v9003 = vpop.f32.mrb[0].mxu0
    %v9004 = vadd.f32 %v8963, %v9003
    %v9005 = vpop.f32.mrb[0].mxu0
    %v9006 = vpop.f32.mrb[0].mxu0
    %9007 = vdwg.mxu0
    %9008 = vmatprep.subr.bf16.mxu0 %v8381
    %9009 = vmatpush1.bf16.msra.mxu0 %v8380
    %9010 = vmatprep.subr.bf16.mxu0 %v8385
    %9011 = vmatpush1.bf16.msra.mxu0 %v8384
    %9012 = vmatprep.subr.bf16.mxu0 %v8389
    %9013 = vmatpush1.bf16.msra.mxu0 %v8388
    %9014 = vmatprep.subr.bf16.mxu0 %v8393
    %9015 = vmatpush1.bf16.msra.mxu0 %v8392
    %9016 = vmatprep.subr.bf16.mxu0 %v8397
    %9017 = vmatpush1.bf16.msra.mxu0 %v8396
    %9018 = vmatprep.subr.bf16.mxu0 %v8401
    %9019 = vmatpush1.bf16.msra.mxu0 %v8400
    %9020 = vmatprep.subr.bf16.mxu0 %v8405
    %9021 = vmatpush1.bf16.msra.mxu0 %v8404
    %9022 = vmatprep.subr.bf16.mxu0 %v8409
    %9023 = vmatpush1.bf16.msra.mxu0 %v8408
    %9024 = vmatprep.subr.bf16.mxu0 %v8413
    %9025 = vmatpush1.bf16.msra.mxu0 %v8412
    %9026 = vmatprep.subr.bf16.mxu0 %v8417
    %9027 = vmatpush1.bf16.msra.mxu0 %v8416
    %9028 = vmatprep.subr.bf16.mxu0 %v8421
    %9029 = vmatpush1.bf16.msra.mxu0 %v8420
    %9030 = vmatprep.subr.bf16.mxu0 %v8425
    %9031 = vmatpush1.bf16.msra.mxu0 %v8424
    %9032 = vmatprep.subr.bf16.mxu0 %v8429
    %9033 = vmatpush1.bf16.msra.mxu0 %v8428
    %9034 = vmatprep.subr.bf16.mxu0 %v8433
    %9035 = vmatpush1.bf16.msra.mxu0 %v8432
    %9036 = vmatprep.subr.bf16.mxu0 %v8437
    %9037 = vmatpush1.bf16.msra.mxu0 %v8436
    %9038 = vmatprep.subr.bf16.mxu0 %v8441
    %9039 = vmatpush1.bf16.msra.mxu0 %v8440
    %9040 = vmatprep.mubr.bf16.mxu0 %v7223
    %9041 = vmatmul.mubr.bf16.gmra.mrb[0].mxu0 %v7222
    %v9042 = vpop.f32.mrb[0].mxu0
    %v9043 = vadd.f32 %v9002, %v9042
    %v9044 = vpop.f32.mrb[0].mxu0
    %v9045 = vadd.f32 %v9004, %v9044
    %v9046 = vpop.f32.mrb[0].mxu0
    %v9047 = vpop.f32.mrb[0].mxu0
    %9048 = vdwg.mxu0
    %9049 = vmatprep.subr.bf16.mxu0 %v8445
    %9050 = vmatpush1.bf16.msra.mxu0 %v8444
    %9051 = vmatprep.subr.bf16.mxu0 %v8449
    %9052 = vmatpush1.bf16.msra.mxu0 %v8448
    %9053 = vmatprep.subr.bf16.mxu0 %v8453
    %9054 = vmatpush1.bf16.msra.mxu0 %v8452
    %9055 = vmatprep.subr.bf16.mxu0 %v8457
    %9056 = vmatpush1.bf16.msra.mxu0 %v8456
    %9057 = vmatprep.subr.bf16.mxu0 %v8461
    %9058 = vmatpush1.bf16.msra.mxu0 %v8460
    %9059 = vmatprep.subr.bf16.mxu0 %v8465
    %9060 = vmatpush1.bf16.msra.mxu0 %v8464
    %9061 = vmatprep.subr.bf16.mxu0 %v8469
    %9062 = vmatpush1.bf16.msra.mxu0 %v8468
    %9063 = vmatprep.subr.bf16.mxu0 %v8473
    %9064 = vmatpush1.bf16.msra.mxu0 %v8472
    %9065 = vmatprep.subr.bf16.mxu0 %v8477
    %9066 = vmatpush1.bf16.msra.mxu0 %v8476
    %9067 = vmatprep.subr.bf16.mxu0 %v8481
    %9068 = vmatpush1.bf16.msra.mxu0 %v8480
    %9069 = vmatprep.subr.bf16.mxu0 %v8485
    %9070 = vmatpush1.bf16.msra.mxu0 %v8484
    %9071 = vmatprep.subr.bf16.mxu0 %v8489
    %9072 = vmatpush1.bf16.msra.mxu0 %v8488
    %9073 = vmatprep.subr.bf16.mxu0 %v8493
    %9074 = vmatpush1.bf16.msra.mxu0 %v8492
    %9075 = vmatprep.subr.bf16.mxu0 %v8497
    %9076 = vmatpush1.bf16.msra.mxu0 %v8496
    %9077 = vmatprep.subr.bf16.mxu0 %v8501
    %9078 = vmatpush1.bf16.msra.mxu0 %v8500
    %9079 = vmatprep.subr.bf16.mxu0 %v8505
    %9080 = vmatpush1.bf16.msra.mxu0 %v8504
    %9081 = vmatprep.mubr.bf16.mxu0 %v7225
    %9082 = vmatmul.mubr.bf16.gmra.mrb[0].mxu0 %v7224
    %v9083 = vpop.f32.mrb[0].mxu0
    %v9084 = vadd.f32 %v9043, %v9083
    %v9085 = vpop.f32.mrb[0].mxu0
    %v9086 = vadd.f32 %v9045, %v9085
    %v9087 = vpop.f32.mrb[0].mxu0
    %v9088 = vpop.f32.mrb[0].mxu0
    %9089 = vdwg.mxu0
    %v9090 = vmax.f32 %v8920, 0.0
    %v9091 = vmax.f32 %v8922, 0.0
    %v9092 = vmax.f32 %v9084, 0.0
    %v9093 = vmax.f32 %v9086, 0.0
    %v9094 = vpack.c.bf16 %v9090, %v9090
    %v9095 = vpack.c.bf16 %v9091, %v9091
    %v9096 = vpack.c.bf16 %v9092, %v9092
    %v9097 = vpack.c.bf16 %v9093, %v9093
    %v9098 = vld [vmem:[#allocation8] sm:$0xff]
    %v9099 = vld [vmem:[#allocation8 + $0x8] sm:$0xff]
    %v9100 = vld [vmem:[#allocation8 + $0x10] sm:$0xff]
    %v9101 = vld [vmem:[#allocation8 + $0x18] sm:$0xff]
    %v9102 = vld [vmem:[#allocation8 + $0x20] sm:$0xff]
    %v9103 = vld [vmem:[#allocation8 + $0x28] sm:$0xff]
    %v9104 = vld [vmem:[#allocation8 + $0x30] sm:$0xff]
    %v9105 = vld [vmem:[#allocation8 + $0x38] sm:$0xff]
    %v9106 = vld [vmem:[#allocation8 + $0x40] sm:$0xff]
    %v9107 = vld [vmem:[#allocation8 + $0x48] sm:$0xff]
    %v9108 = vld [vmem:[#allocation8 + $0x50] sm:$0xff]
    %v9109 = vld [vmem:[#allocation8 + $0x58] sm:$0xff]
    %v9110 = vld [vmem:[#allocation8 + $0x60] sm:$0xff]
    %v9111 = vld [vmem:[#allocation8 + $0x68] sm:$0xff]
    %v9112 = vld [vmem:[#allocation8 + $0x70] sm:$0xff]
    %v9113 = vld [vmem:[#allocation8 + $0x78] sm:$0xff]
    %v9114 = vld [vmem:[#allocation8 + $0x80] sm:$0xff]
    %v9115 = vld [vmem:[#allocation8 + $0x88] sm:$0xff]
    %v9116 = vld [vmem:[#allocation8 + $0x90] sm:$0xff]
    %v9117 = vld [vmem:[#allocation8 + $0x98] sm:$0xff]
    %v9118 = vld [vmem:[#allocation8 + $0xa0] sm:$0xff]
    %v9119 = vld [vmem:[#allocation8 + $0xa8] sm:$0xff]
    %v9120 = vld [vmem:[#allocation8 + $0xb0] sm:$0xff]
    %v9121 = vld [vmem:[#allocation8 + $0xb8] sm:$0xff]
    %v9122 = vld [vmem:[#allocation8 + $0xc0] sm:$0xff]
    %v9123 = vld [vmem:[#allocation8 + $0xc8] sm:$0xff]
    %v9124 = vld [vmem:[#allocation8 + $0xd0] sm:$0xff]
    %v9125 = vld [vmem:[#allocation8 + $0xd8] sm:$0xff]
    %v9126 = vld [vmem:[#allocation8 + $0xe0] sm:$0xff]
    %v9127 = vld [vmem:[#allocation8 + $0xe8] sm:$0xff]
    %v9128 = vld [vmem:[#allocation8 + $0xf0] sm:$0xff]
    %v9129 = vld [vmem:[#allocation8 + $0xf8] sm:$0xff]
    %v9130 = vld [vmem:[#allocation8 + $0x100] sm:$0xff]
    %v9131 = vld [vmem:[#allocation8 + $0x108] sm:$0xff]
    %v9132 = vld [vmem:[#allocation8 + $0x110] sm:$0xff]
    %v9133 = vld [vmem:[#allocation8 + $0x118] sm:$0xff]
    %v9134 = vld [vmem:[#allocation8 + $0x120] sm:$0xff]
    %v9135 = vld [vmem:[#allocation8 + $0x128] sm:$0xff]
    %v9136 = vld [vmem:[#allocation8 + $0x130] sm:$0xff]
    %v9137 = vld [vmem:[#allocation8 + $0x138] sm:$0xff]
    %v9138 = vld [vmem:[#allocation8 + $0x140] sm:$0xff]
    %v9139 = vld [vmem:[#allocation8 + $0x148] sm:$0xff]
    %v9140 = vld [vmem:[#allocation8 + $0x150] sm:$0xff]
    %v9141 = vld [vmem:[#allocation8 + $0x158] sm:$0xff]
    %v9142 = vld [vmem:[#allocation8 + $0x160] sm:$0xff]
    %v9143 = vld [vmem:[#allocation8 + $0x168] sm:$0xff]
    %v9144 = vld [vmem:[#allocation8 + $0x170] sm:$0xff]
    %v9145 = vld [vmem:[#allocation8 + $0x178] sm:$0xff]
    %v9146 = vld [vmem:[#allocation8 + $0x180] sm:$0xff]
    %v9147 = vld [vmem:[#allocation8 + $0x188] sm:$0xff]
    %v9148 = vld [vmem:[#allocation8 + $0x190] sm:$0xff]
    %v9149 = vld [vmem:[#allocation8 + $0x198] sm:$0xff]
    %v9150 = vld [vmem:[#allocation8 + $0x1a0] sm:$0xff]
    %v9151 = vld [vmem:[#allocation8 + $0x1a8] sm:$0xff]
    %v9152 = vld [vmem:[#allocation8 + $0x1b0] sm:$0xff]
    %v9153 = vld [vmem:[#allocation8 + $0x1b8] sm:$0xff]
    %v9154 = vld [vmem:[#allocation8 + $0x1c0] sm:$0xff]
    %v9155 = vld [vmem:[#allocation8 + $0x1c8] sm:$0xff]
    %v9156 = vld [vmem:[#allocation8 + $0x1d0] sm:$0xff]
    %v9157 = vld [vmem:[#allocation8 + $0x1d8] sm:$0xff]
    %v9158 = vld [vmem:[#allocation8 + $0x1e0] sm:$0xff]
    %v9159 = vld [vmem:[#allocation8 + $0x1e8] sm:$0xff]
    %v9160 = vld [vmem:[#allocation8 + $0x1f0] sm:$0xff]
    %v9161 = vld [vmem:[#allocation8 + $0x1f8] sm:$0xff]
    %v9226 = vunpack.c.l.b16 %v9098
    %v9227 = vunpack.c.h.b16 %v9098
    %v9228 = vunpack.c.l.b16 %v9099
    %v9229 = vunpack.c.h.b16 %v9099
    %v9230 = vunpack.c.l.b16 %v9100
    %v9231 = vunpack.c.h.b16 %v9100
    %v9232 = vunpack.c.l.b16 %v9101
    %v9233 = vunpack.c.h.b16 %v9101
    %v9234 = vunpack.c.l.b16 %v9102
    %v9235 = vunpack.c.h.b16 %v9102
    %v9236 = vunpack.c.l.b16 %v9103
    %v9237 = vunpack.c.h.b16 %v9103
    %v9238 = vunpack.c.l.b16 %v9104
    %v9239 = vunpack.c.h.b16 %v9104
    %v9240 = vunpack.c.l.b16 %v9105
    %v9241 = vunpack.c.h.b16 %v9105
    %v9242 = vunpack.c.l.b16 %v9106
    %v9243 = vunpack.c.h.b16 %v9106
    %v9244 = vunpack.c.l.b16 %v9107
    %v9245 = vunpack.c.h.b16 %v9107
    %v9246 = vunpack.c.l.b16 %v9108
    %v9247 = vunpack.c.h.b16 %v9108
    %v9248 = vunpack.c.l.b16 %v9109
    %v9249 = vunpack.c.h.b16 %v9109
    %v9250 = vunpack.c.l.b16 %v9110
    %v9251 = vunpack.c.h.b16 %v9110
    %v9252 = vunpack.c.l.b16 %v9111
    %v9253 = vunpack.c.h.b16 %v9111
    %v9254 = vunpack.c.l.b16 %v9112
    %v9255 = vunpack.c.h.b16 %v9112
    %v9256 = vunpack.c.l.b16 %v9113
    %v9257 = vunpack.c.h.b16 %v9113
    %v9258 = vunpack.c.l.b16 %v9114
    %v9259 = vunpack.c.h.b16 %v9114
    %v9260 = vunpack.c.l.b16 %v9115
    %v9261 = vunpack.c.h.b16 %v9115
    %v9262 = vunpack.c.l.b16 %v9116
    %v9263 = vunpack.c.h.b16 %v9116
    %v9264 = vunpack.c.l.b16 %v9117
    %v9265 = vunpack.c.h.b16 %v9117
    %v9266 = vunpack.c.l.b16 %v9118
    %v9267 = vunpack.c.h.b16 %v9118
    %v9268 = vunpack.c.l.b16 %v9119
    %v9269 = vunpack.c.h.b16 %v9119
    %v9270 = vunpack.c.l.b16 %v9120
    %v9271 = vunpack.c.h.b16 %v9120
    %v9272 = vunpack.c.l.b16 %v9121
    %v9273 = vunpack.c.h.b16 %v9121
    %v9274 = vunpack.c.l.b16 %v9122
    %v9275 = vunpack.c.h.b16 %v9122
    %v9276 = vunpack.c.l.b16 %v9123
    %v9277 = vunpack.c.h.b16 %v9123
    %v9278 = vunpack.c.l.b16 %v9124
    %v9279 = vunpack.c.h.b16 %v9124
    %v9280 = vunpack.c.l.b16 %v9125
    %v9281 = vunpack.c.h.b16 %v9125
    %v9282 = vunpack.c.l.b16 %v9126
    %v9283 = vunpack.c.h.b16 %v9126
    %v9284 = vunpack.c.l.b16 %v9127
    %v9285 = vunpack.c.h.b16 %v9127
    %v9286 = vunpack.c.l.b16 %v9128
    %v9287 = vunpack.c.h.b16 %v9128
    %v9288 = vunpack.c.l.b16 %v9129
    %v9289 = vunpack.c.h.b16 %v9129
    %v9290 = vunpack.c.l.b16 %v9130
    %v9291 = vunpack.c.h.b16 %v9130
    %v9292 = vunpack.c.l.b16 %v9131
    %v9293 = vunpack.c.h.b16 %v9131
    %v9294 = vunpack.c.l.b16 %v9132
    %v9295 = vunpack.c.h.b16 %v9132
    %v9296 = vunpack.c.l.b16 %v9133
    %v9297 = vunpack.c.h.b16 %v9133
    %v9298 = vunpack.c.l.b16 %v9134
    %v9299 = vunpack.c.h.b16 %v9134
    %v9300 = vunpack.c.l.b16 %v9135
    %v9301 = vunpack.c.h.b16 %v9135
    %v9302 = vunpack.c.l.b16 %v9136
    %v9303 = vunpack.c.h.b16 %v9136
    %v9304 = vunpack.c.l.b16 %v9137
    %v9305 = vunpack.c.h.b16 %v9137
    %v9306 = vunpack.c.l.b16 %v9138
    %v9307 = vunpack.c.h.b16 %v9138
    %v9308 = vunpack.c.l.b16 %v9139
    %v9309 = vunpack.c.h.b16 %v9139
    %v9310 = vunpack.c.l.b16 %v9140
    %v9311 = vunpack.c.h.b16 %v9140
    %v9312 = vunpack.c.l.b16 %v9141
    %v9313 = vunpack.c.h.b16 %v9141
    %v9314 = vunpack.c.l.b16 %v9142
    %v9315 = vunpack.c.h.b16 %v9142
    %v9316 = vunpack.c.l.b16 %v9143
    %v9317 = vunpack.c.h.b16 %v9143
    %v9318 = vunpack.c.l.b16 %v9144
    %v9319 = vunpack.c.h.b16 %v9144
    %v9320 = vunpack.c.l.b16 %v9145
    %v9321 = vunpack.c.h.b16 %v9145
    %v9322 = vunpack.c.l.b16 %v9146
    %v9323 = vunpack.c.h.b16 %v9146
    %v9324 = vunpack.c.l.b16 %v9147
    %v9325 = vunpack.c.h.b16 %v9147
    %v9326 = vunpack.c.l.b16 %v9148
    %v9327 = vunpack.c.h.b16 %v9148
    %v9328 = vunpack.c.l.b16 %v9149
    %v9329 = vunpack.c.h.b16 %v9149
    %v9330 = vunpack.c.l.b16 %v9150
    %v9331 = vunpack.c.h.b16 %v9150
    %v9332 = vunpack.c.l.b16 %v9151
    %v9333 = vunpack.c.h.b16 %v9151
    %v9334 = vunpack.c.l.b16 %v9152
    %v9335 = vunpack.c.h.b16 %v9152
    %v9336 = vunpack.c.l.b16 %v9153
    %v9337 = vunpack.c.h.b16 %v9153
    %v9338 = vunpack.c.l.b16 %v9154
    %v9339 = vunpack.c.h.b16 %v9154
    %v9340 = vunpack.c.l.b16 %v9155
    %v9341 = vunpack.c.h.b16 %v9155
    %v9342 = vunpack.c.l.b16 %v9156
    %v9343 = vunpack.c.h.b16 %v9156
    %v9344 = vunpack.c.l.b16 %v9157
    %v9345 = vunpack.c.h.b16 %v9157
    %v9346 = vunpack.c.l.b16 %v9158
    %v9347 = vunpack.c.h.b16 %v9158
    %v9348 = vunpack.c.l.b16 %v9159
    %v9349 = vunpack.c.h.b16 %v9159
    %v9350 = vunpack.c.l.b16 %v9160
    %v9351 = vunpack.c.h.b16 %v9160
    %v9352 = vunpack.c.l.b16 %v9161
    %v9353 = vunpack.c.h.b16 %v9161
    %v9354 = vpack.c.b16 %v9228, %v9226
    %v9355 = vpack.c.b16 %v9229, %v9227
    %v9356 = vpack.c.b16 %v9232, %v9230
    %v9357 = vpack.c.b16 %v9233, %v9231
    %v9358 = vpack.c.b16 %v9236, %v9234
    %v9359 = vpack.c.b16 %v9237, %v9235
    %v9360 = vpack.c.b16 %v9240, %v9238
    %v9361 = vpack.c.b16 %v9241, %v9239
    %v9362 = vpack.c.b16 %v9244, %v9242
    %v9363 = vpack.c.b16 %v9245, %v9243
    %v9364 = vpack.c.b16 %v9248, %v9246
    %v9365 = vpack.c.b16 %v9249, %v9247
    %v9366 = vpack.c.b16 %v9252, %v9250
    %v9367 = vpack.c.b16 %v9253, %v9251
    %v9368 = vpack.c.b16 %v9256, %v9254
    %v9369 = vpack.c.b16 %v9257, %v9255
    %v9370 = vpack.c.b16 %v9260, %v9258
    %v9371 = vpack.c.b16 %v9261, %v9259
    %v9372 = vpack.c.b16 %v9264, %v9262
    %v9373 = vpack.c.b16 %v9265, %v9263
    %v9374 = vpack.c.b16 %v9268, %v9266
    %v9375 = vpack.c.b16 %v9269, %v9267
    %v9376 = vpack.c.b16 %v9272, %v9270
    %v9377 = vpack.c.b16 %v9273, %v9271
    %v9378 = vpack.c.b16 %v9276, %v9274
    %v9379 = vpack.c.b16 %v9277, %v9275
    %v9380 = vpack.c.b16 %v9280, %v9278
    %v9381 = vpack.c.b16 %v9281, %v9279
    %v9382 = vpack.c.b16 %v9284, %v9282
    %v9383 = vpack.c.b16 %v9285, %v9283
    %v9384 = vpack.c.b16 %v9288, %v9286
    %v9385 = vpack.c.b16 %v9289, %v9287
    %v9386 = vpack.c.b16 %v9292, %v9290
    %v9387 = vpack.c.b16 %v9293, %v9291
    %v9388 = vpack.c.b16 %v9296, %v9294
    %v9389 = vpack.c.b16 %v9297, %v9295
    %v9390 = vpack.c.b16 %v9300, %v9298
    %v9391 = vpack.c.b16 %v9301, %v9299
    %v9392 = vpack.c.b16 %v9304, %v9302
    %v9393 = vpack.c.b16 %v9305, %v9303
    %v9394 = vpack.c.b16 %v9308, %v9306
    %v9395 = vpack.c.b16 %v9309, %v9307
    %v9396 = vpack.c.b16 %v9312, %v9310
    %v9397 = vpack.c.b16 %v9313, %v9311
    %v9398 = vpack.c.b16 %v9316, %v9314
    %v9399 = vpack.c.b16 %v9317, %v9315
    %v9400 = vpack.c.b16 %v9320, %v9318
    %v9401 = vpack.c.b16 %v9321, %v9319
    %v9402 = vpack.c.b16 %v9324, %v9322
    %v9403 = vpack.c.b16 %v9325, %v9323
    %v9404 = vpack.c.b16 %v9328, %v9326
    %v9405 = vpack.c.b16 %v9329, %v9327
    %v9406 = vpack.c.b16 %v9332, %v9330
    %v9407 = vpack.c.b16 %v9333, %v9331
    %v9408 = vpack.c.b16 %v9336, %v9334
    %v9409 = vpack.c.b16 %v9337, %v9335
    %v9410 = vpack.c.b16 %v9340, %v9338
    %v9411 = vpack.c.b16 %v9341, %v9339
    %v9412 = vpack.c.b16 %v9344, %v9342
    %v9413 = vpack.c.b16 %v9345, %v9343
    %v9414 = vpack.c.b16 %v9348, %v9346
    %v9415 = vpack.c.b16 %v9349, %v9347
    %v9416 = vpack.c.b16 %v9352, %v9350
    %v9417 = vpack.c.b16 %v9353, %v9351
    %9482 = vmatprep.subr.bf16.mxu0 %v9355
    %9483 = vmatpush1.bf16.msra.mxu0 %v9354
    %9484 = vmatprep.subr.bf16.mxu0 %v9357
    %9485 = vmatpush1.bf16.msra.mxu0 %v9356
    %9486 = vmatprep.subr.bf16.mxu0 %v9359
    %9487 = vmatpush1.bf16.msra.mxu0 %v9358
    %9488 = vmatprep.subr.bf16.mxu0 %v9361
    %9489 = vmatpush1.bf16.msra.mxu0 %v9360
    %9490 = vmatprep.subr.bf16.mxu0 %v9363
    %9491 = vmatpush1.bf16.msra.mxu0 %v9362
    %9492 = vmatprep.subr.bf16.mxu0 %v9365
    %9493 = vmatpush1.bf16.msra.mxu0 %v9364
    %9494 = vmatprep.subr.bf16.mxu0 %v9367
    %9495 = vmatpush1.bf16.msra.mxu0 %v9366
    %9496 = vmatprep.subr.bf16.mxu0 %v9369
    %9497 = vmatpush1.bf16.msra.mxu0 %v9368
    %9498 = vmatprep.subr.bf16.mxu0 %v9371
    %9499 = vmatpush1.bf16.msra.mxu0 %v9370
    %9500 = vmatprep.subr.bf16.mxu0 %v9373
    %9501 = vmatpush1.bf16.msra.mxu0 %v9372
    %9502 = vmatprep.subr.bf16.mxu0 %v9375
    %9503 = vmatpush1.bf16.msra.mxu0 %v9374
    %9504 = vmatprep.subr.bf16.mxu0 %v9377
    %9505 = vmatpush1.bf16.msra.mxu0 %v9376
    %9506 = vmatprep.subr.bf16.mxu0 %v9379
    %9507 = vmatpush1.bf16.msra.mxu0 %v9378
    %9508 = vmatprep.subr.bf16.mxu0 %v9381
    %9509 = vmatpush1.bf16.msra.mxu0 %v9380
    %9510 = vmatprep.subr.bf16.mxu0 %v9383
    %9511 = vmatpush1.bf16.msra.mxu0 %v9382
    %9512 = vmatprep.subr.bf16.mxu0 %v9385
    %9513 = vmatpush1.bf16.msra.mxu0 %v9384
    %9514 = vmatprep.mubr.bf16.mxu0 %v9095
    %9515 = vmatmul.mubr.bf16.gmra.mrb[0].mxu0 %v9094
    %v9516 = vpop.f32.mrb[0].mxu0
    %v9517 = vadd.f32 0.0, %v9516
    %v9518 = vpop.f32.mrb[0].mxu0
    %v9519 = vadd.f32 0.0, %v9518
    %v9520 = vpop.f32.mrb[0].mxu0
    %v9521 = vpop.f32.mrb[0].mxu0
    %9522 = vdwg.mxu0
    %9523 = vmatprep.subr.bf16.mxu0 %v9387
    %9524 = vmatpush1.bf16.msra.mxu0 %v9386
    %9525 = vmatprep.subr.bf16.mxu0 %v9389
    %9526 = vmatpush1.bf16.msra.mxu0 %v9388
    %9527 = vmatprep.subr.bf16.mxu0 %v9391
    %9528 = vmatpush1.bf16.msra.mxu0 %v9390
    %9529 = vmatprep.subr.bf16.mxu0 %v9393
    %9530 = vmatpush1.bf16.msra.mxu0 %v9392
    %9531 = vmatprep.subr.bf16.mxu0 %v9395
    %9532 = vmatpush1.bf16.msra.mxu0 %v9394
    %9533 = vmatprep.subr.bf16.mxu0 %v9397
    %9534 = vmatpush1.bf16.msra.mxu0 %v9396
    %9535 = vmatprep.subr.bf16.mxu0 %v9399
    %9536 = vmatpush1.bf16.msra.mxu0 %v9398
    %9537 = vmatprep.subr.bf16.mxu0 %v9401
    %9538 = vmatpush1.bf16.msra.mxu0 %v9400
    %9539 = vmatprep.subr.bf16.mxu0 %v9403
    %9540 = vmatpush1.bf16.msra.mxu0 %v9402
    %9541 = vmatprep.subr.bf16.mxu0 %v9405
    %9542 = vmatpush1.bf16.msra.mxu0 %v9404
    %9543 = vmatprep.subr.bf16.mxu0 %v9407
    %9544 = vmatpush1.bf16.msra.mxu0 %v9406
    %9545 = vmatprep.subr.bf16.mxu0 %v9409
    %9546 = vmatpush1.bf16.msra.mxu0 %v9408
    %9547 = vmatprep.subr.bf16.mxu0 %v9411
    %9548 = vmatpush1.bf16.msra.mxu0 %v9410
    %9549 = vmatprep.subr.bf16.mxu0 %v9413
    %9550 = vmatpush1.bf16.msra.mxu0 %v9412
    %9551 = vmatprep.subr.bf16.mxu0 %v9415
    %9552 = vmatpush1.bf16.msra.mxu0 %v9414
    %9553 = vmatprep.subr.bf16.mxu0 %v9417
    %9554 = vmatpush1.bf16.msra.mxu0 %v9416
    %9555 = vmatprep.mubr.bf16.mxu0 %v9097
    %9556 = vmatmul.mubr.bf16.gmra.mrb[0].mxu0 %v9096
    %v9557 = vpop.f32.mrb[0].mxu0
    %v9558 = vadd.f32 %v9517, %v9557
    %v9559 = vpop.f32.mrb[0].mxu0
    %v9560 = vadd.f32 %v9519, %v9559
    %v9561 = vpop.f32.mrb[0].mxu0
    %v9562 = vpop.f32.mrb[0].mxu0
    %9563 = vdwg.mxu0
    %v9564 = vmax.f32 %v9558, 0.0
    %v9565 = vmax.f32 %v9560, 0.0
    %v9566 = vpack.c.bf16 %v9564, %v9564
    %v9567 = vpack.c.bf16 %v9565, %v9565
    %v9568 = vld [vmem:[#allocation10] sm:$0xf]
    %v9569 = vld [vmem:[#allocation10 + $0x4] sm:$0xf]
    %v9570 = vld [vmem:[#allocation10 + $0x8] sm:$0xf]
    %v9571 = vld [vmem:[#allocation10 + $0xc] sm:$0xf]
    %v9572 = vld [vmem:[#allocation10 + $0x10] sm:$0xf]
    %v9573 = vld [vmem:[#allocation10 + $0x14] sm:$0xf]
    %v9574 = vld [vmem:[#allocation10 + $0x18] sm:$0xf]
    %v9575 = vld [vmem:[#allocation10 + $0x1c] sm:$0xf]
    %v9576 = vld [vmem:[#allocation10 + $0x20] sm:$0xf]
    %v9577 = vld [vmem:[#allocation10 + $0x24] sm:$0xf]
    %v9578 = vld [vmem:[#allocation10 + $0x28] sm:$0xf]
    %v9579 = vld [vmem:[#allocation10 + $0x2c] sm:$0xf]
    %v9580 = vld [vmem:[#allocation10 + $0x30] sm:$0xf]
    %v9581 = vld [vmem:[#allocation10 + $0x34] sm:$0xf]
    %v9582 = vld [vmem:[#allocation10 + $0x38] sm:$0xf]
    %v9583 = vld [vmem:[#allocation10 + $0x3c] sm:$0xf]
    %v9584 = vld [vmem:[#allocation10 + $0x40] sm:$0xf]
    %v9585 = vld [vmem:[#allocation10 + $0x44] sm:$0xf]
    %v9586 = vld [vmem:[#allocation10 + $0x48] sm:$0xf]
    %v9587 = vld [vmem:[#allocation10 + $0x4c] sm:$0xf]
    %v9588 = vld [vmem:[#allocation10 + $0x50] sm:$0xf]
    %v9589 = vld [vmem:[#allocation10 + $0x54] sm:$0xf]
    %v9590 = vld [vmem:[#allocation10 + $0x58] sm:$0xf]
    %v9591 = vld [vmem:[#allocation10 + $0x5c] sm:$0xf]
    %v9592 = vld [vmem:[#allocation10 + $0x60] sm:$0xf]
    %v9593 = vld [vmem:[#allocation10 + $0x64] sm:$0xf]
    %v9594 = vld [vmem:[#allocation10 + $0x68] sm:$0xf]
    %v9595 = vld [vmem:[#allocation10 + $0x6c] sm:$0xf]
    %v9596 = vld [vmem:[#allocation10 + $0x70] sm:$0xf]
    %v9597 = vld [vmem:[#allocation10 + $0x74] sm:$0xf]
    %v9598 = vld [vmem:[#allocation10 + $0x78] sm:$0xf]
    %v9599 = vld [vmem:[#allocation10 + $0x7c] sm:$0xf]
    %v9632 = vunpack.c.l.b16 %v9568
    %v9633 = vunpack.c.l.b16 %v9569
    %v9634 = vunpack.c.l.b16 %v9570
    %v9635 = vunpack.c.l.b16 %v9571
    %v9636 = vunpack.c.l.b16 %v9572
    %v9637 = vunpack.c.l.b16 %v9573
    %v9638 = vunpack.c.l.b16 %v9574
    %v9639 = vunpack.c.l.b16 %v9575
    %v9640 = vunpack.c.l.b16 %v9576
    %v9641 = vunpack.c.l.b16 %v9577
    %v9642 = vunpack.c.l.b16 %v9578
    %v9643 = vunpack.c.l.b16 %v9579
    %v9644 = vunpack.c.l.b16 %v9580
    %v9645 = vunpack.c.l.b16 %v9581
    %v9646 = vunpack.c.l.b16 %v9582
    %v9647 = vunpack.c.l.b16 %v9583
    %v9648 = vunpack.c.l.b16 %v9584
    %v9649 = vunpack.c.l.b16 %v9585
    %v9650 = vunpack.c.l.b16 %v9586
    %v9651 = vunpack.c.l.b16 %v9587
    %v9652 = vunpack.c.l.b16 %v9588
    %v9653 = vunpack.c.l.b16 %v9589
    %v9654 = vunpack.c.l.b16 %v9590
    %v9655 = vunpack.c.l.b16 %v9591
    %v9656 = vunpack.c.l.b16 %v9592
    %v9657 = vunpack.c.l.b16 %v9593
    %v9658 = vunpack.c.l.b16 %v9594
    %v9659 = vunpack.c.l.b16 %v9595
    %v9660 = vunpack.c.l.b16 %v9596
    %v9661 = vunpack.c.l.b16 %v9597
    %v9662 = vunpack.c.l.b16 %v9598
    %v9663 = vunpack.c.l.b16 %v9599
    %v9664 = vpack.c.b16 %v9633, %v9632
    %v9665 = vpack.c.b16 %v9635, %v9634
    %v9666 = vpack.c.b16 %v9637, %v9636
    %v9667 = vpack.c.b16 %v9639, %v9638
    %v9668 = vpack.c.b16 %v9641, %v9640
    %v9669 = vpack.c.b16 %v9643, %v9642
    %v9670 = vpack.c.b16 %v9645, %v9644
    %v9671 = vpack.c.b16 %v9647, %v9646
    %v9672 = vpack.c.b16 %v9649, %v9648
    %v9673 = vpack.c.b16 %v9651, %v9650
    %v9674 = vpack.c.b16 %v9653, %v9652
    %v9675 = vpack.c.b16 %v9655, %v9654
    %v9676 = vpack.c.b16 %v9657, %v9656
    %v9677 = vpack.c.b16 %v9659, %v9658
    %v9678 = vpack.c.b16 %v9661, %v9660
    %v9679 = vpack.c.b16 %v9663, %v9662
    %9696 = vmatprep.subr.bf16.mxu0 0
    %9697 = vmatpush1.bf16.msra.mxu0 %v9664
    %9698 = vmatprep.subr.bf16.mxu0 0
    %9699 = vmatpush1.bf16.msra.mxu0 %v9665
    %9700 = vmatprep.subr.bf16.mxu0 0
    %9701 = vmatpush1.bf16.msra.mxu0 %v9666
    %9702 = vmatprep.subr.bf16.mxu0 0
    %9703 = vmatpush1.bf16.msra.mxu0 %v9667
    %9704 = vmatprep.subr.bf16.mxu0 0
    %9705 = vmatpush1.bf16.msra.mxu0 %v9668
    %9706 = vmatprep.subr.bf16.mxu0 0
    %9707 = vmatpush1.bf16.msra.mxu0 %v9669
    %9708 = vmatprep.subr.bf16.mxu0 0
    %9709 = vmatpush1.bf16.msra.mxu0 %v9670
    %9710 = vmatprep.subr.bf16.mxu0 0
    %9711 = vmatpush1.bf16.msra.mxu0 %v9671
    %9712 = vmatprep.subr.bf16.mxu0 0
    %9713 = vmatpush1.bf16.msra.mxu0 %v9672
    %9714 = vmatprep.subr.bf16.mxu0 0
    %9715 = vmatpush1.bf16.msra.mxu0 %v9673
    %9716 = vmatprep.subr.bf16.mxu0 0
    %9717 = vmatpush1.bf16.msra.mxu0 %v9674
    %9718 = vmatprep.subr.bf16.mxu0 0
    %9719 = vmatpush1.bf16.msra.mxu0 %v9675
    %9720 = vmatprep.subr.bf16.mxu0 0
    %9721 = vmatpush1.bf16.msra.mxu0 %v9676
    %9722 = vmatprep.subr.bf16.mxu0 0
    %9723 = vmatpush1.bf16.msra.mxu0 %v9677
    %9724 = vmatprep.subr.bf16.mxu0 0
    %9725 = vmatpush1.bf16.msra.mxu0 %v9678
    %9726 = vmatprep.subr.bf16.mxu0 0
    %9727 = vmatpush1.bf16.msra.mxu0 %v9679
    %9728 = vmatprep.mubr.bf16.mxu0 %v9567
    %9729 = vmatmul.mubr.bf16.gmra.mrb[0].mxu0 %v9566
    %v9730 = vpop.f32.mrb[0].mxu0
    %v9731 = vadd.f32 0.0, %v9730
    %v9732 = vpop.f32.mrb[0].mxu0
    %v9733 = vpop.f32.mrb[0].mxu0
    %v9734 = vpop.f32.mrb[0].mxu0
    %9735 = vdwg.mxu0
    %v9736 = vmax.f32 %v9731, 0.0
    %9737 = vst [vmem:[#allocation11] sm:$0xff] %v9736
    // Predicated region
    $region46: #{mlp_forward.1} parent=1 // pred_check
      _
    $region47: #{mlp_forward.1} parent=1 // pred_check_branch
      %9739 = sbr.rel (0) target = $region49
    $region48: #{mlp_forward.1} parent=1 // pred_region
      %s9741 = ssub.s32 128, 128
      %9742 = vsyncadd [#allocation4], %s9741
      %s9744 = sshll.u32 [#allocation11], 4
      %s9745 = int_to_ptr.vmem [resolvable:$true] %s9744
      %9747 = dma.vmem_to_hbm [thread:$0]  %s9745, 128, %s6, [#allocation4]
    $region49: #{mlp_forward.1} parent=1 // pred_fallthru
      _
    // Predicated region
    $region50: #{mlp_forward.1} parent=1 // pred_check
      _
    $region51: #{mlp_forward.1} parent=1 // pred_check_branch
      %9749 = sbr.rel (0) target = $region53
    $region52: #{mlp_forward.1} parent=1 // pred_region
      %9750 = dma.done [#allocation4], 128
    $region53: #{mlp_forward.1} parent=1 // pred_fallthru
      _
    %9751 = vsyncpa [#allocation3], 1
    %9752 = vsyncpa [#allocation6], 1
    %9753 = vsyncpa [#allocation9], 1
    %9754 = vsyncpa [#allocation4], 1

</llo_original>
